<compile_context>
chip_gen: v7x
topology: tpu7x:2x2x1
jax: 0.10.0
libtpu: 0.0.40
codegen_flags: <defaults>
</compile_context>

<pallas_src>
from functools import partial

import jax
import jax.numpy as jnp
from jax.experimental import pallas as pl
from jax.experimental.pallas import tpu as pltpu

C = 120          # channels (fixed by the module)
CP = 128         # lane-padded channels
G = 5            # groups
CG = C // G      # 24 channels per group
KH = KW = 3
EPS = 1e-5
HALO = 72        # total zero-apron rows around the flattened padded grid


# ----------------------------------------------------------------------------
# Single fused kernel: BN batch-stats -> folded affine + ReLU + 3x3 grouped
# conv expressed as 9 row-shifted matmuls against a block-diagonal weight.
# ----------------------------------------------------------------------------
def _fused_bn_relu_gconv_kernel(x_ref, gamma_ref, beta_ref, w_ref, o_ref, *,
                                count, tr, r_valid, hp, wp, h_lim, w_lim,
                                a_pre):
    # --- BN batch statistics over the whole (resident) input -----------------
    # Padding rows / channels are exactly zero, so they do not perturb the
    # sums; divide by the true element count N*H*W.
    xf = x_ref[...]                                         # (R + HALO, 128) f32
    inv_n = 1.0 / count
    mean = jnp.sum(xf, axis=0, keepdims=True) * inv_n
    # One-pass E[x^2] - E[x]^2 (fine for activation-scale data; a centered
    # second pass would be safer if |mean| >> std).
    var = jnp.sum(xf * xf, axis=0, keepdims=True) * inv_n - mean * mean
    scale = gamma_ref[...] * jax.lax.rsqrt(var + EPS)       # (1, 128)
    shift = beta_ref[...] - mean * scale                    # (1, 128)

    # --- halo window of padded-grid rows feeding this output tile ------------
    t = pl.program_id(0)
    s0 = pl.multiple_of(t * tr, 8)                          # aligned window start
    win = tr + HALO
    xw = x_ref[pl.ds(s0, win), :]                           # (win, 128) f32

    # Interior mask from the global flattened-grid row index (no mask input
    # stream): spatial padding / apron rows must contribute exactly 0 to the
    # conv, while relu(shift) could be > 0.
    r = s0 + jax.lax.broadcasted_iota(jnp.int32, (win, 1), 0) - a_pre
    rc = jnp.maximum(r, 0)
    wcol = rc & (wp - 1)                                    # wp = 32 (pow2)
    hrow = (rc >> (wp.bit_length() - 1)) & (hp - 1)         # hp = 32 (pow2)
    valid = ((r >= 0) & (r < r_valid)
             & (hrow >= 1) & (hrow <= h_lim)
             & (wcol >= 1) & (wcol <= w_lim))

    # Folded BN affine + ReLU, padding forced to exactly zero.
    y = jnp.maximum(xw * scale + shift, 0.0)
    y = jnp.where(valid, y, 0.0)                            # (win, 128) f32

    # Three kw-pre-shifted bf16 copies; the kh*32 row offsets below are then
    # sublane-aligned static views.
    ys = [y[kw:kw + tr + 2 * wp, :].astype(jnp.bfloat16) for kw in range(KW)]

    # 9 taps = 9 row-shifted matmuls against the block-diagonal weight,
    # accumulated in registers; single store to the output block.
    acc = None
    for kh in range(KH):
        for kw in range(KW):
            src = ys[kw][kh * wp: kh * wp + tr, :]          # aligned view
            contrib = jnp.dot(src, w_ref[kh * KW + kw],
                              preferred_element_type=jnp.float32)
            acc = contrib if acc is None else acc + contrib
    o_ref[...] = acc


# ----------------------------------------------------------------------------
# Wrapper
# ----------------------------------------------------------------------------
@partial(jax.jit, static_argnames=("n_tiles",))
def fused_bn_relu_gconv(x_nchw, conv_w, gamma, beta, *, n_tiles=2):
    """x_nchw: (N, 120, H, W); conv_w: (120, 24, 3, 3); gamma/beta: (120,).

    n_tiles=2 (default) gives one big tile per TensorCore on v7x; use
    n_tiles=1 on single-TC parts (v5e/v6e) to shave one grid step.
    """
    N, Cin, H, W = x_nchw.shape
    assert Cin == C and H <= 30 and W <= 30      # 32x32 padded grid must cover
    HP = WP = 32                                 # pow2 padded spatial grid
    R = N * HP * WP                              # flattened padded-grid rows
    TR = R // n_tiles
    assert TR * n_tiles == R and TR % 8 == 0
    A_PRE = WP + 1                               # 33 apron rows before row 0
    A_POST = HALO - A_PRE                        # 39 apron rows after the end

    # NCHW -> zero-padded channels-last (32x32 spatial, 128 channels),
    # flattened to (R, 128) rows, plus the zero halo apron.
    x_nhwc = jnp.transpose(x_nchw, (0, 2, 3, 1)).astype(jnp.float32)
    x_pad = jnp.pad(x_nhwc,
                    ((0, 0), (1, HP - 1 - H), (1, WP - 1 - W), (0, CP - C)))
    x_big = jnp.pad(x_pad.reshape(R, CP), ((A_PRE, A_POST), (0, 0)))

    gamma_p = jnp.pad(gamma.astype(jnp.float32), (0, CP - C)).reshape(1, CP)
    beta_p = jnp.pad(beta.astype(jnp.float32), (0, CP - C)).reshape(1, CP)

    # Block-diagonal conv weights: (Cout, Cin/g, 3, 3) -> (9, 128, 128) bf16.
    wg = conv_w.astype(jnp.float32).reshape(G, CG, CG, KH, KW)   # (g, co, ci, kh, kw)
    wt = jnp.transpose(wg, (3, 4, 0, 2, 1)).reshape(KH * KW, G, CG, CG)  # (tap,g,ci,co)
    w_blk = jnp.einsum("tgio,gh->tgiho", wt, jnp.eye(G, dtype=wt.dtype))
    w_blk = w_blk.reshape(KH * KW, C, C)
    w_blk = jnp.pad(w_blk, ((0, 0), (0, CP - C), (0, CP - C))).astype(jnp.bfloat16)

    out_flat = pl.pallas_call(
        partial(_fused_bn_relu_gconv_kernel, count=float(N * H * W), tr=TR,
                r_valid=R, hp=HP, wp=WP, h_lim=H, w_lim=W, a_pre=A_PRE),
        out_shape=jax.ShapeDtypeStruct((R, CP), jnp.float32),
        grid_spec=pltpu.PrefetchScalarGridSpec(
            num_scalar_prefetch=0,
            grid=(n_tiles,),
            in_specs=[
                pl.BlockSpec((R + HALO, CP), lambda t: (0, 0)),   # resident input
                pl.BlockSpec((1, CP), lambda t: (0, 0)),
                pl.BlockSpec((1, CP), lambda t: (0, 0)),
                pl.BlockSpec((KH * KW, CP, CP), lambda t: (0, 0, 0)),
            ],
            out_specs=pl.BlockSpec((TR, CP), lambda t: (t, 0)),
        ),
        compiler_params=pltpu.CompilerParams(
            dimension_semantics=("parallel",),
            vmem_limit_bytes=32 * 1024 * 1024),
    )(x_big, gamma_p, beta_p, w_blk)

    # Strip padded channels and extract the interior of the padded grid; NCHW.
    out = out_flat[:, :C].reshape(N, HP, WP, C)[:, 1:H + 1, 1:W + 1, :]
    return jnp.transpose(out, (0, 3, 1, 2))


# ----------------------------------------------------------------------------
# Pure-JAX reference matching PyTorch training-mode forward
# ----------------------------------------------------------------------------
def reference(x, conv_w, gamma, beta):
    mean = x.mean(axis=(0, 2, 3), keepdims=True)
    var = ((x - mean) ** 2).mean(axis=(0, 2, 3), keepdims=True)
    y = (x - mean) / jnp.sqrt(var + EPS)
    y = y * gamma.reshape(1, C, 1, 1) + beta.reshape(1, C, 1, 1)
    y = jnp.maximum(y, 0.0)
    return jax.lax.conv_general_dilated(
        y, conv_w, window_strides=(1, 1), padding=((1, 1), (1, 1)),
        dimension_numbers=("NCHW", "OIHW", "NCHW"), feature_group_count=G)


if __name__ == "__main__":
    key = jax.random.PRNGKey(0)
    k1, k2, k3, k4 = jax.random.split(key, 4)

    # Shapes from the module spec: x72 = randn(1, 120, 28, 28)
    N, H, W = 1, 28, 28
    x = jax.random.normal(k1, (N, C, H, W), jnp.float32)
    conv_w = jax.random.normal(k2, (C, CG, KH, KW), jnp.float32) * 0.05
    gamma = 1.0 + 0.1 * jax.random.normal(k3, (C,), jnp.float32)
    beta = 0.1 * jax.random.normal(k4, (C,), jnp.float32)

    out = fused_bn_relu_gconv(x, conv_w, gamma, beta)
    jax.block_until_ready(out)

    ref = reference(x, conv_w, gamma, beta)
    assert out.shape == (N, C, H, W), out.shape
    max_err = float(jnp.max(jnp.abs(out - ref)))
    # bf16 MXU inputs with f32 accumulation -> slightly relaxed tolerance
    assert max_err < 3e-2, f"max abs err {max_err}"

    print("KERNEL_OK")
</pallas_src>

<mosaic_0001>
module attributes {stable_mosaic.version = 11 : i64} {
  func.func @_fused_bn_relu_gconv_kernel(%arg0: i32, %arg1: memref<1096x128xf32, #tpu.memory_space<vmem>>, %arg2: memref<1x128xf32, #tpu.memory_space<vmem>>, %arg3: memref<1x128xf32, #tpu.memory_space<vmem>>, %arg4: memref<9x128x128xbf16, #tpu.memory_space<vmem>>, %arg5: memref<512x128xf32, #tpu.memory_space<vmem>>) attributes {dimension_semantics = [#tpu.dimension_semantics<parallel>], iteration_bounds = array<i64: 2>, scalar_prefetch = 0 : i64, scratch_operands = 0 : i64, tpu.core_type = #tpu.core_type<tc>, window_params = [{pipeline_mode = #tpu.pipeline_mode<synchronous>, transform_indices = @transform_0, window_bounds = array<i64: 1096, 128>}, {pipeline_mode = #tpu.pipeline_mode<synchronous>, transform_indices = @transform_1, window_bounds = array<i64: 1, 128>}, {pipeline_mode = #tpu.pipeline_mode<synchronous>, transform_indices = @transform_2, window_bounds = array<i64: 1, 128>}, {pipeline_mode = #tpu.pipeline_mode<synchronous>, transform_indices = @transform_3, window_bounds = array<i64: 9, 128, 128>}, {transform_indices = @transform_4, window_bounds = array<i64: 512, 128>}]} {
    %c0 = arith.constant 0 : index
    %c0_0 = arith.constant 0 : index
    %0 = vector.load %arg1[%c0, %c0_0] : memref<1096x128xf32, #tpu.memory_space<vmem>>, vector<1096x128xf32>
    %cst = arith.constant dense<0.000000e+00> : vector<128xf32>
    %1 = vector.multi_reduction <add>, %0, %cst [0] : vector<1096x128xf32> to vector<128xf32>
    %2 = vector.shape_cast %1 : vector<128xf32> to vector<1x128xf32>
    %cst_1 = arith.constant 0.00127551018 : f32
    %3 = vector.broadcast %cst_1 : f32 to vector<1x128xf32>
    %4 = arith.mulf %2, %3 : vector<1x128xf32>
    %5 = arith.mulf %0, %0 : vector<1096x128xf32>
    %cst_2 = arith.constant dense<0.000000e+00> : vector<128xf32>
    %6 = vector.multi_reduction <add>, %5, %cst_2 [0] : vector<1096x128xf32> to vector<128xf32>
    %7 = vector.shape_cast %6 : vector<128xf32> to vector<1x128xf32>
    %cst_3 = arith.constant 0.00127551018 : f32
    %8 = vector.broadcast %cst_3 : f32 to vector<1x128xf32>
    %9 = arith.mulf %7, %8 : vector<1x128xf32>
    %10 = arith.mulf %4, %4 : vector<1x128xf32>
    %11 = arith.subf %9, %10 : vector<1x128xf32>
    %c0_4 = arith.constant 0 : index
    %c0_5 = arith.constant 0 : index
    %12 = vector.load %arg2[%c0_4, %c0_5] : memref<1x128xf32, #tpu.memory_space<vmem>>, vector<1x128xf32>
    %cst_6 = arith.constant 9.99999974E-6 : f32
    %13 = vector.broadcast %cst_6 : f32 to vector<1x128xf32>
    %14 = arith.addf %11, %13 : vector<1x128xf32>
    %15 = math.rsqrt %14 : vector<1x128xf32>
    %16 = arith.mulf %12, %15 : vector<1x128xf32>
    %c0_7 = arith.constant 0 : index
    %c0_8 = arith.constant 0 : index
    %17 = vector.load %arg3[%c0_7, %c0_8] : memref<1x128xf32, #tpu.memory_space<vmem>>, vector<1x128xf32>
    %18 = arith.mulf %4, %16 : vector<1x128xf32>
    %19 = arith.subf %17, %18 : vector<1x128xf32>
    %c512_i32 = arith.constant 512 : i32
    %20 = arith.muli %arg0, %c512_i32 : i32
    %21 = tpu.assume_multiple %20, 8 : i32
    %22 = arith.index_cast %21 : i32 to index
    %c0_9 = arith.constant 0 : index
    %23 = vector.load %arg1[%22, %c0_9] : memref<1096x128xf32, #tpu.memory_space<vmem>>, vector<584x128xf32>
    %24 = tpu.iota {dimensions = array<i32: 0>} : vector<584x1xi32>
    %25 = vector.broadcast %21 : i32 to vector<584x1xi32>
    %26 = arith.addi %25, %24 : vector<584x1xi32>
    %c33_i32 = arith.constant 33 : i32
    %27 = vector.broadcast %c33_i32 : i32 to vector<584x1xi32>
    %28 = arith.subi %26, %27 : vector<584x1xi32>
    %c0_i32 = arith.constant 0 : i32
    %29 = vector.broadcast %c0_i32 : i32 to vector<584x1xi32>
    %30 = arith.maxsi %28, %29 : vector<584x1xi32>
    %c31_i32 = arith.constant 31 : i32
    %31 = vector.broadcast %c31_i32 : i32 to vector<584x1xi32>
    %32 = arith.andi %30, %31 : vector<584x1xi32>
    %c5_i32 = arith.constant 5 : i32
    %33 = vector.broadcast %c5_i32 : i32 to vector<584x1xi32>
    %34 = arith.shrsi %30, %33 : vector<584x1xi32>
    %c31_i32_10 = arith.constant 31 : i32
    %35 = vector.broadcast %c31_i32_10 : i32 to vector<584x1xi32>
    %36 = arith.andi %34, %35 : vector<584x1xi32>
    %c0_i32_11 = arith.constant 0 : i32
    %37 = vector.broadcast %c0_i32_11 : i32 to vector<584x1xi32>
    %38 = arith.cmpi sge, %28, %37 : vector<584x1xi32>
    %c1024_i32 = arith.constant 1024 : i32
    %39 = vector.broadcast %c1024_i32 : i32 to vector<584x1xi32>
    %40 = arith.cmpi slt, %28, %39 : vector<584x1xi32>
    %41 = arith.andi %38, %40 : vector<584x1xi1>
    %c1_i32 = arith.constant 1 : i32
    %42 = vector.broadcast %c1_i32 : i32 to vector<584x1xi32>
    %43 = arith.cmpi sge, %36, %42 : vector<584x1xi32>
    %44 = arith.andi %41, %43 : vector<584x1xi1>
    %c28_i32 = arith.constant 28 : i32
    %45 = vector.broadcast %c28_i32 : i32 to vector<584x1xi32>
    %46 = arith.cmpi sle, %36, %45 : vector<584x1xi32>
    %47 = arith.andi %44, %46 : vector<584x1xi1>
    %c1_i32_12 = arith.constant 1 : i32
    %48 = vector.broadcast %c1_i32_12 : i32 to vector<584x1xi32>
    %49 = arith.cmpi sge, %32, %48 : vector<584x1xi32>
    %50 = arith.andi %47, %49 : vector<584x1xi1>
    %c28_i32_13 = arith.constant 28 : i32
    %51 = vector.broadcast %c28_i32_13 : i32 to vector<584x1xi32>
    %52 = arith.cmpi sle, %32, %51 : vector<584x1xi32>
    %53 = arith.andi %50, %52 : vector<584x1xi1>
    %54 = vector.broadcast %16 : vector<1x128xf32> to vector<584x128xf32>
    %55 = arith.mulf %23, %54 : vector<584x128xf32>
    %56 = vector.broadcast %19 : vector<1x128xf32> to vector<584x128xf32>
    %57 = arith.addf %55, %56 : vector<584x128xf32>
    %cst_14 = arith.constant 0.000000e+00 : f32
    %58 = vector.broadcast %cst_14 : f32 to vector<584x128xf32>
    %59 = arith.maximumf %57, %58 : vector<584x128xf32>
    %cst_15 = arith.constant 0.000000e+00 : f32
    %60 = vector.shape_cast %53 : vector<584x1xi1> to vector<584x1xi1>
    %61 = vector.broadcast %60 : vector<584x1xi1> to vector<584x128xi1>
    %62 = vector.broadcast %cst_15 : f32 to vector<584x128xf32>
    %63 = arith.select %61, %59, %62 : vector<584x128xi1>, vector<584x128xf32>
    %64 = vector.extract_strided_slice %63 {offsets = [0, 0], sizes = [576, 128], strides = [1, 1]} : vector<584x128xf32> to vector<576x128xf32>
    %65 = arith.truncf %64 : vector<576x128xf32> to vector<576x128xbf16>
    %66 = vector.extract_strided_slice %63 {offsets = [1, 0], sizes = [576, 128], strides = [1, 1]} : vector<584x128xf32> to vector<576x128xf32>
    %67 = arith.truncf %66 : vector<576x128xf32> to vector<576x128xbf16>
    %68 = vector.extract_strided_slice %63 {offsets = [2, 0], sizes = [576, 128], strides = [1, 1]} : vector<584x128xf32> to vector<576x128xf32>
    %69 = arith.truncf %68 : vector<576x128xf32> to vector<576x128xbf16>
    %70 = vector.extract_strided_slice %65 {offsets = [0, 0], sizes = [512, 128], strides = [1, 1]} : vector<576x128xbf16> to vector<512x128xbf16>
    %c0_16 = arith.constant 0 : index
    %c0_17 = arith.constant 0 : index
    %c0_18 = arith.constant 0 : index
    %71 = vector.load %arg4[%c0_16, %c0_17, %c0_18] : memref<9x128x128xbf16, #tpu.memory_space<vmem>>, vector<1x128x128xbf16>
    %72 = vector.shape_cast %71 : vector<1x128x128xbf16> to vector<128x128xbf16>
    %cst_19 = arith.constant dense<0.000000e+00> : vector<512x128xf32>
    %73 = tpu.matmul %70, %72, %cst_19 {dimension_numbers = #tpu.dot_dimension_numbers<[1], [0], [0], [1], [0, 0, 1, 1], [], []>} : vector<512x128xbf16>, vector<128x128xbf16>, vector<512x128xf32> -> vector<512x128xf32>
    %74 = vector.extract_strided_slice %67 {offsets = [0, 0], sizes = [512, 128], strides = [1, 1]} : vector<576x128xbf16> to vector<512x128xbf16>
    %c1 = arith.constant 1 : index
    %c0_20 = arith.constant 0 : index
    %c0_21 = arith.constant 0 : index
    %75 = vector.load %arg4[%c1, %c0_20, %c0_21] : memref<9x128x128xbf16, #tpu.memory_space<vmem>>, vector<1x128x128xbf16>
    %76 = vector.shape_cast %75 : vector<1x128x128xbf16> to vector<128x128xbf16>
    %cst_22 = arith.constant dense<0.000000e+00> : vector<512x128xf32>
    %77 = tpu.matmul %74, %76, %cst_22 {dimension_numbers = #tpu.dot_dimension_numbers<[1], [0], [0], [1], [0, 0, 1, 1], [], []>} : vector<512x128xbf16>, vector<128x128xbf16>, vector<512x128xf32> -> vector<512x128xf32>
    %78 = arith.addf %73, %77 : vector<512x128xf32>
    %79 = vector.extract_strided_slice %69 {offsets = [0, 0], sizes = [512, 128], strides = [1, 1]} : vector<576x128xbf16> to vector<512x128xbf16>
    %c2 = arith.constant 2 : index
    %c0_23 = arith.constant 0 : index
    %c0_24 = arith.constant 0 : index
    %80 = vector.load %arg4[%c2, %c0_23, %c0_24] : memref<9x128x128xbf16, #tpu.memory_space<vmem>>, vector<1x128x128xbf16>
    %81 = vector.shape_cast %80 : vector<1x128x128xbf16> to vector<128x128xbf16>
    %cst_25 = arith.constant dense<0.000000e+00> : vector<512x128xf32>
    %82 = tpu.matmul %79, %81, %cst_25 {dimension_numbers = #tpu.dot_dimension_numbers<[1], [0], [0], [1], [0, 0, 1, 1], [], []>} : vector<512x128xbf16>, vector<128x128xbf16>, vector<512x128xf32> -> vector<512x128xf32>
    %83 = arith.addf %78, %82 : vector<512x128xf32>
    %84 = vector.extract_strided_slice %65 {offsets = [32, 0], sizes = [512, 128], strides = [1, 1]} : vector<576x128xbf16> to vector<512x128xbf16>
    %c3 = arith.constant 3 : index
    %c0_26 = arith.constant 0 : index
    %c0_27 = arith.constant 0 : index
    %85 = vector.load %arg4[%c3, %c0_26, %c0_27] : memref<9x128x128xbf16, #tpu.memory_space<vmem>>, vector<1x128x128xbf16>
    %86 = vector.shape_cast %85 : vector<1x128x128xbf16> to vector<128x128xbf16>
    %cst_28 = arith.constant dense<0.000000e+00> : vector<512x128xf32>
    %87 = tpu.matmul %84, %86, %cst_28 {dimension_numbers = #tpu.dot_dimension_numbers<[1], [0], [0], [1], [0, 0, 1, 1], [], []>} : vector<512x128xbf16>, vector<128x128xbf16>, vector<512x128xf32> -> vector<512x128xf32>
    %88 = arith.addf %83, %87 : vector<512x128xf32>
    %89 = vector.extract_strided_slice %67 {offsets = [32, 0], sizes = [512, 128], strides = [1, 1]} : vector<576x128xbf16> to vector<512x128xbf16>
    %c4 = arith.constant 4 : index
    %c0_29 = arith.constant 0 : index
    %c0_30 = arith.constant 0 : index
    %90 = vector.load %arg4[%c4, %c0_29, %c0_30] : memref<9x128x128xbf16, #tpu.memory_space<vmem>>, vector<1x128x128xbf16>
    %91 = vector.shape_cast %90 : vector<1x128x128xbf16> to vector<128x128xbf16>
    %cst_31 = arith.constant dense<0.000000e+00> : vector<512x128xf32>
    %92 = tpu.matmul %89, %91, %cst_31 {dimension_numbers = #tpu.dot_dimension_numbers<[1], [0], [0], [1], [0, 0, 1, 1], [], []>} : vector<512x128xbf16>, vector<128x128xbf16>, vector<512x128xf32> -> vector<512x128xf32>
    %93 = arith.addf %88, %92 : vector<512x128xf32>
    %94 = vector.extract_strided_slice %69 {offsets = [32, 0], sizes = [512, 128], strides = [1, 1]} : vector<576x128xbf16> to vector<512x128xbf16>
    %c5 = arith.constant 5 : index
    %c0_32 = arith.constant 0 : index
    %c0_33 = arith.constant 0 : index
    %95 = vector.load %arg4[%c5, %c0_32, %c0_33] : memref<9x128x128xbf16, #tpu.memory_space<vmem>>, vector<1x128x128xbf16>
    %96 = vector.shape_cast %95 : vector<1x128x128xbf16> to vector<128x128xbf16>
    %cst_34 = arith.constant dense<0.000000e+00> : vector<512x128xf32>
    %97 = tpu.matmul %94, %96, %cst_34 {dimension_numbers = #tpu.dot_dimension_numbers<[1], [0], [0], [1], [0, 0, 1, 1], [], []>} : vector<512x128xbf16>, vector<128x128xbf16>, vector<512x128xf32> -> vector<512x128xf32>
    %98 = arith.addf %93, %97 : vector<512x128xf32>
    %99 = vector.extract_strided_slice %65 {offsets = [64, 0], sizes = [512, 128], strides = [1, 1]} : vector<576x128xbf16> to vector<512x128xbf16>
    %c6 = arith.constant 6 : index
    %c0_35 = arith.constant 0 : index
    %c0_36 = arith.constant 0 : index
    %100 = vector.load %arg4[%c6, %c0_35, %c0_36] : memref<9x128x128xbf16, #tpu.memory_space<vmem>>, vector<1x128x128xbf16>
    %101 = vector.shape_cast %100 : vector<1x128x128xbf16> to vector<128x128xbf16>
    %cst_37 = arith.constant dense<0.000000e+00> : vector<512x128xf32>
    %102 = tpu.matmul %99, %101, %cst_37 {dimension_numbers = #tpu.dot_dimension_numbers<[1], [0], [0], [1], [0, 0, 1, 1], [], []>} : vector<512x128xbf16>, vector<128x128xbf16>, vector<512x128xf32> -> vector<512x128xf32>
    %103 = arith.addf %98, %102 : vector<512x128xf32>
    %104 = vector.extract_strided_slice %67 {offsets = [64, 0], sizes = [512, 128], strides = [1, 1]} : vector<576x128xbf16> to vector<512x128xbf16>
    %c7 = arith.constant 7 : index
    %c0_38 = arith.constant 0 : index
    %c0_39 = arith.constant 0 : index
    %105 = vector.load %arg4[%c7, %c0_38, %c0_39] : memref<9x128x128xbf16, #tpu.memory_space<vmem>>, vector<1x128x128xbf16>
    %106 = vector.shape_cast %105 : vector<1x128x128xbf16> to vector<128x128xbf16>
    %cst_40 = arith.constant dense<0.000000e+00> : vector<512x128xf32>
    %107 = tpu.matmul %104, %106, %cst_40 {dimension_numbers = #tpu.dot_dimension_numbers<[1], [0], [0], [1], [0, 0, 1, 1], [], []>} : vector<512x128xbf16>, vector<128x128xbf16>, vector<512x128xf32> -> vector<512x128xf32>
    %108 = arith.addf %103, %107 : vector<512x128xf32>
    %109 = vector.extract_strided_slice %69 {offsets = [64, 0], sizes = [512, 128], strides = [1, 1]} : vector<576x128xbf16> to vector<512x128xbf16>
    %c8 = arith.constant 8 : index
    %c0_41 = arith.constant 0 : index
    %c0_42 = arith.constant 0 : index
    %110 = vector.load %arg4[%c8, %c0_41, %c0_42] : memref<9x128x128xbf16, #tpu.memory_space<vmem>>, vector<1x128x128xbf16>
    %111 = vector.shape_cast %110 : vector<1x128x128xbf16> to vector<128x128xbf16>
    %cst_43 = arith.constant dense<0.000000e+00> : vector<512x128xf32>
    %112 = tpu.matmul %109, %111, %cst_43 {dimension_numbers = #tpu.dot_dimension_numbers<[1], [0], [0], [1], [0, 0, 1, 1], [], []>} : vector<512x128xbf16>, vector<128x128xbf16>, vector<512x128xf32> -> vector<512x128xf32>
    %113 = arith.addf %108, %112 : vector<512x128xf32>
    %c0_44 = arith.constant 0 : index
    %c0_45 = arith.constant 0 : index
    %114 = vector.load %arg5[%c0_44, %c0_45] : memref<512x128xf32, #tpu.memory_space<vmem>>, vector<512x128xf32>
    tpu.vector_store %arg5[%c0_44, %c0_45], %113 {strides = array<i32>} : memref<512x128xf32, #tpu.memory_space<vmem>>, vector<512x128xf32>,
    return
  }
  func.func @transform_0(%arg0: i32) -> (i32, i32) {
    %c0_i32 = arith.constant 0 : i32
    %c0_i32_0 = arith.constant 0 : i32
    %c0_i32_1 = arith.constant 0 : i32
    return %c0_i32, %c0_i32_0 : i32, i32
  }
  func.func @transform_1(%arg0: i32) -> (i32, i32) {
    %c0_i32 = arith.constant 0 : i32
    %c0_i32_0 = arith.constant 0 : i32
    %c0_i32_1 = arith.constant 0 : i32
    return %c0_i32, %c0_i32_0 : i32, i32
  }
  func.func @transform_2(%arg0: i32) -> (i32, i32) {
    %c0_i32 = arith.constant 0 : i32
    %c0_i32_0 = arith.constant 0 : i32
    %c0_i32_1 = arith.constant 0 : i32
    return %c0_i32, %c0_i32_0 : i32, i32
  }
  func.func @transform_3(%arg0: i32) -> (i32, i32, i32) {
    %c0_i32 = arith.constant 0 : i32
    %c0_i32_0 = arith.constant 0 : i32
    %c0_i32_1 = arith.constant 0 : i32
    %c0_i32_2 = arith.constant 0 : i32
    return %c0_i32, %c0_i32_0, %c0_i32_1 : i32, i32, i32
  }
  func.func @transform_4(%arg0: i32) -> (i32, i32) {
    %c0_i32 = arith.constant 0 : i32
    %c0_i32_0 = arith.constant 0 : i32
    return %arg0, %c0_i32 : i32, i32
  }
}

</mosaic_0001>

<llo_original>
// kernel: fused_bn_relu_gconv.1
$region0: #{fused_bn_relu_gconv.1}
  #allocation0 [shape = 'u32[]', space=smem, size = 0x4, offset = 0x4, fixed_abs, tag = 'smem constant byte address 0x4 - core index']
  #allocation1 [shape = 'u32[144,128]{1,0:T(1,128)}', space=vmem, size = 0x12000, scoped, tag = 'internal scratch']
  %s0 = inlined_call_operand.vmem [shape: f32[1096,128], index: 0, kind: input, shape index: {}]
  %s1 = inlined_call_operand.vmem [shape: f32[1,128], index: 1, kind: input, shape index: {}]
  %s2 = inlined_call_operand.vmem [shape: f32[1,128], index: 2, kind: input, shape index: {}]
  %s3 = inlined_call_operand.vmem [shape: bf16[9,128,128], index: 3, kind: input, shape index: {}]
  %s4 = inlined_call_operand.vmem [shape: f32[1024,128], index: 4, kind: output, shape index: {}]
  %s5 = sld [smem:[#allocation0]]
  $region49: #{fused_bn_relu_gconv.1} parent=0
    _
  %s7 = ssub.s32 1, %s5
  %s8 = scalar_select 0, %s7, %s5
  loop: start=0, step=1, limit=4
  $region2: #{fused_bn_relu_gconv.1} parent=0 // loop_pre_header
    _
  $region3: #{fused_bn_relu_gconv.1} parent=0 // loop_header
    %s10 = sphi 0, %s14
    %p11 = scmp.ge.s32.totalorder %s10, 4
    %s18 = sphi 0, %s18
    %s20 = sphi 0, %s18
    %s21 = sphi 0, %s20
    %s35 = sphi 0, %s21
    %s39 = sphi 0, %s39
    %s41 = sphi 0, %s39
    %s42 = sphi 0, %s41
    %s56 = sphi 0, %s42
    %s60 = sphi 0, %s60
    %s62 = sphi 0, %s60
    %s63 = sphi 0, %s62
    %s77 = sphi 0, %s63
    %s81 = sphi 0, %s81
    %s83 = sphi 0, %s81
    %s84 = sphi 0, %s83
    %s98 = sphi 0, %s84
    %s104 = sphi 0, %s106
    %s107 = sphi 0, %s104
    %s108 = sphi 0, %s107
    %s124 = sphi 0, %s108
  $region4: #{fused_bn_relu_gconv.1} parent=0 // loop_header_branch
    %13 = sbr.rel (%p11) target = $region8
  $region5: #{fused_bn_relu_gconv.1} parent=0 // loop_body
    %s15 = ssub.s32 %s10, 1
    %s16 = ssub.s32 %s10, 2
    %s17 = sadd.s32 %s10, 1
    %s19 = sadd.s32 %s18, 1
    %p22 = scmp.eq.s32.totalorder %s10, 1
    %p23 = scmp.ne.s32.totalorder %s18, %s20
    %p24 = scmp.eq.s32.totalorder %s10, 0
    %p25 = por %p23, %p24
    %p26 = scmp.ne.s32.totalorder %s18, %s20
    %p27 = scmp.eq.s32.totalorder %s15, 1
    %p28 = por %p26, %p27
    %p29 = scmp.ne.s32.totalorder %s20, %s21
    %p30 = scmp.eq.s32.totalorder %s15, 0
    %p31 = por %p29, %p30
    %p32 = scmp.ne.s32.totalorder %s20, %s21
    %p33 = scmp.eq.s32.totalorder %s16, 1
    %p34 = por %p32, %p33
    %p36 = scmp.ne.s32.totalorder %s21, %s35
    %p37 = scmp.eq.s32.totalorder %s16, 0
    %p38 = por %p36, %p37
    %s40 = sadd.s32 %s39, 1
    %p43 = scmp.eq.s32.totalorder %s10, 1
    %p44 = scmp.ne.s32.totalorder %s39, %s41
    %p45 = scmp.eq.s32.totalorder %s10, 0
    %p46 = por %p44, %p45
    %p47 = scmp.ne.s32.totalorder %s39, %s41
    %p48 = scmp.eq.s32.totalorder %s15, 1
    %p49 = por %p47, %p48
    %p50 = scmp.ne.s32.totalorder %s41, %s42
    %p51 = scmp.eq.s32.totalorder %s15, 0
    %p52 = por %p50, %p51
    %p53 = scmp.ne.s32.totalorder %s41, %s42
    %p54 = scmp.eq.s32.totalorder %s16, 1
    %p55 = por %p53, %p54
    %p57 = scmp.ne.s32.totalorder %s42, %s56
    %p58 = scmp.eq.s32.totalorder %s16, 0
    %p59 = por %p57, %p58
    %s61 = sadd.s32 %s60, 1
    %p64 = scmp.eq.s32.totalorder %s10, 1
    %p65 = scmp.ne.s32.totalorder %s60, %s62
    %p66 = scmp.eq.s32.totalorder %s10, 0
    %p67 = por %p65, %p66
    %p68 = scmp.ne.s32.totalorder %s60, %s62
    %p69 = scmp.eq.s32.totalorder %s15, 1
    %p70 = por %p68, %p69
    %p71 = scmp.ne.s32.totalorder %s62, %s63
    %p72 = scmp.eq.s32.totalorder %s15, 0
    %p73 = por %p71, %p72
    %p74 = scmp.ne.s32.totalorder %s62, %s63
    %p75 = scmp.eq.s32.totalorder %s16, 1
    %p76 = por %p74, %p75
    %p78 = scmp.ne.s32.totalorder %s63, %s77
    %p79 = scmp.eq.s32.totalorder %s16, 0
    %p80 = por %p78, %p79
    %s82 = sadd.s32 %s81, 1
    %p85 = scmp.eq.s32.totalorder %s10, 1
    %p86 = scmp.ne.s32.totalorder %s81, %s83
    %p87 = scmp.eq.s32.totalorder %s10, 0
    %p88 = por %p86, %p87
    %p89 = scmp.ne.s32.totalorder %s81, %s83
    %p90 = scmp.eq.s32.totalorder %s15, 1
    %p91 = por %p89, %p90
    %p92 = scmp.ne.s32.totalorder %s83, %s84
    %p93 = scmp.eq.s32.totalorder %s15, 0
    %p94 = por %p92, %p93
    %p95 = scmp.ne.s32.totalorder %s83, %s84
    %p96 = scmp.eq.s32.totalorder %s16, 1
    %p97 = por %p95, %p96
    %p99 = scmp.ne.s32.totalorder %s84, %s98
    %p100 = scmp.eq.s32.totalorder %s16, 0
    %p101 = por %p99, %p100
    %s102 = ssub.s32 %s10, %s17
    %p103 = scmp.eq.s32.totalorder %s102, 0
    %s105 = sadd.s32 %s104, 1
    %s106 = scalar_select %p103, %s104, %s105
    %p109 = pneg %p103
    %p110 = scmp.eq.s32.totalorder %s10, 1
    %p111 = por %p109, %p110
    %p112 = scmp.ne.s32.totalorder %s104, %s107
    %p113 = scmp.eq.s32.totalorder %s10, 0
    %p114 = por %p112, %p113
    %p115 = scmp.ne.s32.totalorder %s104, %s107
    %p116 = scmp.eq.s32.totalorder %s15, 1
    %p117 = por %p115, %p116
    %p118 = scmp.ne.s32.totalorder %s107, %s108
    %p119 = scmp.eq.s32.totalorder %s15, 0
    %p120 = por %p118, %p119
    %p121 = scmp.ne.s32.totalorder %s107, %s108
    %p122 = scmp.eq.s32.totalorder %s16, 1
    %p123 = por %p121, %p122
    %p125 = scmp.ne.s32.totalorder %s108, %s124
    %p126 = scmp.eq.s32.totalorder %s16, 0
    %p127 = por %p125, %p126
    %p128 = scmp.le.s32.totalorder 1, %s10
    %p129 = scmp.lt.s32.totalorder %s10, 3
    %p130 = pnand %p128, %p129
    %p131 = pneg %p130
    // Predicated region
    $region9: #{fused_bn_relu_gconv.1} parent=5 // pred_check
      _
    $region10: #{fused_bn_relu_gconv.1} parent=5 // pred_check_branch
      %133 = sbr.rel (%p130) target = $region12
    $region11: #{fused_bn_relu_gconv.1} parent=5 // pred_region
      %s134 = ssub.s32 %s10, 1
      // Predicated region
      $region13: #{fused_bn_relu_gconv.1} parent=11 // pred_check
        %p135 = pneg %p31
      $region14: #{fused_bn_relu_gconv.1} parent=11 // pred_check_branch
        %137 = sbr.rel (%p135) target = $region16
      $region15: #{fused_bn_relu_gconv.1} parent=11 // pred_region
        _
      $region16: #{fused_bn_relu_gconv.1} parent=11 // pred_fallthru
        _
      // Predicated region
      $region17: #{fused_bn_relu_gconv.1} parent=11 // pred_check
        %p138 = pneg %p52
      $region18: #{fused_bn_relu_gconv.1} parent=11 // pred_check_branch
        %140 = sbr.rel (%p138) target = $region20
      $region19: #{fused_bn_relu_gconv.1} parent=11 // pred_region
        _
      $region20: #{fused_bn_relu_gconv.1} parent=11 // pred_fallthru
        _
      // Predicated region
      $region21: #{fused_bn_relu_gconv.1} parent=11 // pred_check
        %p141 = pneg %p73
      $region22: #{fused_bn_relu_gconv.1} parent=11 // pred_check_branch
        %143 = sbr.rel (%p141) target = $region24
      $region23: #{fused_bn_relu_gconv.1} parent=11 // pred_region
        _
      $region24: #{fused_bn_relu_gconv.1} parent=11 // pred_fallthru
        _
      // Predicated region
      $region25: #{fused_bn_relu_gconv.1} parent=11 // pred_check
        %p144 = pneg %p94
      $region26: #{fused_bn_relu_gconv.1} parent=11 // pred_check_branch
        %146 = sbr.rel (%p144) target = $region28
      $region27: #{fused_bn_relu_gconv.1} parent=11 // pred_region
        _
      $region28: #{fused_bn_relu_gconv.1} parent=11 // pred_fallthru
        _
    $region12: #{fused_bn_relu_gconv.1} parent=5 // pred_fallthru
      _
    %p147 = scmp.lt.s32.totalorder %s10, 2
    // Predicated region
    $region29: #{fused_bn_relu_gconv.1} parent=5 // pred_check
      %p148 = pneg %p147
    $region30: #{fused_bn_relu_gconv.1} parent=5 // pred_check_branch
      %150 = sbr.rel (%p148) target = $region32
    $region31: #{fused_bn_relu_gconv.1} parent=5 // pred_region
      _
    $region32: #{fused_bn_relu_gconv.1} parent=5 // pred_fallthru
      _
    %p151 = scmp.le.s32.totalorder 1, %s10
    %p152 = scmp.lt.s32.totalorder %s10, 3
    %p153 = pnand %p151, %p152
    %p154 = pneg %p153
    // Predicated region
    $region33: #{fused_bn_relu_gconv.1} parent=5 // pred_check
      _
    $region34: #{fused_bn_relu_gconv.1} parent=5 // pred_check_branch
      %156 = sbr.rel (%p153) target = $region36
    $region35: #{fused_bn_relu_gconv.1} parent=5 // pred_region
      %s157 = ssub.s32 %s10, 1
      %p158 = pneg %p31
      %p159 = pneg %p28
      %p160 = pneg %p52
      %p161 = pneg %p49
      %p162 = pneg %p73
      %p163 = pneg %p70
      %p164 = pneg %p94
      %p165 = pneg %p91
      %p166 = pneg %p120
      %p167 = pneg %p117
      %s168 = smul.u32 64, %s15
      %p169 = scmp.lt.s32.totalorder %s168, 127
      %s170 = scalar_select %p169, %s168, 127
      %s171 = smul.addr %s170, 8
      %s172 = scalar_lea.vmem %s4, %s171
      %s173 = smul.u32 64, %s15
      %p174 = scmp.lt.s32.totalorder %s173, 127
      %s175 = scalar_select %p174, %s173, 127
      %s176 = smul.addr %s175, 8
      %s177 = scalar_lea.vmem %s4, %s176
      %s178 = smul.u32 64, %s15
      %v180 = vld [vmem:[%s0] sm:$0xff]
      %v181 = vld [vmem:[%s0 + $0x8] sm:$0xff]
      %v182 = vld [vmem:[%s0 + $0x10] sm:$0xff]
      %v183 = vld [vmem:[%s0 + $0x18] sm:$0xff]
      %v184 = vld [vmem:[%s0 + $0x20] sm:$0xff]
      %v185 = vld [vmem:[%s0 + $0x28] sm:$0xff]
      %v186 = vld [vmem:[%s0 + $0x30] sm:$0xff]
      %v187 = vld [vmem:[%s0 + $0x38] sm:$0xff]
      %v188 = vld [vmem:[%s0 + $0x40] sm:$0xff]
      %v189 = vld [vmem:[%s0 + $0x48] sm:$0xff]
      %v190 = vld [vmem:[%s0 + $0x50] sm:$0xff]
      %v191 = vld [vmem:[%s0 + $0x58] sm:$0xff]
      %v192 = vld [vmem:[%s0 + $0x60] sm:$0xff]
      %v193 = vld [vmem:[%s0 + $0x68] sm:$0xff]
      %v194 = vld [vmem:[%s0 + $0x70] sm:$0xff]
      %v195 = vld [vmem:[%s0 + $0x78] sm:$0xff]
      %v196 = vld [vmem:[%s0 + $0x80] sm:$0xff]
      %v197 = vld [vmem:[%s0 + $0x88] sm:$0xff]
      %v198 = vld [vmem:[%s0 + $0x90] sm:$0xff]
      %v199 = vld [vmem:[%s0 + $0x98] sm:$0xff]
      %v200 = vld [vmem:[%s0 + $0xa0] sm:$0xff]
      %v201 = vld [vmem:[%s0 + $0xa8] sm:$0xff]
      %v202 = vld [vmem:[%s0 + $0xb0] sm:$0xff]
      %v203 = vld [vmem:[%s0 + $0xb8] sm:$0xff]
      %v204 = vld [vmem:[%s0 + $0xc0] sm:$0xff]
      %v205 = vld [vmem:[%s0 + $0xc8] sm:$0xff]
      %v206 = vld [vmem:[%s0 + $0xd0] sm:$0xff]
      %v207 = vld [vmem:[%s0 + $0xd8] sm:$0xff]
      %v208 = vld [vmem:[%s0 + $0xe0] sm:$0xff]
      %v209 = vld [vmem:[%s0 + $0xe8] sm:$0xff]
      %v210 = vld [vmem:[%s0 + $0xf0] sm:$0xff]
      %v211 = vld [vmem:[%s0 + $0xf8] sm:$0xff]
      %v212 = vld [vmem:[%s0 + $0x100] sm:$0xff]
      %v213 = vld [vmem:[%s0 + $0x108] sm:$0xff]
      %v214 = vld [vmem:[%s0 + $0x110] sm:$0xff]
      %v215 = vld [vmem:[%s0 + $0x118] sm:$0xff]
      %v216 = vld [vmem:[%s0 + $0x120] sm:$0xff]
      %v217 = vld [vmem:[%s0 + $0x128] sm:$0xff]
      %v218 = vld [vmem:[%s0 + $0x130] sm:$0xff]
      %v219 = vld [vmem:[%s0 + $0x138] sm:$0xff]
      %v220 = vld [vmem:[%s0 + $0x140] sm:$0xff]
      %v221 = vld [vmem:[%s0 + $0x148] sm:$0xff]
      %v222 = vld [vmem:[%s0 + $0x150] sm:$0xff]
      %v223 = vld [vmem:[%s0 + $0x158] sm:$0xff]
      %v224 = vld [vmem:[%s0 + $0x160] sm:$0xff]
      %v225 = vld [vmem:[%s0 + $0x168] sm:$0xff]
      %v226 = vld [vmem:[%s0 + $0x170] sm:$0xff]
      %v227 = vld [vmem:[%s0 + $0x178] sm:$0xff]
      %v228 = vld [vmem:[%s0 + $0x180] sm:$0xff]
      %v229 = vld [vmem:[%s0 + $0x188] sm:$0xff]
      %v230 = vld [vmem:[%s0 + $0x190] sm:$0xff]
      %v231 = vld [vmem:[%s0 + $0x198] sm:$0xff]
      %v232 = vld [vmem:[%s0 + $0x1a0] sm:$0xff]
      %v233 = vld [vmem:[%s0 + $0x1a8] sm:$0xff]
      %v234 = vld [vmem:[%s0 + $0x1b0] sm:$0xff]
      %v235 = vld [vmem:[%s0 + $0x1b8] sm:$0xff]
      %v236 = vld [vmem:[%s0 + $0x1c0] sm:$0xff]
      %v237 = vld [vmem:[%s0 + $0x1c8] sm:$0xff]
      %v238 = vld [vmem:[%s0 + $0x1d0] sm:$0xff]
      %v239 = vld [vmem:[%s0 + $0x1d8] sm:$0xff]
      %v240 = vld [vmem:[%s0 + $0x1e0] sm:$0xff]
      %v241 = vld [vmem:[%s0 + $0x1e8] sm:$0xff]
      %v242 = vld [vmem:[%s0 + $0x1f0] sm:$0xff]
      %v243 = vld [vmem:[%s0 + $0x1f8] sm:$0xff]
      %v244 = vld [vmem:[%s0 + $0x200] sm:$0xff]
      %v245 = vld [vmem:[%s0 + $0x208] sm:$0xff]
      %v246 = vld [vmem:[%s0 + $0x210] sm:$0xff]
      %v247 = vld [vmem:[%s0 + $0x218] sm:$0xff]
      %v248 = vld [vmem:[%s0 + $0x220] sm:$0xff]
      %v249 = vld [vmem:[%s0 + $0x228] sm:$0xff]
      %v250 = vld [vmem:[%s0 + $0x230] sm:$0xff]
      %v251 = vld [vmem:[%s0 + $0x238] sm:$0xff]
      %v252 = vld [vmem:[%s0 + $0x240] sm:$0xff]
      %v253 = vld [vmem:[%s0 + $0x248] sm:$0xff]
      %v254 = vld [vmem:[%s0 + $0x250] sm:$0xff]
      %v255 = vld [vmem:[%s0 + $0x258] sm:$0xff]
      %v256 = vld [vmem:[%s0 + $0x260] sm:$0xff]
      %v257 = vld [vmem:[%s0 + $0x268] sm:$0xff]
      %v258 = vld [vmem:[%s0 + $0x270] sm:$0xff]
      %v259 = vld [vmem:[%s0 + $0x278] sm:$0xff]
      %v260 = vld [vmem:[%s0 + $0x280] sm:$0xff]
      %v261 = vld [vmem:[%s0 + $0x288] sm:$0xff]
      %v262 = vld [vmem:[%s0 + $0x290] sm:$0xff]
      %v263 = vld [vmem:[%s0 + $0x298] sm:$0xff]
      %v264 = vld [vmem:[%s0 + $0x2a0] sm:$0xff]
      %v265 = vld [vmem:[%s0 + $0x2a8] sm:$0xff]
      %v266 = vld [vmem:[%s0 + $0x2b0] sm:$0xff]
      %v267 = vld [vmem:[%s0 + $0x2b8] sm:$0xff]
      %v268 = vld [vmem:[%s0 + $0x2c0] sm:$0xff]
      %v269 = vld [vmem:[%s0 + $0x2c8] sm:$0xff]
      %v270 = vld [vmem:[%s0 + $0x2d0] sm:$0xff]
      %v271 = vld [vmem:[%s0 + $0x2d8] sm:$0xff]
      %v272 = vld [vmem:[%s0 + $0x2e0] sm:$0xff]
      %v273 = vld [vmem:[%s0 + $0x2e8] sm:$0xff]
      %v274 = vld [vmem:[%s0 + $0x2f0] sm:$0xff]
      %v275 = vld [vmem:[%s0 + $0x2f8] sm:$0xff]
      %v276 = vld [vmem:[%s0 + $0x300] sm:$0xff]
      %v277 = vld [vmem:[%s0 + $0x308] sm:$0xff]
      %v278 = vld [vmem:[%s0 + $0x310] sm:$0xff]
      %v279 = vld [vmem:[%s0 + $0x318] sm:$0xff]
      %v280 = vld [vmem:[%s0 + $0x320] sm:$0xff]
      %v281 = vld [vmem:[%s0 + $0x328] sm:$0xff]
      %v282 = vld [vmem:[%s0 + $0x330] sm:$0xff]
      %v283 = vld [vmem:[%s0 + $0x338] sm:$0xff]
      %v284 = vld [vmem:[%s0 + $0x340] sm:$0xff]
      %v285 = vld [vmem:[%s0 + $0x348] sm:$0xff]
      %v286 = vld [vmem:[%s0 + $0x350] sm:$0xff]
      %v287 = vld [vmem:[%s0 + $0x358] sm:$0xff]
      %v288 = vld [vmem:[%s0 + $0x360] sm:$0xff]
      %v289 = vld [vmem:[%s0 + $0x368] sm:$0xff]
      %v290 = vld [vmem:[%s0 + $0x370] sm:$0xff]
      %v291 = vld [vmem:[%s0 + $0x378] sm:$0xff]
      %v292 = vld [vmem:[%s0 + $0x380] sm:$0xff]
      %v293 = vld [vmem:[%s0 + $0x388] sm:$0xff]
      %v294 = vld [vmem:[%s0 + $0x390] sm:$0xff]
      %v295 = vld [vmem:[%s0 + $0x398] sm:$0xff]
      %v296 = vld [vmem:[%s0 + $0x3a0] sm:$0xff]
      %v297 = vld [vmem:[%s0 + $0x3a8] sm:$0xff]
      %v298 = vld [vmem:[%s0 + $0x3b0] sm:$0xff]
      %v299 = vld [vmem:[%s0 + $0x3b8] sm:$0xff]
      %v300 = vld [vmem:[%s0 + $0x3c0] sm:$0xff]
      %v301 = vld [vmem:[%s0 + $0x3c8] sm:$0xff]
      %v302 = vld [vmem:[%s0 + $0x3d0] sm:$0xff]
      %v303 = vld [vmem:[%s0 + $0x3d8] sm:$0xff]
      %v304 = vld [vmem:[%s0 + $0x3e0] sm:$0xff]
      %v305 = vld [vmem:[%s0 + $0x3e8] sm:$0xff]
      %v306 = vld [vmem:[%s0 + $0x3f0] sm:$0xff]
      %v307 = vld [vmem:[%s0 + $0x3f8] sm:$0xff]
      %v308 = vld [vmem:[%s0 + $0x400] sm:$0xff]
      %v309 = vld [vmem:[%s0 + $0x408] sm:$0xff]
      %v310 = vld [vmem:[%s0 + $0x410] sm:$0xff]
      %v311 = vld [vmem:[%s0 + $0x418] sm:$0xff]
      %v312 = vld [vmem:[%s0 + $0x420] sm:$0xff]
      %v313 = vld [vmem:[%s0 + $0x428] sm:$0xff]
      %v314 = vld [vmem:[%s0 + $0x430] sm:$0xff]
      %v315 = vld [vmem:[%s0 + $0x438] sm:$0xff]
      %v316 = vld [vmem:[%s0 + $0x440] sm:$0xff]
      %v317 = vadd.f32 %v180, %v181
      %v318 = vadd.f32 %v317, %v182
      %v319 = vadd.f32 %v318, %v183
      %v320 = vadd.f32 %v319, %v184
      %v321 = vadd.f32 %v320, %v185
      %v322 = vadd.f32 %v321, %v186
      %v323 = vadd.f32 %v322, %v187
      %v324 = vadd.f32 %v323, %v188
      %v325 = vadd.f32 %v324, %v189
      %v326 = vadd.f32 %v325, %v190
      %v327 = vadd.f32 %v326, %v191
      %v328 = vadd.f32 %v327, %v192
      %v329 = vadd.f32 %v328, %v193
      %v330 = vadd.f32 %v329, %v194
      %v331 = vadd.f32 %v330, %v195
      %v332 = vadd.f32 %v331, %v196
      %v333 = vadd.f32 %v332, %v197
      %v334 = vadd.f32 %v333, %v198
      %v335 = vadd.f32 %v334, %v199
      %v336 = vadd.f32 %v335, %v200
      %v337 = vadd.f32 %v336, %v201
      %v338 = vadd.f32 %v337, %v202
      %v339 = vadd.f32 %v338, %v203
      %v340 = vadd.f32 %v339, %v204
      %v341 = vadd.f32 %v340, %v205
      %v342 = vadd.f32 %v341, %v206
      %v343 = vadd.f32 %v342, %v207
      %v344 = vadd.f32 %v343, %v208
      %v345 = vadd.f32 %v344, %v209
      %v346 = vadd.f32 %v345, %v210
      %v347 = vadd.f32 %v346, %v211
      %v348 = vadd.f32 %v347, %v212
      %v349 = vadd.f32 %v348, %v213
      %v350 = vadd.f32 %v349, %v214
      %v351 = vadd.f32 %v350, %v215
      %v352 = vadd.f32 %v351, %v216
      %v353 = vadd.f32 %v352, %v217
      %v354 = vadd.f32 %v353, %v218
      %v355 = vadd.f32 %v354, %v219
      %v356 = vadd.f32 %v355, %v220
      %v357 = vadd.f32 %v356, %v221
      %v358 = vadd.f32 %v357, %v222
      %v359 = vadd.f32 %v358, %v223
      %v360 = vadd.f32 %v359, %v224
      %v361 = vadd.f32 %v360, %v225
      %v362 = vadd.f32 %v361, %v226
      %v363 = vadd.f32 %v362, %v227
      %v364 = vadd.f32 %v363, %v228
      %v365 = vadd.f32 %v364, %v229
      %v366 = vadd.f32 %v365, %v230
      %v367 = vadd.f32 %v366, %v231
      %v368 = vadd.f32 %v367, %v232
      %v369 = vadd.f32 %v368, %v233
      %v370 = vadd.f32 %v369, %v234
      %v371 = vadd.f32 %v370, %v235
      %v372 = vadd.f32 %v371, %v236
      %v373 = vadd.f32 %v372, %v237
      %v374 = vadd.f32 %v373, %v238
      %v375 = vadd.f32 %v374, %v239
      %v376 = vadd.f32 %v375, %v240
      %v377 = vadd.f32 %v376, %v241
      %v378 = vadd.f32 %v377, %v242
      %v379 = vadd.f32 %v378, %v243
      %v380 = vadd.f32 %v379, %v244
      %v381 = vadd.f32 %v380, %v245
      %v382 = vadd.f32 %v381, %v246
      %v383 = vadd.f32 %v382, %v247
      %v384 = vadd.f32 %v383, %v248
      %v385 = vadd.f32 %v384, %v249
      %v386 = vadd.f32 %v385, %v250
      %v387 = vadd.f32 %v386, %v251
      %v388 = vadd.f32 %v387, %v252
      %v389 = vadd.f32 %v388, %v253
      %v390 = vadd.f32 %v389, %v254
      %v391 = vadd.f32 %v390, %v255
      %v392 = vadd.f32 %v391, %v256
      %v393 = vadd.f32 %v392, %v257
      %v394 = vadd.f32 %v393, %v258
      %v395 = vadd.f32 %v394, %v259
      %v396 = vadd.f32 %v395, %v260
      %v397 = vadd.f32 %v396, %v261
      %v398 = vadd.f32 %v397, %v262
      %v399 = vadd.f32 %v398, %v263
      %v400 = vadd.f32 %v399, %v264
      %v401 = vadd.f32 %v400, %v265
      %v402 = vadd.f32 %v401, %v266
      %v403 = vadd.f32 %v402, %v267
      %v404 = vadd.f32 %v403, %v268
      %v405 = vadd.f32 %v404, %v269
      %v406 = vadd.f32 %v405, %v270
      %v407 = vadd.f32 %v406, %v271
      %v408 = vadd.f32 %v407, %v272
      %v409 = vadd.f32 %v408, %v273
      %v410 = vadd.f32 %v409, %v274
      %v411 = vadd.f32 %v410, %v275
      %v412 = vadd.f32 %v411, %v276
      %v413 = vadd.f32 %v412, %v277
      %v414 = vadd.f32 %v413, %v278
      %v415 = vadd.f32 %v414, %v279
      %v416 = vadd.f32 %v415, %v280
      %v417 = vadd.f32 %v416, %v281
      %v418 = vadd.f32 %v417, %v282
      %v419 = vadd.f32 %v418, %v283
      %v420 = vadd.f32 %v419, %v284
      %v421 = vadd.f32 %v420, %v285
      %v422 = vadd.f32 %v421, %v286
      %v423 = vadd.f32 %v422, %v287
      %v424 = vadd.f32 %v423, %v288
      %v425 = vadd.f32 %v424, %v289
      %v426 = vadd.f32 %v425, %v290
      %v427 = vadd.f32 %v426, %v291
      %v428 = vadd.f32 %v427, %v292
      %v429 = vadd.f32 %v428, %v293
      %v430 = vadd.f32 %v429, %v294
      %v431 = vadd.f32 %v430, %v295
      %v432 = vadd.f32 %v431, %v296
      %v433 = vadd.f32 %v432, %v297
      %v434 = vadd.f32 %v433, %v298
      %v435 = vadd.f32 %v434, %v299
      %v436 = vadd.f32 %v435, %v300
      %v437 = vadd.f32 %v436, %v301
      %v438 = vadd.f32 %v437, %v302
      %v439 = vadd.f32 %v438, %v303
      %v440 = vadd.f32 %v439, %v304
      %v441 = vadd.f32 %v440, %v305
      %v442 = vadd.f32 %v441, %v306
      %v443 = vadd.f32 %v442, %v307
      %v444 = vadd.f32 %v443, %v308
      %v445 = vadd.f32 %v444, %v309
      %v446 = vadd.f32 %v445, %v310
      %v447 = vadd.f32 %v446, %v311
      %v448 = vadd.f32 %v447, %v312
      %v449 = vadd.f32 %v448, %v313
      %v450 = vadd.f32 %v449, %v314
      %v451 = vadd.f32 %v450, %v315
      %v452 = vadd.f32 %v451, %v316
      %v453 = vrot.slane %v452, 4
      %v454 = vadd.f32 %v452, %v453
      %v455 = vrot.slane %v454, 2
      %v456 = vadd.f32 %v454, %v455
      %v457 = vrot.slane %v456, 1
      %v458 = vadd.f32 %v456, %v457
      %v459 = vmul.f32 %v458, 0.0012755102
      %v460 = vmul.f32 %v180, %v180
      %v461 = vmul.f32 %v181, %v181
      %v462 = vmul.f32 %v182, %v182
      %v463 = vmul.f32 %v183, %v183
      %v464 = vmul.f32 %v184, %v184
      %v465 = vmul.f32 %v185, %v185
      %v466 = vmul.f32 %v186, %v186
      %v467 = vmul.f32 %v187, %v187
      %v468 = vmul.f32 %v188, %v188
      %v469 = vmul.f32 %v189, %v189
      %v470 = vmul.f32 %v190, %v190
      %v471 = vmul.f32 %v191, %v191
      %v472 = vmul.f32 %v192, %v192
      %v473 = vmul.f32 %v193, %v193
      %v474 = vmul.f32 %v194, %v194
      %v475 = vmul.f32 %v195, %v195
      %v476 = vmul.f32 %v196, %v196
      %v477 = vmul.f32 %v197, %v197
      %v478 = vmul.f32 %v198, %v198
      %v479 = vmul.f32 %v199, %v199
      %v480 = vmul.f32 %v200, %v200
      %v481 = vmul.f32 %v201, %v201
      %v482 = vmul.f32 %v202, %v202
      %v483 = vmul.f32 %v203, %v203
      %v484 = vmul.f32 %v204, %v204
      %v485 = vmul.f32 %v205, %v205
      %v486 = vmul.f32 %v206, %v206
      %v487 = vmul.f32 %v207, %v207
      %v488 = vmul.f32 %v208, %v208
      %v489 = vmul.f32 %v209, %v209
      %v490 = vmul.f32 %v210, %v210
      %v491 = vmul.f32 %v211, %v211
      %v492 = vmul.f32 %v212, %v212
      %v493 = vmul.f32 %v213, %v213
      %v494 = vmul.f32 %v214, %v214
      %v495 = vmul.f32 %v215, %v215
      %v496 = vmul.f32 %v216, %v216
      %v497 = vmul.f32 %v217, %v217
      %v498 = vmul.f32 %v218, %v218
      %v499 = vmul.f32 %v219, %v219
      %v500 = vmul.f32 %v220, %v220
      %v501 = vmul.f32 %v221, %v221
      %v502 = vmul.f32 %v222, %v222
      %v503 = vmul.f32 %v223, %v223
      %v504 = vmul.f32 %v224, %v224
      %v505 = vmul.f32 %v225, %v225
      %v506 = vmul.f32 %v226, %v226
      %v507 = vmul.f32 %v227, %v227
      %v508 = vmul.f32 %v228, %v228
      %v509 = vmul.f32 %v229, %v229
      %v510 = vmul.f32 %v230, %v230
      %v511 = vmul.f32 %v231, %v231
      %v512 = vmul.f32 %v232, %v232
      %v513 = vmul.f32 %v233, %v233
      %v514 = vmul.f32 %v234, %v234
      %v515 = vmul.f32 %v235, %v235
      %v516 = vmul.f32 %v236, %v236
      %v517 = vmul.f32 %v237, %v237
      %v518 = vmul.f32 %v238, %v238
      %v519 = vmul.f32 %v239, %v239
      %v520 = vmul.f32 %v240, %v240
      %v521 = vmul.f32 %v241, %v241
      %v522 = vmul.f32 %v242, %v242
      %v523 = vmul.f32 %v243, %v243
      %v524 = vmul.f32 %v244, %v244
      %v525 = vmul.f32 %v245, %v245
      %v526 = vmul.f32 %v246, %v246
      %v527 = vmul.f32 %v247, %v247
      %v528 = vmul.f32 %v248, %v248
      %v529 = vmul.f32 %v249, %v249
      %v530 = vmul.f32 %v250, %v250
      %v531 = vmul.f32 %v251, %v251
      %v532 = vmul.f32 %v252, %v252
      %v533 = vmul.f32 %v253, %v253
      %v534 = vmul.f32 %v254, %v254
      %v535 = vmul.f32 %v255, %v255
      %v536 = vmul.f32 %v256, %v256
      %v537 = vmul.f32 %v257, %v257
      %v538 = vmul.f32 %v258, %v258
      %v539 = vmul.f32 %v259, %v259
      %v540 = vmul.f32 %v260, %v260
      %v541 = vmul.f32 %v261, %v261
      %v542 = vmul.f32 %v262, %v262
      %v543 = vmul.f32 %v263, %v263
      %v544 = vmul.f32 %v264, %v264
      %v545 = vmul.f32 %v265, %v265
      %v546 = vmul.f32 %v266, %v266
      %v547 = vmul.f32 %v267, %v267
      %v548 = vmul.f32 %v268, %v268
      %v549 = vmul.f32 %v269, %v269
      %v550 = vmul.f32 %v270, %v270
      %v551 = vmul.f32 %v271, %v271
      %v552 = vmul.f32 %v272, %v272
      %v553 = vmul.f32 %v273, %v273
      %v554 = vmul.f32 %v274, %v274
      %v555 = vmul.f32 %v275, %v275
      %v556 = vmul.f32 %v276, %v276
      %v557 = vmul.f32 %v277, %v277
      %v558 = vmul.f32 %v278, %v278
      %v559 = vmul.f32 %v279, %v279
      %v560 = vmul.f32 %v280, %v280
      %v561 = vmul.f32 %v281, %v281
      %v562 = vmul.f32 %v282, %v282
      %v563 = vmul.f32 %v283, %v283
      %v564 = vmul.f32 %v284, %v284
      %v565 = vmul.f32 %v285, %v285
      %v566 = vmul.f32 %v286, %v286
      %v567 = vmul.f32 %v287, %v287
      %v568 = vmul.f32 %v288, %v288
      %v569 = vmul.f32 %v289, %v289
      %v570 = vmul.f32 %v290, %v290
      %v571 = vmul.f32 %v291, %v291
      %v572 = vmul.f32 %v292, %v292
      %v573 = vmul.f32 %v293, %v293
      %v574 = vmul.f32 %v294, %v294
      %v575 = vmul.f32 %v295, %v295
      %v576 = vmul.f32 %v296, %v296
      %v577 = vmul.f32 %v297, %v297
      %v578 = vmul.f32 %v298, %v298
      %v579 = vmul.f32 %v299, %v299
      %v580 = vmul.f32 %v300, %v300
      %v581 = vmul.f32 %v301, %v301
      %v582 = vmul.f32 %v302, %v302
      %v583 = vmul.f32 %v303, %v303
      %v584 = vmul.f32 %v304, %v304
      %v585 = vmul.f32 %v305, %v305
      %v586 = vmul.f32 %v306, %v306
      %v587 = vmul.f32 %v307, %v307
      %v588 = vmul.f32 %v308, %v308
      %v589 = vmul.f32 %v309, %v309
      %v590 = vmul.f32 %v310, %v310
      %v591 = vmul.f32 %v311, %v311
      %v592 = vmul.f32 %v312, %v312
      %v593 = vmul.f32 %v313, %v313
      %v594 = vmul.f32 %v314, %v314
      %v595 = vmul.f32 %v315, %v315
      %v596 = vmul.f32 %v316, %v316
      %v597 = vadd.f32 %v460, %v461
      %v598 = vadd.f32 %v597, %v462
      %v599 = vadd.f32 %v598, %v463
      %v600 = vadd.f32 %v599, %v464
      %v601 = vadd.f32 %v600, %v465
      %v602 = vadd.f32 %v601, %v466
      %v603 = vadd.f32 %v602, %v467
      %v604 = vadd.f32 %v603, %v468
      %v605 = vadd.f32 %v604, %v469
      %v606 = vadd.f32 %v605, %v470
      %v607 = vadd.f32 %v606, %v471
      %v608 = vadd.f32 %v607, %v472
      %v609 = vadd.f32 %v608, %v473
      %v610 = vadd.f32 %v609, %v474
      %v611 = vadd.f32 %v610, %v475
      %v612 = vadd.f32 %v611, %v476
      %v613 = vadd.f32 %v612, %v477
      %v614 = vadd.f32 %v613, %v478
      %v615 = vadd.f32 %v614, %v479
      %v616 = vadd.f32 %v615, %v480
      %v617 = vadd.f32 %v616, %v481
      %v618 = vadd.f32 %v617, %v482
      %v619 = vadd.f32 %v618, %v483
      %v620 = vadd.f32 %v619, %v484
      %v621 = vadd.f32 %v620, %v485
      %v622 = vadd.f32 %v621, %v486
      %v623 = vadd.f32 %v622, %v487
      %v624 = vadd.f32 %v623, %v488
      %v625 = vadd.f32 %v624, %v489
      %v626 = vadd.f32 %v625, %v490
      %v627 = vadd.f32 %v626, %v491
      %v628 = vadd.f32 %v627, %v492
      %v629 = vadd.f32 %v628, %v493
      %v630 = vadd.f32 %v629, %v494
      %v631 = vadd.f32 %v630, %v495
      %v632 = vadd.f32 %v631, %v496
      %v633 = vadd.f32 %v632, %v497
      %v634 = vadd.f32 %v633, %v498
      %v635 = vadd.f32 %v634, %v499
      %v636 = vadd.f32 %v635, %v500
      %v637 = vadd.f32 %v636, %v501
      %v638 = vadd.f32 %v637, %v502
      %v639 = vadd.f32 %v638, %v503
      %v640 = vadd.f32 %v639, %v504
      %v641 = vadd.f32 %v640, %v505
      %v642 = vadd.f32 %v641, %v506
      %v643 = vadd.f32 %v642, %v507
      %v644 = vadd.f32 %v643, %v508
      %v645 = vadd.f32 %v644, %v509
      %v646 = vadd.f32 %v645, %v510
      %v647 = vadd.f32 %v646, %v511
      %v648 = vadd.f32 %v647, %v512
      %v649 = vadd.f32 %v648, %v513
      %v650 = vadd.f32 %v649, %v514
      %v651 = vadd.f32 %v650, %v515
      %v652 = vadd.f32 %v651, %v516
      %v653 = vadd.f32 %v652, %v517
      %v654 = vadd.f32 %v653, %v518
      %v655 = vadd.f32 %v654, %v519
      %v656 = vadd.f32 %v655, %v520
      %v657 = vadd.f32 %v656, %v521
      %v658 = vadd.f32 %v657, %v522
      %v659 = vadd.f32 %v658, %v523
      %v660 = vadd.f32 %v659, %v524
      %v661 = vadd.f32 %v660, %v525
      %v662 = vadd.f32 %v661, %v526
      %v663 = vadd.f32 %v662, %v527
      %v664 = vadd.f32 %v663, %v528
      %v665 = vadd.f32 %v664, %v529
      %v666 = vadd.f32 %v665, %v530
      %v667 = vadd.f32 %v666, %v531
      %v668 = vadd.f32 %v667, %v532
      %v669 = vadd.f32 %v668, %v533
      %v670 = vadd.f32 %v669, %v534
      %v671 = vadd.f32 %v670, %v535
      %v672 = vadd.f32 %v671, %v536
      %v673 = vadd.f32 %v672, %v537
      %v674 = vadd.f32 %v673, %v538
      %v675 = vadd.f32 %v674, %v539
      %v676 = vadd.f32 %v675, %v540
      %v677 = vadd.f32 %v676, %v541
      %v678 = vadd.f32 %v677, %v542
      %v679 = vadd.f32 %v678, %v543
      %v680 = vadd.f32 %v679, %v544
      %v681 = vadd.f32 %v680, %v545
      %v682 = vadd.f32 %v681, %v546
      %v683 = vadd.f32 %v682, %v547
      %v684 = vadd.f32 %v683, %v548
      %v685 = vadd.f32 %v684, %v549
      %v686 = vadd.f32 %v685, %v550
      %v687 = vadd.f32 %v686, %v551
      %v688 = vadd.f32 %v687, %v552
      %v689 = vadd.f32 %v688, %v553
      %v690 = vadd.f32 %v689, %v554
      %v691 = vadd.f32 %v690, %v555
      %v692 = vadd.f32 %v691, %v556
      %v693 = vadd.f32 %v692, %v557
      %v694 = vadd.f32 %v693, %v558
      %v695 = vadd.f32 %v694, %v559
      %v696 = vadd.f32 %v695, %v560
      %v697 = vadd.f32 %v696, %v561
      %v698 = vadd.f32 %v697, %v562
      %v699 = vadd.f32 %v698, %v563
      %v700 = vadd.f32 %v699, %v564
      %v701 = vadd.f32 %v700, %v565
      %v702 = vadd.f32 %v701, %v566
      %v703 = vadd.f32 %v702, %v567
      %v704 = vadd.f32 %v703, %v568
      %v705 = vadd.f32 %v704, %v569
      %v706 = vadd.f32 %v705, %v570
      %v707 = vadd.f32 %v706, %v571
      %v708 = vadd.f32 %v707, %v572
      %v709 = vadd.f32 %v708, %v573
      %v710 = vadd.f32 %v709, %v574
      %v711 = vadd.f32 %v710, %v575
      %v712 = vadd.f32 %v711, %v576
      %v713 = vadd.f32 %v712, %v577
      %v714 = vadd.f32 %v713, %v578
      %v715 = vadd.f32 %v714, %v579
      %v716 = vadd.f32 %v715, %v580
      %v717 = vadd.f32 %v716, %v581
      %v718 = vadd.f32 %v717, %v582
      %v719 = vadd.f32 %v718, %v583
      %v720 = vadd.f32 %v719, %v584
      %v721 = vadd.f32 %v720, %v585
      %v722 = vadd.f32 %v721, %v586
      %v723 = vadd.f32 %v722, %v587
      %v724 = vadd.f32 %v723, %v588
      %v725 = vadd.f32 %v724, %v589
      %v726 = vadd.f32 %v725, %v590
      %v727 = vadd.f32 %v726, %v591
      %v728 = vadd.f32 %v727, %v592
      %v729 = vadd.f32 %v728, %v593
      %v730 = vadd.f32 %v729, %v594
      %v731 = vadd.f32 %v730, %v595
      %v732 = vadd.f32 %v731, %v596
      %v733 = vrot.slane %v732, 4
      %v734 = vadd.f32 %v732, %v733
      %v735 = vrot.slane %v734, 2
      %v736 = vadd.f32 %v734, %v735
      %v737 = vrot.slane %v736, 1
      %v738 = vadd.f32 %v736, %v737
      %v739 = vmul.f32 %v738, 0.0012755102
      %v740 = vmul.f32 %v459, %v459
      %v741 = vsub.f32 %v739, %v740
      %v742 = vld [vmem:[%s1] sm:$0x1]
      %v743 = vadd.f32 %v741, 1e-05
      %v744 = vrsqrt.pop %v743
      %v745 = vmul.f32 %v742, %v744
      %v746 = vld [vmem:[%s2] sm:$0x1]
      %v747 = vmul.f32 %v459, %v745
      %v748 = vsub.f32 %v746, %v747
      %s749 = smul.u32 %s15, 512
      %s750 = scalar_lea.vmem %s0, %s749
      %v751 = vld [vmem:[%s750] sm:$0xff]
      %v752 = vld [vmem:[%s750 + $0x8] sm:$0xff]
      %v753 = vld [vmem:[%s750 + $0x10] sm:$0xff]
      %v754 = vld [vmem:[%s750 + $0x18] sm:$0xff]
      %v755 = vld [vmem:[%s750 + $0x20] sm:$0xff]
      %v756 = vld [vmem:[%s750 + $0x28] sm:$0xff]
      %v757 = vld [vmem:[%s750 + $0x30] sm:$0xff]
      %v758 = vld [vmem:[%s750 + $0x38] sm:$0xff]
      %v759 = vld [vmem:[%s750 + $0x40] sm:$0xff]
      %v760 = vld [vmem:[%s750 + $0x48] sm:$0xff]
      %v761 = vld [vmem:[%s750 + $0x50] sm:$0xff]
      %v762 = vld [vmem:[%s750 + $0x58] sm:$0xff]
      %v763 = vld [vmem:[%s750 + $0x60] sm:$0xff]
      %v764 = vld [vmem:[%s750 + $0x68] sm:$0xff]
      %v765 = vld [vmem:[%s750 + $0x70] sm:$0xff]
      %v766 = vld [vmem:[%s750 + $0x78] sm:$0xff]
      %v767 = vld [vmem:[%s750 + $0x80] sm:$0xff]
      %v768 = vld [vmem:[%s750 + $0x88] sm:$0xff]
      %v769 = vld [vmem:[%s750 + $0x90] sm:$0xff]
      %v770 = vld [vmem:[%s750 + $0x98] sm:$0xff]
      %v771 = vld [vmem:[%s750 + $0xa0] sm:$0xff]
      %v772 = vld [vmem:[%s750 + $0xa8] sm:$0xff]
      %v773 = vld [vmem:[%s750 + $0xb0] sm:$0xff]
      %v774 = vld [vmem:[%s750 + $0xb8] sm:$0xff]
      %v775 = vld [vmem:[%s750 + $0xc0] sm:$0xff]
      %v776 = vld [vmem:[%s750 + $0xc8] sm:$0xff]
      %v777 = vld [vmem:[%s750 + $0xd0] sm:$0xff]
      %v778 = vld [vmem:[%s750 + $0xd8] sm:$0xff]
      %v779 = vld [vmem:[%s750 + $0xe0] sm:$0xff]
      %v780 = vld [vmem:[%s750 + $0xe8] sm:$0xff]
      %v781 = vld [vmem:[%s750 + $0xf0] sm:$0xff]
      %v782 = vld [vmem:[%s750 + $0xf8] sm:$0xff]
      %v783 = vld [vmem:[%s750 + $0x100] sm:$0xff]
      %v784 = vld [vmem:[%s750 + $0x108] sm:$0xff]
      %v785 = vld [vmem:[%s750 + $0x110] sm:$0xff]
      %v786 = vld [vmem:[%s750 + $0x118] sm:$0xff]
      %v787 = vld [vmem:[%s750 + $0x120] sm:$0xff]
      %v788 = vld [vmem:[%s750 + $0x128] sm:$0xff]
      %v789 = vld [vmem:[%s750 + $0x130] sm:$0xff]
      %v790 = vld [vmem:[%s750 + $0x138] sm:$0xff]
      %v791 = vld [vmem:[%s750 + $0x140] sm:$0xff]
      %v792 = vld [vmem:[%s750 + $0x148] sm:$0xff]
      %v793 = vld [vmem:[%s750 + $0x150] sm:$0xff]
      %v794 = vld [vmem:[%s750 + $0x158] sm:$0xff]
      %v795 = vld [vmem:[%s750 + $0x160] sm:$0xff]
      %v796 = vld [vmem:[%s750 + $0x168] sm:$0xff]
      %v797 = vld [vmem:[%s750 + $0x170] sm:$0xff]
      %v798 = vld [vmem:[%s750 + $0x178] sm:$0xff]
      %v799 = vld [vmem:[%s750 + $0x180] sm:$0xff]
      %v800 = vld [vmem:[%s750 + $0x188] sm:$0xff]
      %v801 = vld [vmem:[%s750 + $0x190] sm:$0xff]
      %v802 = vld [vmem:[%s750 + $0x198] sm:$0xff]
      %v803 = vld [vmem:[%s750 + $0x1a0] sm:$0xff]
      %v804 = vld [vmem:[%s750 + $0x1a8] sm:$0xff]
      %v805 = vld [vmem:[%s750 + $0x1b0] sm:$0xff]
      %v806 = vld [vmem:[%s750 + $0x1b8] sm:$0xff]
      %v807 = vld [vmem:[%s750 + $0x1c0] sm:$0xff]
      %v808 = vld [vmem:[%s750 + $0x1c8] sm:$0xff]
      %v809 = vld [vmem:[%s750 + $0x1d0] sm:$0xff]
      %v810 = vld [vmem:[%s750 + $0x1d8] sm:$0xff]
      %v811 = vld [vmem:[%s750 + $0x1e0] sm:$0xff]
      %v812 = vld [vmem:[%s750 + $0x1e8] sm:$0xff]
      %v813 = vld [vmem:[%s750 + $0x1f0] sm:$0xff]
      %v814 = vld [vmem:[%s750 + $0x1f8] sm:$0xff]
      %v815 = vld [vmem:[%s750 + $0x200] sm:$0xff]
      %v816 = vld [vmem:[%s750 + $0x208] sm:$0xff]
      %v817 = vld [vmem:[%s750 + $0x210] sm:$0xff]
      %v818 = vld [vmem:[%s750 + $0x218] sm:$0xff]
      %v819 = vld [vmem:[%s750 + $0x220] sm:$0xff]
      %v820 = vld [vmem:[%s750 + $0x228] sm:$0xff]
      %v821 = vld [vmem:[%s750 + $0x230] sm:$0xff]
      %v822 = vld [vmem:[%s750 + $0x238] sm:$0xff]
      %v823 = vld [vmem:[%s750 + $0x240] sm:$0xff]
      %v824 = vlaneseq
      %v825 = vshrl.u32 %v824, 7
      %v826 = vadd.s32 %v825, 8
      %v827 = vadd.s32 %v825, 16
      %v828 = vadd.s32 %v825, 24
      %v829 = vadd.s32 %v825, 32
      %v830 = vadd.s32 %v825, 40
      %v831 = vadd.s32 %v825, 48
      %v832 = vadd.s32 %v825, 56
      %v833 = vadd.s32 %v825, 64
      %v834 = vadd.s32 %v825, 72
      %v835 = vadd.s32 %v825, 80
      %v836 = vadd.s32 %v825, 88
      %v837 = vadd.s32 %v825, 96
      %v838 = vadd.s32 %v825, 104
      %v839 = vadd.s32 %v825, 112
      %v840 = vadd.s32 %v825, 120
      %v841 = vadd.s32 %v825, 128
      %v842 = vadd.s32 %v825, 136
      %v843 = vadd.s32 %v825, 144
      %v844 = vadd.s32 %v825, 152
      %v845 = vadd.s32 %v825, 160
      %v846 = vadd.s32 %v825, 168
      %v847 = vadd.s32 %v825, 176
      %v848 = vadd.s32 %v825, 184
      %v849 = vadd.s32 %v825, 192
      %v850 = vadd.s32 %v825, 200
      %v851 = vadd.s32 %v825, 208
      %v852 = vadd.s32 %v825, 216
      %v853 = vadd.s32 %v825, 224
      %v854 = vadd.s32 %v825, 232
      %v855 = vadd.s32 %v825, 240
      %v856 = vadd.s32 %v825, 248
      %v857 = vadd.s32 %v825, 256
      %v858 = vadd.s32 %v825, 264
      %v859 = vadd.s32 %v825, 272
      %v860 = vadd.s32 %v825, 280
      %v861 = vadd.s32 %v825, 288
      %v862 = vadd.s32 %v825, 296
      %v863 = vadd.s32 %v825, 304
      %v864 = vadd.s32 %v825, 312
      %v865 = vadd.s32 %v825, 320
      %v866 = vadd.s32 %v825, 328
      %v867 = vadd.s32 %v825, 336
      %v868 = vadd.s32 %v825, 344
      %v869 = vadd.s32 %v825, 352
      %v870 = vadd.s32 %v825, 360
      %v871 = vadd.s32 %v825, 368
      %v872 = vadd.s32 %v825, 376
      %v873 = vadd.s32 %v825, 384
      %v874 = vadd.s32 %v825, 392
      %v875 = vadd.s32 %v825, 400
      %v876 = vadd.s32 %v825, 408
      %v877 = vadd.s32 %v825, 416
      %v878 = vadd.s32 %v825, 424
      %v879 = vadd.s32 %v825, 432
      %v880 = vadd.s32 %v825, 440
      %v881 = vadd.s32 %v825, 448
      %v882 = vadd.s32 %v825, 456
      %v883 = vadd.s32 %v825, 464
      %v884 = vadd.s32 %v825, 472
      %v885 = vadd.s32 %v825, 480
      %v886 = vadd.s32 %v825, 488
      %v887 = vadd.s32 %v825, 496
      %v888 = vadd.s32 %v825, 504
      %v889 = vadd.s32 %v825, 512
      %v890 = vadd.s32 %v825, 520
      %v891 = vadd.s32 %v825, 528
      %v892 = vadd.s32 %v825, 536
      %v893 = vadd.s32 %v825, 544
      %v894 = vadd.s32 %v825, 552
      %v895 = vadd.s32 %v825, 560
      %v896 = vadd.s32 %v825, 568
      %v897 = vadd.s32 %v825, 576
      %v898 = vstv %s749
      %v899 = vadd.s32 %v898, %v825
      %v900 = vadd.s32 %v898, %v826
      %v901 = vadd.s32 %v898, %v827
      %v902 = vadd.s32 %v898, %v828
      %v903 = vadd.s32 %v898, %v829
      %v904 = vadd.s32 %v898, %v830
      %v905 = vadd.s32 %v898, %v831
      %v906 = vadd.s32 %v898, %v832
      %v907 = vadd.s32 %v898, %v833
      %v908 = vadd.s32 %v898, %v834
      %v909 = vadd.s32 %v898, %v835
      %v910 = vadd.s32 %v898, %v836
      %v911 = vadd.s32 %v898, %v837
      %v912 = vadd.s32 %v898, %v838
      %v913 = vadd.s32 %v898, %v839
      %v914 = vadd.s32 %v898, %v840
      %v915 = vadd.s32 %v898, %v841
      %v916 = vadd.s32 %v898, %v842
      %v917 = vadd.s32 %v898, %v843
      %v918 = vadd.s32 %v898, %v844
      %v919 = vadd.s32 %v898, %v845
      %v920 = vadd.s32 %v898, %v846
      %v921 = vadd.s32 %v898, %v847
      %v922 = vadd.s32 %v898, %v848
      %v923 = vadd.s32 %v898, %v849
      %v924 = vadd.s32 %v898, %v850
      %v925 = vadd.s32 %v898, %v851
      %v926 = vadd.s32 %v898, %v852
      %v927 = vadd.s32 %v898, %v853
      %v928 = vadd.s32 %v898, %v854
      %v929 = vadd.s32 %v898, %v855
      %v930 = vadd.s32 %v898, %v856
      %v931 = vadd.s32 %v898, %v857
      %v932 = vadd.s32 %v898, %v858
      %v933 = vadd.s32 %v898, %v859
      %v934 = vadd.s32 %v898, %v860
      %v935 = vadd.s32 %v898, %v861
      %v936 = vadd.s32 %v898, %v862
      %v937 = vadd.s32 %v898, %v863
      %v938 = vadd.s32 %v898, %v864
      %v939 = vadd.s32 %v898, %v865
      %v940 = vadd.s32 %v898, %v866
      %v941 = vadd.s32 %v898, %v867
      %v942 = vadd.s32 %v898, %v868
      %v943 = vadd.s32 %v898, %v869
      %v944 = vadd.s32 %v898, %v870
      %v945 = vadd.s32 %v898, %v871
      %v946 = vadd.s32 %v898, %v872
      %v947 = vadd.s32 %v898, %v873
      %v948 = vadd.s32 %v898, %v874
      %v949 = vadd.s32 %v898, %v875
      %v950 = vadd.s32 %v898, %v876
      %v951 = vadd.s32 %v898, %v877
      %v952 = vadd.s32 %v898, %v878
      %v953 = vadd.s32 %v898, %v879
      %v954 = vadd.s32 %v898, %v880
      %v955 = vadd.s32 %v898, %v881
      %v956 = vadd.s32 %v898, %v882
      %v957 = vadd.s32 %v898, %v883
      %v958 = vadd.s32 %v898, %v884
      %v959 = vadd.s32 %v898, %v885
      %v960 = vadd.s32 %v898, %v886
      %v961 = vadd.s32 %v898, %v887
      %v962 = vadd.s32 %v898, %v888
      %v963 = vadd.s32 %v898, %v889
      %v964 = vadd.s32 %v898, %v890
      %v965 = vadd.s32 %v898, %v891
      %v966 = vadd.s32 %v898, %v892
      %v967 = vadd.s32 %v898, %v893
      %v968 = vadd.s32 %v898, %v894
      %v969 = vadd.s32 %v898, %v895
      %v970 = vadd.s32 %v898, %v896
      %v971 = vadd.s32 %v898, %v897
      %v972 = vsub.s32 %v899, 33
      %v973 = vsub.s32 %v900, 33
      %v974 = vsub.s32 %v901, 33
      %v975 = vsub.s32 %v902, 33
      %v976 = vsub.s32 %v903, 33
      %v977 = vsub.s32 %v904, 33
      %v978 = vsub.s32 %v905, 33
      %v979 = vsub.s32 %v906, 33
      %v980 = vsub.s32 %v907, 33
      %v981 = vsub.s32 %v908, 33
      %v982 = vsub.s32 %v909, 33
      %v983 = vsub.s32 %v910, 33
      %v984 = vsub.s32 %v911, 33
      %v985 = vsub.s32 %v912, 33
      %v986 = vsub.s32 %v913, 33
      %v987 = vsub.s32 %v914, 33
      %v988 = vsub.s32 %v915, 33
      %v989 = vsub.s32 %v916, 33
      %v990 = vsub.s32 %v917, 33
      %v991 = vsub.s32 %v918, 33
      %v992 = vsub.s32 %v919, 33
      %v993 = vsub.s32 %v920, 33
      %v994 = vsub.s32 %v921, 33
      %v995 = vsub.s32 %v922, 33
      %v996 = vsub.s32 %v923, 33
      %v997 = vsub.s32 %v924, 33
      %v998 = vsub.s32 %v925, 33
      %v999 = vsub.s32 %v926, 33
      %v1000 = vsub.s32 %v927, 33
      %v1001 = vsub.s32 %v928, 33
      %v1002 = vsub.s32 %v929, 33
      %v1003 = vsub.s32 %v930, 33
      %v1004 = vsub.s32 %v931, 33
      %v1005 = vsub.s32 %v932, 33
      %v1006 = vsub.s32 %v933, 33
      %v1007 = vsub.s32 %v934, 33
      %v1008 = vsub.s32 %v935, 33
      %v1009 = vsub.s32 %v936, 33
      %v1010 = vsub.s32 %v937, 33
      %v1011 = vsub.s32 %v938, 33
      %v1012 = vsub.s32 %v939, 33
      %v1013 = vsub.s32 %v940, 33
      %v1014 = vsub.s32 %v941, 33
      %v1015 = vsub.s32 %v942, 33
      %v1016 = vsub.s32 %v943, 33
      %v1017 = vsub.s32 %v944, 33
      %v1018 = vsub.s32 %v945, 33
      %v1019 = vsub.s32 %v946, 33
      %v1020 = vsub.s32 %v947, 33
      %v1021 = vsub.s32 %v948, 33
      %v1022 = vsub.s32 %v949, 33
      %v1023 = vsub.s32 %v950, 33
      %v1024 = vsub.s32 %v951, 33
      %v1025 = vsub.s32 %v952, 33
      %v1026 = vsub.s32 %v953, 33
      %v1027 = vsub.s32 %v954, 33
      %v1028 = vsub.s32 %v955, 33
      %v1029 = vsub.s32 %v956, 33
      %v1030 = vsub.s32 %v957, 33
      %v1031 = vsub.s32 %v958, 33
      %v1032 = vsub.s32 %v959, 33
      %v1033 = vsub.s32 %v960, 33
      %v1034 = vsub.s32 %v961, 33
      %v1035 = vsub.s32 %v962, 33
      %v1036 = vsub.s32 %v963, 33
      %v1037 = vsub.s32 %v964, 33
      %v1038 = vsub.s32 %v965, 33
      %v1039 = vsub.s32 %v966, 33
      %v1040 = vsub.s32 %v967, 33
      %v1041 = vsub.s32 %v968, 33
      %v1042 = vsub.s32 %v969, 33
      %v1043 = vsub.s32 %v970, 33
      %v1044 = vsub.s32 %v971, 33
      %vm1045 = vcmp.gt.s32.totalorder %v972, 0
      %v1046 = vsel %vm1045, %v972, 0
      %vm1047 = vcmp.gt.s32.totalorder %v973, 0
      %v1048 = vsel %vm1047, %v973, 0
      %vm1049 = vcmp.gt.s32.totalorder %v974, 0
      %v1050 = vsel %vm1049, %v974, 0
      %vm1051 = vcmp.gt.s32.totalorder %v975, 0
      %v1052 = vsel %vm1051, %v975, 0
      %vm1053 = vcmp.gt.s32.totalorder %v976, 0
      %v1054 = vsel %vm1053, %v976, 0
      %vm1055 = vcmp.gt.s32.totalorder %v977, 0
      %v1056 = vsel %vm1055, %v977, 0
      %vm1057 = vcmp.gt.s32.totalorder %v978, 0
      %v1058 = vsel %vm1057, %v978, 0
      %vm1059 = vcmp.gt.s32.totalorder %v979, 0
      %v1060 = vsel %vm1059, %v979, 0
      %vm1061 = vcmp.gt.s32.totalorder %v980, 0
      %v1062 = vsel %vm1061, %v980, 0
      %vm1063 = vcmp.gt.s32.totalorder %v981, 0
      %v1064 = vsel %vm1063, %v981, 0
      %vm1065 = vcmp.gt.s32.totalorder %v982, 0
      %v1066 = vsel %vm1065, %v982, 0
      %vm1067 = vcmp.gt.s32.totalorder %v983, 0
      %v1068 = vsel %vm1067, %v983, 0
      %vm1069 = vcmp.gt.s32.totalorder %v984, 0
      %v1070 = vsel %vm1069, %v984, 0
      %vm1071 = vcmp.gt.s32.totalorder %v985, 0
      %v1072 = vsel %vm1071, %v985, 0
      %vm1073 = vcmp.gt.s32.totalorder %v986, 0
      %v1074 = vsel %vm1073, %v986, 0
      %vm1075 = vcmp.gt.s32.totalorder %v987, 0
      %v1076 = vsel %vm1075, %v987, 0
      %vm1077 = vcmp.gt.s32.totalorder %v988, 0
      %v1078 = vsel %vm1077, %v988, 0
      %vm1079 = vcmp.gt.s32.totalorder %v989, 0
      %v1080 = vsel %vm1079, %v989, 0
      %vm1081 = vcmp.gt.s32.totalorder %v990, 0
      %v1082 = vsel %vm1081, %v990, 0
      %vm1083 = vcmp.gt.s32.totalorder %v991, 0
      %v1084 = vsel %vm1083, %v991, 0
      %vm1085 = vcmp.gt.s32.totalorder %v992, 0
      %v1086 = vsel %vm1085, %v992, 0
      %vm1087 = vcmp.gt.s32.totalorder %v993, 0
      %v1088 = vsel %vm1087, %v993, 0
      %vm1089 = vcmp.gt.s32.totalorder %v994, 0
      %v1090 = vsel %vm1089, %v994, 0
      %vm1091 = vcmp.gt.s32.totalorder %v995, 0
      %v1092 = vsel %vm1091, %v995, 0
      %vm1093 = vcmp.gt.s32.totalorder %v996, 0
      %v1094 = vsel %vm1093, %v996, 0
      %vm1095 = vcmp.gt.s32.totalorder %v997, 0
      %v1096 = vsel %vm1095, %v997, 0
      %vm1097 = vcmp.gt.s32.totalorder %v998, 0
      %v1098 = vsel %vm1097, %v998, 0
      %vm1099 = vcmp.gt.s32.totalorder %v999, 0
      %v1100 = vsel %vm1099, %v999, 0
      %vm1101 = vcmp.gt.s32.totalorder %v1000, 0
      %v1102 = vsel %vm1101, %v1000, 0
      %vm1103 = vcmp.gt.s32.totalorder %v1001, 0
      %v1104 = vsel %vm1103, %v1001, 0
      %vm1105 = vcmp.gt.s32.totalorder %v1002, 0
      %v1106 = vsel %vm1105, %v1002, 0
      %vm1107 = vcmp.gt.s32.totalorder %v1003, 0
      %v1108 = vsel %vm1107, %v1003, 0
      %vm1109 = vcmp.gt.s32.totalorder %v1004, 0
      %v1110 = vsel %vm1109, %v1004, 0
      %vm1111 = vcmp.gt.s32.totalorder %v1005, 0
      %v1112 = vsel %vm1111, %v1005, 0
      %vm1113 = vcmp.gt.s32.totalorder %v1006, 0
      %v1114 = vsel %vm1113, %v1006, 0
      %vm1115 = vcmp.gt.s32.totalorder %v1007, 0
      %v1116 = vsel %vm1115, %v1007, 0
      %vm1117 = vcmp.gt.s32.totalorder %v1008, 0
      %v1118 = vsel %vm1117, %v1008, 0
      %vm1119 = vcmp.gt.s32.totalorder %v1009, 0
      %v1120 = vsel %vm1119, %v1009, 0
      %vm1121 = vcmp.gt.s32.totalorder %v1010, 0
      %v1122 = vsel %vm1121, %v1010, 0
      %vm1123 = vcmp.gt.s32.totalorder %v1011, 0
      %v1124 = vsel %vm1123, %v1011, 0
      %vm1125 = vcmp.gt.s32.totalorder %v1012, 0
      %v1126 = vsel %vm1125, %v1012, 0
      %vm1127 = vcmp.gt.s32.totalorder %v1013, 0
      %v1128 = vsel %vm1127, %v1013, 0
      %vm1129 = vcmp.gt.s32.totalorder %v1014, 0
      %v1130 = vsel %vm1129, %v1014, 0
      %vm1131 = vcmp.gt.s32.totalorder %v1015, 0
      %v1132 = vsel %vm1131, %v1015, 0
      %vm1133 = vcmp.gt.s32.totalorder %v1016, 0
      %v1134 = vsel %vm1133, %v1016, 0
      %vm1135 = vcmp.gt.s32.totalorder %v1017, 0
      %v1136 = vsel %vm1135, %v1017, 0
      %vm1137 = vcmp.gt.s32.totalorder %v1018, 0
      %v1138 = vsel %vm1137, %v1018, 0
      %vm1139 = vcmp.gt.s32.totalorder %v1019, 0
      %v1140 = vsel %vm1139, %v1019, 0
      %vm1141 = vcmp.gt.s32.totalorder %v1020, 0
      %v1142 = vsel %vm1141, %v1020, 0
      %vm1143 = vcmp.gt.s32.totalorder %v1021, 0
      %v1144 = vsel %vm1143, %v1021, 0
      %vm1145 = vcmp.gt.s32.totalorder %v1022, 0
      %v1146 = vsel %vm1145, %v1022, 0
      %vm1147 = vcmp.gt.s32.totalorder %v1023, 0
      %v1148 = vsel %vm1147, %v1023, 0
      %vm1149 = vcmp.gt.s32.totalorder %v1024, 0
      %v1150 = vsel %vm1149, %v1024, 0
      %vm1151 = vcmp.gt.s32.totalorder %v1025, 0
      %v1152 = vsel %vm1151, %v1025, 0
      %vm1153 = vcmp.gt.s32.totalorder %v1026, 0
      %v1154 = vsel %vm1153, %v1026, 0
      %vm1155 = vcmp.gt.s32.totalorder %v1027, 0
      %v1156 = vsel %vm1155, %v1027, 0
      %vm1157 = vcmp.gt.s32.totalorder %v1028, 0
      %v1158 = vsel %vm1157, %v1028, 0
      %vm1159 = vcmp.gt.s32.totalorder %v1029, 0
      %v1160 = vsel %vm1159, %v1029, 0
      %vm1161 = vcmp.gt.s32.totalorder %v1030, 0
      %v1162 = vsel %vm1161, %v1030, 0
      %vm1163 = vcmp.gt.s32.totalorder %v1031, 0
      %v1164 = vsel %vm1163, %v1031, 0
      %vm1165 = vcmp.gt.s32.totalorder %v1032, 0
      %v1166 = vsel %vm1165, %v1032, 0
      %vm1167 = vcmp.gt.s32.totalorder %v1033, 0
      %v1168 = vsel %vm1167, %v1033, 0
      %vm1169 = vcmp.gt.s32.totalorder %v1034, 0
      %v1170 = vsel %vm1169, %v1034, 0
      %vm1171 = vcmp.gt.s32.totalorder %v1035, 0
      %v1172 = vsel %vm1171, %v1035, 0
      %vm1173 = vcmp.gt.s32.totalorder %v1036, 0
      %v1174 = vsel %vm1173, %v1036, 0
      %vm1175 = vcmp.gt.s32.totalorder %v1037, 0
      %v1176 = vsel %vm1175, %v1037, 0
      %vm1177 = vcmp.gt.s32.totalorder %v1038, 0
      %v1178 = vsel %vm1177, %v1038, 0
      %vm1179 = vcmp.gt.s32.totalorder %v1039, 0
      %v1180 = vsel %vm1179, %v1039, 0
      %vm1181 = vcmp.gt.s32.totalorder %v1040, 0
      %v1182 = vsel %vm1181, %v1040, 0
      %vm1183 = vcmp.gt.s32.totalorder %v1041, 0
      %v1184 = vsel %vm1183, %v1041, 0
      %vm1185 = vcmp.gt.s32.totalorder %v1042, 0
      %v1186 = vsel %vm1185, %v1042, 0
      %vm1187 = vcmp.gt.s32.totalorder %v1043, 0
      %v1188 = vsel %vm1187, %v1043, 0
      %vm1189 = vcmp.gt.s32.totalorder %v1044, 0
      %v1190 = vsel %vm1189, %v1044, 0
      %v1191 = vand.u32 %v1046, 31
      %v1192 = vand.u32 %v1048, 31
      %v1193 = vand.u32 %v1050, 31
      %v1194 = vand.u32 %v1052, 31
      %v1195 = vand.u32 %v1054, 31
      %v1196 = vand.u32 %v1056, 31
      %v1197 = vand.u32 %v1058, 31
      %v1198 = vand.u32 %v1060, 31
      %v1199 = vand.u32 %v1062, 31
      %v1200 = vand.u32 %v1064, 31
      %v1201 = vand.u32 %v1066, 31
      %v1202 = vand.u32 %v1068, 31
      %v1203 = vand.u32 %v1070, 31
      %v1204 = vand.u32 %v1072, 31
      %v1205 = vand.u32 %v1074, 31
      %v1206 = vand.u32 %v1076, 31
      %v1207 = vand.u32 %v1078, 31
      %v1208 = vand.u32 %v1080, 31
      %v1209 = vand.u32 %v1082, 31
      %v1210 = vand.u32 %v1084, 31
      %v1211 = vand.u32 %v1086, 31
      %v1212 = vand.u32 %v1088, 31
      %v1213 = vand.u32 %v1090, 31
      %v1214 = vand.u32 %v1092, 31
      %v1215 = vand.u32 %v1094, 31
      %v1216 = vand.u32 %v1096, 31
      %v1217 = vand.u32 %v1098, 31
      %v1218 = vand.u32 %v1100, 31
      %v1219 = vand.u32 %v1102, 31
      %v1220 = vand.u32 %v1104, 31
      %v1221 = vand.u32 %v1106, 31
      %v1222 = vand.u32 %v1108, 31
      %v1223 = vand.u32 %v1110, 31
      %v1224 = vand.u32 %v1112, 31
      %v1225 = vand.u32 %v1114, 31
      %v1226 = vand.u32 %v1116, 31
      %v1227 = vand.u32 %v1118, 31
      %v1228 = vand.u32 %v1120, 31
      %v1229 = vand.u32 %v1122, 31
      %v1230 = vand.u32 %v1124, 31
      %v1231 = vand.u32 %v1126, 31
      %v1232 = vand.u32 %v1128, 31
      %v1233 = vand.u32 %v1130, 31
      %v1234 = vand.u32 %v1132, 31
      %v1235 = vand.u32 %v1134, 31
      %v1236 = vand.u32 %v1136, 31
      %v1237 = vand.u32 %v1138, 31
      %v1238 = vand.u32 %v1140, 31
      %v1239 = vand.u32 %v1142, 31
      %v1240 = vand.u32 %v1144, 31
      %v1241 = vand.u32 %v1146, 31
      %v1242 = vand.u32 %v1148, 31
      %v1243 = vand.u32 %v1150, 31
      %v1244 = vand.u32 %v1152, 31
      %v1245 = vand.u32 %v1154, 31
      %v1246 = vand.u32 %v1156, 31
      %v1247 = vand.u32 %v1158, 31
      %v1248 = vand.u32 %v1160, 31
      %v1249 = vand.u32 %v1162, 31
      %v1250 = vand.u32 %v1164, 31
      %v1251 = vand.u32 %v1166, 31
      %v1252 = vand.u32 %v1168, 31
      %v1253 = vand.u32 %v1170, 31
      %v1254 = vand.u32 %v1172, 31
      %v1255 = vand.u32 %v1174, 31
      %v1256 = vand.u32 %v1176, 31
      %v1257 = vand.u32 %v1178, 31
      %v1258 = vand.u32 %v1180, 31
      %v1259 = vand.u32 %v1182, 31
      %v1260 = vand.u32 %v1184, 31
      %v1261 = vand.u32 %v1186, 31
      %v1262 = vand.u32 %v1188, 31
      %v1263 = vand.u32 %v1190, 31
      %v1264 = vshra.s32 %v1046, 5
      %v1265 = vshra.s32 %v1048, 5
      %v1266 = vshra.s32 %v1050, 5
      %v1267 = vshra.s32 %v1052, 5
      %v1268 = vshra.s32 %v1054, 5
      %v1269 = vshra.s32 %v1056, 5
      %v1270 = vshra.s32 %v1058, 5
      %v1271 = vshra.s32 %v1060, 5
      %v1272 = vshra.s32 %v1062, 5
      %v1273 = vshra.s32 %v1064, 5
      %v1274 = vshra.s32 %v1066, 5
      %v1275 = vshra.s32 %v1068, 5
      %v1276 = vshra.s32 %v1070, 5
      %v1277 = vshra.s32 %v1072, 5
      %v1278 = vshra.s32 %v1074, 5
      %v1279 = vshra.s32 %v1076, 5
      %v1280 = vshra.s32 %v1078, 5
      %v1281 = vshra.s32 %v1080, 5
      %v1282 = vshra.s32 %v1082, 5
      %v1283 = vshra.s32 %v1084, 5
      %v1284 = vshra.s32 %v1086, 5
      %v1285 = vshra.s32 %v1088, 5
      %v1286 = vshra.s32 %v1090, 5
      %v1287 = vshra.s32 %v1092, 5
      %v1288 = vshra.s32 %v1094, 5
      %v1289 = vshra.s32 %v1096, 5
      %v1290 = vshra.s32 %v1098, 5
      %v1291 = vshra.s32 %v1100, 5
      %v1292 = vshra.s32 %v1102, 5
      %v1293 = vshra.s32 %v1104, 5
      %v1294 = vshra.s32 %v1106, 5
      %v1295 = vshra.s32 %v1108, 5
      %v1296 = vshra.s32 %v1110, 5
      %v1297 = vshra.s32 %v1112, 5
      %v1298 = vshra.s32 %v1114, 5
      %v1299 = vshra.s32 %v1116, 5
      %v1300 = vshra.s32 %v1118, 5
      %v1301 = vshra.s32 %v1120, 5
      %v1302 = vshra.s32 %v1122, 5
      %v1303 = vshra.s32 %v1124, 5
      %v1304 = vshra.s32 %v1126, 5
      %v1305 = vshra.s32 %v1128, 5
      %v1306 = vshra.s32 %v1130, 5
      %v1307 = vshra.s32 %v1132, 5
      %v1308 = vshra.s32 %v1134, 5
      %v1309 = vshra.s32 %v1136, 5
      %v1310 = vshra.s32 %v1138, 5
      %v1311 = vshra.s32 %v1140, 5
      %v1312 = vshra.s32 %v1142, 5
      %v1313 = vshra.s32 %v1144, 5
      %v1314 = vshra.s32 %v1146, 5
      %v1315 = vshra.s32 %v1148, 5
      %v1316 = vshra.s32 %v1150, 5
      %v1317 = vshra.s32 %v1152, 5
      %v1318 = vshra.s32 %v1154, 5
      %v1319 = vshra.s32 %v1156, 5
      %v1320 = vshra.s32 %v1158, 5
      %v1321 = vshra.s32 %v1160, 5
      %v1322 = vshra.s32 %v1162, 5
      %v1323 = vshra.s32 %v1164, 5
      %v1324 = vshra.s32 %v1166, 5
      %v1325 = vshra.s32 %v1168, 5
      %v1326 = vshra.s32 %v1170, 5
      %v1327 = vshra.s32 %v1172, 5
      %v1328 = vshra.s32 %v1174, 5
      %v1329 = vshra.s32 %v1176, 5
      %v1330 = vshra.s32 %v1178, 5
      %v1331 = vshra.s32 %v1180, 5
      %v1332 = vshra.s32 %v1182, 5
      %v1333 = vshra.s32 %v1184, 5
      %v1334 = vshra.s32 %v1186, 5
      %v1335 = vshra.s32 %v1188, 5
      %v1336 = vshra.s32 %v1190, 5
      %v1337 = vand.u32 %v1264, 31
      %v1338 = vand.u32 %v1265, 31
      %v1339 = vand.u32 %v1266, 31
      %v1340 = vand.u32 %v1267, 31
      %v1341 = vand.u32 %v1268, 31
      %v1342 = vand.u32 %v1269, 31
      %v1343 = vand.u32 %v1270, 31
      %v1344 = vand.u32 %v1271, 31
      %v1345 = vand.u32 %v1272, 31
      %v1346 = vand.u32 %v1273, 31
      %v1347 = vand.u32 %v1274, 31
      %v1348 = vand.u32 %v1275, 31
      %v1349 = vand.u32 %v1276, 31
      %v1350 = vand.u32 %v1277, 31
      %v1351 = vand.u32 %v1278, 31
      %v1352 = vand.u32 %v1279, 31
      %v1353 = vand.u32 %v1280, 31
      %v1354 = vand.u32 %v1281, 31
      %v1355 = vand.u32 %v1282, 31
      %v1356 = vand.u32 %v1283, 31
      %v1357 = vand.u32 %v1284, 31
      %v1358 = vand.u32 %v1285, 31
      %v1359 = vand.u32 %v1286, 31
      %v1360 = vand.u32 %v1287, 31
      %v1361 = vand.u32 %v1288, 31
      %v1362 = vand.u32 %v1289, 31
      %v1363 = vand.u32 %v1290, 31
      %v1364 = vand.u32 %v1291, 31
      %v1365 = vand.u32 %v1292, 31
      %v1366 = vand.u32 %v1293, 31
      %v1367 = vand.u32 %v1294, 31
      %v1368 = vand.u32 %v1295, 31
      %v1369 = vand.u32 %v1296, 31
      %v1370 = vand.u32 %v1297, 31
      %v1371 = vand.u32 %v1298, 31
      %v1372 = vand.u32 %v1299, 31
      %v1373 = vand.u32 %v1300, 31
      %v1374 = vand.u32 %v1301, 31
      %v1375 = vand.u32 %v1302, 31
      %v1376 = vand.u32 %v1303, 31
      %v1377 = vand.u32 %v1304, 31
      %v1378 = vand.u32 %v1305, 31
      %v1379 = vand.u32 %v1306, 31
      %v1380 = vand.u32 %v1307, 31
      %v1381 = vand.u32 %v1308, 31
      %v1382 = vand.u32 %v1309, 31
      %v1383 = vand.u32 %v1310, 31
      %v1384 = vand.u32 %v1311, 31
      %v1385 = vand.u32 %v1312, 31
      %v1386 = vand.u32 %v1313, 31
      %v1387 = vand.u32 %v1314, 31
      %v1388 = vand.u32 %v1315, 31
      %v1389 = vand.u32 %v1316, 31
      %v1390 = vand.u32 %v1317, 31
      %v1391 = vand.u32 %v1318, 31
      %v1392 = vand.u32 %v1319, 31
      %v1393 = vand.u32 %v1320, 31
      %v1394 = vand.u32 %v1321, 31
      %v1395 = vand.u32 %v1322, 31
      %v1396 = vand.u32 %v1323, 31
      %v1397 = vand.u32 %v1324, 31
      %v1398 = vand.u32 %v1325, 31
      %v1399 = vand.u32 %v1326, 31
      %v1400 = vand.u32 %v1327, 31
      %v1401 = vand.u32 %v1328, 31
      %v1402 = vand.u32 %v1329, 31
      %v1403 = vand.u32 %v1330, 31
      %v1404 = vand.u32 %v1331, 31
      %v1405 = vand.u32 %v1332, 31
      %v1406 = vand.u32 %v1333, 31
      %v1407 = vand.u32 %v1334, 31
      %v1408 = vand.u32 %v1335, 31
      %v1409 = vand.u32 %v1336, 31
      %vm1410 = vcmp.ge.s32.totalorder %v972, 0
      %vm1411 = vcmp.ge.s32.totalorder %v973, 0
      %vm1412 = vcmp.ge.s32.totalorder %v974, 0
      %vm1413 = vcmp.ge.s32.totalorder %v975, 0
      %vm1414 = vcmp.ge.s32.totalorder %v976, 0
      %vm1415 = vcmp.ge.s32.totalorder %v977, 0
      %vm1416 = vcmp.ge.s32.totalorder %v978, 0
      %vm1417 = vcmp.ge.s32.totalorder %v979, 0
      %vm1418 = vcmp.ge.s32.totalorder %v980, 0
      %vm1419 = vcmp.ge.s32.totalorder %v981, 0
      %vm1420 = vcmp.ge.s32.totalorder %v982, 0
      %vm1421 = vcmp.ge.s32.totalorder %v983, 0
      %vm1422 = vcmp.ge.s32.totalorder %v984, 0
      %vm1423 = vcmp.ge.s32.totalorder %v985, 0
      %vm1424 = vcmp.ge.s32.totalorder %v986, 0
      %vm1425 = vcmp.ge.s32.totalorder %v987, 0
      %vm1426 = vcmp.ge.s32.totalorder %v988, 0
      %vm1427 = vcmp.ge.s32.totalorder %v989, 0
      %vm1428 = vcmp.ge.s32.totalorder %v990, 0
      %vm1429 = vcmp.ge.s32.totalorder %v991, 0
      %vm1430 = vcmp.ge.s32.totalorder %v992, 0
      %vm1431 = vcmp.ge.s32.totalorder %v993, 0
      %vm1432 = vcmp.ge.s32.totalorder %v994, 0
      %vm1433 = vcmp.ge.s32.totalorder %v995, 0
      %vm1434 = vcmp.ge.s32.totalorder %v996, 0
      %vm1435 = vcmp.ge.s32.totalorder %v997, 0
      %vm1436 = vcmp.ge.s32.totalorder %v998, 0
      %vm1437 = vcmp.ge.s32.totalorder %v999, 0
      %vm1438 = vcmp.ge.s32.totalorder %v1000, 0
      %vm1439 = vcmp.ge.s32.totalorder %v1001, 0
      %vm1440 = vcmp.ge.s32.totalorder %v1002, 0
      %vm1441 = vcmp.ge.s32.totalorder %v1003, 0
      %vm1442 = vcmp.ge.s32.totalorder %v1004, 0
      %vm1443 = vcmp.ge.s32.totalorder %v1005, 0
      %vm1444 = vcmp.ge.s32.totalorder %v1006, 0
      %vm1445 = vcmp.ge.s32.totalorder %v1007, 0
      %vm1446 = vcmp.ge.s32.totalorder %v1008, 0
      %vm1447 = vcmp.ge.s32.totalorder %v1009, 0
      %vm1448 = vcmp.ge.s32.totalorder %v1010, 0
      %vm1449 = vcmp.ge.s32.totalorder %v1011, 0
      %vm1450 = vcmp.ge.s32.totalorder %v1012, 0
      %vm1451 = vcmp.ge.s32.totalorder %v1013, 0
      %vm1452 = vcmp.ge.s32.totalorder %v1014, 0
      %vm1453 = vcmp.ge.s32.totalorder %v1015, 0
      %vm1454 = vcmp.ge.s32.totalorder %v1016, 0
      %vm1455 = vcmp.ge.s32.totalorder %v1017, 0
      %vm1456 = vcmp.ge.s32.totalorder %v1018, 0
      %vm1457 = vcmp.ge.s32.totalorder %v1019, 0
      %vm1458 = vcmp.ge.s32.totalorder %v1020, 0
      %vm1459 = vcmp.ge.s32.totalorder %v1021, 0
      %vm1460 = vcmp.ge.s32.totalorder %v1022, 0
      %vm1461 = vcmp.ge.s32.totalorder %v1023, 0
      %vm1462 = vcmp.ge.s32.totalorder %v1024, 0
      %vm1463 = vcmp.ge.s32.totalorder %v1025, 0
      %vm1464 = vcmp.ge.s32.totalorder %v1026, 0
      %vm1465 = vcmp.ge.s32.totalorder %v1027, 0
      %vm1466 = vcmp.ge.s32.totalorder %v1028, 0
      %vm1467 = vcmp.ge.s32.totalorder %v1029, 0
      %vm1468 = vcmp.ge.s32.totalorder %v1030, 0
      %vm1469 = vcmp.ge.s32.totalorder %v1031, 0
      %vm1470 = vcmp.ge.s32.totalorder %v1032, 0
      %vm1471 = vcmp.ge.s32.totalorder %v1033, 0
      %vm1472 = vcmp.ge.s32.totalorder %v1034, 0
      %vm1473 = vcmp.ge.s32.totalorder %v1035, 0
      %vm1474 = vcmp.ge.s32.totalorder %v1036, 0
      %vm1475 = vcmp.ge.s32.totalorder %v1037, 0
      %vm1476 = vcmp.ge.s32.totalorder %v1038, 0
      %vm1477 = vcmp.ge.s32.totalorder %v1039, 0
      %vm1478 = vcmp.ge.s32.totalorder %v1040, 0
      %vm1479 = vcmp.ge.s32.totalorder %v1041, 0
      %vm1480 = vcmp.ge.s32.totalorder %v1042, 0
      %vm1481 = vcmp.ge.s32.totalorder %v1043, 0
      %vm1482 = vcmp.ge.s32.totalorder %v1044, 0
      %vm1483 = vcmp.lt.s32.totalorder %v972, 1024
      %vm1484 = vcmp.lt.s32.totalorder %v973, 1024
      %vm1485 = vcmp.lt.s32.totalorder %v974, 1024
      %vm1486 = vcmp.lt.s32.totalorder %v975, 1024
      %vm1487 = vcmp.lt.s32.totalorder %v976, 1024
      %vm1488 = vcmp.lt.s32.totalorder %v977, 1024
      %vm1489 = vcmp.lt.s32.totalorder %v978, 1024
      %vm1490 = vcmp.lt.s32.totalorder %v979, 1024
      %vm1491 = vcmp.lt.s32.totalorder %v980, 1024
      %vm1492 = vcmp.lt.s32.totalorder %v981, 1024
      %vm1493 = vcmp.lt.s32.totalorder %v982, 1024
      %vm1494 = vcmp.lt.s32.totalorder %v983, 1024
      %vm1495 = vcmp.lt.s32.totalorder %v984, 1024
      %vm1496 = vcmp.lt.s32.totalorder %v985, 1024
      %vm1497 = vcmp.lt.s32.totalorder %v986, 1024
      %vm1498 = vcmp.lt.s32.totalorder %v987, 1024
      %vm1499 = vcmp.lt.s32.totalorder %v988, 1024
      %vm1500 = vcmp.lt.s32.totalorder %v989, 1024
      %vm1501 = vcmp.lt.s32.totalorder %v990, 1024
      %vm1502 = vcmp.lt.s32.totalorder %v991, 1024
      %vm1503 = vcmp.lt.s32.totalorder %v992, 1024
      %vm1504 = vcmp.lt.s32.totalorder %v993, 1024
      %vm1505 = vcmp.lt.s32.totalorder %v994, 1024
      %vm1506 = vcmp.lt.s32.totalorder %v995, 1024
      %vm1507 = vcmp.lt.s32.totalorder %v996, 1024
      %vm1508 = vcmp.lt.s32.totalorder %v997, 1024
      %vm1509 = vcmp.lt.s32.totalorder %v998, 1024
      %vm1510 = vcmp.lt.s32.totalorder %v999, 1024
      %vm1511 = vcmp.lt.s32.totalorder %v1000, 1024
      %vm1512 = vcmp.lt.s32.totalorder %v1001, 1024
      %vm1513 = vcmp.lt.s32.totalorder %v1002, 1024
      %vm1514 = vcmp.lt.s32.totalorder %v1003, 1024
      %vm1515 = vcmp.lt.s32.totalorder %v1004, 1024
      %vm1516 = vcmp.lt.s32.totalorder %v1005, 1024
      %vm1517 = vcmp.lt.s32.totalorder %v1006, 1024
      %vm1518 = vcmp.lt.s32.totalorder %v1007, 1024
      %vm1519 = vcmp.lt.s32.totalorder %v1008, 1024
      %vm1520 = vcmp.lt.s32.totalorder %v1009, 1024
      %vm1521 = vcmp.lt.s32.totalorder %v1010, 1024
      %vm1522 = vcmp.lt.s32.totalorder %v1011, 1024
      %vm1523 = vcmp.lt.s32.totalorder %v1012, 1024
      %vm1524 = vcmp.lt.s32.totalorder %v1013, 1024
      %vm1525 = vcmp.lt.s32.totalorder %v1014, 1024
      %vm1526 = vcmp.lt.s32.totalorder %v1015, 1024
      %vm1527 = vcmp.lt.s32.totalorder %v1016, 1024
      %vm1528 = vcmp.lt.s32.totalorder %v1017, 1024
      %vm1529 = vcmp.lt.s32.totalorder %v1018, 1024
      %vm1530 = vcmp.lt.s32.totalorder %v1019, 1024
      %vm1531 = vcmp.lt.s32.totalorder %v1020, 1024
      %vm1532 = vcmp.lt.s32.totalorder %v1021, 1024
      %vm1533 = vcmp.lt.s32.totalorder %v1022, 1024
      %vm1534 = vcmp.lt.s32.totalorder %v1023, 1024
      %vm1535 = vcmp.lt.s32.totalorder %v1024, 1024
      %vm1536 = vcmp.lt.s32.totalorder %v1025, 1024
      %vm1537 = vcmp.lt.s32.totalorder %v1026, 1024
      %vm1538 = vcmp.lt.s32.totalorder %v1027, 1024
      %vm1539 = vcmp.lt.s32.totalorder %v1028, 1024
      %vm1540 = vcmp.lt.s32.totalorder %v1029, 1024
      %vm1541 = vcmp.lt.s32.totalorder %v1030, 1024
      %vm1542 = vcmp.lt.s32.totalorder %v1031, 1024
      %vm1543 = vcmp.lt.s32.totalorder %v1032, 1024
      %vm1544 = vcmp.lt.s32.totalorder %v1033, 1024
      %vm1545 = vcmp.lt.s32.totalorder %v1034, 1024
      %vm1546 = vcmp.lt.s32.totalorder %v1035, 1024
      %vm1547 = vcmp.lt.s32.totalorder %v1036, 1024
      %vm1548 = vcmp.lt.s32.totalorder %v1037, 1024
      %vm1549 = vcmp.lt.s32.totalorder %v1038, 1024
      %vm1550 = vcmp.lt.s32.totalorder %v1039, 1024
      %vm1551 = vcmp.lt.s32.totalorder %v1040, 1024
      %vm1552 = vcmp.lt.s32.totalorder %v1041, 1024
      %vm1553 = vcmp.lt.s32.totalorder %v1042, 1024
      %vm1554 = vcmp.lt.s32.totalorder %v1043, 1024
      %vm1555 = vcmp.lt.s32.totalorder %v1044, 1024
      %vm1556 = vmand %vm1410, %vm1483
      %vm1557 = vmand %vm1411, %vm1484
      %vm1558 = vmand %vm1412, %vm1485
      %vm1559 = vmand %vm1413, %vm1486
      %vm1560 = vmand %vm1414, %vm1487
      %vm1561 = vmand %vm1415, %vm1488
      %vm1562 = vmand %vm1416, %vm1489
      %vm1563 = vmand %vm1417, %vm1490
      %vm1564 = vmand %vm1418, %vm1491
      %vm1565 = vmand %vm1419, %vm1492
      %vm1566 = vmand %vm1420, %vm1493
      %vm1567 = vmand %vm1421, %vm1494
      %vm1568 = vmand %vm1422, %vm1495
      %vm1569 = vmand %vm1423, %vm1496
      %vm1570 = vmand %vm1424, %vm1497
      %vm1571 = vmand %vm1425, %vm1498
      %vm1572 = vmand %vm1426, %vm1499
      %vm1573 = vmand %vm1427, %vm1500
      %vm1574 = vmand %vm1428, %vm1501
      %vm1575 = vmand %vm1429, %vm1502
      %vm1576 = vmand %vm1430, %vm1503
      %vm1577 = vmand %vm1431, %vm1504
      %vm1578 = vmand %vm1432, %vm1505
      %vm1579 = vmand %vm1433, %vm1506
      %vm1580 = vmand %vm1434, %vm1507
      %vm1581 = vmand %vm1435, %vm1508
      %vm1582 = vmand %vm1436, %vm1509
      %vm1583 = vmand %vm1437, %vm1510
      %vm1584 = vmand %vm1438, %vm1511
      %vm1585 = vmand %vm1439, %vm1512
      %vm1586 = vmand %vm1440, %vm1513
      %vm1587 = vmand %vm1441, %vm1514
      %vm1588 = vmand %vm1442, %vm1515
      %vm1589 = vmand %vm1443, %vm1516
      %vm1590 = vmand %vm1444, %vm1517
      %vm1591 = vmand %vm1445, %vm1518
      %vm1592 = vmand %vm1446, %vm1519
      %vm1593 = vmand %vm1447, %vm1520
      %vm1594 = vmand %vm1448, %vm1521
      %vm1595 = vmand %vm1449, %vm1522
      %vm1596 = vmand %vm1450, %vm1523
      %vm1597 = vmand %vm1451, %vm1524
      %vm1598 = vmand %vm1452, %vm1525
      %vm1599 = vmand %vm1453, %vm1526
      %vm1600 = vmand %vm1454, %vm1527
      %vm1601 = vmand %vm1455, %vm1528
      %vm1602 = vmand %vm1456, %vm1529
      %vm1603 = vmand %vm1457, %vm1530
      %vm1604 = vmand %vm1458, %vm1531
      %vm1605 = vmand %vm1459, %vm1532
      %vm1606 = vmand %vm1460, %vm1533
      %vm1607 = vmand %vm1461, %vm1534
      %vm1608 = vmand %vm1462, %vm1535
      %vm1609 = vmand %vm1463, %vm1536
      %vm1610 = vmand %vm1464, %vm1537
      %vm1611 = vmand %vm1465, %vm1538
      %vm1612 = vmand %vm1466, %vm1539
      %vm1613 = vmand %vm1467, %vm1540
      %vm1614 = vmand %vm1468, %vm1541
      %vm1615 = vmand %vm1469, %vm1542
      %vm1616 = vmand %vm1470, %vm1543
      %vm1617 = vmand %vm1471, %vm1544
      %vm1618 = vmand %vm1472, %vm1545
      %vm1619 = vmand %vm1473, %vm1546
      %vm1620 = vmand %vm1474, %vm1547
      %vm1621 = vmand %vm1475, %vm1548
      %vm1622 = vmand %vm1476, %vm1549
      %vm1623 = vmand %vm1477, %vm1550
      %vm1624 = vmand %vm1478, %vm1551
      %vm1625 = vmand %vm1479, %vm1552
      %vm1626 = vmand %vm1480, %vm1553
      %vm1627 = vmand %vm1481, %vm1554
      %vm1628 = vmand %vm1482, %vm1555
      %vm1629 = vcmp.ge.s32.totalorder %v1337, 1
      %vm1630 = vcmp.ge.s32.totalorder %v1338, 1
      %vm1631 = vcmp.ge.s32.totalorder %v1339, 1
      %vm1632 = vcmp.ge.s32.totalorder %v1340, 1
      %vm1633 = vcmp.ge.s32.totalorder %v1341, 1
      %vm1634 = vcmp.ge.s32.totalorder %v1342, 1
      %vm1635 = vcmp.ge.s32.totalorder %v1343, 1
      %vm1636 = vcmp.ge.s32.totalorder %v1344, 1
      %vm1637 = vcmp.ge.s32.totalorder %v1345, 1
      %vm1638 = vcmp.ge.s32.totalorder %v1346, 1
      %vm1639 = vcmp.ge.s32.totalorder %v1347, 1
      %vm1640 = vcmp.ge.s32.totalorder %v1348, 1
      %vm1641 = vcmp.ge.s32.totalorder %v1349, 1
      %vm1642 = vcmp.ge.s32.totalorder %v1350, 1
      %vm1643 = vcmp.ge.s32.totalorder %v1351, 1
      %vm1644 = vcmp.ge.s32.totalorder %v1352, 1
      %vm1645 = vcmp.ge.s32.totalorder %v1353, 1
      %vm1646 = vcmp.ge.s32.totalorder %v1354, 1
      %vm1647 = vcmp.ge.s32.totalorder %v1355, 1
      %vm1648 = vcmp.ge.s32.totalorder %v1356, 1
      %vm1649 = vcmp.ge.s32.totalorder %v1357, 1
      %vm1650 = vcmp.ge.s32.totalorder %v1358, 1
      %vm1651 = vcmp.ge.s32.totalorder %v1359, 1
      %vm1652 = vcmp.ge.s32.totalorder %v1360, 1
      %vm1653 = vcmp.ge.s32.totalorder %v1361, 1
      %vm1654 = vcmp.ge.s32.totalorder %v1362, 1
      %vm1655 = vcmp.ge.s32.totalorder %v1363, 1
      %vm1656 = vcmp.ge.s32.totalorder %v1364, 1
      %vm1657 = vcmp.ge.s32.totalorder %v1365, 1
      %vm1658 = vcmp.ge.s32.totalorder %v1366, 1
      %vm1659 = vcmp.ge.s32.totalorder %v1367, 1
      %vm1660 = vcmp.ge.s32.totalorder %v1368, 1
      %vm1661 = vcmp.ge.s32.totalorder %v1369, 1
      %vm1662 = vcmp.ge.s32.totalorder %v1370, 1
      %vm1663 = vcmp.ge.s32.totalorder %v1371, 1
      %vm1664 = vcmp.ge.s32.totalorder %v1372, 1
      %vm1665 = vcmp.ge.s32.totalorder %v1373, 1
      %vm1666 = vcmp.ge.s32.totalorder %v1374, 1
      %vm1667 = vcmp.ge.s32.totalorder %v1375, 1
      %vm1668 = vcmp.ge.s32.totalorder %v1376, 1
      %vm1669 = vcmp.ge.s32.totalorder %v1377, 1
      %vm1670 = vcmp.ge.s32.totalorder %v1378, 1
      %vm1671 = vcmp.ge.s32.totalorder %v1379, 1
      %vm1672 = vcmp.ge.s32.totalorder %v1380, 1
      %vm1673 = vcmp.ge.s32.totalorder %v1381, 1
      %vm1674 = vcmp.ge.s32.totalorder %v1382, 1
      %vm1675 = vcmp.ge.s32.totalorder %v1383, 1
      %vm1676 = vcmp.ge.s32.totalorder %v1384, 1
      %vm1677 = vcmp.ge.s32.totalorder %v1385, 1
      %vm1678 = vcmp.ge.s32.totalorder %v1386, 1
      %vm1679 = vcmp.ge.s32.totalorder %v1387, 1
      %vm1680 = vcmp.ge.s32.totalorder %v1388, 1
      %vm1681 = vcmp.ge.s32.totalorder %v1389, 1
      %vm1682 = vcmp.ge.s32.totalorder %v1390, 1
      %vm1683 = vcmp.ge.s32.totalorder %v1391, 1
      %vm1684 = vcmp.ge.s32.totalorder %v1392, 1
      %vm1685 = vcmp.ge.s32.totalorder %v1393, 1
      %vm1686 = vcmp.ge.s32.totalorder %v1394, 1
      %vm1687 = vcmp.ge.s32.totalorder %v1395, 1
      %vm1688 = vcmp.ge.s32.totalorder %v1396, 1
      %vm1689 = vcmp.ge.s32.totalorder %v1397, 1
      %vm1690 = vcmp.ge.s32.totalorder %v1398, 1
      %vm1691 = vcmp.ge.s32.totalorder %v1399, 1
      %vm1692 = vcmp.ge.s32.totalorder %v1400, 1
      %vm1693 = vcmp.ge.s32.totalorder %v1401, 1
      %vm1694 = vcmp.ge.s32.totalorder %v1402, 1
      %vm1695 = vcmp.ge.s32.totalorder %v1403, 1
      %vm1696 = vcmp.ge.s32.totalorder %v1404, 1
      %vm1697 = vcmp.ge.s32.totalorder %v1405, 1
      %vm1698 = vcmp.ge.s32.totalorder %v1406, 1
      %vm1699 = vcmp.ge.s32.totalorder %v1407, 1
      %vm1700 = vcmp.ge.s32.totalorder %v1408, 1
      %vm1701 = vcmp.ge.s32.totalorder %v1409, 1
      %vm1702 = vmand %vm1556, %vm1629
      %vm1703 = vmand %vm1557, %vm1630
      %vm1704 = vmand %vm1558, %vm1631
      %vm1705 = vmand %vm1559, %vm1632
      %vm1706 = vmand %vm1560, %vm1633
      %vm1707 = vmand %vm1561, %vm1634
      %vm1708 = vmand %vm1562, %vm1635
      %vm1709 = vmand %vm1563, %vm1636
      %vm1710 = vmand %vm1564, %vm1637
      %vm1711 = vmand %vm1565, %vm1638
      %vm1712 = vmand %vm1566, %vm1639
      %vm1713 = vmand %vm1567, %vm1640
      %vm1714 = vmand %vm1568, %vm1641
      %vm1715 = vmand %vm1569, %vm1642
      %vm1716 = vmand %vm1570, %vm1643
      %vm1717 = vmand %vm1571, %vm1644
      %vm1718 = vmand %vm1572, %vm1645
      %vm1719 = vmand %vm1573, %vm1646
      %vm1720 = vmand %vm1574, %vm1647
      %vm1721 = vmand %vm1575, %vm1648
      %vm1722 = vmand %vm1576, %vm1649
      %vm1723 = vmand %vm1577, %vm1650
      %vm1724 = vmand %vm1578, %vm1651
      %vm1725 = vmand %vm1579, %vm1652
      %vm1726 = vmand %vm1580, %vm1653
      %vm1727 = vmand %vm1581, %vm1654
      %vm1728 = vmand %vm1582, %vm1655
      %vm1729 = vmand %vm1583, %vm1656
      %vm1730 = vmand %vm1584, %vm1657
      %vm1731 = vmand %vm1585, %vm1658
      %vm1732 = vmand %vm1586, %vm1659
      %vm1733 = vmand %vm1587, %vm1660
      %vm1734 = vmand %vm1588, %vm1661
      %vm1735 = vmand %vm1589, %vm1662
      %vm1736 = vmand %vm1590, %vm1663
      %vm1737 = vmand %vm1591, %vm1664
      %vm1738 = vmand %vm1592, %vm1665
      %vm1739 = vmand %vm1593, %vm1666
      %vm1740 = vmand %vm1594, %vm1667
      %vm1741 = vmand %vm1595, %vm1668
      %vm1742 = vmand %vm1596, %vm1669
      %vm1743 = vmand %vm1597, %vm1670
      %vm1744 = vmand %vm1598, %vm1671
      %vm1745 = vmand %vm1599, %vm1672
      %vm1746 = vmand %vm1600, %vm1673
      %vm1747 = vmand %vm1601, %vm1674
      %vm1748 = vmand %vm1602, %vm1675
      %vm1749 = vmand %vm1603, %vm1676
      %vm1750 = vmand %vm1604, %vm1677
      %vm1751 = vmand %vm1605, %vm1678
      %vm1752 = vmand %vm1606, %vm1679
      %vm1753 = vmand %vm1607, %vm1680
      %vm1754 = vmand %vm1608, %vm1681
      %vm1755 = vmand %vm1609, %vm1682
      %vm1756 = vmand %vm1610, %vm1683
      %vm1757 = vmand %vm1611, %vm1684
      %vm1758 = vmand %vm1612, %vm1685
      %vm1759 = vmand %vm1613, %vm1686
      %vm1760 = vmand %vm1614, %vm1687
      %vm1761 = vmand %vm1615, %vm1688
      %vm1762 = vmand %vm1616, %vm1689
      %vm1763 = vmand %vm1617, %vm1690
      %vm1764 = vmand %vm1618, %vm1691
      %vm1765 = vmand %vm1619, %vm1692
      %vm1766 = vmand %vm1620, %vm1693
      %vm1767 = vmand %vm1621, %vm1694
      %vm1768 = vmand %vm1622, %vm1695
      %vm1769 = vmand %vm1623, %vm1696
      %vm1770 = vmand %vm1624, %vm1697
      %vm1771 = vmand %vm1625, %vm1698
      %vm1772 = vmand %vm1626, %vm1699
      %vm1773 = vmand %vm1627, %vm1700
      %vm1774 = vmand %vm1628, %vm1701
      %vm1775 = vcmp.le.s32.totalorder %v1337, 28
      %vm1776 = vcmp.le.s32.totalorder %v1338, 28
      %vm1777 = vcmp.le.s32.totalorder %v1339, 28
      %vm1778 = vcmp.le.s32.totalorder %v1340, 28
      %vm1779 = vcmp.le.s32.totalorder %v1341, 28
      %vm1780 = vcmp.le.s32.totalorder %v1342, 28
      %vm1781 = vcmp.le.s32.totalorder %v1343, 28
      %vm1782 = vcmp.le.s32.totalorder %v1344, 28
      %vm1783 = vcmp.le.s32.totalorder %v1345, 28
      %vm1784 = vcmp.le.s32.totalorder %v1346, 28
      %vm1785 = vcmp.le.s32.totalorder %v1347, 28
      %vm1786 = vcmp.le.s32.totalorder %v1348, 28
      %vm1787 = vcmp.le.s32.totalorder %v1349, 28
      %vm1788 = vcmp.le.s32.totalorder %v1350, 28
      %vm1789 = vcmp.le.s32.totalorder %v1351, 28
      %vm1790 = vcmp.le.s32.totalorder %v1352, 28
      %vm1791 = vcmp.le.s32.totalorder %v1353, 28
      %vm1792 = vcmp.le.s32.totalorder %v1354, 28
      %vm1793 = vcmp.le.s32.totalorder %v1355, 28
      %vm1794 = vcmp.le.s32.totalorder %v1356, 28
      %vm1795 = vcmp.le.s32.totalorder %v1357, 28
      %vm1796 = vcmp.le.s32.totalorder %v1358, 28
      %vm1797 = vcmp.le.s32.totalorder %v1359, 28
      %vm1798 = vcmp.le.s32.totalorder %v1360, 28
      %vm1799 = vcmp.le.s32.totalorder %v1361, 28
      %vm1800 = vcmp.le.s32.totalorder %v1362, 28
      %vm1801 = vcmp.le.s32.totalorder %v1363, 28
      %vm1802 = vcmp.le.s32.totalorder %v1364, 28
      %vm1803 = vcmp.le.s32.totalorder %v1365, 28
      %vm1804 = vcmp.le.s32.totalorder %v1366, 28
      %vm1805 = vcmp.le.s32.totalorder %v1367, 28
      %vm1806 = vcmp.le.s32.totalorder %v1368, 28
      %vm1807 = vcmp.le.s32.totalorder %v1369, 28
      %vm1808 = vcmp.le.s32.totalorder %v1370, 28
      %vm1809 = vcmp.le.s32.totalorder %v1371, 28
      %vm1810 = vcmp.le.s32.totalorder %v1372, 28
      %vm1811 = vcmp.le.s32.totalorder %v1373, 28
      %vm1812 = vcmp.le.s32.totalorder %v1374, 28
      %vm1813 = vcmp.le.s32.totalorder %v1375, 28
      %vm1814 = vcmp.le.s32.totalorder %v1376, 28
      %vm1815 = vcmp.le.s32.totalorder %v1377, 28
      %vm1816 = vcmp.le.s32.totalorder %v1378, 28
      %vm1817 = vcmp.le.s32.totalorder %v1379, 28
      %vm1818 = vcmp.le.s32.totalorder %v1380, 28
      %vm1819 = vcmp.le.s32.totalorder %v1381, 28
      %vm1820 = vcmp.le.s32.totalorder %v1382, 28
      %vm1821 = vcmp.le.s32.totalorder %v1383, 28
      %vm1822 = vcmp.le.s32.totalorder %v1384, 28
      %vm1823 = vcmp.le.s32.totalorder %v1385, 28
      %vm1824 = vcmp.le.s32.totalorder %v1386, 28
      %vm1825 = vcmp.le.s32.totalorder %v1387, 28
      %vm1826 = vcmp.le.s32.totalorder %v1388, 28
      %vm1827 = vcmp.le.s32.totalorder %v1389, 28
      %vm1828 = vcmp.le.s32.totalorder %v1390, 28
      %vm1829 = vcmp.le.s32.totalorder %v1391, 28
      %vm1830 = vcmp.le.s32.totalorder %v1392, 28
      %vm1831 = vcmp.le.s32.totalorder %v1393, 28
      %vm1832 = vcmp.le.s32.totalorder %v1394, 28
      %vm1833 = vcmp.le.s32.totalorder %v1395, 28
      %vm1834 = vcmp.le.s32.totalorder %v1396, 28
      %vm1835 = vcmp.le.s32.totalorder %v1397, 28
      %vm1836 = vcmp.le.s32.totalorder %v1398, 28
      %vm1837 = vcmp.le.s32.totalorder %v1399, 28
      %vm1838 = vcmp.le.s32.totalorder %v1400, 28
      %vm1839 = vcmp.le.s32.totalorder %v1401, 28
      %vm1840 = vcmp.le.s32.totalorder %v1402, 28
      %vm1841 = vcmp.le.s32.totalorder %v1403, 28
      %vm1842 = vcmp.le.s32.totalorder %v1404, 28
      %vm1843 = vcmp.le.s32.totalorder %v1405, 28
      %vm1844 = vcmp.le.s32.totalorder %v1406, 28
      %vm1845 = vcmp.le.s32.totalorder %v1407, 28
      %vm1846 = vcmp.le.s32.totalorder %v1408, 28
      %vm1847 = vcmp.le.s32.totalorder %v1409, 28
      %vm1848 = vmand %vm1702, %vm1775
      %vm1849 = vmand %vm1703, %vm1776
      %vm1850 = vmand %vm1704, %vm1777
      %vm1851 = vmand %vm1705, %vm1778
      %vm1852 = vmand %vm1706, %vm1779
      %vm1853 = vmand %vm1707, %vm1780
      %vm1854 = vmand %vm1708, %vm1781
      %vm1855 = vmand %vm1709, %vm1782
      %vm1856 = vmand %vm1710, %vm1783
      %vm1857 = vmand %vm1711, %vm1784
      %vm1858 = vmand %vm1712, %vm1785
      %vm1859 = vmand %vm1713, %vm1786
      %vm1860 = vmand %vm1714, %vm1787
      %vm1861 = vmand %vm1715, %vm1788
      %vm1862 = vmand %vm1716, %vm1789
      %vm1863 = vmand %vm1717, %vm1790
      %vm1864 = vmand %vm1718, %vm1791
      %vm1865 = vmand %vm1719, %vm1792
      %vm1866 = vmand %vm1720, %vm1793
      %vm1867 = vmand %vm1721, %vm1794
      %vm1868 = vmand %vm1722, %vm1795
      %vm1869 = vmand %vm1723, %vm1796
      %vm1870 = vmand %vm1724, %vm1797
      %vm1871 = vmand %vm1725, %vm1798
      %vm1872 = vmand %vm1726, %vm1799
      %vm1873 = vmand %vm1727, %vm1800
      %vm1874 = vmand %vm1728, %vm1801
      %vm1875 = vmand %vm1729, %vm1802
      %vm1876 = vmand %vm1730, %vm1803
      %vm1877 = vmand %vm1731, %vm1804
      %vm1878 = vmand %vm1732, %vm1805
      %vm1879 = vmand %vm1733, %vm1806
      %vm1880 = vmand %vm1734, %vm1807
      %vm1881 = vmand %vm1735, %vm1808
      %vm1882 = vmand %vm1736, %vm1809
      %vm1883 = vmand %vm1737, %vm1810
      %vm1884 = vmand %vm1738, %vm1811
      %vm1885 = vmand %vm1739, %vm1812
      %vm1886 = vmand %vm1740, %vm1813
      %vm1887 = vmand %vm1741, %vm1814
      %vm1888 = vmand %vm1742, %vm1815
      %vm1889 = vmand %vm1743, %vm1816
      %vm1890 = vmand %vm1744, %vm1817
      %vm1891 = vmand %vm1745, %vm1818
      %vm1892 = vmand %vm1746, %vm1819
      %vm1893 = vmand %vm1747, %vm1820
      %vm1894 = vmand %vm1748, %vm1821
      %vm1895 = vmand %vm1749, %vm1822
      %vm1896 = vmand %vm1750, %vm1823
      %vm1897 = vmand %vm1751, %vm1824
      %vm1898 = vmand %vm1752, %vm1825
      %vm1899 = vmand %vm1753, %vm1826
      %vm1900 = vmand %vm1754, %vm1827
      %vm1901 = vmand %vm1755, %vm1828
      %vm1902 = vmand %vm1756, %vm1829
      %vm1903 = vmand %vm1757, %vm1830
      %vm1904 = vmand %vm1758, %vm1831
      %vm1905 = vmand %vm1759, %vm1832
      %vm1906 = vmand %vm1760, %vm1833
      %vm1907 = vmand %vm1761, %vm1834
      %vm1908 = vmand %vm1762, %vm1835
      %vm1909 = vmand %vm1763, %vm1836
      %vm1910 = vmand %vm1764, %vm1837
      %vm1911 = vmand %vm1765, %vm1838
      %vm1912 = vmand %vm1766, %vm1839
      %vm1913 = vmand %vm1767, %vm1840
      %vm1914 = vmand %vm1768, %vm1841
      %vm1915 = vmand %vm1769, %vm1842
      %vm1916 = vmand %vm1770, %vm1843
      %vm1917 = vmand %vm1771, %vm1844
      %vm1918 = vmand %vm1772, %vm1845
      %vm1919 = vmand %vm1773, %vm1846
      %vm1920 = vmand %vm1774, %vm1847
      %vm1921 = vcmp.ge.s32.totalorder %v1191, 1
      %vm1922 = vcmp.ge.s32.totalorder %v1192, 1
      %vm1923 = vcmp.ge.s32.totalorder %v1193, 1
      %vm1924 = vcmp.ge.s32.totalorder %v1194, 1
      %vm1925 = vcmp.ge.s32.totalorder %v1195, 1
      %vm1926 = vcmp.ge.s32.totalorder %v1196, 1
      %vm1927 = vcmp.ge.s32.totalorder %v1197, 1
      %vm1928 = vcmp.ge.s32.totalorder %v1198, 1
      %vm1929 = vcmp.ge.s32.totalorder %v1199, 1
      %vm1930 = vcmp.ge.s32.totalorder %v1200, 1
      %vm1931 = vcmp.ge.s32.totalorder %v1201, 1
      %vm1932 = vcmp.ge.s32.totalorder %v1202, 1
      %vm1933 = vcmp.ge.s32.totalorder %v1203, 1
      %vm1934 = vcmp.ge.s32.totalorder %v1204, 1
      %vm1935 = vcmp.ge.s32.totalorder %v1205, 1
      %vm1936 = vcmp.ge.s32.totalorder %v1206, 1
      %vm1937 = vcmp.ge.s32.totalorder %v1207, 1
      %vm1938 = vcmp.ge.s32.totalorder %v1208, 1
      %vm1939 = vcmp.ge.s32.totalorder %v1209, 1
      %vm1940 = vcmp.ge.s32.totalorder %v1210, 1
      %vm1941 = vcmp.ge.s32.totalorder %v1211, 1
      %vm1942 = vcmp.ge.s32.totalorder %v1212, 1
      %vm1943 = vcmp.ge.s32.totalorder %v1213, 1
      %vm1944 = vcmp.ge.s32.totalorder %v1214, 1
      %vm1945 = vcmp.ge.s32.totalorder %v1215, 1
      %vm1946 = vcmp.ge.s32.totalorder %v1216, 1
      %vm1947 = vcmp.ge.s32.totalorder %v1217, 1
      %vm1948 = vcmp.ge.s32.totalorder %v1218, 1
      %vm1949 = vcmp.ge.s32.totalorder %v1219, 1
      %vm1950 = vcmp.ge.s32.totalorder %v1220, 1
      %vm1951 = vcmp.ge.s32.totalorder %v1221, 1
      %vm1952 = vcmp.ge.s32.totalorder %v1222, 1
      %vm1953 = vcmp.ge.s32.totalorder %v1223, 1
      %vm1954 = vcmp.ge.s32.totalorder %v1224, 1
      %vm1955 = vcmp.ge.s32.totalorder %v1225, 1
      %vm1956 = vcmp.ge.s32.totalorder %v1226, 1
      %vm1957 = vcmp.ge.s32.totalorder %v1227, 1
      %vm1958 = vcmp.ge.s32.totalorder %v1228, 1
      %vm1959 = vcmp.ge.s32.totalorder %v1229, 1
      %vm1960 = vcmp.ge.s32.totalorder %v1230, 1
      %vm1961 = vcmp.ge.s32.totalorder %v1231, 1
      %vm1962 = vcmp.ge.s32.totalorder %v1232, 1
      %vm1963 = vcmp.ge.s32.totalorder %v1233, 1
      %vm1964 = vcmp.ge.s32.totalorder %v1234, 1
      %vm1965 = vcmp.ge.s32.totalorder %v1235, 1
      %vm1966 = vcmp.ge.s32.totalorder %v1236, 1
      %vm1967 = vcmp.ge.s32.totalorder %v1237, 1
      %vm1968 = vcmp.ge.s32.totalorder %v1238, 1
      %vm1969 = vcmp.ge.s32.totalorder %v1239, 1
      %vm1970 = vcmp.ge.s32.totalorder %v1240, 1
      %vm1971 = vcmp.ge.s32.totalorder %v1241, 1
      %vm1972 = vcmp.ge.s32.totalorder %v1242, 1
      %vm1973 = vcmp.ge.s32.totalorder %v1243, 1
      %vm1974 = vcmp.ge.s32.totalorder %v1244, 1
      %vm1975 = vcmp.ge.s32.totalorder %v1245, 1
      %vm1976 = vcmp.ge.s32.totalorder %v1246, 1
      %vm1977 = vcmp.ge.s32.totalorder %v1247, 1
      %vm1978 = vcmp.ge.s32.totalorder %v1248, 1
      %vm1979 = vcmp.ge.s32.totalorder %v1249, 1
      %vm1980 = vcmp.ge.s32.totalorder %v1250, 1
      %vm1981 = vcmp.ge.s32.totalorder %v1251, 1
      %vm1982 = vcmp.ge.s32.totalorder %v1252, 1
      %vm1983 = vcmp.ge.s32.totalorder %v1253, 1
      %vm1984 = vcmp.ge.s32.totalorder %v1254, 1
      %vm1985 = vcmp.ge.s32.totalorder %v1255, 1
      %vm1986 = vcmp.ge.s32.totalorder %v1256, 1
      %vm1987 = vcmp.ge.s32.totalorder %v1257, 1
      %vm1988 = vcmp.ge.s32.totalorder %v1258, 1
      %vm1989 = vcmp.ge.s32.totalorder %v1259, 1
      %vm1990 = vcmp.ge.s32.totalorder %v1260, 1
      %vm1991 = vcmp.ge.s32.totalorder %v1261, 1
      %vm1992 = vcmp.ge.s32.totalorder %v1262, 1
      %vm1993 = vcmp.ge.s32.totalorder %v1263, 1
      %vm1994 = vmand %vm1848, %vm1921
      %vm1995 = vmand %vm1849, %vm1922
      %vm1996 = vmand %vm1850, %vm1923
      %vm1997 = vmand %vm1851, %vm1924
      %vm1998 = vmand %vm1852, %vm1925
      %vm1999 = vmand %vm1853, %vm1926
      %vm2000 = vmand %vm1854, %vm1927
      %vm2001 = vmand %vm1855, %vm1928
      %vm2002 = vmand %vm1856, %vm1929
      %vm2003 = vmand %vm1857, %vm1930
      %vm2004 = vmand %vm1858, %vm1931
      %vm2005 = vmand %vm1859, %vm1932
      %vm2006 = vmand %vm1860, %vm1933
      %vm2007 = vmand %vm1861, %vm1934
      %vm2008 = vmand %vm1862, %vm1935
      %vm2009 = vmand %vm1863, %vm1936
      %vm2010 = vmand %vm1864, %vm1937
      %vm2011 = vmand %vm1865, %vm1938
      %vm2012 = vmand %vm1866, %vm1939
      %vm2013 = vmand %vm1867, %vm1940
      %vm2014 = vmand %vm1868, %vm1941
      %vm2015 = vmand %vm1869, %vm1942
      %vm2016 = vmand %vm1870, %vm1943
      %vm2017 = vmand %vm1871, %vm1944
      %vm2018 = vmand %vm1872, %vm1945
      %vm2019 = vmand %vm1873, %vm1946
      %vm2020 = vmand %vm1874, %vm1947
      %vm2021 = vmand %vm1875, %vm1948
      %vm2022 = vmand %vm1876, %vm1949
      %vm2023 = vmand %vm1877, %vm1950
      %vm2024 = vmand %vm1878, %vm1951
      %vm2025 = vmand %vm1879, %vm1952
      %vm2026 = vmand %vm1880, %vm1953
      %vm2027 = vmand %vm1881, %vm1954
      %vm2028 = vmand %vm1882, %vm1955
      %vm2029 = vmand %vm1883, %vm1956
      %vm2030 = vmand %vm1884, %vm1957
      %vm2031 = vmand %vm1885, %vm1958
      %vm2032 = vmand %vm1886, %vm1959
      %vm2033 = vmand %vm1887, %vm1960
      %vm2034 = vmand %vm1888, %vm1961
      %vm2035 = vmand %vm1889, %vm1962
      %vm2036 = vmand %vm1890, %vm1963
      %vm2037 = vmand %vm1891, %vm1964
      %vm2038 = vmand %vm1892, %vm1965
      %vm2039 = vmand %vm1893, %vm1966
      %vm2040 = vmand %vm1894, %vm1967
      %vm2041 = vmand %vm1895, %vm1968
      %vm2042 = vmand %vm1896, %vm1969
      %vm2043 = vmand %vm1897, %vm1970
      %vm2044 = vmand %vm1898, %vm1971
      %vm2045 = vmand %vm1899, %vm1972
      %vm2046 = vmand %vm1900, %vm1973
      %vm2047 = vmand %vm1901, %vm1974
      %vm2048 = vmand %vm1902, %vm1975
      %vm2049 = vmand %vm1903, %vm1976
      %vm2050 = vmand %vm1904, %vm1977
      %vm2051 = vmand %vm1905, %vm1978
      %vm2052 = vmand %vm1906, %vm1979
      %vm2053 = vmand %vm1907, %vm1980
      %vm2054 = vmand %vm1908, %vm1981
      %vm2055 = vmand %vm1909, %vm1982
      %vm2056 = vmand %vm1910, %vm1983
      %vm2057 = vmand %vm1911, %vm1984
      %vm2058 = vmand %vm1912, %vm1985
      %vm2059 = vmand %vm1913, %vm1986
      %vm2060 = vmand %vm1914, %vm1987
      %vm2061 = vmand %vm1915, %vm1988
      %vm2062 = vmand %vm1916, %vm1989
      %vm2063 = vmand %vm1917, %vm1990
      %vm2064 = vmand %vm1918, %vm1991
      %vm2065 = vmand %vm1919, %vm1992
      %vm2066 = vmand %vm1920, %vm1993
      %vm2067 = vcmp.le.s32.totalorder %v1191, 28
      %vm2068 = vcmp.le.s32.totalorder %v1192, 28
      %vm2069 = vcmp.le.s32.totalorder %v1193, 28
      %vm2070 = vcmp.le.s32.totalorder %v1194, 28
      %vm2071 = vcmp.le.s32.totalorder %v1195, 28
      %vm2072 = vcmp.le.s32.totalorder %v1196, 28
      %vm2073 = vcmp.le.s32.totalorder %v1197, 28
      %vm2074 = vcmp.le.s32.totalorder %v1198, 28
      %vm2075 = vcmp.le.s32.totalorder %v1199, 28
      %vm2076 = vcmp.le.s32.totalorder %v1200, 28
      %vm2077 = vcmp.le.s32.totalorder %v1201, 28
      %vm2078 = vcmp.le.s32.totalorder %v1202, 28
      %vm2079 = vcmp.le.s32.totalorder %v1203, 28
      %vm2080 = vcmp.le.s32.totalorder %v1204, 28
      %vm2081 = vcmp.le.s32.totalorder %v1205, 28
      %vm2082 = vcmp.le.s32.totalorder %v1206, 28
      %vm2083 = vcmp.le.s32.totalorder %v1207, 28
      %vm2084 = vcmp.le.s32.totalorder %v1208, 28
      %vm2085 = vcmp.le.s32.totalorder %v1209, 28
      %vm2086 = vcmp.le.s32.totalorder %v1210, 28
      %vm2087 = vcmp.le.s32.totalorder %v1211, 28
      %vm2088 = vcmp.le.s32.totalorder %v1212, 28
      %vm2089 = vcmp.le.s32.totalorder %v1213, 28
      %vm2090 = vcmp.le.s32.totalorder %v1214, 28
      %vm2091 = vcmp.le.s32.totalorder %v1215, 28
      %vm2092 = vcmp.le.s32.totalorder %v1216, 28
      %vm2093 = vcmp.le.s32.totalorder %v1217, 28
      %vm2094 = vcmp.le.s32.totalorder %v1218, 28
      %vm2095 = vcmp.le.s32.totalorder %v1219, 28
      %vm2096 = vcmp.le.s32.totalorder %v1220, 28
      %vm2097 = vcmp.le.s32.totalorder %v1221, 28
      %vm2098 = vcmp.le.s32.totalorder %v1222, 28
      %vm2099 = vcmp.le.s32.totalorder %v1223, 28
      %vm2100 = vcmp.le.s32.totalorder %v1224, 28
      %vm2101 = vcmp.le.s32.totalorder %v1225, 28
      %vm2102 = vcmp.le.s32.totalorder %v1226, 28
      %vm2103 = vcmp.le.s32.totalorder %v1227, 28
      %vm2104 = vcmp.le.s32.totalorder %v1228, 28
      %vm2105 = vcmp.le.s32.totalorder %v1229, 28
      %vm2106 = vcmp.le.s32.totalorder %v1230, 28
      %vm2107 = vcmp.le.s32.totalorder %v1231, 28
      %vm2108 = vcmp.le.s32.totalorder %v1232, 28
      %vm2109 = vcmp.le.s32.totalorder %v1233, 28
      %vm2110 = vcmp.le.s32.totalorder %v1234, 28
      %vm2111 = vcmp.le.s32.totalorder %v1235, 28
      %vm2112 = vcmp.le.s32.totalorder %v1236, 28
      %vm2113 = vcmp.le.s32.totalorder %v1237, 28
      %vm2114 = vcmp.le.s32.totalorder %v1238, 28
      %vm2115 = vcmp.le.s32.totalorder %v1239, 28
      %vm2116 = vcmp.le.s32.totalorder %v1240, 28
      %vm2117 = vcmp.le.s32.totalorder %v1241, 28
      %vm2118 = vcmp.le.s32.totalorder %v1242, 28
      %vm2119 = vcmp.le.s32.totalorder %v1243, 28
      %vm2120 = vcmp.le.s32.totalorder %v1244, 28
      %vm2121 = vcmp.le.s32.totalorder %v1245, 28
      %vm2122 = vcmp.le.s32.totalorder %v1246, 28
      %vm2123 = vcmp.le.s32.totalorder %v1247, 28
      %vm2124 = vcmp.le.s32.totalorder %v1248, 28
      %vm2125 = vcmp.le.s32.totalorder %v1249, 28
      %vm2126 = vcmp.le.s32.totalorder %v1250, 28
      %vm2127 = vcmp.le.s32.totalorder %v1251, 28
      %vm2128 = vcmp.le.s32.totalorder %v1252, 28
      %vm2129 = vcmp.le.s32.totalorder %v1253, 28
      %vm2130 = vcmp.le.s32.totalorder %v1254, 28
      %vm2131 = vcmp.le.s32.totalorder %v1255, 28
      %vm2132 = vcmp.le.s32.totalorder %v1256, 28
      %vm2133 = vcmp.le.s32.totalorder %v1257, 28
      %vm2134 = vcmp.le.s32.totalorder %v1258, 28
      %vm2135 = vcmp.le.s32.totalorder %v1259, 28
      %vm2136 = vcmp.le.s32.totalorder %v1260, 28
      %vm2137 = vcmp.le.s32.totalorder %v1261, 28
      %vm2138 = vcmp.le.s32.totalorder %v1262, 28
      %vm2139 = vcmp.le.s32.totalorder %v1263, 28
      %vm2140 = vmand %vm1994, %vm2067
      %vm2141 = vmand %vm1995, %vm2068
      %vm2142 = vmand %vm1996, %vm2069
      %vm2143 = vmand %vm1997, %vm2070
      %vm2144 = vmand %vm1998, %vm2071
      %vm2145 = vmand %vm1999, %vm2072
      %vm2146 = vmand %vm2000, %vm2073
      %vm2147 = vmand %vm2001, %vm2074
      %vm2148 = vmand %vm2002, %vm2075
      %vm2149 = vmand %vm2003, %vm2076
      %vm2150 = vmand %vm2004, %vm2077
      %vm2151 = vmand %vm2005, %vm2078
      %vm2152 = vmand %vm2006, %vm2079
      %vm2153 = vmand %vm2007, %vm2080
      %vm2154 = vmand %vm2008, %vm2081
      %vm2155 = vmand %vm2009, %vm2082
      %vm2156 = vmand %vm2010, %vm2083
      %vm2157 = vmand %vm2011, %vm2084
      %vm2158 = vmand %vm2012, %vm2085
      %vm2159 = vmand %vm2013, %vm2086
      %vm2160 = vmand %vm2014, %vm2087
      %vm2161 = vmand %vm2015, %vm2088
      %vm2162 = vmand %vm2016, %vm2089
      %vm2163 = vmand %vm2017, %vm2090
      %vm2164 = vmand %vm2018, %vm2091
      %vm2165 = vmand %vm2019, %vm2092
      %vm2166 = vmand %vm2020, %vm2093
      %vm2167 = vmand %vm2021, %vm2094
      %vm2168 = vmand %vm2022, %vm2095
      %vm2169 = vmand %vm2023, %vm2096
      %vm2170 = vmand %vm2024, %vm2097
      %vm2171 = vmand %vm2025, %vm2098
      %vm2172 = vmand %vm2026, %vm2099
      %vm2173 = vmand %vm2027, %vm2100
      %vm2174 = vmand %vm2028, %vm2101
      %vm2175 = vmand %vm2029, %vm2102
      %vm2176 = vmand %vm2030, %vm2103
      %vm2177 = vmand %vm2031, %vm2104
      %vm2178 = vmand %vm2032, %vm2105
      %vm2179 = vmand %vm2033, %vm2106
      %vm2180 = vmand %vm2034, %vm2107
      %vm2181 = vmand %vm2035, %vm2108
      %vm2182 = vmand %vm2036, %vm2109
      %vm2183 = vmand %vm2037, %vm2110
      %vm2184 = vmand %vm2038, %vm2111
      %vm2185 = vmand %vm2039, %vm2112
      %vm2186 = vmand %vm2040, %vm2113
      %vm2187 = vmand %vm2041, %vm2114
      %vm2188 = vmand %vm2042, %vm2115
      %vm2189 = vmand %vm2043, %vm2116
      %vm2190 = vmand %vm2044, %vm2117
      %vm2191 = vmand %vm2045, %vm2118
      %vm2192 = vmand %vm2046, %vm2119
      %vm2193 = vmand %vm2047, %vm2120
      %vm2194 = vmand %vm2048, %vm2121
      %vm2195 = vmand %vm2049, %vm2122
      %vm2196 = vmand %vm2050, %vm2123
      %vm2197 = vmand %vm2051, %vm2124
      %vm2198 = vmand %vm2052, %vm2125
      %vm2199 = vmand %vm2053, %vm2126
      %vm2200 = vmand %vm2054, %vm2127
      %vm2201 = vmand %vm2055, %vm2128
      %vm2202 = vmand %vm2056, %vm2129
      %vm2203 = vmand %vm2057, %vm2130
      %vm2204 = vmand %vm2058, %vm2131
      %vm2205 = vmand %vm2059, %vm2132
      %vm2206 = vmand %vm2060, %vm2133
      %vm2207 = vmand %vm2061, %vm2134
      %vm2208 = vmand %vm2062, %vm2135
      %vm2209 = vmand %vm2063, %vm2136
      %vm2210 = vmand %vm2064, %vm2137
      %vm2211 = vmand %vm2065, %vm2138
      %vm2212 = vmand %vm2066, %vm2139
      %v2214 = vlaneseq
      %v2215 = vshrl.u32 %v2214, 7
      %v2216 = vsub.s32 0, %v2215
      %v2217 = vrot.slane %v745, %v2216
      %v2219 = vmul.f32 %v751, %v2217
      %v2220 = vmul.f32 %v752, %v2217
      %v2221 = vmul.f32 %v753, %v2217
      %v2222 = vmul.f32 %v754, %v2217
      %v2223 = vmul.f32 %v755, %v2217
      %v2224 = vmul.f32 %v756, %v2217
      %v2225 = vmul.f32 %v757, %v2217
      %v2226 = vmul.f32 %v758, %v2217
      %v2227 = vmul.f32 %v759, %v2217
      %v2228 = vmul.f32 %v760, %v2217
      %v2229 = vmul.f32 %v761, %v2217
      %v2230 = vmul.f32 %v762, %v2217
      %v2231 = vmul.f32 %v763, %v2217
      %v2232 = vmul.f32 %v764, %v2217
      %v2233 = vmul.f32 %v765, %v2217
      %v2234 = vmul.f32 %v766, %v2217
      %v2235 = vmul.f32 %v767, %v2217
      %v2236 = vmul.f32 %v768, %v2217
      %v2237 = vmul.f32 %v769, %v2217
      %v2238 = vmul.f32 %v770, %v2217
      %v2239 = vmul.f32 %v771, %v2217
      %v2240 = vmul.f32 %v772, %v2217
      %v2241 = vmul.f32 %v773, %v2217
      %v2242 = vmul.f32 %v774, %v2217
      %v2243 = vmul.f32 %v775, %v2217
      %v2244 = vmul.f32 %v776, %v2217
      %v2245 = vmul.f32 %v777, %v2217
      %v2246 = vmul.f32 %v778, %v2217
      %v2247 = vmul.f32 %v779, %v2217
      %v2248 = vmul.f32 %v780, %v2217
      %v2249 = vmul.f32 %v781, %v2217
      %v2250 = vmul.f32 %v782, %v2217
      %v2251 = vmul.f32 %v783, %v2217
      %v2252 = vmul.f32 %v784, %v2217
      %v2253 = vmul.f32 %v785, %v2217
      %v2254 = vmul.f32 %v786, %v2217
      %v2255 = vmul.f32 %v787, %v2217
      %v2256 = vmul.f32 %v788, %v2217
      %v2257 = vmul.f32 %v789, %v2217
      %v2258 = vmul.f32 %v790, %v2217
      %v2259 = vmul.f32 %v791, %v2217
      %v2260 = vmul.f32 %v792, %v2217
      %v2261 = vmul.f32 %v793, %v2217
      %v2262 = vmul.f32 %v794, %v2217
      %v2263 = vmul.f32 %v795, %v2217
      %v2264 = vmul.f32 %v796, %v2217
      %v2265 = vmul.f32 %v797, %v2217
      %v2266 = vmul.f32 %v798, %v2217
      %v2267 = vmul.f32 %v799, %v2217
      %v2268 = vmul.f32 %v800, %v2217
      %v2269 = vmul.f32 %v801, %v2217
      %v2270 = vmul.f32 %v802, %v2217
      %v2271 = vmul.f32 %v803, %v2217
      %v2272 = vmul.f32 %v804, %v2217
      %v2273 = vmul.f32 %v805, %v2217
      %v2274 = vmul.f32 %v806, %v2217
      %v2275 = vmul.f32 %v807, %v2217
      %v2276 = vmul.f32 %v808, %v2217
      %v2277 = vmul.f32 %v809, %v2217
      %v2278 = vmul.f32 %v810, %v2217
      %v2279 = vmul.f32 %v811, %v2217
      %v2280 = vmul.f32 %v812, %v2217
      %v2281 = vmul.f32 %v813, %v2217
      %v2282 = vmul.f32 %v814, %v2217
      %v2283 = vmul.f32 %v815, %v2217
      %v2284 = vmul.f32 %v816, %v2217
      %v2285 = vmul.f32 %v817, %v2217
      %v2286 = vmul.f32 %v818, %v2217
      %v2287 = vmul.f32 %v819, %v2217
      %v2288 = vmul.f32 %v820, %v2217
      %v2289 = vmul.f32 %v821, %v2217
      %v2290 = vmul.f32 %v822, %v2217
      %v2291 = vmul.f32 %v823, %v2217
      %v2293 = vlaneseq
      %v2294 = vshrl.u32 %v2293, 7
      %v2295 = vsub.s32 0, %v2294
      %v2296 = vrot.slane %v748, %v2295
      %v2298 = vadd.f32 %v2219, %v2296
      %v2299 = vadd.f32 %v2220, %v2296
      %v2300 = vadd.f32 %v2221, %v2296
      %v2301 = vadd.f32 %v2222, %v2296
      %v2302 = vadd.f32 %v2223, %v2296
      %v2303 = vadd.f32 %v2224, %v2296
      %v2304 = vadd.f32 %v2225, %v2296
      %v2305 = vadd.f32 %v2226, %v2296
      %v2306 = vadd.f32 %v2227, %v2296
      %v2307 = vadd.f32 %v2228, %v2296
      %v2308 = vadd.f32 %v2229, %v2296
      %v2309 = vadd.f32 %v2230, %v2296
      %v2310 = vadd.f32 %v2231, %v2296
      %v2311 = vadd.f32 %v2232, %v2296
      %v2312 = vadd.f32 %v2233, %v2296
      %v2313 = vadd.f32 %v2234, %v2296
      %v2314 = vadd.f32 %v2235, %v2296
      %v2315 = vadd.f32 %v2236, %v2296
      %v2316 = vadd.f32 %v2237, %v2296
      %v2317 = vadd.f32 %v2238, %v2296
      %v2318 = vadd.f32 %v2239, %v2296
      %v2319 = vadd.f32 %v2240, %v2296
      %v2320 = vadd.f32 %v2241, %v2296
      %v2321 = vadd.f32 %v2242, %v2296
      %v2322 = vadd.f32 %v2243, %v2296
      %v2323 = vadd.f32 %v2244, %v2296
      %v2324 = vadd.f32 %v2245, %v2296
      %v2325 = vadd.f32 %v2246, %v2296
      %v2326 = vadd.f32 %v2247, %v2296
      %v2327 = vadd.f32 %v2248, %v2296
      %v2328 = vadd.f32 %v2249, %v2296
      %v2329 = vadd.f32 %v2250, %v2296
      %v2330 = vadd.f32 %v2251, %v2296
      %v2331 = vadd.f32 %v2252, %v2296
      %v2332 = vadd.f32 %v2253, %v2296
      %v2333 = vadd.f32 %v2254, %v2296
      %v2334 = vadd.f32 %v2255, %v2296
      %v2335 = vadd.f32 %v2256, %v2296
      %v2336 = vadd.f32 %v2257, %v2296
      %v2337 = vadd.f32 %v2258, %v2296
      %v2338 = vadd.f32 %v2259, %v2296
      %v2339 = vadd.f32 %v2260, %v2296
      %v2340 = vadd.f32 %v2261, %v2296
      %v2341 = vadd.f32 %v2262, %v2296
      %v2342 = vadd.f32 %v2263, %v2296
      %v2343 = vadd.f32 %v2264, %v2296
      %v2344 = vadd.f32 %v2265, %v2296
      %v2345 = vadd.f32 %v2266, %v2296
      %v2346 = vadd.f32 %v2267, %v2296
      %v2347 = vadd.f32 %v2268, %v2296
      %v2348 = vadd.f32 %v2269, %v2296
      %v2349 = vadd.f32 %v2270, %v2296
      %v2350 = vadd.f32 %v2271, %v2296
      %v2351 = vadd.f32 %v2272, %v2296
      %v2352 = vadd.f32 %v2273, %v2296
      %v2353 = vadd.f32 %v2274, %v2296
      %v2354 = vadd.f32 %v2275, %v2296
      %v2355 = vadd.f32 %v2276, %v2296
      %v2356 = vadd.f32 %v2277, %v2296
      %v2357 = vadd.f32 %v2278, %v2296
      %v2358 = vadd.f32 %v2279, %v2296
      %v2359 = vadd.f32 %v2280, %v2296
      %v2360 = vadd.f32 %v2281, %v2296
      %v2361 = vadd.f32 %v2282, %v2296
      %v2362 = vadd.f32 %v2283, %v2296
      %v2363 = vadd.f32 %v2284, %v2296
      %v2364 = vadd.f32 %v2285, %v2296
      %v2365 = vadd.f32 %v2286, %v2296
      %v2366 = vadd.f32 %v2287, %v2296
      %v2367 = vadd.f32 %v2288, %v2296
      %v2368 = vadd.f32 %v2289, %v2296
      %v2369 = vadd.f32 %v2290, %v2296
      %v2370 = vadd.f32 %v2291, %v2296
      %v2371 = vmax.f32 %v2298, 0.0
      %v2372 = vmax.f32 %v2299, 0.0
      %v2373 = vmax.f32 %v2300, 0.0
      %v2374 = vmax.f32 %v2301, 0.0
      %v2375 = vmax.f32 %v2302, 0.0
      %v2376 = vmax.f32 %v2303, 0.0
      %v2377 = vmax.f32 %v2304, 0.0
      %v2378 = vmax.f32 %v2305, 0.0
      %v2379 = vmax.f32 %v2306, 0.0
      %v2380 = vmax.f32 %v2307, 0.0
      %v2381 = vmax.f32 %v2308, 0.0
      %v2382 = vmax.f32 %v2309, 0.0
      %v2383 = vmax.f32 %v2310, 0.0
      %v2384 = vmax.f32 %v2311, 0.0
      %v2385 = vmax.f32 %v2312, 0.0
      %v2386 = vmax.f32 %v2313, 0.0
      %v2387 = vmax.f32 %v2314, 0.0
      %v2388 = vmax.f32 %v2315, 0.0
      %v2389 = vmax.f32 %v2316, 0.0
      %v2390 = vmax.f32 %v2317, 0.0
      %v2391 = vmax.f32 %v2318, 0.0
      %v2392 = vmax.f32 %v2319, 0.0
      %v2393 = vmax.f32 %v2320, 0.0
      %v2394 = vmax.f32 %v2321, 0.0
      %v2395 = vmax.f32 %v2322, 0.0
      %v2396 = vmax.f32 %v2323, 0.0
      %v2397 = vmax.f32 %v2324, 0.0
      %v2398 = vmax.f32 %v2325, 0.0
      %v2399 = vmax.f32 %v2326, 0.0
      %v2400 = vmax.f32 %v2327, 0.0
      %v2401 = vmax.f32 %v2328, 0.0
      %v2402 = vmax.f32 %v2329, 0.0
      %v2403 = vmax.f32 %v2330, 0.0
      %v2404 = vmax.f32 %v2331, 0.0
      %v2405 = vmax.f32 %v2332, 0.0
      %v2406 = vmax.f32 %v2333, 0.0
      %v2407 = vmax.f32 %v2334, 0.0
      %v2408 = vmax.f32 %v2335, 0.0
      %v2409 = vmax.f32 %v2336, 0.0
      %v2410 = vmax.f32 %v2337, 0.0
      %v2411 = vmax.f32 %v2338, 0.0
      %v2412 = vmax.f32 %v2339, 0.0
      %v2413 = vmax.f32 %v2340, 0.0
      %v2414 = vmax.f32 %v2341, 0.0
      %v2415 = vmax.f32 %v2342, 0.0
      %v2416 = vmax.f32 %v2343, 0.0
      %v2417 = vmax.f32 %v2344, 0.0
      %v2418 = vmax.f32 %v2345, 0.0
      %v2419 = vmax.f32 %v2346, 0.0
      %v2420 = vmax.f32 %v2347, 0.0
      %v2421 = vmax.f32 %v2348, 0.0
      %v2422 = vmax.f32 %v2349, 0.0
      %v2423 = vmax.f32 %v2350, 0.0
      %v2424 = vmax.f32 %v2351, 0.0
      %v2425 = vmax.f32 %v2352, 0.0
      %v2426 = vmax.f32 %v2353, 0.0
      %v2427 = vmax.f32 %v2354, 0.0
      %v2428 = vmax.f32 %v2355, 0.0
      %v2429 = vmax.f32 %v2356, 0.0
      %v2430 = vmax.f32 %v2357, 0.0
      %v2431 = vmax.f32 %v2358, 0.0
      %v2432 = vmax.f32 %v2359, 0.0
      %v2433 = vmax.f32 %v2360, 0.0
      %v2434 = vmax.f32 %v2361, 0.0
      %v2435 = vmax.f32 %v2362, 0.0
      %v2436 = vmax.f32 %v2363, 0.0
      %v2437 = vmax.f32 %v2364, 0.0
      %v2438 = vmax.f32 %v2365, 0.0
      %v2439 = vmax.f32 %v2366, 0.0
      %v2440 = vmax.f32 %v2367, 0.0
      %v2441 = vmax.f32 %v2368, 0.0
      %v2442 = vmax.f32 %v2369, 0.0
      %v2443 = vmax.f32 %v2370, 0.0
      %v2444 = vsel %vm2140, 1, 0
      %v2445 = vsel %vm2141, 1, 0
      %v2446 = vsel %vm2142, 1, 0
      %v2447 = vsel %vm2143, 1, 0
      %v2448 = vsel %vm2144, 1, 0
      %v2449 = vsel %vm2145, 1, 0
      %v2450 = vsel %vm2146, 1, 0
      %v2451 = vsel %vm2147, 1, 0
      %v2452 = vsel %vm2148, 1, 0
      %v2453 = vsel %vm2149, 1, 0
      %v2454 = vsel %vm2150, 1, 0
      %v2455 = vsel %vm2151, 1, 0
      %v2456 = vsel %vm2152, 1, 0
      %v2457 = vsel %vm2153, 1, 0
      %v2458 = vsel %vm2154, 1, 0
      %v2459 = vsel %vm2155, 1, 0
      %v2460 = vsel %vm2156, 1, 0
      %v2461 = vsel %vm2157, 1, 0
      %v2462 = vsel %vm2158, 1, 0
      %v2463 = vsel %vm2159, 1, 0
      %v2464 = vsel %vm2160, 1, 0
      %v2465 = vsel %vm2161, 1, 0
      %v2466 = vsel %vm2162, 1, 0
      %v2467 = vsel %vm2163, 1, 0
      %v2468 = vsel %vm2164, 1, 0
      %v2469 = vsel %vm2165, 1, 0
      %v2470 = vsel %vm2166, 1, 0
      %v2471 = vsel %vm2167, 1, 0
      %v2472 = vsel %vm2168, 1, 0
      %v2473 = vsel %vm2169, 1, 0
      %v2474 = vsel %vm2170, 1, 0
      %v2475 = vsel %vm2171, 1, 0
      %v2476 = vsel %vm2172, 1, 0
      %v2477 = vsel %vm2173, 1, 0
      %v2478 = vsel %vm2174, 1, 0
      %v2479 = vsel %vm2175, 1, 0
      %v2480 = vsel %vm2176, 1, 0
      %v2481 = vsel %vm2177, 1, 0
      %v2482 = vsel %vm2178, 1, 0
      %v2483 = vsel %vm2179, 1, 0
      %v2484 = vsel %vm2180, 1, 0
      %v2485 = vsel %vm2181, 1, 0
      %v2486 = vsel %vm2182, 1, 0
      %v2487 = vsel %vm2183, 1, 0
      %v2488 = vsel %vm2184, 1, 0
      %v2489 = vsel %vm2185, 1, 0
      %v2490 = vsel %vm2186, 1, 0
      %v2491 = vsel %vm2187, 1, 0
      %v2492 = vsel %vm2188, 1, 0
      %v2493 = vsel %vm2189, 1, 0
      %v2494 = vsel %vm2190, 1, 0
      %v2495 = vsel %vm2191, 1, 0
      %v2496 = vsel %vm2192, 1, 0
      %v2497 = vsel %vm2193, 1, 0
      %v2498 = vsel %vm2194, 1, 0
      %v2499 = vsel %vm2195, 1, 0
      %v2500 = vsel %vm2196, 1, 0
      %v2501 = vsel %vm2197, 1, 0
      %v2502 = vsel %vm2198, 1, 0
      %v2503 = vsel %vm2199, 1, 0
      %v2504 = vsel %vm2200, 1, 0
      %v2505 = vsel %vm2201, 1, 0
      %v2506 = vsel %vm2202, 1, 0
      %v2507 = vsel %vm2203, 1, 0
      %v2508 = vsel %vm2204, 1, 0
      %v2509 = vsel %vm2205, 1, 0
      %v2510 = vsel %vm2206, 1, 0
      %v2511 = vsel %vm2207, 1, 0
      %v2512 = vsel %vm2208, 1, 0
      %v2513 = vsel %vm2209, 1, 0
      %v2514 = vsel %vm2210, 1, 0
      %v2515 = vsel %vm2211, 1, 0
      %v2516 = vsel %vm2212, 1, 0
      %vm2517 = vcmp.eq.s32.totalorder %v2444, 1
      %vm2518 = vcmp.eq.s32.totalorder %v2445, 1
      %vm2519 = vcmp.eq.s32.totalorder %v2446, 1
      %vm2520 = vcmp.eq.s32.totalorder %v2447, 1
      %vm2521 = vcmp.eq.s32.totalorder %v2448, 1
      %vm2522 = vcmp.eq.s32.totalorder %v2449, 1
      %vm2523 = vcmp.eq.s32.totalorder %v2450, 1
      %vm2524 = vcmp.eq.s32.totalorder %v2451, 1
      %vm2525 = vcmp.eq.s32.totalorder %v2452, 1
      %vm2526 = vcmp.eq.s32.totalorder %v2453, 1
      %vm2527 = vcmp.eq.s32.totalorder %v2454, 1
      %vm2528 = vcmp.eq.s32.totalorder %v2455, 1
      %vm2529 = vcmp.eq.s32.totalorder %v2456, 1
      %vm2530 = vcmp.eq.s32.totalorder %v2457, 1
      %vm2531 = vcmp.eq.s32.totalorder %v2458, 1
      %vm2532 = vcmp.eq.s32.totalorder %v2459, 1
      %vm2533 = vcmp.eq.s32.totalorder %v2460, 1
      %vm2534 = vcmp.eq.s32.totalorder %v2461, 1
      %vm2535 = vcmp.eq.s32.totalorder %v2462, 1
      %vm2536 = vcmp.eq.s32.totalorder %v2463, 1
      %vm2537 = vcmp.eq.s32.totalorder %v2464, 1
      %vm2538 = vcmp.eq.s32.totalorder %v2465, 1
      %vm2539 = vcmp.eq.s32.totalorder %v2466, 1
      %vm2540 = vcmp.eq.s32.totalorder %v2467, 1
      %vm2541 = vcmp.eq.s32.totalorder %v2468, 1
      %vm2542 = vcmp.eq.s32.totalorder %v2469, 1
      %vm2543 = vcmp.eq.s32.totalorder %v2470, 1
      %vm2544 = vcmp.eq.s32.totalorder %v2471, 1
      %vm2545 = vcmp.eq.s32.totalorder %v2472, 1
      %vm2546 = vcmp.eq.s32.totalorder %v2473, 1
      %vm2547 = vcmp.eq.s32.totalorder %v2474, 1
      %vm2548 = vcmp.eq.s32.totalorder %v2475, 1
      %vm2549 = vcmp.eq.s32.totalorder %v2476, 1
      %vm2550 = vcmp.eq.s32.totalorder %v2477, 1
      %vm2551 = vcmp.eq.s32.totalorder %v2478, 1
      %vm2552 = vcmp.eq.s32.totalorder %v2479, 1
      %vm2553 = vcmp.eq.s32.totalorder %v2480, 1
      %vm2554 = vcmp.eq.s32.totalorder %v2481, 1
      %vm2555 = vcmp.eq.s32.totalorder %v2482, 1
      %vm2556 = vcmp.eq.s32.totalorder %v2483, 1
      %vm2557 = vcmp.eq.s32.totalorder %v2484, 1
      %vm2558 = vcmp.eq.s32.totalorder %v2485, 1
      %vm2559 = vcmp.eq.s32.totalorder %v2486, 1
      %vm2560 = vcmp.eq.s32.totalorder %v2487, 1
      %vm2561 = vcmp.eq.s32.totalorder %v2488, 1
      %vm2562 = vcmp.eq.s32.totalorder %v2489, 1
      %vm2563 = vcmp.eq.s32.totalorder %v2490, 1
      %vm2564 = vcmp.eq.s32.totalorder %v2491, 1
      %vm2565 = vcmp.eq.s32.totalorder %v2492, 1
      %vm2566 = vcmp.eq.s32.totalorder %v2493, 1
      %vm2567 = vcmp.eq.s32.totalorder %v2494, 1
      %vm2568 = vcmp.eq.s32.totalorder %v2495, 1
      %vm2569 = vcmp.eq.s32.totalorder %v2496, 1
      %vm2570 = vcmp.eq.s32.totalorder %v2497, 1
      %vm2571 = vcmp.eq.s32.totalorder %v2498, 1
      %vm2572 = vcmp.eq.s32.totalorder %v2499, 1
      %vm2573 = vcmp.eq.s32.totalorder %v2500, 1
      %vm2574 = vcmp.eq.s32.totalorder %v2501, 1
      %vm2575 = vcmp.eq.s32.totalorder %v2502, 1
      %vm2576 = vcmp.eq.s32.totalorder %v2503, 1
      %vm2577 = vcmp.eq.s32.totalorder %v2504, 1
      %vm2578 = vcmp.eq.s32.totalorder %v2505, 1
      %vm2579 = vcmp.eq.s32.totalorder %v2506, 1
      %vm2580 = vcmp.eq.s32.totalorder %v2507, 1
      %vm2581 = vcmp.eq.s32.totalorder %v2508, 1
      %vm2582 = vcmp.eq.s32.totalorder %v2509, 1
      %vm2583 = vcmp.eq.s32.totalorder %v2510, 1
      %vm2584 = vcmp.eq.s32.totalorder %v2511, 1
      %vm2585 = vcmp.eq.s32.totalorder %v2512, 1
      %vm2586 = vcmp.eq.s32.totalorder %v2513, 1
      %vm2587 = vcmp.eq.s32.totalorder %v2514, 1
      %vm2588 = vcmp.eq.s32.totalorder %v2515, 1
      %vm2589 = vcmp.eq.s32.totalorder %v2516, 1
      %v2590 = vsel %vm2517, %v2371, 0.0
      %v2591 = vsel %vm2518, %v2372, 0.0
      %v2592 = vsel %vm2519, %v2373, 0.0
      %v2593 = vsel %vm2520, %v2374, 0.0
      %v2594 = vsel %vm2521, %v2375, 0.0
      %v2595 = vsel %vm2522, %v2376, 0.0
      %v2596 = vsel %vm2523, %v2377, 0.0
      %v2597 = vsel %vm2524, %v2378, 0.0
      %v2598 = vsel %vm2525, %v2379, 0.0
      %v2599 = vsel %vm2526, %v2380, 0.0
      %v2600 = vsel %vm2527, %v2381, 0.0
      %v2601 = vsel %vm2528, %v2382, 0.0
      %v2602 = vsel %vm2529, %v2383, 0.0
      %v2603 = vsel %vm2530, %v2384, 0.0
      %v2604 = vsel %vm2531, %v2385, 0.0
      %v2605 = vsel %vm2532, %v2386, 0.0
      %v2606 = vsel %vm2533, %v2387, 0.0
      %v2607 = vsel %vm2534, %v2388, 0.0
      %v2608 = vsel %vm2535, %v2389, 0.0
      %v2609 = vsel %vm2536, %v2390, 0.0
      %v2610 = vsel %vm2537, %v2391, 0.0
      %v2611 = vsel %vm2538, %v2392, 0.0
      %v2612 = vsel %vm2539, %v2393, 0.0
      %v2613 = vsel %vm2540, %v2394, 0.0
      %v2614 = vsel %vm2541, %v2395, 0.0
      %v2615 = vsel %vm2542, %v2396, 0.0
      %v2616 = vsel %vm2543, %v2397, 0.0
      %v2617 = vsel %vm2544, %v2398, 0.0
      %v2618 = vsel %vm2545, %v2399, 0.0
      %v2619 = vsel %vm2546, %v2400, 0.0
      %v2620 = vsel %vm2547, %v2401, 0.0
      %v2621 = vsel %vm2548, %v2402, 0.0
      %v2622 = vsel %vm2549, %v2403, 0.0
      %v2623 = vsel %vm2550, %v2404, 0.0
      %v2624 = vsel %vm2551, %v2405, 0.0
      %v2625 = vsel %vm2552, %v2406, 0.0
      %v2626 = vsel %vm2553, %v2407, 0.0
      %v2627 = vsel %vm2554, %v2408, 0.0
      %v2628 = vsel %vm2555, %v2409, 0.0
      %v2629 = vsel %vm2556, %v2410, 0.0
      %v2630 = vsel %vm2557, %v2411, 0.0
      %v2631 = vsel %vm2558, %v2412, 0.0
      %v2632 = vsel %vm2559, %v2413, 0.0
      %v2633 = vsel %vm2560, %v2414, 0.0
      %v2634 = vsel %vm2561, %v2415, 0.0
      %v2635 = vsel %vm2562, %v2416, 0.0
      %v2636 = vsel %vm2563, %v2417, 0.0
      %v2637 = vsel %vm2564, %v2418, 0.0
      %v2638 = vsel %vm2565, %v2419, 0.0
      %v2639 = vsel %vm2566, %v2420, 0.0
      %v2640 = vsel %vm2567, %v2421, 0.0
      %v2641 = vsel %vm2568, %v2422, 0.0
      %v2642 = vsel %vm2569, %v2423, 0.0
      %v2643 = vsel %vm2570, %v2424, 0.0
      %v2644 = vsel %vm2571, %v2425, 0.0
      %v2645 = vsel %vm2572, %v2426, 0.0
      %v2646 = vsel %vm2573, %v2427, 0.0
      %v2647 = vsel %vm2574, %v2428, 0.0
      %v2648 = vsel %vm2575, %v2429, 0.0
      %v2649 = vsel %vm2576, %v2430, 0.0
      %v2650 = vsel %vm2577, %v2431, 0.0
      %v2651 = vsel %vm2578, %v2432, 0.0
      %v2652 = vsel %vm2579, %v2433, 0.0
      %v2653 = vsel %vm2580, %v2434, 0.0
      %v2654 = vsel %vm2581, %v2435, 0.0
      %v2655 = vsel %vm2582, %v2436, 0.0
      %v2656 = vsel %vm2583, %v2437, 0.0
      %v2657 = vsel %vm2584, %v2438, 0.0
      %v2658 = vsel %vm2585, %v2439, 0.0
      %v2659 = vsel %vm2586, %v2440, 0.0
      %v2660 = vsel %vm2587, %v2441, 0.0
      %v2661 = vsel %vm2588, %v2442, 0.0
      %v2662 = vsel %vm2589, %v2443, 0.0
      %v2663 = vpack.c.bf16 %v2591, %v2590
      %v2664 = vpack.c.bf16 %v2593, %v2592
      %v2665 = vpack.c.bf16 %v2595, %v2594
      %v2666 = vpack.c.bf16 %v2597, %v2596
      %v2667 = vpack.c.bf16 %v2599, %v2598
      %v2668 = vpack.c.bf16 %v2601, %v2600
      %v2669 = vpack.c.bf16 %v2603, %v2602
      %v2670 = vpack.c.bf16 %v2605, %v2604
      %v2671 = vpack.c.bf16 %v2607, %v2606
      %v2672 = vpack.c.bf16 %v2609, %v2608
      %v2673 = vpack.c.bf16 %v2611, %v2610
      %v2674 = vpack.c.bf16 %v2613, %v2612
      %v2675 = vpack.c.bf16 %v2615, %v2614
      %v2676 = vpack.c.bf16 %v2617, %v2616
      %v2677 = vpack.c.bf16 %v2619, %v2618
      %v2678 = vpack.c.bf16 %v2621, %v2620
      %v2679 = vpack.c.bf16 %v2623, %v2622
      %v2680 = vpack.c.bf16 %v2625, %v2624
      %v2681 = vpack.c.bf16 %v2627, %v2626
      %v2682 = vpack.c.bf16 %v2629, %v2628
      %v2683 = vpack.c.bf16 %v2631, %v2630
      %v2684 = vpack.c.bf16 %v2633, %v2632
      %v2685 = vpack.c.bf16 %v2635, %v2634
      %v2686 = vpack.c.bf16 %v2637, %v2636
      %v2687 = vpack.c.bf16 %v2639, %v2638
      %v2688 = vpack.c.bf16 %v2641, %v2640
      %v2689 = vpack.c.bf16 %v2643, %v2642
      %v2690 = vpack.c.bf16 %v2645, %v2644
      %v2691 = vpack.c.bf16 %v2647, %v2646
      %v2692 = vpack.c.bf16 %v2649, %v2648
      %v2693 = vpack.c.bf16 %v2651, %v2650
      %v2694 = vpack.c.bf16 %v2653, %v2652
      %v2695 = vpack.c.bf16 %v2655, %v2654
      %v2696 = vpack.c.bf16 %v2657, %v2656
      %v2697 = vpack.c.bf16 %v2659, %v2658
      %v2698 = vpack.c.bf16 %v2661, %v2660
      %v2699 = vpack.c.bf16 %v2662, %v2662
      %v2700 = vld [vmem:[%s3] sm:$0xf]
      %v2701 = vld [vmem:[%s3 + $0x4] sm:$0xf]
      %v2702 = vld [vmem:[%s3 + $0x8] sm:$0xf]
      %v2703 = vld [vmem:[%s3 + $0xc] sm:$0xf]
      %v2704 = vld [vmem:[%s3 + $0x10] sm:$0xf]
      %v2705 = vld [vmem:[%s3 + $0x14] sm:$0xf]
      %v2706 = vld [vmem:[%s3 + $0x18] sm:$0xf]
      %v2707 = vld [vmem:[%s3 + $0x1c] sm:$0xf]
      %v2708 = vld [vmem:[%s3 + $0x20] sm:$0xf]
      %v2709 = vld [vmem:[%s3 + $0x24] sm:$0xf]
      %v2710 = vld [vmem:[%s3 + $0x28] sm:$0xf]
      %v2711 = vld [vmem:[%s3 + $0x2c] sm:$0xf]
      %v2712 = vld [vmem:[%s3 + $0x30] sm:$0xf]
      %v2713 = vld [vmem:[%s3 + $0x34] sm:$0xf]
      %v2714 = vld [vmem:[%s3 + $0x38] sm:$0xf]
      %v2715 = vld [vmem:[%s3 + $0x3c] sm:$0xf]
      %s2716 = scalar_lea.vmem %s3, 64
      %v2717 = vld [vmem:[%s2716] sm:$0xf]
      %v2718 = vld [vmem:[%s2716 + $0x4] sm:$0xf]
      %v2719 = vld [vmem:[%s2716 + $0x8] sm:$0xf]
      %v2720 = vld [vmem:[%s2716 + $0xc] sm:$0xf]
      %v2721 = vld [vmem:[%s2716 + $0x10] sm:$0xf]
      %v2722 = vld [vmem:[%s2716 + $0x14] sm:$0xf]
      %v2723 = vld [vmem:[%s2716 + $0x18] sm:$0xf]
      %v2724 = vld [vmem:[%s2716 + $0x1c] sm:$0xf]
      %v2725 = vld [vmem:[%s2716 + $0x20] sm:$0xf]
      %v2726 = vld [vmem:[%s2716 + $0x24] sm:$0xf]
      %v2727 = vld [vmem:[%s2716 + $0x28] sm:$0xf]
      %v2728 = vld [vmem:[%s2716 + $0x2c] sm:$0xf]
      %v2729 = vld [vmem:[%s2716 + $0x30] sm:$0xf]
      %v2730 = vld [vmem:[%s2716 + $0x34] sm:$0xf]
      %v2731 = vld [vmem:[%s2716 + $0x38] sm:$0xf]
      %v2732 = vld [vmem:[%s2716 + $0x3c] sm:$0xf]
      %vm2733 = vsmask.f32 7424
      %v2735 = vshrl.u32 %v2663, 16
      %v2737 = vshll.u32 %v2663, 16
      %v2739 = vrot.slane %v2737, 1
      %v2740 = vor.u32 %v2735, %v2739
      %v2742 = vshll.u32 %v2664, 16
      %v2744 = vrot.slane %v2742, 1
      %v2745 = vsel %vm2733, %v2740, %v2744
      %v2746 = vshrl.u32 %v2664, 16
      %v2748 = vor.u32 %v2746, %v2744
      %v2750 = vshll.u32 %v2665, 16
      %v2752 = vrot.slane %v2750, 1
      %v2753 = vsel %vm2733, %v2748, %v2752
      %v2754 = vshrl.u32 %v2665, 16
      %v2756 = vor.u32 %v2754, %v2752
      %v2758 = vshll.u32 %v2666, 16
      %v2760 = vrot.slane %v2758, 1
      %v2761 = vsel %vm2733, %v2756, %v2760
      %v2762 = vshrl.u32 %v2666, 16
      %v2764 = vor.u32 %v2762, %v2760
      %v2766 = vshll.u32 %v2667, 16
      %v2768 = vrot.slane %v2766, 1
      %v2769 = vsel %vm2733, %v2764, %v2768
      %v2770 = vshrl.u32 %v2667, 16
      %v2772 = vor.u32 %v2770, %v2768
      %v2774 = vshll.u32 %v2668, 16
      %v2776 = vrot.slane %v2774, 1
      %v2777 = vsel %vm2733, %v2772, %v2776
      %v2778 = vshrl.u32 %v2668, 16
      %v2780 = vor.u32 %v2778, %v2776
      %v2782 = vshll.u32 %v2669, 16
      %v2784 = vrot.slane %v2782, 1
      %v2785 = vsel %vm2733, %v2780, %v2784
      %v2786 = vshrl.u32 %v2669, 16
      %v2788 = vor.u32 %v2786, %v2784
      %v2790 = vshll.u32 %v2670, 16
      %v2792 = vrot.slane %v2790, 1
      %v2793 = vsel %vm2733, %v2788, %v2792
      %v2794 = vshrl.u32 %v2670, 16
      %v2796 = vor.u32 %v2794, %v2792
      %v2798 = vshll.u32 %v2671, 16
      %v2800 = vrot.slane %v2798, 1
      %v2801 = vsel %vm2733, %v2796, %v2800
      %v2802 = vshrl.u32 %v2671, 16
      %v2804 = vor.u32 %v2802, %v2800
      %v2806 = vshll.u32 %v2672, 16
      %v2808 = vrot.slane %v2806, 1
      %v2809 = vsel %vm2733, %v2804, %v2808
      %v2810 = vshrl.u32 %v2672, 16
      %v2812 = vor.u32 %v2810, %v2808
      %v2814 = vshll.u32 %v2673, 16
      %v2816 = vrot.slane %v2814, 1
      %v2817 = vsel %vm2733, %v2812, %v2816
      %v2818 = vshrl.u32 %v2673, 16
      %v2820 = vor.u32 %v2818, %v2816
      %v2822 = vshll.u32 %v2674, 16
      %v2824 = vrot.slane %v2822, 1
      %v2825 = vsel %vm2733, %v2820, %v2824
      %v2826 = vshrl.u32 %v2674, 16
      %v2828 = vor.u32 %v2826, %v2824
      %v2830 = vshll.u32 %v2675, 16
      %v2832 = vrot.slane %v2830, 1
      %v2833 = vsel %vm2733, %v2828, %v2832
      %v2834 = vshrl.u32 %v2675, 16
      %v2836 = vor.u32 %v2834, %v2832
      %v2838 = vshll.u32 %v2676, 16
      %v2840 = vrot.slane %v2838, 1
      %v2841 = vsel %vm2733, %v2836, %v2840
      %v2842 = vshrl.u32 %v2676, 16
      %v2844 = vor.u32 %v2842, %v2840
      %v2846 = vshll.u32 %v2677, 16
      %v2848 = vrot.slane %v2846, 1
      %v2849 = vsel %vm2733, %v2844, %v2848
      %v2850 = vshrl.u32 %v2677, 16
      %v2852 = vor.u32 %v2850, %v2848
      %v2854 = vshll.u32 %v2678, 16
      %v2856 = vrot.slane %v2854, 1
      %v2857 = vsel %vm2733, %v2852, %v2856
      %v2858 = vshrl.u32 %v2678, 16
      %v2860 = vor.u32 %v2858, %v2856
      %v2862 = vshll.u32 %v2679, 16
      %v2864 = vrot.slane %v2862, 1
      %v2865 = vsel %vm2733, %v2860, %v2864
      %v2866 = vshrl.u32 %v2679, 16
      %v2868 = vor.u32 %v2866, %v2864
      %v2870 = vshll.u32 %v2680, 16
      %v2872 = vrot.slane %v2870, 1
      %v2873 = vsel %vm2733, %v2868, %v2872
      %v2874 = vshrl.u32 %v2680, 16
      %v2876 = vor.u32 %v2874, %v2872
      %v2878 = vshll.u32 %v2681, 16
      %v2880 = vrot.slane %v2878, 1
      %v2881 = vsel %vm2733, %v2876, %v2880
      %v2882 = vshrl.u32 %v2681, 16
      %v2884 = vor.u32 %v2882, %v2880
      %v2886 = vshll.u32 %v2682, 16
      %v2888 = vrot.slane %v2886, 1
      %v2889 = vsel %vm2733, %v2884, %v2888
      %v2890 = vshrl.u32 %v2682, 16
      %v2892 = vor.u32 %v2890, %v2888
      %v2894 = vshll.u32 %v2683, 16
      %v2896 = vrot.slane %v2894, 1
      %v2897 = vsel %vm2733, %v2892, %v2896
      %v2898 = vshrl.u32 %v2683, 16
      %v2900 = vor.u32 %v2898, %v2896
      %v2902 = vshll.u32 %v2684, 16
      %v2904 = vrot.slane %v2902, 1
      %v2905 = vsel %vm2733, %v2900, %v2904
      %v2906 = vshrl.u32 %v2684, 16
      %v2908 = vor.u32 %v2906, %v2904
      %v2910 = vshll.u32 %v2685, 16
      %v2912 = vrot.slane %v2910, 1
      %v2913 = vsel %vm2733, %v2908, %v2912
      %v2914 = vshrl.u32 %v2685, 16
      %v2916 = vor.u32 %v2914, %v2912
      %v2918 = vshll.u32 %v2686, 16
      %v2920 = vrot.slane %v2918, 1
      %v2921 = vsel %vm2733, %v2916, %v2920
      %v2922 = vshrl.u32 %v2686, 16
      %v2924 = vor.u32 %v2922, %v2920
      %v2926 = vshll.u32 %v2687, 16
      %v2928 = vrot.slane %v2926, 1
      %v2929 = vsel %vm2733, %v2924, %v2928
      %v2930 = vshrl.u32 %v2687, 16
      %v2932 = vor.u32 %v2930, %v2928
      %v2934 = vshll.u32 %v2688, 16
      %v2936 = vrot.slane %v2934, 1
      %v2937 = vsel %vm2733, %v2932, %v2936
      %v2938 = vshrl.u32 %v2688, 16
      %v2940 = vor.u32 %v2938, %v2936
      %v2942 = vshll.u32 %v2689, 16
      %v2944 = vrot.slane %v2942, 1
      %v2945 = vsel %vm2733, %v2940, %v2944
      %v2946 = vshrl.u32 %v2689, 16
      %v2948 = vor.u32 %v2946, %v2944
      %v2950 = vshll.u32 %v2690, 16
      %v2952 = vrot.slane %v2950, 1
      %v2953 = vsel %vm2733, %v2948, %v2952
      %v2954 = vshrl.u32 %v2690, 16
      %v2956 = vor.u32 %v2954, %v2952
      %v2958 = vshll.u32 %v2691, 16
      %v2960 = vrot.slane %v2958, 1
      %v2961 = vsel %vm2733, %v2956, %v2960
      %v2962 = vshrl.u32 %v2691, 16
      %v2964 = vor.u32 %v2962, %v2960
      %v2966 = vshll.u32 %v2692, 16
      %v2968 = vrot.slane %v2966, 1
      %v2969 = vsel %vm2733, %v2964, %v2968
      %v2970 = vshrl.u32 %v2692, 16
      %v2972 = vor.u32 %v2970, %v2968
      %v2974 = vshll.u32 %v2693, 16
      %v2976 = vrot.slane %v2974, 1
      %v2977 = vsel %vm2733, %v2972, %v2976
      %v2978 = vshrl.u32 %v2693, 16
      %v2980 = vor.u32 %v2978, %v2976
      %v2982 = vshll.u32 %v2694, 16
      %v2984 = vrot.slane %v2982, 1
      %v2985 = vsel %vm2733, %v2980, %v2984
      %v2986 = vshrl.u32 %v2694, 16
      %v2988 = vor.u32 %v2986, %v2984
      %v2990 = vshll.u32 %v2695, 16
      %v2992 = vrot.slane %v2990, 1
      %v2993 = vsel %vm2733, %v2988, %v2992
      %v3042 = vunpack.c.l.b16 %v2717
      %v3043 = vunpack.c.l.b16 %v2718
      %v3044 = vunpack.c.l.b16 %v2719
      %v3045 = vunpack.c.l.b16 %v2720
      %v3046 = vunpack.c.l.b16 %v2721
      %v3047 = vunpack.c.l.b16 %v2722
      %v3048 = vunpack.c.l.b16 %v2723
      %v3049 = vunpack.c.l.b16 %v2724
      %v3050 = vunpack.c.l.b16 %v2725
      %v3051 = vunpack.c.l.b16 %v2726
      %v3052 = vunpack.c.l.b16 %v2727
      %v3053 = vunpack.c.l.b16 %v2728
      %v3054 = vunpack.c.l.b16 %v2729
      %v3055 = vunpack.c.l.b16 %v2730
      %v3056 = vunpack.c.l.b16 %v2731
      %v3057 = vunpack.c.l.b16 %v2732
      %v3058 = vpack.c.b16 %v3043, %v3042
      %v3059 = vpack.c.b16 %v3045, %v3044
      %v3060 = vpack.c.b16 %v3047, %v3046
      %v3061 = vpack.c.b16 %v3049, %v3048
      %v3062 = vpack.c.b16 %v3051, %v3050
      %v3063 = vpack.c.b16 %v3053, %v3052
      %v3064 = vpack.c.b16 %v3055, %v3054
      %v3065 = vpack.c.b16 %v3057, %v3056
      %3074 = vmatprep.subr.bf16.mxu0 0
      %3075 = vmatpush1.bf16.msra.mxu0 %v3058
      %3076 = vmatprep.subr.bf16.mxu0 0
      %3077 = vmatpush1.bf16.msra.mxu0 %v3059
      %3078 = vmatprep.subr.bf16.mxu0 0
      %3079 = vmatpush1.bf16.msra.mxu0 %v3060
      %3080 = vmatprep.subr.bf16.mxu0 0
      %3081 = vmatpush1.bf16.msra.mxu0 %v3061
      %3082 = vmatprep.subr.bf16.mxu0 0
      %3083 = vmatpush1.bf16.msra.mxu0 %v3062
      %3084 = vmatprep.subr.bf16.mxu0 0
      %3085 = vmatpush1.bf16.msra.mxu0 %v3063
      %3086 = vmatprep.subr.bf16.mxu0 0
      %3087 = vmatpush1.bf16.msra.mxu0 %v3064
      %3088 = vmatprep.subr.bf16.mxu0 0
      %3089 = vmatpush1.bf16.msra.mxu0 %v3065
      %3090 = vmatprep.subr.bf16.mxu0 0
      %3091 = vmatpush1.bf16.msra.mxu0 0
      %3092 = vmatprep.subr.bf16.mxu0 0
      %3093 = vmatpush1.bf16.msra.mxu0 0
      %3094 = vmatprep.subr.bf16.mxu0 0
      %3095 = vmatpush1.bf16.msra.mxu0 0
      %3096 = vmatprep.subr.bf16.mxu0 0
      %3097 = vmatpush1.bf16.msra.mxu0 0
      %3098 = vmatprep.subr.bf16.mxu0 0
      %3099 = vmatpush1.bf16.msra.mxu0 0
      %3100 = vmatprep.subr.bf16.mxu0 0
      %3101 = vmatpush1.bf16.msra.mxu0 0
      %3102 = vmatprep.subr.bf16.mxu0 0
      %3103 = vmatpush1.bf16.msra.mxu0 0
      %3104 = vmatprep.subr.bf16.mxu0 0
      %3105 = vmatpush1.bf16.msra.mxu0 0
      %3106 = vmatprep.mubr.bf16.mxu0 0
      %3107 = vmatmul.mubr.bf16.gmra.mrb[0].mxu0 %v2745
      %v3108 = vpop.f32.mrb[0].mxu0
      %v3109 = vadd.f32 0.0, %v3108
      %v3110 = vpop.f32.mrb[0].mxu0
      %v3111 = vpop.f32.mrb[0].mxu0
      %v3112 = vadd.f32 0.0, %v3111
      %v3113 = vpop.f32.mrb[0].mxu0
      %3114 = vmatprep.mubr.bf16.mxu0 0
      %3115 = vmatmul.mubr.bf16.gmra.mrb[0].mxu0 %v2753
      %v3116 = vpop.f32.mrb[0].mxu0
      %v3117 = vadd.f32 0.0, %v3116
      %v3118 = vpop.f32.mrb[0].mxu0
      %v3119 = vpop.f32.mrb[0].mxu0
      %v3120 = vadd.f32 0.0, %v3119
      %v3121 = vpop.f32.mrb[0].mxu0
      %3122 = vmatprep.mubr.bf16.mxu0 0
      %3123 = vmatmul.mubr.bf16.gmra.mrb[0].mxu0 %v2761
      %v3124 = vpop.f32.mrb[0].mxu0
      %v3125 = vadd.f32 0.0, %v3124
      %v3126 = vpop.f32.mrb[0].mxu0
      %v3127 = vpop.f32.mrb[0].mxu0
      %v3128 = vadd.f32 0.0, %v3127
      %v3129 = vpop.f32.mrb[0].mxu0
      %3130 = vmatprep.mubr.bf16.mxu0 0
      %3131 = vmatmul.mubr.bf16.gmra.mrb[0].mxu0 %v2769
      %v3132 = vpop.f32.mrb[0].mxu0
      %v3133 = vadd.f32 0.0, %v3132
      %v3134 = vpop.f32.mrb[0].mxu0
      %v3135 = vpop.f32.mrb[0].mxu0
      %v3136 = vadd.f32 0.0, %v3135
      %v3137 = vpop.f32.mrb[0].mxu0
      %3138 = vmatprep.mubr.bf16.mxu0 0
      %3139 = vmatmul.mubr.bf16.gmra.mrb[0].mxu0 %v2777
      %v3140 = vpop.f32.mrb[0].mxu0
      %v3141 = vadd.f32 0.0, %v3140
      %v3142 = vpop.f32.mrb[0].mxu0
      %v3143 = vpop.f32.mrb[0].mxu0
      %v3144 = vadd.f32 0.0, %v3143
      %v3145 = vpop.f32.mrb[0].mxu0
      %3146 = vmatprep.mubr.bf16.mxu0 0
      %3147 = vmatmul.mubr.bf16.gmra.mrb[0].mxu0 %v2785
      %v3148 = vpop.f32.mrb[0].mxu0
      %v3149 = vadd.f32 0.0, %v3148
      %v3150 = vpop.f32.mrb[0].mxu0
      %v3151 = vpop.f32.mrb[0].mxu0
      %v3152 = vadd.f32 0.0, %v3151
      %v3153 = vpop.f32.mrb[0].mxu0
      %3154 = vmatprep.mubr.bf16.mxu0 0
      %3155 = vmatmul.mubr.bf16.gmra.mrb[0].mxu0 %v2793
      %v3156 = vpop.f32.mrb[0].mxu0
      %v3157 = vadd.f32 0.0, %v3156
      %v3158 = vpop.f32.mrb[0].mxu0
      %v3159 = vpop.f32.mrb[0].mxu0
      %v3160 = vadd.f32 0.0, %v3159
      %v3161 = vpop.f32.mrb[0].mxu0
      %3162 = vmatprep.mubr.bf16.mxu0 0
      %3163 = vmatmul.mubr.bf16.gmra.mrb[0].mxu0 %v2801
      %v3164 = vpop.f32.mrb[0].mxu0
      %v3165 = vadd.f32 0.0, %v3164
      %v3166 = vpop.f32.mrb[0].mxu0
      %v3167 = vpop.f32.mrb[0].mxu0
      %v3168 = vadd.f32 0.0, %v3167
      %v3169 = vpop.f32.mrb[0].mxu0
      %3170 = vmatprep.mubr.bf16.mxu0 0
      %3171 = vmatmul.mubr.bf16.gmra.mrb[0].mxu0 %v2809
      %v3172 = vpop.f32.mrb[0].mxu0
      %v3173 = vadd.f32 0.0, %v3172
      %v3174 = vpop.f32.mrb[0].mxu0
      %v3175 = vpop.f32.mrb[0].mxu0
      %v3176 = vadd.f32 0.0, %v3175
      %v3177 = vpop.f32.mrb[0].mxu0
      %3178 = vmatprep.mubr.bf16.mxu0 0
      %3179 = vmatmul.mubr.bf16.gmra.mrb[0].mxu0 %v2817
      %v3180 = vpop.f32.mrb[0].mxu0
      %v3181 = vadd.f32 0.0, %v3180
      %v3182 = vpop.f32.mrb[0].mxu0
      %v3183 = vpop.f32.mrb[0].mxu0
      %v3184 = vadd.f32 0.0, %v3183
      %v3185 = vpop.f32.mrb[0].mxu0
      %3186 = vmatprep.mubr.bf16.mxu0 0
      %3187 = vmatmul.mubr.bf16.gmra.mrb[0].mxu0 %v2825
      %v3188 = vpop.f32.mrb[0].mxu0
      %v3189 = vadd.f32 0.0, %v3188
      %v3190 = vpop.f32.mrb[0].mxu0
      %v3191 = vpop.f32.mrb[0].mxu0
      %v3192 = vadd.f32 0.0, %v3191
      %v3193 = vpop.f32.mrb[0].mxu0
      %3194 = vmatprep.mubr.bf16.mxu0 0
      %3195 = vmatmul.mubr.bf16.gmra.mrb[0].mxu0 %v2833
      %v3196 = vpop.f32.mrb[0].mxu0
      %v3197 = vadd.f32 0.0, %v3196
      %v3198 = vpop.f32.mrb[0].mxu0
      %v3199 = vpop.f32.mrb[0].mxu0
      %v3200 = vadd.f32 0.0, %v3199
      %v3201 = vpop.f32.mrb[0].mxu0
      %3202 = vmatprep.mubr.bf16.mxu0 0
      %3203 = vmatmul.mubr.bf16.gmra.mrb[0].mxu0 %v2841
      %v3204 = vpop.f32.mrb[0].mxu0
      %v3205 = vadd.f32 0.0, %v3204
      %v3206 = vpop.f32.mrb[0].mxu0
      %v3207 = vpop.f32.mrb[0].mxu0
      %v3208 = vadd.f32 0.0, %v3207
      %v3209 = vpop.f32.mrb[0].mxu0
      %3210 = vmatprep.mubr.bf16.mxu0 0
      %3211 = vmatmul.mubr.bf16.gmra.mrb[0].mxu0 %v2849
      %v3212 = vpop.f32.mrb[0].mxu0
      %v3213 = vadd.f32 0.0, %v3212
      %v3214 = vpop.f32.mrb[0].mxu0
      %v3215 = vpop.f32.mrb[0].mxu0
      %v3216 = vadd.f32 0.0, %v3215
      %v3217 = vpop.f32.mrb[0].mxu0
      %3218 = vmatprep.mubr.bf16.mxu0 0
      %3219 = vmatmul.mubr.bf16.gmra.mrb[0].mxu0 %v2857
      %v3220 = vpop.f32.mrb[0].mxu0
      %v3221 = vadd.f32 0.0, %v3220
      %v3222 = vpop.f32.mrb[0].mxu0
      %v3223 = vpop.f32.mrb[0].mxu0
      %v3224 = vadd.f32 0.0, %v3223
      %v3225 = vpop.f32.mrb[0].mxu0
      %3226 = vmatprep.mubr.bf16.mxu0 0
      %3227 = vmatmul.mubr.bf16.gmra.mrb[0].mxu0 %v2865
      %v3228 = vpop.f32.mrb[0].mxu0
      %v3229 = vadd.f32 0.0, %v3228
      %v3230 = vpop.f32.mrb[0].mxu0
      %v3231 = vpop.f32.mrb[0].mxu0
      %v3232 = vadd.f32 0.0, %v3231
      %v3233 = vpop.f32.mrb[0].mxu0
      %3234 = vmatprep.mubr.bf16.mxu0 0
      %3235 = vmatmul.mubr.bf16.gmra.mrb[0].mxu0 %v2873
      %v3236 = vpop.f32.mrb[0].mxu0
      %v3237 = vadd.f32 0.0, %v3236
      %v3238 = vpop.f32.mrb[0].mxu0
      %v3239 = vpop.f32.mrb[0].mxu0
      %v3240 = vadd.f32 0.0, %v3239
      %v3241 = vpop.f32.mrb[0].mxu0
      %3242 = vmatprep.mubr.bf16.mxu0 0
      %3243 = vmatmul.mubr.bf16.gmra.mrb[0].mxu0 %v2881
      %v3244 = vpop.f32.mrb[0].mxu0
      %v3245 = vadd.f32 0.0, %v3244
      %v3246 = vpop.f32.mrb[0].mxu0
      %v3247 = vpop.f32.mrb[0].mxu0
      %v3248 = vadd.f32 0.0, %v3247
      %v3249 = vpop.f32.mrb[0].mxu0
      %3250 = vmatprep.mubr.bf16.mxu0 0
      %3251 = vmatmul.mubr.bf16.gmra.mrb[0].mxu0 %v2889
      %v3252 = vpop.f32.mrb[0].mxu0
      %v3253 = vadd.f32 0.0, %v3252
      %v3254 = vpop.f32.mrb[0].mxu0
      %v3255 = vpop.f32.mrb[0].mxu0
      %v3256 = vadd.f32 0.0, %v3255
      %v3257 = vpop.f32.mrb[0].mxu0
      %3258 = vmatprep.mubr.bf16.mxu0 0
      %3259 = vmatmul.mubr.bf16.gmra.mrb[0].mxu0 %v2897
      %v3260 = vpop.f32.mrb[0].mxu0
      %v3261 = vadd.f32 0.0, %v3260
      %v3262 = vpop.f32.mrb[0].mxu0
      %v3263 = vpop.f32.mrb[0].mxu0
      %v3264 = vadd.f32 0.0, %v3263
      %v3265 = vpop.f32.mrb[0].mxu0
      %3266 = vmatprep.mubr.bf16.mxu0 0
      %3267 = vmatmul.mubr.bf16.gmra.mrb[0].mxu0 %v2905
      %v3268 = vpop.f32.mrb[0].mxu0
      %v3269 = vadd.f32 0.0, %v3268
      %v3270 = vpop.f32.mrb[0].mxu0
      %v3271 = vpop.f32.mrb[0].mxu0
      %v3272 = vadd.f32 0.0, %v3271
      %v3273 = vpop.f32.mrb[0].mxu0
      %3274 = vmatprep.mubr.bf16.mxu0 0
      %3275 = vmatmul.mubr.bf16.gmra.mrb[0].mxu0 %v2913
      %v3276 = vpop.f32.mrb[0].mxu0
      %v3277 = vadd.f32 0.0, %v3276
      %v3278 = vpop.f32.mrb[0].mxu0
      %v3279 = vpop.f32.mrb[0].mxu0
      %v3280 = vadd.f32 0.0, %v3279
      %v3281 = vpop.f32.mrb[0].mxu0
      %3282 = vmatprep.mubr.bf16.mxu0 0
      %3283 = vmatmul.mubr.bf16.gmra.mrb[0].mxu0 %v2921
      %v3284 = vpop.f32.mrb[0].mxu0
      %v3285 = vadd.f32 0.0, %v3284
      %v3286 = vpop.f32.mrb[0].mxu0
      %v3287 = vpop.f32.mrb[0].mxu0
      %v3288 = vadd.f32 0.0, %v3287
      %v3289 = vpop.f32.mrb[0].mxu0
      %3290 = vmatprep.mubr.bf16.mxu0 0
      %3291 = vmatmul.mubr.bf16.gmra.mrb[0].mxu0 %v2929
      %v3292 = vpop.f32.mrb[0].mxu0
      %v3293 = vadd.f32 0.0, %v3292
      %v3294 = vpop.f32.mrb[0].mxu0
      %v3295 = vpop.f32.mrb[0].mxu0
      %v3296 = vadd.f32 0.0, %v3295
      %v3297 = vpop.f32.mrb[0].mxu0
      %3298 = vmatprep.mubr.bf16.mxu0 0
      %3299 = vmatmul.mubr.bf16.gmra.mrb[0].mxu0 %v2937
      %v3300 = vpop.f32.mrb[0].mxu0
      %v3301 = vadd.f32 0.0, %v3300
      %v3302 = vpop.f32.mrb[0].mxu0
      %v3303 = vpop.f32.mrb[0].mxu0
      %v3304 = vadd.f32 0.0, %v3303
      %v3305 = vpop.f32.mrb[0].mxu0
      %3306 = vmatprep.mubr.bf16.mxu0 0
      %3307 = vmatmul.mubr.bf16.gmra.mrb[0].mxu0 %v2945
      %v3308 = vpop.f32.mrb[0].mxu0
      %v3309 = vadd.f32 0.0, %v3308
      %v3310 = vpop.f32.mrb[0].mxu0
      %v3311 = vpop.f32.mrb[0].mxu0
      %v3312 = vadd.f32 0.0, %v3311
      %v3313 = vpop.f32.mrb[0].mxu0
      %3314 = vmatprep.mubr.bf16.mxu0 0
      %3315 = vmatmul.mubr.bf16.gmra.mrb[0].mxu0 %v2953
      %v3316 = vpop.f32.mrb[0].mxu0
      %v3317 = vadd.f32 0.0, %v3316
      %v3318 = vpop.f32.mrb[0].mxu0
      %v3319 = vpop.f32.mrb[0].mxu0
      %v3320 = vadd.f32 0.0, %v3319
      %v3321 = vpop.f32.mrb[0].mxu0
      %3322 = vmatprep.mubr.bf16.mxu0 0
      %3323 = vmatmul.mubr.bf16.gmra.mrb[0].mxu0 %v2961
      %v3324 = vpop.f32.mrb[0].mxu0
      %v3325 = vadd.f32 0.0, %v3324
      %v3326 = vpop.f32.mrb[0].mxu0
      %v3327 = vpop.f32.mrb[0].mxu0
      %v3328 = vadd.f32 0.0, %v3327
      %v3329 = vpop.f32.mrb[0].mxu0
      %3330 = vmatprep.mubr.bf16.mxu0 0
      %3331 = vmatmul.mubr.bf16.gmra.mrb[0].mxu0 %v2969
      %v3332 = vpop.f32.mrb[0].mxu0
      %v3333 = vadd.f32 0.0, %v3332
      %v3334 = vpop.f32.mrb[0].mxu0
      %v3335 = vpop.f32.mrb[0].mxu0
      %v3336 = vadd.f32 0.0, %v3335
      %v3337 = vpop.f32.mrb[0].mxu0
      %3338 = vmatprep.mubr.bf16.mxu0 0
      %3339 = vmatmul.mubr.bf16.gmra.mrb[0].mxu0 %v2977
      %v3340 = vpop.f32.mrb[0].mxu0
      %v3341 = vadd.f32 0.0, %v3340
      %v3342 = vpop.f32.mrb[0].mxu0
      %v3343 = vpop.f32.mrb[0].mxu0
      %v3344 = vadd.f32 0.0, %v3343
      %v3345 = vpop.f32.mrb[0].mxu0
      %3346 = vmatprep.mubr.bf16.mxu0 0
      %3347 = vmatmul.mubr.bf16.gmra.mrb[0].mxu0 %v2985
      %v3348 = vpop.f32.mrb[0].mxu0
      %v3349 = vadd.f32 0.0, %v3348
      %v3350 = vpop.f32.mrb[0].mxu0
      %v3351 = vpop.f32.mrb[0].mxu0
      %v3352 = vadd.f32 0.0, %v3351
      %v3353 = vpop.f32.mrb[0].mxu0
      %3354 = vmatprep.mubr.bf16.mxu0 0
      %3355 = vmatmul.mubr.bf16.gmra.mrb[0].mxu0 %v2993
      %v3356 = vpop.f32.mrb[0].mxu0
      %v3357 = vadd.f32 0.0, %v3356
      %v3358 = vpop.f32.mrb[0].mxu0
      %v3359 = vpop.f32.mrb[0].mxu0
      %v3360 = vadd.f32 0.0, %v3359
      %v3361 = vpop.f32.mrb[0].mxu0
      %3362 = vdwg.mxu0
      %v3379 = vunpack.c.l.b16 %v2700
      %v3380 = vunpack.c.l.b16 %v2701
      %v3381 = vunpack.c.l.b16 %v2702
      %v3382 = vunpack.c.l.b16 %v2703
      %v3383 = vunpack.c.l.b16 %v2704
      %v3384 = vunpack.c.l.b16 %v2705
      %v3385 = vunpack.c.l.b16 %v2706
      %v3386 = vunpack.c.l.b16 %v2707
      %v3387 = vunpack.c.l.b16 %v2708
      %v3388 = vunpack.c.l.b16 %v2709
      %v3389 = vunpack.c.l.b16 %v2710
      %v3390 = vunpack.c.l.b16 %v2711
      %v3391 = vunpack.c.l.b16 %v2712
      %v3392 = vunpack.c.l.b16 %v2713
      %v3393 = vunpack.c.l.b16 %v2714
      %v3394 = vunpack.c.l.b16 %v2715
      %v3395 = vpack.c.b16 %v3380, %v3379
      %v3396 = vpack.c.b16 %v3382, %v3381
      %v3397 = vpack.c.b16 %v3384, %v3383
      %v3398 = vpack.c.b16 %v3386, %v3385
      %v3399 = vpack.c.b16 %v3388, %v3387
      %v3400 = vpack.c.b16 %v3390, %v3389
      %v3401 = vpack.c.b16 %v3392, %v3391
      %v3402 = vpack.c.b16 %v3394, %v3393
      %3411 = vmatprep.subr.bf16.mxu0 0
      %3412 = vmatpush1.bf16.msra.mxu0 %v3395
      %3413 = vmatprep.subr.bf16.mxu0 0
      %3414 = vmatpush1.bf16.msra.mxu0 %v3396
      %3415 = vmatprep.subr.bf16.mxu0 0
      %3416 = vmatpush1.bf16.msra.mxu0 %v3397
      %3417 = vmatprep.subr.bf16.mxu0 0
      %3418 = vmatpush1.bf16.msra.mxu0 %v3398
      %3419 = vmatprep.subr.bf16.mxu0 0
      %3420 = vmatpush1.bf16.msra.mxu0 %v3399
      %3421 = vmatprep.subr.bf16.mxu0 0
      %3422 = vmatpush1.bf16.msra.mxu0 %v3400
      %3423 = vmatprep.subr.bf16.mxu0 0
      %3424 = vmatpush1.bf16.msra.mxu0 %v3401
      %3425 = vmatprep.subr.bf16.mxu0 0
      %3426 = vmatpush1.bf16.msra.mxu0 %v3402
      %3427 = vmatprep.subr.bf16.mxu0 0
      %3428 = vmatpush1.bf16.msra.mxu0 0
      %3429 = vmatprep.subr.bf16.mxu0 0
      %3430 = vmatpush1.bf16.msra.mxu0 0
      %3431 = vmatprep.subr.bf16.mxu0 0
      %3432 = vmatpush1.bf16.msra.mxu0 0
      %3433 = vmatprep.subr.bf16.mxu0 0
      %3434 = vmatpush1.bf16.msra.mxu0 0
      %3435 = vmatprep.subr.bf16.mxu0 0
      %3436 = vmatpush1.bf16.msra.mxu0 0
      %3437 = vmatprep.subr.bf16.mxu0 0
      %3438 = vmatpush1.bf16.msra.mxu0 0
      %3439 = vmatprep.subr.bf16.mxu0 0
      %3440 = vmatpush1.bf16.msra.mxu0 0
      %3441 = vmatprep.subr.bf16.mxu0 0
      %3442 = vmatpush1.bf16.msra.mxu0 0
      %3443 = vmatprep.mubr.bf16.mxu0 0
      %3444 = vmatmul.mubr.bf16.gmra.mrb[0].mxu0 %v2663
      %v3445 = vpop.f32.mrb[0].mxu0
      %v3446 = vadd.f32 %v3109, %v3445
      %v3447 = vpop.f32.mrb[0].mxu0
      %v3448 = vpop.f32.mrb[0].mxu0
      %v3449 = vadd.f32 %v3112, %v3448
      %v3450 = vpop.f32.mrb[0].mxu0
      %3451 = vmatprep.mubr.bf16.mxu0 0
      %3452 = vmatmul.mubr.bf16.gmra.mrb[0].mxu0 %v2664
      %v3453 = vpop.f32.mrb[0].mxu0
      %v3454 = vadd.f32 %v3117, %v3453
      %v3455 = vpop.f32.mrb[0].mxu0
      %v3456 = vpop.f32.mrb[0].mxu0
      %v3457 = vadd.f32 %v3120, %v3456
      %v3458 = vpop.f32.mrb[0].mxu0
      %3459 = vmatprep.mubr.bf16.mxu0 0
      %3460 = vmatmul.mubr.bf16.gmra.mrb[0].mxu0 %v2665
      %v3461 = vpop.f32.mrb[0].mxu0
      %v3462 = vadd.f32 %v3125, %v3461
      %v3463 = vpop.f32.mrb[0].mxu0
      %v3464 = vpop.f32.mrb[0].mxu0
      %v3465 = vadd.f32 %v3128, %v3464
      %v3466 = vpop.f32.mrb[0].mxu0
      %3467 = vmatprep.mubr.bf16.mxu0 0
      %3468 = vmatmul.mubr.bf16.gmra.mrb[0].mxu0 %v2666
      %v3469 = vpop.f32.mrb[0].mxu0
      %v3470 = vadd.f32 %v3133, %v3469
      %v3471 = vpop.f32.mrb[0].mxu0
      %v3472 = vpop.f32.mrb[0].mxu0
      %v3473 = vadd.f32 %v3136, %v3472
      %v3474 = vpop.f32.mrb[0].mxu0
      %3475 = vmatprep.mubr.bf16.mxu0 0
      %3476 = vmatmul.mubr.bf16.gmra.mrb[0].mxu0 %v2667
      %v3477 = vpop.f32.mrb[0].mxu0
      %v3478 = vadd.f32 %v3141, %v3477
      %v3479 = vpop.f32.mrb[0].mxu0
      %v3480 = vpop.f32.mrb[0].mxu0
      %v3481 = vadd.f32 %v3144, %v3480
      %v3482 = vpop.f32.mrb[0].mxu0
      %3483 = vmatprep.mubr.bf16.mxu0 0
      %3484 = vmatmul.mubr.bf16.gmra.mrb[0].mxu0 %v2668
      %v3485 = vpop.f32.mrb[0].mxu0
      %v3486 = vadd.f32 %v3149, %v3485
      %v3487 = vpop.f32.mrb[0].mxu0
      %v3488 = vpop.f32.mrb[0].mxu0
      %v3489 = vadd.f32 %v3152, %v3488
      %v3490 = vpop.f32.mrb[0].mxu0
      %3491 = vmatprep.mubr.bf16.mxu0 0
      %3492 = vmatmul.mubr.bf16.gmra.mrb[0].mxu0 %v2669
      %v3493 = vpop.f32.mrb[0].mxu0
      %v3494 = vadd.f32 %v3157, %v3493
      %v3495 = vpop.f32.mrb[0].mxu0
      %v3496 = vpop.f32.mrb[0].mxu0
      %v3497 = vadd.f32 %v3160, %v3496
      %v3498 = vpop.f32.mrb[0].mxu0
      %3499 = vmatprep.mubr.bf16.mxu0 0
      %3500 = vmatmul.mubr.bf16.gmra.mrb[0].mxu0 %v2670
      %v3501 = vpop.f32.mrb[0].mxu0
      %v3502 = vadd.f32 %v3165, %v3501
      %v3503 = vpop.f32.mrb[0].mxu0
      %v3504 = vpop.f32.mrb[0].mxu0
      %v3505 = vadd.f32 %v3168, %v3504
      %v3506 = vpop.f32.mrb[0].mxu0
      %3507 = vmatprep.mubr.bf16.mxu0 0
      %3508 = vmatmul.mubr.bf16.gmra.mrb[0].mxu0 %v2671
      %v3509 = vpop.f32.mrb[0].mxu0
      %v3510 = vadd.f32 %v3173, %v3509
      %v3511 = vpop.f32.mrb[0].mxu0
      %v3512 = vpop.f32.mrb[0].mxu0
      %v3513 = vadd.f32 %v3176, %v3512
      %v3514 = vpop.f32.mrb[0].mxu0
      %3515 = vmatprep.mubr.bf16.mxu0 0
      %3516 = vmatmul.mubr.bf16.gmra.mrb[0].mxu0 %v2672
      %v3517 = vpop.f32.mrb[0].mxu0
      %v3518 = vadd.f32 %v3181, %v3517
      %v3519 = vpop.f32.mrb[0].mxu0
      %v3520 = vpop.f32.mrb[0].mxu0
      %v3521 = vadd.f32 %v3184, %v3520
      %v3522 = vpop.f32.mrb[0].mxu0
      %3523 = vmatprep.mubr.bf16.mxu0 0
      %3524 = vmatmul.mubr.bf16.gmra.mrb[0].mxu0 %v2673
      %v3525 = vpop.f32.mrb[0].mxu0
      %v3526 = vadd.f32 %v3189, %v3525
      %v3527 = vpop.f32.mrb[0].mxu0
      %v3528 = vpop.f32.mrb[0].mxu0
      %v3529 = vadd.f32 %v3192, %v3528
      %v3530 = vpop.f32.mrb[0].mxu0
      %3531 = vmatprep.mubr.bf16.mxu0 0
      %3532 = vmatmul.mubr.bf16.gmra.mrb[0].mxu0 %v2674
      %v3533 = vpop.f32.mrb[0].mxu0
      %v3534 = vadd.f32 %v3197, %v3533
      %v3535 = vpop.f32.mrb[0].mxu0
      %v3536 = vpop.f32.mrb[0].mxu0
      %v3537 = vadd.f32 %v3200, %v3536
      %v3538 = vpop.f32.mrb[0].mxu0
      %3539 = vmatprep.mubr.bf16.mxu0 0
      %3540 = vmatmul.mubr.bf16.gmra.mrb[0].mxu0 %v2675
      %v3541 = vpop.f32.mrb[0].mxu0
      %v3542 = vadd.f32 %v3205, %v3541
      %v3543 = vpop.f32.mrb[0].mxu0
      %v3544 = vpop.f32.mrb[0].mxu0
      %v3545 = vadd.f32 %v3208, %v3544
      %v3546 = vpop.f32.mrb[0].mxu0
      %3547 = vmatprep.mubr.bf16.mxu0 0
      %3548 = vmatmul.mubr.bf16.gmra.mrb[0].mxu0 %v2676
      %v3549 = vpop.f32.mrb[0].mxu0
      %v3550 = vadd.f32 %v3213, %v3549
      %v3551 = vpop.f32.mrb[0].mxu0
      %v3552 = vpop.f32.mrb[0].mxu0
      %v3553 = vadd.f32 %v3216, %v3552
      %v3554 = vpop.f32.mrb[0].mxu0
      %3555 = vmatprep.mubr.bf16.mxu0 0
      %3556 = vmatmul.mubr.bf16.gmra.mrb[0].mxu0 %v2677
      %v3557 = vpop.f32.mrb[0].mxu0
      %v3558 = vadd.f32 %v3221, %v3557
      %v3559 = vpop.f32.mrb[0].mxu0
      %v3560 = vpop.f32.mrb[0].mxu0
      %v3561 = vadd.f32 %v3224, %v3560
      %v3562 = vpop.f32.mrb[0].mxu0
      %3563 = vmatprep.mubr.bf16.mxu0 0
      %3564 = vmatmul.mubr.bf16.gmra.mrb[0].mxu0 %v2678
      %v3565 = vpop.f32.mrb[0].mxu0
      %v3566 = vadd.f32 %v3229, %v3565
      %v3567 = vpop.f32.mrb[0].mxu0
      %v3568 = vpop.f32.mrb[0].mxu0
      %v3569 = vadd.f32 %v3232, %v3568
      %v3570 = vpop.f32.mrb[0].mxu0
      %3571 = vmatprep.mubr.bf16.mxu0 0
      %3572 = vmatmul.mubr.bf16.gmra.mrb[0].mxu0 %v2679
      %v3573 = vpop.f32.mrb[0].mxu0
      %v3574 = vadd.f32 %v3237, %v3573
      %v3575 = vpop.f32.mrb[0].mxu0
      %v3576 = vpop.f32.mrb[0].mxu0
      %v3577 = vadd.f32 %v3240, %v3576
      %v3578 = vpop.f32.mrb[0].mxu0
      %3579 = vmatprep.mubr.bf16.mxu0 0
      %3580 = vmatmul.mubr.bf16.gmra.mrb[0].mxu0 %v2680
      %v3581 = vpop.f32.mrb[0].mxu0
      %v3582 = vadd.f32 %v3245, %v3581
      %v3583 = vpop.f32.mrb[0].mxu0
      %v3584 = vpop.f32.mrb[0].mxu0
      %v3585 = vadd.f32 %v3248, %v3584
      %v3586 = vpop.f32.mrb[0].mxu0
      %3587 = vmatprep.mubr.bf16.mxu0 0
      %3588 = vmatmul.mubr.bf16.gmra.mrb[0].mxu0 %v2681
      %v3589 = vpop.f32.mrb[0].mxu0
      %v3590 = vadd.f32 %v3253, %v3589
      %v3591 = vpop.f32.mrb[0].mxu0
      %v3592 = vpop.f32.mrb[0].mxu0
      %v3593 = vadd.f32 %v3256, %v3592
      %v3594 = vpop.f32.mrb[0].mxu0
      %3595 = vmatprep.mubr.bf16.mxu0 0
      %3596 = vmatmul.mubr.bf16.gmra.mrb[0].mxu0 %v2682
      %v3597 = vpop.f32.mrb[0].mxu0
      %v3598 = vadd.f32 %v3261, %v3597
      %v3599 = vpop.f32.mrb[0].mxu0
      %v3600 = vpop.f32.mrb[0].mxu0
      %v3601 = vadd.f32 %v3264, %v3600
      %v3602 = vpop.f32.mrb[0].mxu0
      %3603 = vmatprep.mubr.bf16.mxu0 0
      %3604 = vmatmul.mubr.bf16.gmra.mrb[0].mxu0 %v2683
      %v3605 = vpop.f32.mrb[0].mxu0
      %v3606 = vadd.f32 %v3269, %v3605
      %v3607 = vpop.f32.mrb[0].mxu0
      %v3608 = vpop.f32.mrb[0].mxu0
      %v3609 = vadd.f32 %v3272, %v3608
      %v3610 = vpop.f32.mrb[0].mxu0
      %3611 = vmatprep.mubr.bf16.mxu0 0
      %3612 = vmatmul.mubr.bf16.gmra.mrb[0].mxu0 %v2684
      %v3613 = vpop.f32.mrb[0].mxu0
      %v3614 = vadd.f32 %v3277, %v3613
      %v3615 = vpop.f32.mrb[0].mxu0
      %v3616 = vpop.f32.mrb[0].mxu0
      %v3617 = vadd.f32 %v3280, %v3616
      %v3618 = vpop.f32.mrb[0].mxu0
      %3619 = vmatprep.mubr.bf16.mxu0 0
      %3620 = vmatmul.mubr.bf16.gmra.mrb[0].mxu0 %v2685
      %v3621 = vpop.f32.mrb[0].mxu0
      %v3622 = vadd.f32 %v3285, %v3621
      %v3623 = vpop.f32.mrb[0].mxu0
      %v3624 = vpop.f32.mrb[0].mxu0
      %v3625 = vadd.f32 %v3288, %v3624
      %v3626 = vpop.f32.mrb[0].mxu0
      %3627 = vmatprep.mubr.bf16.mxu0 0
      %3628 = vmatmul.mubr.bf16.gmra.mrb[0].mxu0 %v2686
      %v3629 = vpop.f32.mrb[0].mxu0
      %v3630 = vadd.f32 %v3293, %v3629
      %v3631 = vpop.f32.mrb[0].mxu0
      %v3632 = vpop.f32.mrb[0].mxu0
      %v3633 = vadd.f32 %v3296, %v3632
      %v3634 = vpop.f32.mrb[0].mxu0
      %3635 = vmatprep.mubr.bf16.mxu0 0
      %3636 = vmatmul.mubr.bf16.gmra.mrb[0].mxu0 %v2687
      %v3637 = vpop.f32.mrb[0].mxu0
      %v3638 = vadd.f32 %v3301, %v3637
      %v3639 = vpop.f32.mrb[0].mxu0
      %v3640 = vpop.f32.mrb[0].mxu0
      %v3641 = vadd.f32 %v3304, %v3640
      %v3642 = vpop.f32.mrb[0].mxu0
      %3643 = vmatprep.mubr.bf16.mxu0 0
      %3644 = vmatmul.mubr.bf16.gmra.mrb[0].mxu0 %v2688
      %v3645 = vpop.f32.mrb[0].mxu0
      %v3646 = vadd.f32 %v3309, %v3645
      %v3647 = vpop.f32.mrb[0].mxu0
      %v3648 = vpop.f32.mrb[0].mxu0
      %v3649 = vadd.f32 %v3312, %v3648
      %v3650 = vpop.f32.mrb[0].mxu0
      %3651 = vmatprep.mubr.bf16.mxu0 0
      %3652 = vmatmul.mubr.bf16.gmra.mrb[0].mxu0 %v2689
      %v3653 = vpop.f32.mrb[0].mxu0
      %v3654 = vadd.f32 %v3317, %v3653
      %v3655 = vpop.f32.mrb[0].mxu0
      %v3656 = vpop.f32.mrb[0].mxu0
      %v3657 = vadd.f32 %v3320, %v3656
      %v3658 = vpop.f32.mrb[0].mxu0
      %3659 = vmatprep.mubr.bf16.mxu0 0
      %3660 = vmatmul.mubr.bf16.gmra.mrb[0].mxu0 %v2690
      %v3661 = vpop.f32.mrb[0].mxu0
      %v3662 = vadd.f32 %v3325, %v3661
      %v3663 = vpop.f32.mrb[0].mxu0
      %v3664 = vpop.f32.mrb[0].mxu0
      %v3665 = vadd.f32 %v3328, %v3664
      %v3666 = vpop.f32.mrb[0].mxu0
      %3667 = vmatprep.mubr.bf16.mxu0 0
      %3668 = vmatmul.mubr.bf16.gmra.mrb[0].mxu0 %v2691
      %v3669 = vpop.f32.mrb[0].mxu0
      %v3670 = vadd.f32 %v3333, %v3669
      %v3671 = vpop.f32.mrb[0].mxu0
      %v3672 = vpop.f32.mrb[0].mxu0
      %v3673 = vadd.f32 %v3336, %v3672
      %v3674 = vpop.f32.mrb[0].mxu0
      %3675 = vmatprep.mubr.bf16.mxu0 0
      %3676 = vmatmul.mubr.bf16.gmra.mrb[0].mxu0 %v2692
      %v3677 = vpop.f32.mrb[0].mxu0
      %v3678 = vadd.f32 %v3341, %v3677
      %v3679 = vpop.f32.mrb[0].mxu0
      %v3680 = vpop.f32.mrb[0].mxu0
      %v3681 = vadd.f32 %v3344, %v3680
      %v3682 = vpop.f32.mrb[0].mxu0
      %3683 = vmatprep.mubr.bf16.mxu0 0
      %3684 = vmatmul.mubr.bf16.gmra.mrb[0].mxu0 %v2693
      %v3685 = vpop.f32.mrb[0].mxu0
      %v3686 = vadd.f32 %v3349, %v3685
      %v3687 = vpop.f32.mrb[0].mxu0
      %v3688 = vpop.f32.mrb[0].mxu0
      %v3689 = vadd.f32 %v3352, %v3688
      %v3690 = vpop.f32.mrb[0].mxu0
      %3691 = vmatprep.mubr.bf16.mxu0 0
      %3692 = vmatmul.mubr.bf16.gmra.mrb[0].mxu0 %v2694
      %v3693 = vpop.f32.mrb[0].mxu0
      %v3694 = vadd.f32 %v3357, %v3693
      %v3695 = vpop.f32.mrb[0].mxu0
      %v3696 = vpop.f32.mrb[0].mxu0
      %v3697 = vadd.f32 %v3360, %v3696
      %v3698 = vpop.f32.mrb[0].mxu0
      %3699 = vdwg.mxu0
      %s3700 = scalar_lea.vmem %s3, 128
      %v3701 = vld [vmem:[%s3700] sm:$0xf]
      %v3702 = vld [vmem:[%s3700 + $0x4] sm:$0xf]
      %v3703 = vld [vmem:[%s3700 + $0x8] sm:$0xf]
      %v3704 = vld [vmem:[%s3700 + $0xc] sm:$0xf]
      %v3705 = vld [vmem:[%s3700 + $0x10] sm:$0xf]
      %v3706 = vld [vmem:[%s3700 + $0x14] sm:$0xf]
      %v3707 = vld [vmem:[%s3700 + $0x18] sm:$0xf]
      %v3708 = vld [vmem:[%s3700 + $0x1c] sm:$0xf]
      %v3709 = vld [vmem:[%s3700 + $0x20] sm:$0xf]
      %v3710 = vld [vmem:[%s3700 + $0x24] sm:$0xf]
      %v3711 = vld [vmem:[%s3700 + $0x28] sm:$0xf]
      %v3712 = vld [vmem:[%s3700 + $0x2c] sm:$0xf]
      %v3713 = vld [vmem:[%s3700 + $0x30] sm:$0xf]
      %v3714 = vld [vmem:[%s3700 + $0x34] sm:$0xf]
      %v3715 = vld [vmem:[%s3700 + $0x38] sm:$0xf]
      %v3716 = vld [vmem:[%s3700 + $0x3c] sm:$0xf]
      %vm3750 = vcmask 1046528
      %v3751 = vrot.slane %v2663, 1
      %v3752 = vrot.slane %v2664, 1
      %v3753 = vsel %vm3750, %v3751, %v3752
      %v3754 = vrot.slane %v2665, 1
      %v3755 = vsel %vm3750, %v3752, %v3754
      %v3756 = vrot.slane %v2666, 1
      %v3757 = vsel %vm3750, %v3754, %v3756
      %v3758 = vrot.slane %v2667, 1
      %v3759 = vsel %vm3750, %v3756, %v3758
      %v3760 = vrot.slane %v2668, 1
      %v3761 = vsel %vm3750, %v3758, %v3760
      %v3762 = vrot.slane %v2669, 1
      %v3763 = vsel %vm3750, %v3760, %v3762
      %v3764 = vrot.slane %v2670, 1
      %v3765 = vsel %vm3750, %v3762, %v3764
      %v3766 = vrot.slane %v2671, 1
      %v3767 = vsel %vm3750, %v3764, %v3766
      %v3768 = vrot.slane %v2672, 1
      %v3769 = vsel %vm3750, %v3766, %v3768
      %v3770 = vrot.slane %v2673, 1
      %v3771 = vsel %vm3750, %v3768, %v3770
      %v3772 = vrot.slane %v2674, 1
      %v3773 = vsel %vm3750, %v3770, %v3772
      %v3774 = vrot.slane %v2675, 1
      %v3775 = vsel %vm3750, %v3772, %v3774
      %v3776 = vrot.slane %v2676, 1
      %v3777 = vsel %vm3750, %v3774, %v3776
      %v3778 = vrot.slane %v2677, 1
      %v3779 = vsel %vm3750, %v3776, %v3778
      %v3780 = vrot.slane %v2678, 1
      %v3781 = vsel %vm3750, %v3778, %v3780
      %v3782 = vrot.slane %v2679, 1
      %v3783 = vsel %vm3750, %v3780, %v3782
      %v3784 = vrot.slane %v2680, 1
      %v3785 = vsel %vm3750, %v3782, %v3784
      %v3786 = vrot.slane %v2681, 1
      %v3787 = vsel %vm3750, %v3784, %v3786
      %v3788 = vrot.slane %v2682, 1
      %v3789 = vsel %vm3750, %v3786, %v3788
      %v3790 = vrot.slane %v2683, 1
      %v3791 = vsel %vm3750, %v3788, %v3790
      %v3792 = vrot.slane %v2684, 1
      %v3793 = vsel %vm3750, %v3790, %v3792
      %v3794 = vrot.slane %v2685, 1
      %v3795 = vsel %vm3750, %v3792, %v3794
      %v3796 = vrot.slane %v2686, 1
      %v3797 = vsel %vm3750, %v3794, %v3796
      %v3798 = vrot.slane %v2687, 1
      %v3799 = vsel %vm3750, %v3796, %v3798
      %v3800 = vrot.slane %v2688, 1
      %v3801 = vsel %vm3750, %v3798, %v3800
      %v3802 = vrot.slane %v2689, 1
      %v3803 = vsel %vm3750, %v3800, %v3802
      %v3804 = vrot.slane %v2690, 1
      %v3805 = vsel %vm3750, %v3802, %v3804
      %v3806 = vrot.slane %v2691, 1
      %v3807 = vsel %vm3750, %v3804, %v3806
      %v3808 = vrot.slane %v2692, 1
      %v3809 = vsel %vm3750, %v3806, %v3808
      %v3810 = vrot.slane %v2693, 1
      %v3811 = vsel %vm3750, %v3808, %v3810
      %v3812 = vrot.slane %v2694, 1
      %v3813 = vsel %vm3750, %v3810, %v3812
      %v3814 = vrot.slane %v2695, 1
      %v3815 = vsel %vm3750, %v3812, %v3814
      %v3864 = vunpack.c.l.b16 %v3701
      %v3865 = vunpack.c.l.b16 %v3702
      %v3866 = vunpack.c.l.b16 %v3703
      %v3867 = vunpack.c.l.b16 %v3704
      %v3868 = vunpack.c.l.b16 %v3705
      %v3869 = vunpack.c.l.b16 %v3706
      %v3870 = vunpack.c.l.b16 %v3707
      %v3871 = vunpack.c.l.b16 %v3708
      %v3872 = vunpack.c.l.b16 %v3709
      %v3873 = vunpack.c.l.b16 %v3710
      %v3874 = vunpack.c.l.b16 %v3711
      %v3875 = vunpack.c.l.b16 %v3712
      %v3876 = vunpack.c.l.b16 %v3713
      %v3877 = vunpack.c.l.b16 %v3714
      %v3878 = vunpack.c.l.b16 %v3715
      %v3879 = vunpack.c.l.b16 %v3716
      %v3880 = vpack.c.b16 %v3865, %v3864
      %v3881 = vpack.c.b16 %v3867, %v3866
      %v3882 = vpack.c.b16 %v3869, %v3868
      %v3883 = vpack.c.b16 %v3871, %v3870
      %v3884 = vpack.c.b16 %v3873, %v3872
      %v3885 = vpack.c.b16 %v3875, %v3874
      %v3886 = vpack.c.b16 %v3877, %v3876
      %v3887 = vpack.c.b16 %v3879, %v3878
      %3896 = vmatprep.subr.bf16.mxu0 0
      %3897 = vmatpush1.bf16.msra.mxu0 %v3880
      %3898 = vmatprep.subr.bf16.mxu0 0
      %3899 = vmatpush1.bf16.msra.mxu0 %v3881
      %3900 = vmatprep.subr.bf16.mxu0 0
      %3901 = vmatpush1.bf16.msra.mxu0 %v3882
      %3902 = vmatprep.subr.bf16.mxu0 0
      %3903 = vmatpush1.bf16.msra.mxu0 %v3883
      %3904 = vmatprep.subr.bf16.mxu0 0
      %3905 = vmatpush1.bf16.msra.mxu0 %v3884
      %3906 = vmatprep.subr.bf16.mxu0 0
      %3907 = vmatpush1.bf16.msra.mxu0 %v3885
      %3908 = vmatprep.subr.bf16.mxu0 0
      %3909 = vmatpush1.bf16.msra.mxu0 %v3886
      %3910 = vmatprep.subr.bf16.mxu0 0
      %3911 = vmatpush1.bf16.msra.mxu0 %v3887
      %3912 = vmatprep.subr.bf16.mxu0 0
      %3913 = vmatpush1.bf16.msra.mxu0 0
      %3914 = vmatprep.subr.bf16.mxu0 0
      %3915 = vmatpush1.bf16.msra.mxu0 0
      %3916 = vmatprep.subr.bf16.mxu0 0
      %3917 = vmatpush1.bf16.msra.mxu0 0
      %3918 = vmatprep.subr.bf16.mxu0 0
      %3919 = vmatpush1.bf16.msra.mxu0 0
      %3920 = vmatprep.subr.bf16.mxu0 0
      %3921 = vmatpush1.bf16.msra.mxu0 0
      %3922 = vmatprep.subr.bf16.mxu0 0
      %3923 = vmatpush1.bf16.msra.mxu0 0
      %3924 = vmatprep.subr.bf16.mxu0 0
      %3925 = vmatpush1.bf16.msra.mxu0 0
      %3926 = vmatprep.subr.bf16.mxu0 0
      %3927 = vmatpush1.bf16.msra.mxu0 0
      %3928 = vmatprep.mubr.bf16.mxu0 0
      %3929 = vmatmul.mubr.bf16.gmra.mrb[0].mxu0 %v3753
      %v3930 = vpop.f32.mrb[0].mxu0
      %v3931 = vadd.f32 0.0, %v3930
      %v3932 = vpop.f32.mrb[0].mxu0
      %v3933 = vpop.f32.mrb[0].mxu0
      %v3934 = vadd.f32 0.0, %v3933
      %v3935 = vpop.f32.mrb[0].mxu0
      %3936 = vmatprep.mubr.bf16.mxu0 0
      %3937 = vmatmul.mubr.bf16.gmra.mrb[0].mxu0 %v3755
      %v3938 = vpop.f32.mrb[0].mxu0
      %v3939 = vadd.f32 0.0, %v3938
      %v3940 = vpop.f32.mrb[0].mxu0
      %v3941 = vpop.f32.mrb[0].mxu0
      %v3942 = vadd.f32 0.0, %v3941
      %v3943 = vpop.f32.mrb[0].mxu0
      %3944 = vmatprep.mubr.bf16.mxu0 0
      %3945 = vmatmul.mubr.bf16.gmra.mrb[0].mxu0 %v3757
      %v3946 = vpop.f32.mrb[0].mxu0
      %v3947 = vadd.f32 0.0, %v3946
      %v3948 = vpop.f32.mrb[0].mxu0
      %v3949 = vpop.f32.mrb[0].mxu0
      %v3950 = vadd.f32 0.0, %v3949
      %v3951 = vpop.f32.mrb[0].mxu0
      %3952 = vmatprep.mubr.bf16.mxu0 0
      %3953 = vmatmul.mubr.bf16.gmra.mrb[0].mxu0 %v3759
      %v3954 = vpop.f32.mrb[0].mxu0
      %v3955 = vadd.f32 0.0, %v3954
      %v3956 = vpop.f32.mrb[0].mxu0
      %v3957 = vpop.f32.mrb[0].mxu0
      %v3958 = vadd.f32 0.0, %v3957
      %v3959 = vpop.f32.mrb[0].mxu0
      %3960 = vmatprep.mubr.bf16.mxu0 0
      %3961 = vmatmul.mubr.bf16.gmra.mrb[0].mxu0 %v3761
      %v3962 = vpop.f32.mrb[0].mxu0
      %v3963 = vadd.f32 0.0, %v3962
      %v3964 = vpop.f32.mrb[0].mxu0
      %v3965 = vpop.f32.mrb[0].mxu0
      %v3966 = vadd.f32 0.0, %v3965
      %v3967 = vpop.f32.mrb[0].mxu0
      %3968 = vmatprep.mubr.bf16.mxu0 0
      %3969 = vmatmul.mubr.bf16.gmra.mrb[0].mxu0 %v3763
      %v3970 = vpop.f32.mrb[0].mxu0
      %v3971 = vadd.f32 0.0, %v3970
      %v3972 = vpop.f32.mrb[0].mxu0
      %v3973 = vpop.f32.mrb[0].mxu0
      %v3974 = vadd.f32 0.0, %v3973
      %v3975 = vpop.f32.mrb[0].mxu0
      %3976 = vmatprep.mubr.bf16.mxu0 0
      %3977 = vmatmul.mubr.bf16.gmra.mrb[0].mxu0 %v3765
      %v3978 = vpop.f32.mrb[0].mxu0
      %v3979 = vadd.f32 0.0, %v3978
      %v3980 = vpop.f32.mrb[0].mxu0
      %v3981 = vpop.f32.mrb[0].mxu0
      %v3982 = vadd.f32 0.0, %v3981
      %v3983 = vpop.f32.mrb[0].mxu0
      %3984 = vmatprep.mubr.bf16.mxu0 0
      %3985 = vmatmul.mubr.bf16.gmra.mrb[0].mxu0 %v3767
      %v3986 = vpop.f32.mrb[0].mxu0
      %v3987 = vadd.f32 0.0, %v3986
      %v3988 = vpop.f32.mrb[0].mxu0
      %v3989 = vpop.f32.mrb[0].mxu0
      %v3990 = vadd.f32 0.0, %v3989
      %v3991 = vpop.f32.mrb[0].mxu0
      %3992 = vmatprep.mubr.bf16.mxu0 0
      %3993 = vmatmul.mubr.bf16.gmra.mrb[0].mxu0 %v3769
      %v3994 = vpop.f32.mrb[0].mxu0
      %v3995 = vadd.f32 0.0, %v3994
      %v3996 = vpop.f32.mrb[0].mxu0
      %v3997 = vpop.f32.mrb[0].mxu0
      %v3998 = vadd.f32 0.0, %v3997
      %v3999 = vpop.f32.mrb[0].mxu0
      %4000 = vmatprep.mubr.bf16.mxu0 0
      %4001 = vmatmul.mubr.bf16.gmra.mrb[0].mxu0 %v3771
      %v4002 = vpop.f32.mrb[0].mxu0
      %v4003 = vadd.f32 0.0, %v4002
      %v4004 = vpop.f32.mrb[0].mxu0
      %v4005 = vpop.f32.mrb[0].mxu0
      %v4006 = vadd.f32 0.0, %v4005
      %v4007 = vpop.f32.mrb[0].mxu0
      %4008 = vmatprep.mubr.bf16.mxu0 0
      %4009 = vmatmul.mubr.bf16.gmra.mrb[0].mxu0 %v3773
      %v4010 = vpop.f32.mrb[0].mxu0
      %v4011 = vadd.f32 0.0, %v4010
      %v4012 = vpop.f32.mrb[0].mxu0
      %v4013 = vpop.f32.mrb[0].mxu0
      %v4014 = vadd.f32 0.0, %v4013
      %v4015 = vpop.f32.mrb[0].mxu0
      %4016 = vmatprep.mubr.bf16.mxu0 0
      %4017 = vmatmul.mubr.bf16.gmra.mrb[0].mxu0 %v3775
      %v4018 = vpop.f32.mrb[0].mxu0
      %v4019 = vadd.f32 0.0, %v4018
      %v4020 = vpop.f32.mrb[0].mxu0
      %v4021 = vpop.f32.mrb[0].mxu0
      %v4022 = vadd.f32 0.0, %v4021
      %v4023 = vpop.f32.mrb[0].mxu0
      %4024 = vmatprep.mubr.bf16.mxu0 0
      %4025 = vmatmul.mubr.bf16.gmra.mrb[0].mxu0 %v3777
      %v4026 = vpop.f32.mrb[0].mxu0
      %v4027 = vadd.f32 0.0, %v4026
      %v4028 = vpop.f32.mrb[0].mxu0
      %v4029 = vpop.f32.mrb[0].mxu0
      %v4030 = vadd.f32 0.0, %v4029
      %v4031 = vpop.f32.mrb[0].mxu0
      %4032 = vmatprep.mubr.bf16.mxu0 0
      %4033 = vmatmul.mubr.bf16.gmra.mrb[0].mxu0 %v3779
      %v4034 = vpop.f32.mrb[0].mxu0
      %v4035 = vadd.f32 0.0, %v4034
      %v4036 = vpop.f32.mrb[0].mxu0
      %v4037 = vpop.f32.mrb[0].mxu0
      %v4038 = vadd.f32 0.0, %v4037
      %v4039 = vpop.f32.mrb[0].mxu0
      %4040 = vmatprep.mubr.bf16.mxu0 0
      %4041 = vmatmul.mubr.bf16.gmra.mrb[0].mxu0 %v3781
      %v4042 = vpop.f32.mrb[0].mxu0
      %v4043 = vadd.f32 0.0, %v4042
      %v4044 = vpop.f32.mrb[0].mxu0
      %v4045 = vpop.f32.mrb[0].mxu0
      %v4046 = vadd.f32 0.0, %v4045
      %v4047 = vpop.f32.mrb[0].mxu0
      %4048 = vmatprep.mubr.bf16.mxu0 0
      %4049 = vmatmul.mubr.bf16.gmra.mrb[0].mxu0 %v3783
      %v4050 = vpop.f32.mrb[0].mxu0
      %v4051 = vadd.f32 0.0, %v4050
      %v4052 = vpop.f32.mrb[0].mxu0
      %v4053 = vpop.f32.mrb[0].mxu0
      %v4054 = vadd.f32 0.0, %v4053
      %v4055 = vpop.f32.mrb[0].mxu0
      %4056 = vmatprep.mubr.bf16.mxu0 0
      %4057 = vmatmul.mubr.bf16.gmra.mrb[0].mxu0 %v3785
      %v4058 = vpop.f32.mrb[0].mxu0
      %v4059 = vadd.f32 0.0, %v4058
      %v4060 = vpop.f32.mrb[0].mxu0
      %v4061 = vpop.f32.mrb[0].mxu0
      %v4062 = vadd.f32 0.0, %v4061
      %v4063 = vpop.f32.mrb[0].mxu0
      %4064 = vmatprep.mubr.bf16.mxu0 0
      %4065 = vmatmul.mubr.bf16.gmra.mrb[0].mxu0 %v3787
      %v4066 = vpop.f32.mrb[0].mxu0
      %v4067 = vadd.f32 0.0, %v4066
      %v4068 = vpop.f32.mrb[0].mxu0
      %v4069 = vpop.f32.mrb[0].mxu0
      %v4070 = vadd.f32 0.0, %v4069
      %v4071 = vpop.f32.mrb[0].mxu0
      %4072 = vmatprep.mubr.bf16.mxu0 0
      %4073 = vmatmul.mubr.bf16.gmra.mrb[0].mxu0 %v3789
      %v4074 = vpop.f32.mrb[0].mxu0
      %v4075 = vadd.f32 0.0, %v4074
      %v4076 = vpop.f32.mrb[0].mxu0
      %v4077 = vpop.f32.mrb[0].mxu0
      %v4078 = vadd.f32 0.0, %v4077
      %v4079 = vpop.f32.mrb[0].mxu0
      %4080 = vmatprep.mubr.bf16.mxu0 0
      %4081 = vmatmul.mubr.bf16.gmra.mrb[0].mxu0 %v3791
      %v4082 = vpop.f32.mrb[0].mxu0
      %v4083 = vadd.f32 0.0, %v4082
      %v4084 = vpop.f32.mrb[0].mxu0
      %v4085 = vpop.f32.mrb[0].mxu0
      %v4086 = vadd.f32 0.0, %v4085
      %v4087 = vpop.f32.mrb[0].mxu0
      %4088 = vmatprep.mubr.bf16.mxu0 0
      %4089 = vmatmul.mubr.bf16.gmra.mrb[0].mxu0 %v3793
      %v4090 = vpop.f32.mrb[0].mxu0
      %v4091 = vadd.f32 0.0, %v4090
      %v4092 = vpop.f32.mrb[0].mxu0
      %v4093 = vpop.f32.mrb[0].mxu0
      %v4094 = vadd.f32 0.0, %v4093
      %v4095 = vpop.f32.mrb[0].mxu0
      %4096 = vmatprep.mubr.bf16.mxu0 0
      %4097 = vmatmul.mubr.bf16.gmra.mrb[0].mxu0 %v3795
      %v4098 = vpop.f32.mrb[0].mxu0
      %v4099 = vadd.f32 0.0, %v4098
      %v4100 = vpop.f32.mrb[0].mxu0
      %v4101 = vpop.f32.mrb[0].mxu0
      %v4102 = vadd.f32 0.0, %v4101
      %v4103 = vpop.f32.mrb[0].mxu0
      %4104 = vmatprep.mubr.bf16.mxu0 0
      %4105 = vmatmul.mubr.bf16.gmra.mrb[0].mxu0 %v3797
      %v4106 = vpop.f32.mrb[0].mxu0
      %v4107 = vadd.f32 0.0, %v4106
      %v4108 = vpop.f32.mrb[0].mxu0
      %v4109 = vpop.f32.mrb[0].mxu0
      %v4110 = vadd.f32 0.0, %v4109
      %v4111 = vpop.f32.mrb[0].mxu0
      %4112 = vmatprep.mubr.bf16.mxu0 0
      %4113 = vmatmul.mubr.bf16.gmra.mrb[0].mxu0 %v3799
      %v4114 = vpop.f32.mrb[0].mxu0
      %v4115 = vadd.f32 0.0, %v4114
      %v4116 = vpop.f32.mrb[0].mxu0
      %v4117 = vpop.f32.mrb[0].mxu0
      %v4118 = vadd.f32 0.0, %v4117
      %v4119 = vpop.f32.mrb[0].mxu0
      %4120 = vmatprep.mubr.bf16.mxu0 0
      %4121 = vmatmul.mubr.bf16.gmra.mrb[0].mxu0 %v3801
      %v4122 = vpop.f32.mrb[0].mxu0
      %v4123 = vadd.f32 0.0, %v4122
      %v4124 = vpop.f32.mrb[0].mxu0
      %v4125 = vpop.f32.mrb[0].mxu0
      %v4126 = vadd.f32 0.0, %v4125
      %v4127 = vpop.f32.mrb[0].mxu0
      %4128 = vmatprep.mubr.bf16.mxu0 0
      %4129 = vmatmul.mubr.bf16.gmra.mrb[0].mxu0 %v3803
      %v4130 = vpop.f32.mrb[0].mxu0
      %v4131 = vadd.f32 0.0, %v4130
      %v4132 = vpop.f32.mrb[0].mxu0
      %v4133 = vpop.f32.mrb[0].mxu0
      %v4134 = vadd.f32 0.0, %v4133
      %v4135 = vpop.f32.mrb[0].mxu0
      %4136 = vmatprep.mubr.bf16.mxu0 0
      %4137 = vmatmul.mubr.bf16.gmra.mrb[0].mxu0 %v3805
      %v4138 = vpop.f32.mrb[0].mxu0
      %v4139 = vadd.f32 0.0, %v4138
      %v4140 = vpop.f32.mrb[0].mxu0
      %v4141 = vpop.f32.mrb[0].mxu0
      %v4142 = vadd.f32 0.0, %v4141
      %v4143 = vpop.f32.mrb[0].mxu0
      %4144 = vmatprep.mubr.bf16.mxu0 0
      %4145 = vmatmul.mubr.bf16.gmra.mrb[0].mxu0 %v3807
      %v4146 = vpop.f32.mrb[0].mxu0
      %v4147 = vadd.f32 0.0, %v4146
      %v4148 = vpop.f32.mrb[0].mxu0
      %v4149 = vpop.f32.mrb[0].mxu0
      %v4150 = vadd.f32 0.0, %v4149
      %v4151 = vpop.f32.mrb[0].mxu0
      %4152 = vmatprep.mubr.bf16.mxu0 0
      %4153 = vmatmul.mubr.bf16.gmra.mrb[0].mxu0 %v3809
      %v4154 = vpop.f32.mrb[0].mxu0
      %v4155 = vadd.f32 0.0, %v4154
      %v4156 = vpop.f32.mrb[0].mxu0
      %v4157 = vpop.f32.mrb[0].mxu0
      %v4158 = vadd.f32 0.0, %v4157
      %v4159 = vpop.f32.mrb[0].mxu0
      %4160 = vmatprep.mubr.bf16.mxu0 0
      %4161 = vmatmul.mubr.bf16.gmra.mrb[0].mxu0 %v3811
      %v4162 = vpop.f32.mrb[0].mxu0
      %v4163 = vadd.f32 0.0, %v4162
      %v4164 = vpop.f32.mrb[0].mxu0
      %v4165 = vpop.f32.mrb[0].mxu0
      %v4166 = vadd.f32 0.0, %v4165
      %v4167 = vpop.f32.mrb[0].mxu0
      %4168 = vmatprep.mubr.bf16.mxu0 0
      %4169 = vmatmul.mubr.bf16.gmra.mrb[0].mxu0 %v3813
      %v4170 = vpop.f32.mrb[0].mxu0
      %v4171 = vadd.f32 0.0, %v4170
      %v4172 = vpop.f32.mrb[0].mxu0
      %v4173 = vpop.f32.mrb[0].mxu0
      %v4174 = vadd.f32 0.0, %v4173
      %v4175 = vpop.f32.mrb[0].mxu0
      %4176 = vmatprep.mubr.bf16.mxu0 0
      %4177 = vmatmul.mubr.bf16.gmra.mrb[0].mxu0 %v3815
      %v4178 = vpop.f32.mrb[0].mxu0
      %v4179 = vadd.f32 0.0, %v4178
      %v4180 = vpop.f32.mrb[0].mxu0
      %v4181 = vpop.f32.mrb[0].mxu0
      %v4182 = vadd.f32 0.0, %v4181
      %v4183 = vpop.f32.mrb[0].mxu0
      %4184 = vdwg.mxu0
      %v4185 = vadd.f32 %v3446, %v3931
      %v4186 = vadd.f32 %v3449, %v3934
      %v4187 = vadd.f32 %v3454, %v3939
      %v4188 = vadd.f32 %v3457, %v3942
      %v4189 = vadd.f32 %v3462, %v3947
      %v4190 = vadd.f32 %v3465, %v3950
      %v4191 = vadd.f32 %v3470, %v3955
      %v4192 = vadd.f32 %v3473, %v3958
      %v4193 = vadd.f32 %v3478, %v3963
      %v4194 = vadd.f32 %v3481, %v3966
      %v4195 = vadd.f32 %v3486, %v3971
      %v4196 = vadd.f32 %v3489, %v3974
      %v4197 = vadd.f32 %v3494, %v3979
      %v4198 = vadd.f32 %v3497, %v3982
      %v4199 = vadd.f32 %v3502, %v3987
      %v4200 = vadd.f32 %v3505, %v3990
      %v4201 = vadd.f32 %v3510, %v3995
      %v4202 = vadd.f32 %v3513, %v3998
      %v4203 = vadd.f32 %v3518, %v4003
      %v4204 = vadd.f32 %v3521, %v4006
      %v4205 = vadd.f32 %v3526, %v4011
      %v4206 = vadd.f32 %v3529, %v4014
      %v4207 = vadd.f32 %v3534, %v4019
      %v4208 = vadd.f32 %v3537, %v4022
      %v4209 = vadd.f32 %v3542, %v4027
      %v4210 = vadd.f32 %v3545, %v4030
      %v4211 = vadd.f32 %v3550, %v4035
      %v4212 = vadd.f32 %v3553, %v4038
      %v4213 = vadd.f32 %v3558, %v4043
      %v4214 = vadd.f32 %v3561, %v4046
      %v4215 = vadd.f32 %v3566, %v4051
      %v4216 = vadd.f32 %v3569, %v4054
      %v4217 = vadd.f32 %v3574, %v4059
      %v4218 = vadd.f32 %v3577, %v4062
      %v4219 = vadd.f32 %v3582, %v4067
      %v4220 = vadd.f32 %v3585, %v4070
      %v4221 = vadd.f32 %v3590, %v4075
      %v4222 = vadd.f32 %v3593, %v4078
      %v4223 = vadd.f32 %v3598, %v4083
      %v4224 = vadd.f32 %v3601, %v4086
      %v4225 = vadd.f32 %v3606, %v4091
      %v4226 = vadd.f32 %v3609, %v4094
      %v4227 = vadd.f32 %v3614, %v4099
      %v4228 = vadd.f32 %v3617, %v4102
      %v4229 = vadd.f32 %v3622, %v4107
      %v4230 = vadd.f32 %v3625, %v4110
      %v4231 = vadd.f32 %v3630, %v4115
      %v4232 = vadd.f32 %v3633, %v4118
      %v4233 = vadd.f32 %v3638, %v4123
      %v4234 = vadd.f32 %v3641, %v4126
      %v4235 = vadd.f32 %v3646, %v4131
      %v4236 = vadd.f32 %v3649, %v4134
      %v4237 = vadd.f32 %v3654, %v4139
      %v4238 = vadd.f32 %v3657, %v4142
      %v4239 = vadd.f32 %v3662, %v4147
      %v4240 = vadd.f32 %v3665, %v4150
      %v4241 = vadd.f32 %v3670, %v4155
      %v4242 = vadd.f32 %v3673, %v4158
      %v4243 = vadd.f32 %v3678, %v4163
      %v4244 = vadd.f32 %v3681, %v4166
      %v4245 = vadd.f32 %v3686, %v4171
      %v4246 = vadd.f32 %v3689, %v4174
      %v4247 = vadd.f32 %v3694, %v4179
      %v4248 = vadd.f32 %v3697, %v4182
      %s4249 = scalar_lea.vmem %s3, 192
      %v4250 = vld [vmem:[%s4249] sm:$0xf]
      %v4251 = vld [vmem:[%s4249 + $0x4] sm:$0xf]
      %v4252 = vld [vmem:[%s4249 + $0x8] sm:$0xf]
      %v4253 = vld [vmem:[%s4249 + $0xc] sm:$0xf]
      %v4254 = vld [vmem:[%s4249 + $0x10] sm:$0xf]
      %v4255 = vld [vmem:[%s4249 + $0x14] sm:$0xf]
      %v4256 = vld [vmem:[%s4249 + $0x18] sm:$0xf]
      %v4257 = vld [vmem:[%s4249 + $0x1c] sm:$0xf]
      %v4258 = vld [vmem:[%s4249 + $0x20] sm:$0xf]
      %v4259 = vld [vmem:[%s4249 + $0x24] sm:$0xf]
      %v4260 = vld [vmem:[%s4249 + $0x28] sm:$0xf]
      %v4261 = vld [vmem:[%s4249 + $0x2c] sm:$0xf]
      %v4262 = vld [vmem:[%s4249 + $0x30] sm:$0xf]
      %v4263 = vld [vmem:[%s4249 + $0x34] sm:$0xf]
      %v4264 = vld [vmem:[%s4249 + $0x38] sm:$0xf]
      %v4265 = vld [vmem:[%s4249 + $0x3c] sm:$0xf]
      %v4282 = vunpack.c.l.b16 %v4250
      %v4283 = vunpack.c.l.b16 %v4251
      %v4284 = vunpack.c.l.b16 %v4252
      %v4285 = vunpack.c.l.b16 %v4253
      %v4286 = vunpack.c.l.b16 %v4254
      %v4287 = vunpack.c.l.b16 %v4255
      %v4288 = vunpack.c.l.b16 %v4256
      %v4289 = vunpack.c.l.b16 %v4257
      %v4290 = vunpack.c.l.b16 %v4258
      %v4291 = vunpack.c.l.b16 %v4259
      %v4292 = vunpack.c.l.b16 %v4260
      %v4293 = vunpack.c.l.b16 %v4261
      %v4294 = vunpack.c.l.b16 %v4262
      %v4295 = vunpack.c.l.b16 %v4263
      %v4296 = vunpack.c.l.b16 %v4264
      %v4297 = vunpack.c.l.b16 %v4265
      %v4298 = vpack.c.b16 %v4283, %v4282
      %v4299 = vpack.c.b16 %v4285, %v4284
      %v4300 = vpack.c.b16 %v4287, %v4286
      %v4301 = vpack.c.b16 %v4289, %v4288
      %v4302 = vpack.c.b16 %v4291, %v4290
      %v4303 = vpack.c.b16 %v4293, %v4292
      %v4304 = vpack.c.b16 %v4295, %v4294
      %v4305 = vpack.c.b16 %v4297, %v4296
      %4314 = vmatprep.subr.bf16.mxu0 0
      %4315 = vmatpush1.bf16.msra.mxu0 %v4298
      %4316 = vmatprep.subr.bf16.mxu0 0
      %4317 = vmatpush1.bf16.msra.mxu0 %v4299
      %4318 = vmatprep.subr.bf16.mxu0 0
      %4319 = vmatpush1.bf16.msra.mxu0 %v4300
      %4320 = vmatprep.subr.bf16.mxu0 0
      %4321 = vmatpush1.bf16.msra.mxu0 %v4301
      %4322 = vmatprep.subr.bf16.mxu0 0
      %4323 = vmatpush1.bf16.msra.mxu0 %v4302
      %4324 = vmatprep.subr.bf16.mxu0 0
      %4325 = vmatpush1.bf16.msra.mxu0 %v4303
      %4326 = vmatprep.subr.bf16.mxu0 0
      %4327 = vmatpush1.bf16.msra.mxu0 %v4304
      %4328 = vmatprep.subr.bf16.mxu0 0
      %4329 = vmatpush1.bf16.msra.mxu0 %v4305
      %4330 = vmatprep.subr.bf16.mxu0 0
      %4331 = vmatpush1.bf16.msra.mxu0 0
      %4332 = vmatprep.subr.bf16.mxu0 0
      %4333 = vmatpush1.bf16.msra.mxu0 0
      %4334 = vmatprep.subr.bf16.mxu0 0
      %4335 = vmatpush1.bf16.msra.mxu0 0
      %4336 = vmatprep.subr.bf16.mxu0 0
      %4337 = vmatpush1.bf16.msra.mxu0 0
      %4338 = vmatprep.subr.bf16.mxu0 0
      %4339 = vmatpush1.bf16.msra.mxu0 0
      %4340 = vmatprep.subr.bf16.mxu0 0
      %4341 = vmatpush1.bf16.msra.mxu0 0
      %4342 = vmatprep.subr.bf16.mxu0 0
      %4343 = vmatpush1.bf16.msra.mxu0 0
      %4344 = vmatprep.subr.bf16.mxu0 0
      %4345 = vmatpush1.bf16.msra.mxu0 0
      %4346 = vmatprep.mubr.bf16.mxu0 0
      %4347 = vmatmul.mubr.bf16.gmra.mrb[0].mxu0 %v2665
      %v4348 = vpop.f32.mrb[0].mxu0
      %v4349 = vadd.f32 0.0, %v4348
      %v4350 = vpop.f32.mrb[0].mxu0
      %v4351 = vpop.f32.mrb[0].mxu0
      %v4352 = vadd.f32 0.0, %v4351
      %v4353 = vpop.f32.mrb[0].mxu0
      %4354 = vmatprep.mubr.bf16.mxu0 0
      %4355 = vmatmul.mubr.bf16.gmra.mrb[0].mxu0 %v2666
      %v4356 = vpop.f32.mrb[0].mxu0
      %v4357 = vadd.f32 0.0, %v4356
      %v4358 = vpop.f32.mrb[0].mxu0
      %v4359 = vpop.f32.mrb[0].mxu0
      %v4360 = vadd.f32 0.0, %v4359
      %v4361 = vpop.f32.mrb[0].mxu0
      %4362 = vmatprep.mubr.bf16.mxu0 0
      %4363 = vmatmul.mubr.bf16.gmra.mrb[0].mxu0 %v2667
      %v4364 = vpop.f32.mrb[0].mxu0
      %v4365 = vadd.f32 0.0, %v4364
      %v4366 = vpop.f32.mrb[0].mxu0
      %v4367 = vpop.f32.mrb[0].mxu0
      %v4368 = vadd.f32 0.0, %v4367
      %v4369 = vpop.f32.mrb[0].mxu0
      %4370 = vmatprep.mubr.bf16.mxu0 0
      %4371 = vmatmul.mubr.bf16.gmra.mrb[0].mxu0 %v2668
      %v4372 = vpop.f32.mrb[0].mxu0
      %v4373 = vadd.f32 0.0, %v4372
      %v4374 = vpop.f32.mrb[0].mxu0
      %v4375 = vpop.f32.mrb[0].mxu0
      %v4376 = vadd.f32 0.0, %v4375
      %v4377 = vpop.f32.mrb[0].mxu0
      %4378 = vmatprep.mubr.bf16.mxu0 0
      %4379 = vmatmul.mubr.bf16.gmra.mrb[0].mxu0 %v2669
      %v4380 = vpop.f32.mrb[0].mxu0
      %v4381 = vadd.f32 0.0, %v4380
      %v4382 = vpop.f32.mrb[0].mxu0
      %v4383 = vpop.f32.mrb[0].mxu0
      %v4384 = vadd.f32 0.0, %v4383
      %v4385 = vpop.f32.mrb[0].mxu0
      %4386 = vmatprep.mubr.bf16.mxu0 0
      %4387 = vmatmul.mubr.bf16.gmra.mrb[0].mxu0 %v2670
      %v4388 = vpop.f32.mrb[0].mxu0
      %v4389 = vadd.f32 0.0, %v4388
      %v4390 = vpop.f32.mrb[0].mxu0
      %v4391 = vpop.f32.mrb[0].mxu0
      %v4392 = vadd.f32 0.0, %v4391
      %v4393 = vpop.f32.mrb[0].mxu0
      %4394 = vmatprep.mubr.bf16.mxu0 0
      %4395 = vmatmul.mubr.bf16.gmra.mrb[0].mxu0 %v2671
      %v4396 = vpop.f32.mrb[0].mxu0
      %v4397 = vadd.f32 0.0, %v4396
      %v4398 = vpop.f32.mrb[0].mxu0
      %v4399 = vpop.f32.mrb[0].mxu0
      %v4400 = vadd.f32 0.0, %v4399
      %v4401 = vpop.f32.mrb[0].mxu0
      %4402 = vmatprep.mubr.bf16.mxu0 0
      %4403 = vmatmul.mubr.bf16.gmra.mrb[0].mxu0 %v2672
      %v4404 = vpop.f32.mrb[0].mxu0
      %v4405 = vadd.f32 0.0, %v4404
      %v4406 = vpop.f32.mrb[0].mxu0
      %v4407 = vpop.f32.mrb[0].mxu0
      %v4408 = vadd.f32 0.0, %v4407
      %v4409 = vpop.f32.mrb[0].mxu0
      %4410 = vmatprep.mubr.bf16.mxu0 0
      %4411 = vmatmul.mubr.bf16.gmra.mrb[0].mxu0 %v2673
      %v4412 = vpop.f32.mrb[0].mxu0
      %v4413 = vadd.f32 0.0, %v4412
      %v4414 = vpop.f32.mrb[0].mxu0
      %v4415 = vpop.f32.mrb[0].mxu0
      %v4416 = vadd.f32 0.0, %v4415
      %v4417 = vpop.f32.mrb[0].mxu0
      %4418 = vmatprep.mubr.bf16.mxu0 0
      %4419 = vmatmul.mubr.bf16.gmra.mrb[0].mxu0 %v2674
      %v4420 = vpop.f32.mrb[0].mxu0
      %v4421 = vadd.f32 0.0, %v4420
      %v4422 = vpop.f32.mrb[0].mxu0
      %v4423 = vpop.f32.mrb[0].mxu0
      %v4424 = vadd.f32 0.0, %v4423
      %v4425 = vpop.f32.mrb[0].mxu0
      %4426 = vmatprep.mubr.bf16.mxu0 0
      %4427 = vmatmul.mubr.bf16.gmra.mrb[0].mxu0 %v2675
      %v4428 = vpop.f32.mrb[0].mxu0
      %v4429 = vadd.f32 0.0, %v4428
      %v4430 = vpop.f32.mrb[0].mxu0
      %v4431 = vpop.f32.mrb[0].mxu0
      %v4432 = vadd.f32 0.0, %v4431
      %v4433 = vpop.f32.mrb[0].mxu0
      %4434 = vmatprep.mubr.bf16.mxu0 0
      %4435 = vmatmul.mubr.bf16.gmra.mrb[0].mxu0 %v2676
      %v4436 = vpop.f32.mrb[0].mxu0
      %v4437 = vadd.f32 0.0, %v4436
      %v4438 = vpop.f32.mrb[0].mxu0
      %v4439 = vpop.f32.mrb[0].mxu0
      %v4440 = vadd.f32 0.0, %v4439
      %v4441 = vpop.f32.mrb[0].mxu0
      %4442 = vmatprep.mubr.bf16.mxu0 0
      %4443 = vmatmul.mubr.bf16.gmra.mrb[0].mxu0 %v2677
      %v4444 = vpop.f32.mrb[0].mxu0
      %v4445 = vadd.f32 0.0, %v4444
      %v4446 = vpop.f32.mrb[0].mxu0
      %v4447 = vpop.f32.mrb[0].mxu0
      %v4448 = vadd.f32 0.0, %v4447
      %v4449 = vpop.f32.mrb[0].mxu0
      %4450 = vmatprep.mubr.bf16.mxu0 0
      %4451 = vmatmul.mubr.bf16.gmra.mrb[0].mxu0 %v2678
      %v4452 = vpop.f32.mrb[0].mxu0
      %v4453 = vadd.f32 0.0, %v4452
      %v4454 = vpop.f32.mrb[0].mxu0
      %v4455 = vpop.f32.mrb[0].mxu0
      %v4456 = vadd.f32 0.0, %v4455
      %v4457 = vpop.f32.mrb[0].mxu0
      %4458 = vmatprep.mubr.bf16.mxu0 0
      %4459 = vmatmul.mubr.bf16.gmra.mrb[0].mxu0 %v2679
      %v4460 = vpop.f32.mrb[0].mxu0
      %v4461 = vadd.f32 0.0, %v4460
      %v4462 = vpop.f32.mrb[0].mxu0
      %v4463 = vpop.f32.mrb[0].mxu0
      %v4464 = vadd.f32 0.0, %v4463
      %v4465 = vpop.f32.mrb[0].mxu0
      %4466 = vmatprep.mubr.bf16.mxu0 0
      %4467 = vmatmul.mubr.bf16.gmra.mrb[0].mxu0 %v2680
      %v4468 = vpop.f32.mrb[0].mxu0
      %v4469 = vadd.f32 0.0, %v4468
      %v4470 = vpop.f32.mrb[0].mxu0
      %v4471 = vpop.f32.mrb[0].mxu0
      %v4472 = vadd.f32 0.0, %v4471
      %v4473 = vpop.f32.mrb[0].mxu0
      %4474 = vmatprep.mubr.bf16.mxu0 0
      %4475 = vmatmul.mubr.bf16.gmra.mrb[0].mxu0 %v2681
      %v4476 = vpop.f32.mrb[0].mxu0
      %v4477 = vadd.f32 0.0, %v4476
      %v4478 = vpop.f32.mrb[0].mxu0
      %v4479 = vpop.f32.mrb[0].mxu0
      %v4480 = vadd.f32 0.0, %v4479
      %v4481 = vpop.f32.mrb[0].mxu0
      %4482 = vmatprep.mubr.bf16.mxu0 0
      %4483 = vmatmul.mubr.bf16.gmra.mrb[0].mxu0 %v2682
      %v4484 = vpop.f32.mrb[0].mxu0
      %v4485 = vadd.f32 0.0, %v4484
      %v4486 = vpop.f32.mrb[0].mxu0
      %v4487 = vpop.f32.mrb[0].mxu0
      %v4488 = vadd.f32 0.0, %v4487
      %v4489 = vpop.f32.mrb[0].mxu0
      %4490 = vmatprep.mubr.bf16.mxu0 0
      %4491 = vmatmul.mubr.bf16.gmra.mrb[0].mxu0 %v2683
      %v4492 = vpop.f32.mrb[0].mxu0
      %v4493 = vadd.f32 0.0, %v4492
      %v4494 = vpop.f32.mrb[0].mxu0
      %v4495 = vpop.f32.mrb[0].mxu0
      %v4496 = vadd.f32 0.0, %v4495
      %v4497 = vpop.f32.mrb[0].mxu0
      %4498 = vmatprep.mubr.bf16.mxu0 0
      %4499 = vmatmul.mubr.bf16.gmra.mrb[0].mxu0 %v2684
      %v4500 = vpop.f32.mrb[0].mxu0
      %v4501 = vadd.f32 0.0, %v4500
      %v4502 = vpop.f32.mrb[0].mxu0
      %v4503 = vpop.f32.mrb[0].mxu0
      %v4504 = vadd.f32 0.0, %v4503
      %v4505 = vpop.f32.mrb[0].mxu0
      %4506 = vmatprep.mubr.bf16.mxu0 0
      %4507 = vmatmul.mubr.bf16.gmra.mrb[0].mxu0 %v2685
      %v4508 = vpop.f32.mrb[0].mxu0
      %v4509 = vadd.f32 0.0, %v4508
      %v4510 = vpop.f32.mrb[0].mxu0
      %v4511 = vpop.f32.mrb[0].mxu0
      %v4512 = vadd.f32 0.0, %v4511
      %v4513 = vpop.f32.mrb[0].mxu0
      %4514 = vmatprep.mubr.bf16.mxu0 0
      %4515 = vmatmul.mubr.bf16.gmra.mrb[0].mxu0 %v2686
      %v4516 = vpop.f32.mrb[0].mxu0
      %v4517 = vadd.f32 0.0, %v4516
      %v4518 = vpop.f32.mrb[0].mxu0
      %v4519 = vpop.f32.mrb[0].mxu0
      %v4520 = vadd.f32 0.0, %v4519
      %v4521 = vpop.f32.mrb[0].mxu0
      %4522 = vmatprep.mubr.bf16.mxu0 0
      %4523 = vmatmul.mubr.bf16.gmra.mrb[0].mxu0 %v2687
      %v4524 = vpop.f32.mrb[0].mxu0
      %v4525 = vadd.f32 0.0, %v4524
      %v4526 = vpop.f32.mrb[0].mxu0
      %v4527 = vpop.f32.mrb[0].mxu0
      %v4528 = vadd.f32 0.0, %v4527
      %v4529 = vpop.f32.mrb[0].mxu0
      %4530 = vmatprep.mubr.bf16.mxu0 0
      %4531 = vmatmul.mubr.bf16.gmra.mrb[0].mxu0 %v2688
      %v4532 = vpop.f32.mrb[0].mxu0
      %v4533 = vadd.f32 0.0, %v4532
      %v4534 = vpop.f32.mrb[0].mxu0
      %v4535 = vpop.f32.mrb[0].mxu0
      %v4536 = vadd.f32 0.0, %v4535
      %v4537 = vpop.f32.mrb[0].mxu0
      %4538 = vmatprep.mubr.bf16.mxu0 0
      %4539 = vmatmul.mubr.bf16.gmra.mrb[0].mxu0 %v2689
      %v4540 = vpop.f32.mrb[0].mxu0
      %v4541 = vadd.f32 0.0, %v4540
      %v4542 = vpop.f32.mrb[0].mxu0
      %v4543 = vpop.f32.mrb[0].mxu0
      %v4544 = vadd.f32 0.0, %v4543
      %v4545 = vpop.f32.mrb[0].mxu0
      %4546 = vmatprep.mubr.bf16.mxu0 0
      %4547 = vmatmul.mubr.bf16.gmra.mrb[0].mxu0 %v2690
      %v4548 = vpop.f32.mrb[0].mxu0
      %v4549 = vadd.f32 0.0, %v4548
      %v4550 = vpop.f32.mrb[0].mxu0
      %v4551 = vpop.f32.mrb[0].mxu0
      %v4552 = vadd.f32 0.0, %v4551
      %v4553 = vpop.f32.mrb[0].mxu0
      %4554 = vmatprep.mubr.bf16.mxu0 0
      %4555 = vmatmul.mubr.bf16.gmra.mrb[0].mxu0 %v2691
      %v4556 = vpop.f32.mrb[0].mxu0
      %v4557 = vadd.f32 0.0, %v4556
      %v4558 = vpop.f32.mrb[0].mxu0
      %v4559 = vpop.f32.mrb[0].mxu0
      %v4560 = vadd.f32 0.0, %v4559
      %v4561 = vpop.f32.mrb[0].mxu0
      %4562 = vmatprep.mubr.bf16.mxu0 0
      %4563 = vmatmul.mubr.bf16.gmra.mrb[0].mxu0 %v2692
      %v4564 = vpop.f32.mrb[0].mxu0
      %v4565 = vadd.f32 0.0, %v4564
      %v4566 = vpop.f32.mrb[0].mxu0
      %v4567 = vpop.f32.mrb[0].mxu0
      %v4568 = vadd.f32 0.0, %v4567
      %v4569 = vpop.f32.mrb[0].mxu0
      %4570 = vmatprep.mubr.bf16.mxu0 0
      %4571 = vmatmul.mubr.bf16.gmra.mrb[0].mxu0 %v2693
      %v4572 = vpop.f32.mrb[0].mxu0
      %v4573 = vadd.f32 0.0, %v4572
      %v4574 = vpop.f32.mrb[0].mxu0
      %v4575 = vpop.f32.mrb[0].mxu0
      %v4576 = vadd.f32 0.0, %v4575
      %v4577 = vpop.f32.mrb[0].mxu0
      %4578 = vmatprep.mubr.bf16.mxu0 0
      %4579 = vmatmul.mubr.bf16.gmra.mrb[0].mxu0 %v2694
      %v4580 = vpop.f32.mrb[0].mxu0
      %v4581 = vadd.f32 0.0, %v4580
      %v4582 = vpop.f32.mrb[0].mxu0
      %v4583 = vpop.f32.mrb[0].mxu0
      %v4584 = vadd.f32 0.0, %v4583
      %v4585 = vpop.f32.mrb[0].mxu0
      %4586 = vmatprep.mubr.bf16.mxu0 0
      %4587 = vmatmul.mubr.bf16.gmra.mrb[0].mxu0 %v2695
      %v4588 = vpop.f32.mrb[0].mxu0
      %v4589 = vadd.f32 0.0, %v4588
      %v4590 = vpop.f32.mrb[0].mxu0
      %v4591 = vpop.f32.mrb[0].mxu0
      %v4592 = vadd.f32 0.0, %v4591
      %v4593 = vpop.f32.mrb[0].mxu0
      %4594 = vmatprep.mubr.bf16.mxu0 0
      %4595 = vmatmul.mubr.bf16.gmra.mrb[0].mxu0 %v2696
      %v4596 = vpop.f32.mrb[0].mxu0
      %v4597 = vadd.f32 0.0, %v4596
      %v4598 = vpop.f32.mrb[0].mxu0
      %v4599 = vpop.f32.mrb[0].mxu0
      %v4600 = vadd.f32 0.0, %v4599
      %v4601 = vpop.f32.mrb[0].mxu0
      %4602 = vdwg.mxu0
      %v4603 = vadd.f32 %v4185, %v4349
      %v4604 = vadd.f32 %v4186, %v4352
      %v4605 = vadd.f32 %v4187, %v4357
      %v4606 = vadd.f32 %v4188, %v4360
      %v4607 = vadd.f32 %v4189, %v4365
      %v4608 = vadd.f32 %v4190, %v4368
      %v4609 = vadd.f32 %v4191, %v4373
      %v4610 = vadd.f32 %v4192, %v4376
      %v4611 = vadd.f32 %v4193, %v4381
      %v4612 = vadd.f32 %v4194, %v4384
      %v4613 = vadd.f32 %v4195, %v4389
      %v4614 = vadd.f32 %v4196, %v4392
      %v4615 = vadd.f32 %v4197, %v4397
      %v4616 = vadd.f32 %v4198, %v4400
      %v4617 = vadd.f32 %v4199, %v4405
      %v4618 = vadd.f32 %v4200, %v4408
      %v4619 = vadd.f32 %v4201, %v4413
      %v4620 = vadd.f32 %v4202, %v4416
      %v4621 = vadd.f32 %v4203, %v4421
      %v4622 = vadd.f32 %v4204, %v4424
      %v4623 = vadd.f32 %v4205, %v4429
      %v4624 = vadd.f32 %v4206, %v4432
      %v4625 = vadd.f32 %v4207, %v4437
      %v4626 = vadd.f32 %v4208, %v4440
      %v4627 = vadd.f32 %v4209, %v4445
      %v4628 = vadd.f32 %v4210, %v4448
      %v4629 = vadd.f32 %v4211, %v4453
      %v4630 = vadd.f32 %v4212, %v4456
      %v4631 = vadd.f32 %v4213, %v4461
      %v4632 = vadd.f32 %v4214, %v4464
      %v4633 = vadd.f32 %v4215, %v4469
      %v4634 = vadd.f32 %v4216, %v4472
      %v4635 = vadd.f32 %v4217, %v4477
      %v4636 = vadd.f32 %v4218, %v4480
      %v4637 = vadd.f32 %v4219, %v4485
      %v4638 = vadd.f32 %v4220, %v4488
      %v4639 = vadd.f32 %v4221, %v4493
      %v4640 = vadd.f32 %v4222, %v4496
      %v4641 = vadd.f32 %v4223, %v4501
      %v4642 = vadd.f32 %v4224, %v4504
      %v4643 = vadd.f32 %v4225, %v4509
      %v4644 = vadd.f32 %v4226, %v4512
      %v4645 = vadd.f32 %v4227, %v4517
      %v4646 = vadd.f32 %v4228, %v4520
      %v4647 = vadd.f32 %v4229, %v4525
      %v4648 = vadd.f32 %v4230, %v4528
      %v4649 = vadd.f32 %v4231, %v4533
      %v4650 = vadd.f32 %v4232, %v4536
      %v4651 = vadd.f32 %v4233, %v4541
      %v4652 = vadd.f32 %v4234, %v4544
      %v4653 = vadd.f32 %v4235, %v4549
      %v4654 = vadd.f32 %v4236, %v4552
      %v4655 = vadd.f32 %v4237, %v4557
      %v4656 = vadd.f32 %v4238, %v4560
      %v4657 = vadd.f32 %v4239, %v4565
      %v4658 = vadd.f32 %v4240, %v4568
      %v4659 = vadd.f32 %v4241, %v4573
      %v4660 = vadd.f32 %v4242, %v4576
      %v4661 = vadd.f32 %v4243, %v4581
      %v4662 = vadd.f32 %v4244, %v4584
      %v4663 = vadd.f32 %v4245, %v4589
      %v4664 = vadd.f32 %v4246, %v4592
      %v4665 = vadd.f32 %v4247, %v4597
      %v4666 = vadd.f32 %v4248, %v4600
      %s4667 = scalar_lea.vmem %s3, 256
      %v4668 = vld [vmem:[%s4667] sm:$0xf]
      %v4669 = vld [vmem:[%s4667 + $0x4] sm:$0xf]
      %v4670 = vld [vmem:[%s4667 + $0x8] sm:$0xf]
      %v4671 = vld [vmem:[%s4667 + $0xc] sm:$0xf]
      %v4672 = vld [vmem:[%s4667 + $0x10] sm:$0xf]
      %v4673 = vld [vmem:[%s4667 + $0x14] sm:$0xf]
      %v4674 = vld [vmem:[%s4667 + $0x18] sm:$0xf]
      %v4675 = vld [vmem:[%s4667 + $0x1c] sm:$0xf]
      %v4676 = vld [vmem:[%s4667 + $0x20] sm:$0xf]
      %v4677 = vld [vmem:[%s4667 + $0x24] sm:$0xf]
      %v4678 = vld [vmem:[%s4667 + $0x28] sm:$0xf]
      %v4679 = vld [vmem:[%s4667 + $0x2c] sm:$0xf]
      %v4680 = vld [vmem:[%s4667 + $0x30] sm:$0xf]
      %v4681 = vld [vmem:[%s4667 + $0x34] sm:$0xf]
      %v4682 = vld [vmem:[%s4667 + $0x38] sm:$0xf]
      %v4683 = vld [vmem:[%s4667 + $0x3c] sm:$0xf]
      %v4684 = vshrl.u32 %v2695, 16
      %v4686 = vor.u32 %v4684, %v2992
      %v4688 = vshll.u32 %v2696, 16
      %v4690 = vrot.slane %v4688, 1
      %v4691 = vsel %vm2733, %v4686, %v4690
      %v4692 = vshrl.u32 %v2696, 16
      %v4694 = vor.u32 %v4692, %v4690
      %v4696 = vshll.u32 %v2697, 16
      %v4698 = vrot.slane %v4696, 1
      %v4699 = vsel %vm2733, %v4694, %v4698
      %v4718 = vunpack.c.l.b16 %v4668
      %v4719 = vunpack.c.l.b16 %v4669
      %v4720 = vunpack.c.l.b16 %v4670
      %v4721 = vunpack.c.l.b16 %v4671
      %v4722 = vunpack.c.l.b16 %v4672
      %v4723 = vunpack.c.l.b16 %v4673
      %v4724 = vunpack.c.l.b16 %v4674
      %v4725 = vunpack.c.l.b16 %v4675
      %v4726 = vunpack.c.l.b16 %v4676
      %v4727 = vunpack.c.l.b16 %v4677
      %v4728 = vunpack.c.l.b16 %v4678
      %v4729 = vunpack.c.l.b16 %v4679
      %v4730 = vunpack.c.l.b16 %v4680
      %v4731 = vunpack.c.l.b16 %v4681
      %v4732 = vunpack.c.l.b16 %v4682
      %v4733 = vunpack.c.l.b16 %v4683
      %v4734 = vpack.c.b16 %v4719, %v4718
      %v4735 = vpack.c.b16 %v4721, %v4720
      %v4736 = vpack.c.b16 %v4723, %v4722
      %v4737 = vpack.c.b16 %v4725, %v4724
      %v4738 = vpack.c.b16 %v4727, %v4726
      %v4739 = vpack.c.b16 %v4729, %v4728
      %v4740 = vpack.c.b16 %v4731, %v4730
      %v4741 = vpack.c.b16 %v4733, %v4732
      %4750 = vmatprep.subr.bf16.mxu0 0
      %4751 = vmatpush1.bf16.msra.mxu0 %v4734
      %4752 = vmatprep.subr.bf16.mxu0 0
      %4753 = vmatpush1.bf16.msra.mxu0 %v4735
      %4754 = vmatprep.subr.bf16.mxu0 0
      %4755 = vmatpush1.bf16.msra.mxu0 %v4736
      %4756 = vmatprep.subr.bf16.mxu0 0
      %4757 = vmatpush1.bf16.msra.mxu0 %v4737
      %4758 = vmatprep.subr.bf16.mxu0 0
      %4759 = vmatpush1.bf16.msra.mxu0 %v4738
      %4760 = vmatprep.subr.bf16.mxu0 0
      %4761 = vmatpush1.bf16.msra.mxu0 %v4739
      %4762 = vmatprep.subr.bf16.mxu0 0
      %4763 = vmatpush1.bf16.msra.mxu0 %v4740
      %4764 = vmatprep.subr.bf16.mxu0 0
      %4765 = vmatpush1.bf16.msra.mxu0 %v4741
      %4766 = vmatprep.subr.bf16.mxu0 0
      %4767 = vmatpush1.bf16.msra.mxu0 0
      %4768 = vmatprep.subr.bf16.mxu0 0
      %4769 = vmatpush1.bf16.msra.mxu0 0
      %4770 = vmatprep.subr.bf16.mxu0 0
      %4771 = vmatpush1.bf16.msra.mxu0 0
      %4772 = vmatprep.subr.bf16.mxu0 0
      %4773 = vmatpush1.bf16.msra.mxu0 0
      %4774 = vmatprep.subr.bf16.mxu0 0
      %4775 = vmatpush1.bf16.msra.mxu0 0
      %4776 = vmatprep.subr.bf16.mxu0 0
      %4777 = vmatpush1.bf16.msra.mxu0 0
      %4778 = vmatprep.subr.bf16.mxu0 0
      %4779 = vmatpush1.bf16.msra.mxu0 0
      %4780 = vmatprep.subr.bf16.mxu0 0
      %4781 = vmatpush1.bf16.msra.mxu0 0
      %4782 = vmatprep.mubr.bf16.mxu0 0
      %4783 = vmatmul.mubr.bf16.gmra.mrb[0].mxu0 %v2761
      %v4784 = vpop.f32.mrb[0].mxu0
      %v4785 = vadd.f32 0.0, %v4784
      %v4786 = vpop.f32.mrb[0].mxu0
      %v4787 = vpop.f32.mrb[0].mxu0
      %v4788 = vadd.f32 0.0, %v4787
      %v4789 = vpop.f32.mrb[0].mxu0
      %4790 = vmatprep.mubr.bf16.mxu0 0
      %4791 = vmatmul.mubr.bf16.gmra.mrb[0].mxu0 %v2769
      %v4792 = vpop.f32.mrb[0].mxu0
      %v4793 = vadd.f32 0.0, %v4792
      %v4794 = vpop.f32.mrb[0].mxu0
      %v4795 = vpop.f32.mrb[0].mxu0
      %v4796 = vadd.f32 0.0, %v4795
      %v4797 = vpop.f32.mrb[0].mxu0
      %4798 = vmatprep.mubr.bf16.mxu0 0
      %4799 = vmatmul.mubr.bf16.gmra.mrb[0].mxu0 %v2777
      %v4800 = vpop.f32.mrb[0].mxu0
      %v4801 = vadd.f32 0.0, %v4800
      %v4802 = vpop.f32.mrb[0].mxu0
      %v4803 = vpop.f32.mrb[0].mxu0
      %v4804 = vadd.f32 0.0, %v4803
      %v4805 = vpop.f32.mrb[0].mxu0
      %4806 = vmatprep.mubr.bf16.mxu0 0
      %4807 = vmatmul.mubr.bf16.gmra.mrb[0].mxu0 %v2785
      %v4808 = vpop.f32.mrb[0].mxu0
      %v4809 = vadd.f32 0.0, %v4808
      %v4810 = vpop.f32.mrb[0].mxu0
      %v4811 = vpop.f32.mrb[0].mxu0
      %v4812 = vadd.f32 0.0, %v4811
      %v4813 = vpop.f32.mrb[0].mxu0
      %4814 = vmatprep.mubr.bf16.mxu0 0
      %4815 = vmatmul.mubr.bf16.gmra.mrb[0].mxu0 %v2793
      %v4816 = vpop.f32.mrb[0].mxu0
      %v4817 = vadd.f32 0.0, %v4816
      %v4818 = vpop.f32.mrb[0].mxu0
      %v4819 = vpop.f32.mrb[0].mxu0
      %v4820 = vadd.f32 0.0, %v4819
      %v4821 = vpop.f32.mrb[0].mxu0
      %4822 = vmatprep.mubr.bf16.mxu0 0
      %4823 = vmatmul.mubr.bf16.gmra.mrb[0].mxu0 %v2801
      %v4824 = vpop.f32.mrb[0].mxu0
      %v4825 = vadd.f32 0.0, %v4824
      %v4826 = vpop.f32.mrb[0].mxu0
      %v4827 = vpop.f32.mrb[0].mxu0
      %v4828 = vadd.f32 0.0, %v4827
      %v4829 = vpop.f32.mrb[0].mxu0
      %4830 = vmatprep.mubr.bf16.mxu0 0
      %4831 = vmatmul.mubr.bf16.gmra.mrb[0].mxu0 %v2809
      %v4832 = vpop.f32.mrb[0].mxu0
      %v4833 = vadd.f32 0.0, %v4832
      %v4834 = vpop.f32.mrb[0].mxu0
      %v4835 = vpop.f32.mrb[0].mxu0
      %v4836 = vadd.f32 0.0, %v4835
      %v4837 = vpop.f32.mrb[0].mxu0
      %4838 = vmatprep.mubr.bf16.mxu0 0
      %4839 = vmatmul.mubr.bf16.gmra.mrb[0].mxu0 %v2817
      %v4840 = vpop.f32.mrb[0].mxu0
      %v4841 = vadd.f32 0.0, %v4840
      %v4842 = vpop.f32.mrb[0].mxu0
      %v4843 = vpop.f32.mrb[0].mxu0
      %v4844 = vadd.f32 0.0, %v4843
      %v4845 = vpop.f32.mrb[0].mxu0
      %4846 = vmatprep.mubr.bf16.mxu0 0
      %4847 = vmatmul.mubr.bf16.gmra.mrb[0].mxu0 %v2825
      %v4848 = vpop.f32.mrb[0].mxu0
      %v4849 = vadd.f32 0.0, %v4848
      %v4850 = vpop.f32.mrb[0].mxu0
      %v4851 = vpop.f32.mrb[0].mxu0
      %v4852 = vadd.f32 0.0, %v4851
      %v4853 = vpop.f32.mrb[0].mxu0
      %4854 = vmatprep.mubr.bf16.mxu0 0
      %4855 = vmatmul.mubr.bf16.gmra.mrb[0].mxu0 %v2833
      %v4856 = vpop.f32.mrb[0].mxu0
      %v4857 = vadd.f32 0.0, %v4856
      %v4858 = vpop.f32.mrb[0].mxu0
      %v4859 = vpop.f32.mrb[0].mxu0
      %v4860 = vadd.f32 0.0, %v4859
      %v4861 = vpop.f32.mrb[0].mxu0
      %4862 = vmatprep.mubr.bf16.mxu0 0
      %4863 = vmatmul.mubr.bf16.gmra.mrb[0].mxu0 %v2841
      %v4864 = vpop.f32.mrb[0].mxu0
      %v4865 = vadd.f32 0.0, %v4864
      %v4866 = vpop.f32.mrb[0].mxu0
      %v4867 = vpop.f32.mrb[0].mxu0
      %v4868 = vadd.f32 0.0, %v4867
      %v4869 = vpop.f32.mrb[0].mxu0
      %4870 = vmatprep.mubr.bf16.mxu0 0
      %4871 = vmatmul.mubr.bf16.gmra.mrb[0].mxu0 %v2849
      %v4872 = vpop.f32.mrb[0].mxu0
      %v4873 = vadd.f32 0.0, %v4872
      %v4874 = vpop.f32.mrb[0].mxu0
      %v4875 = vpop.f32.mrb[0].mxu0
      %v4876 = vadd.f32 0.0, %v4875
      %v4877 = vpop.f32.mrb[0].mxu0
      %4878 = vmatprep.mubr.bf16.mxu0 0
      %4879 = vmatmul.mubr.bf16.gmra.mrb[0].mxu0 %v2857
      %v4880 = vpop.f32.mrb[0].mxu0
      %v4881 = vadd.f32 0.0, %v4880
      %v4882 = vpop.f32.mrb[0].mxu0
      %v4883 = vpop.f32.mrb[0].mxu0
      %v4884 = vadd.f32 0.0, %v4883
      %v4885 = vpop.f32.mrb[0].mxu0
      %4886 = vmatprep.mubr.bf16.mxu0 0
      %4887 = vmatmul.mubr.bf16.gmra.mrb[0].mxu0 %v2865
      %v4888 = vpop.f32.mrb[0].mxu0
      %v4889 = vadd.f32 0.0, %v4888
      %v4890 = vpop.f32.mrb[0].mxu0
      %v4891 = vpop.f32.mrb[0].mxu0
      %v4892 = vadd.f32 0.0, %v4891
      %v4893 = vpop.f32.mrb[0].mxu0
      %4894 = vmatprep.mubr.bf16.mxu0 0
      %4895 = vmatmul.mubr.bf16.gmra.mrb[0].mxu0 %v2873
      %v4896 = vpop.f32.mrb[0].mxu0
      %v4897 = vadd.f32 0.0, %v4896
      %v4898 = vpop.f32.mrb[0].mxu0
      %v4899 = vpop.f32.mrb[0].mxu0
      %v4900 = vadd.f32 0.0, %v4899
      %v4901 = vpop.f32.mrb[0].mxu0
      %4902 = vmatprep.mubr.bf16.mxu0 0
      %4903 = vmatmul.mubr.bf16.gmra.mrb[0].mxu0 %v2881
      %v4904 = vpop.f32.mrb[0].mxu0
      %v4905 = vadd.f32 0.0, %v4904
      %v4906 = vpop.f32.mrb[0].mxu0
      %v4907 = vpop.f32.mrb[0].mxu0
      %v4908 = vadd.f32 0.0, %v4907
      %v4909 = vpop.f32.mrb[0].mxu0
      %4910 = vmatprep.mubr.bf16.mxu0 0
      %4911 = vmatmul.mubr.bf16.gmra.mrb[0].mxu0 %v2889
      %v4912 = vpop.f32.mrb[0].mxu0
      %v4913 = vadd.f32 0.0, %v4912
      %v4914 = vpop.f32.mrb[0].mxu0
      %v4915 = vpop.f32.mrb[0].mxu0
      %v4916 = vadd.f32 0.0, %v4915
      %v4917 = vpop.f32.mrb[0].mxu0
      %4918 = vmatprep.mubr.bf16.mxu0 0
      %4919 = vmatmul.mubr.bf16.gmra.mrb[0].mxu0 %v2897
      %v4920 = vpop.f32.mrb[0].mxu0
      %v4921 = vadd.f32 0.0, %v4920
      %v4922 = vpop.f32.mrb[0].mxu0
      %v4923 = vpop.f32.mrb[0].mxu0
      %v4924 = vadd.f32 0.0, %v4923
      %v4925 = vpop.f32.mrb[0].mxu0
      %4926 = vmatprep.mubr.bf16.mxu0 0
      %4927 = vmatmul.mubr.bf16.gmra.mrb[0].mxu0 %v2905
      %v4928 = vpop.f32.mrb[0].mxu0
      %v4929 = vadd.f32 0.0, %v4928
      %v4930 = vpop.f32.mrb[0].mxu0
      %v4931 = vpop.f32.mrb[0].mxu0
      %v4932 = vadd.f32 0.0, %v4931
      %v4933 = vpop.f32.mrb[0].mxu0
      %4934 = vmatprep.mubr.bf16.mxu0 0
      %4935 = vmatmul.mubr.bf16.gmra.mrb[0].mxu0 %v2913
      %v4936 = vpop.f32.mrb[0].mxu0
      %v4937 = vadd.f32 0.0, %v4936
      %v4938 = vpop.f32.mrb[0].mxu0
      %v4939 = vpop.f32.mrb[0].mxu0
      %v4940 = vadd.f32 0.0, %v4939
      %v4941 = vpop.f32.mrb[0].mxu0
      %4942 = vmatprep.mubr.bf16.mxu0 0
      %4943 = vmatmul.mubr.bf16.gmra.mrb[0].mxu0 %v2921
      %v4944 = vpop.f32.mrb[0].mxu0
      %v4945 = vadd.f32 0.0, %v4944
      %v4946 = vpop.f32.mrb[0].mxu0
      %v4947 = vpop.f32.mrb[0].mxu0
      %v4948 = vadd.f32 0.0, %v4947
      %v4949 = vpop.f32.mrb[0].mxu0
      %4950 = vmatprep.mubr.bf16.mxu0 0
      %4951 = vmatmul.mubr.bf16.gmra.mrb[0].mxu0 %v2929
      %v4952 = vpop.f32.mrb[0].mxu0
      %v4953 = vadd.f32 0.0, %v4952
      %v4954 = vpop.f32.mrb[0].mxu0
      %v4955 = vpop.f32.mrb[0].mxu0
      %v4956 = vadd.f32 0.0, %v4955
      %v4957 = vpop.f32.mrb[0].mxu0
      %4958 = vmatprep.mubr.bf16.mxu0 0
      %4959 = vmatmul.mubr.bf16.gmra.mrb[0].mxu0 %v2937
      %v4960 = vpop.f32.mrb[0].mxu0
      %v4961 = vadd.f32 0.0, %v4960
      %v4962 = vpop.f32.mrb[0].mxu0
      %v4963 = vpop.f32.mrb[0].mxu0
      %v4964 = vadd.f32 0.0, %v4963
      %v4965 = vpop.f32.mrb[0].mxu0
      %4966 = vmatprep.mubr.bf16.mxu0 0
      %4967 = vmatmul.mubr.bf16.gmra.mrb[0].mxu0 %v2945
      %v4968 = vpop.f32.mrb[0].mxu0
      %v4969 = vadd.f32 0.0, %v4968
      %v4970 = vpop.f32.mrb[0].mxu0
      %v4971 = vpop.f32.mrb[0].mxu0
      %v4972 = vadd.f32 0.0, %v4971
      %v4973 = vpop.f32.mrb[0].mxu0
      %4974 = vmatprep.mubr.bf16.mxu0 0
      %4975 = vmatmul.mubr.bf16.gmra.mrb[0].mxu0 %v2953
      %v4976 = vpop.f32.mrb[0].mxu0
      %v4977 = vadd.f32 0.0, %v4976
      %v4978 = vpop.f32.mrb[0].mxu0
      %v4979 = vpop.f32.mrb[0].mxu0
      %v4980 = vadd.f32 0.0, %v4979
      %v4981 = vpop.f32.mrb[0].mxu0
      %4982 = vmatprep.mubr.bf16.mxu0 0
      %4983 = vmatmul.mubr.bf16.gmra.mrb[0].mxu0 %v2961
      %v4984 = vpop.f32.mrb[0].mxu0
      %v4985 = vadd.f32 0.0, %v4984
      %v4986 = vpop.f32.mrb[0].mxu0
      %v4987 = vpop.f32.mrb[0].mxu0
      %v4988 = vadd.f32 0.0, %v4987
      %v4989 = vpop.f32.mrb[0].mxu0
      %4990 = vmatprep.mubr.bf16.mxu0 0
      %4991 = vmatmul.mubr.bf16.gmra.mrb[0].mxu0 %v2969
      %v4992 = vpop.f32.mrb[0].mxu0
      %v4993 = vadd.f32 0.0, %v4992
      %v4994 = vpop.f32.mrb[0].mxu0
      %v4995 = vpop.f32.mrb[0].mxu0
      %v4996 = vadd.f32 0.0, %v4995
      %v4997 = vpop.f32.mrb[0].mxu0
      %4998 = vmatprep.mubr.bf16.mxu0 0
      %4999 = vmatmul.mubr.bf16.gmra.mrb[0].mxu0 %v2977
      %v5000 = vpop.f32.mrb[0].mxu0
      %v5001 = vadd.f32 0.0, %v5000
      %v5002 = vpop.f32.mrb[0].mxu0
      %v5003 = vpop.f32.mrb[0].mxu0
      %v5004 = vadd.f32 0.0, %v5003
      %v5005 = vpop.f32.mrb[0].mxu0
      %5006 = vmatprep.mubr.bf16.mxu0 0
      %5007 = vmatmul.mubr.bf16.gmra.mrb[0].mxu0 %v2985
      %v5008 = vpop.f32.mrb[0].mxu0
      %v5009 = vadd.f32 0.0, %v5008
      %v5010 = vpop.f32.mrb[0].mxu0
      %v5011 = vpop.f32.mrb[0].mxu0
      %v5012 = vadd.f32 0.0, %v5011
      %v5013 = vpop.f32.mrb[0].mxu0
      %5014 = vmatprep.mubr.bf16.mxu0 0
      %5015 = vmatmul.mubr.bf16.gmra.mrb[0].mxu0 %v2993
      %v5016 = vpop.f32.mrb[0].mxu0
      %v5017 = vadd.f32 0.0, %v5016
      %v5018 = vpop.f32.mrb[0].mxu0
      %v5019 = vpop.f32.mrb[0].mxu0
      %v5020 = vadd.f32 0.0, %v5019
      %v5021 = vpop.f32.mrb[0].mxu0
      %5022 = vmatprep.mubr.bf16.mxu0 0
      %5023 = vmatmul.mubr.bf16.gmra.mrb[0].mxu0 %v4691
      %v5024 = vpop.f32.mrb[0].mxu0
      %v5025 = vadd.f32 0.0, %v5024
      %v5026 = vpop.f32.mrb[0].mxu0
      %v5027 = vpop.f32.mrb[0].mxu0
      %v5028 = vadd.f32 0.0, %v5027
      %v5029 = vpop.f32.mrb[0].mxu0
      %5030 = vmatprep.mubr.bf16.mxu0 0
      %5031 = vmatmul.mubr.bf16.gmra.mrb[0].mxu0 %v4699
      %v5032 = vpop.f32.mrb[0].mxu0
      %v5033 = vadd.f32 0.0, %v5032
      %v5034 = vpop.f32.mrb[0].mxu0
      %v5035 = vpop.f32.mrb[0].mxu0
      %v5036 = vadd.f32 0.0, %v5035
      %v5037 = vpop.f32.mrb[0].mxu0
      %5038 = vdwg.mxu0
      %v5039 = vadd.f32 %v4603, %v4785
      %v5040 = vadd.f32 %v4604, %v4788
      %v5041 = vadd.f32 %v4605, %v4793
      %v5042 = vadd.f32 %v4606, %v4796
      %v5043 = vadd.f32 %v4607, %v4801
      %v5044 = vadd.f32 %v4608, %v4804
      %v5045 = vadd.f32 %v4609, %v4809
      %v5046 = vadd.f32 %v4610, %v4812
      %v5047 = vadd.f32 %v4611, %v4817
      %v5048 = vadd.f32 %v4612, %v4820
      %v5049 = vadd.f32 %v4613, %v4825
      %v5050 = vadd.f32 %v4614, %v4828
      %v5051 = vadd.f32 %v4615, %v4833
      %v5052 = vadd.f32 %v4616, %v4836
      %v5053 = vadd.f32 %v4617, %v4841
      %v5054 = vadd.f32 %v4618, %v4844
      %v5055 = vadd.f32 %v4619, %v4849
      %v5056 = vadd.f32 %v4620, %v4852
      %v5057 = vadd.f32 %v4621, %v4857
      %v5058 = vadd.f32 %v4622, %v4860
      %v5059 = vadd.f32 %v4623, %v4865
      %v5060 = vadd.f32 %v4624, %v4868
      %v5061 = vadd.f32 %v4625, %v4873
      %v5062 = vadd.f32 %v4626, %v4876
      %v5063 = vadd.f32 %v4627, %v4881
      %v5064 = vadd.f32 %v4628, %v4884
      %v5065 = vadd.f32 %v4629, %v4889
      %v5066 = vadd.f32 %v4630, %v4892
      %v5067 = vadd.f32 %v4631, %v4897
      %v5068 = vadd.f32 %v4632, %v4900
      %v5069 = vadd.f32 %v4633, %v4905
      %v5070 = vadd.f32 %v4634, %v4908
      %v5071 = vadd.f32 %v4635, %v4913
      %v5072 = vadd.f32 %v4636, %v4916
      %v5073 = vadd.f32 %v4637, %v4921
      %v5074 = vadd.f32 %v4638, %v4924
      %v5075 = vadd.f32 %v4639, %v4929
      %v5076 = vadd.f32 %v4640, %v4932
      %v5077 = vadd.f32 %v4641, %v4937
      %v5078 = vadd.f32 %v4642, %v4940
      %v5079 = vadd.f32 %v4643, %v4945
      %v5080 = vadd.f32 %v4644, %v4948
      %v5081 = vadd.f32 %v4645, %v4953
      %v5082 = vadd.f32 %v4646, %v4956
      %v5083 = vadd.f32 %v4647, %v4961
      %v5084 = vadd.f32 %v4648, %v4964
      %v5085 = vadd.f32 %v4649, %v4969
      %v5086 = vadd.f32 %v4650, %v4972
      %v5087 = vadd.f32 %v4651, %v4977
      %v5088 = vadd.f32 %v4652, %v4980
      %v5089 = vadd.f32 %v4653, %v4985
      %v5090 = vadd.f32 %v4654, %v4988
      %v5091 = vadd.f32 %v4655, %v4993
      %v5092 = vadd.f32 %v4656, %v4996
      %v5093 = vadd.f32 %v4657, %v5001
      %v5094 = vadd.f32 %v4658, %v5004
      %v5095 = vadd.f32 %v4659, %v5009
      %v5096 = vadd.f32 %v4660, %v5012
      %v5097 = vadd.f32 %v4661, %v5017
      %v5098 = vadd.f32 %v4662, %v5020
      %v5099 = vadd.f32 %v4663, %v5025
      %v5100 = vadd.f32 %v4664, %v5028
      %v5101 = vadd.f32 %v4665, %v5033
      %v5102 = vadd.f32 %v4666, %v5036
      %s5103 = scalar_lea.vmem %s3, 320
      %v5104 = vld [vmem:[%s5103] sm:$0xf]
      %v5105 = vld [vmem:[%s5103 + $0x4] sm:$0xf]
      %v5106 = vld [vmem:[%s5103 + $0x8] sm:$0xf]
      %v5107 = vld [vmem:[%s5103 + $0xc] sm:$0xf]
      %v5108 = vld [vmem:[%s5103 + $0x10] sm:$0xf]
      %v5109 = vld [vmem:[%s5103 + $0x14] sm:$0xf]
      %v5110 = vld [vmem:[%s5103 + $0x18] sm:$0xf]
      %v5111 = vld [vmem:[%s5103 + $0x1c] sm:$0xf]
      %v5112 = vld [vmem:[%s5103 + $0x20] sm:$0xf]
      %v5113 = vld [vmem:[%s5103 + $0x24] sm:$0xf]
      %v5114 = vld [vmem:[%s5103 + $0x28] sm:$0xf]
      %v5115 = vld [vmem:[%s5103 + $0x2c] sm:$0xf]
      %v5116 = vld [vmem:[%s5103 + $0x30] sm:$0xf]
      %v5117 = vld [vmem:[%s5103 + $0x34] sm:$0xf]
      %v5118 = vld [vmem:[%s5103 + $0x38] sm:$0xf]
      %v5119 = vld [vmem:[%s5103 + $0x3c] sm:$0xf]
      %v5122 = vrot.slane %v2696, 1
      %v5123 = vsel %vm3750, %v3814, %v5122
      %v5124 = vrot.slane %v2697, 1
      %v5125 = vsel %vm3750, %v5122, %v5124
      %v5144 = vunpack.c.l.b16 %v5104
      %v5145 = vunpack.c.l.b16 %v5105
      %v5146 = vunpack.c.l.b16 %v5106
      %v5147 = vunpack.c.l.b16 %v5107
      %v5148 = vunpack.c.l.b16 %v5108
      %v5149 = vunpack.c.l.b16 %v5109
      %v5150 = vunpack.c.l.b16 %v5110
      %v5151 = vunpack.c.l.b16 %v5111
      %v5152 = vunpack.c.l.b16 %v5112
      %v5153 = vunpack.c.l.b16 %v5113
      %v5154 = vunpack.c.l.b16 %v5114
      %v5155 = vunpack.c.l.b16 %v5115
      %v5156 = vunpack.c.l.b16 %v5116
      %v5157 = vunpack.c.l.b16 %v5117
      %v5158 = vunpack.c.l.b16 %v5118
      %v5159 = vunpack.c.l.b16 %v5119
      %v5160 = vpack.c.b16 %v5145, %v5144
      %v5161 = vpack.c.b16 %v5147, %v5146
      %v5162 = vpack.c.b16 %v5149, %v5148
      %v5163 = vpack.c.b16 %v5151, %v5150
      %v5164 = vpack.c.b16 %v5153, %v5152
      %v5165 = vpack.c.b16 %v5155, %v5154
      %v5166 = vpack.c.b16 %v5157, %v5156
      %v5167 = vpack.c.b16 %v5159, %v5158
      %5176 = vmatprep.subr.bf16.mxu0 0
      %5177 = vmatpush1.bf16.msra.mxu0 %v5160
      %5178 = vmatprep.subr.bf16.mxu0 0
      %5179 = vmatpush1.bf16.msra.mxu0 %v5161
      %5180 = vmatprep.subr.bf16.mxu0 0
      %5181 = vmatpush1.bf16.msra.mxu0 %v5162
      %5182 = vmatprep.subr.bf16.mxu0 0
      %5183 = vmatpush1.bf16.msra.mxu0 %v5163
      %5184 = vmatprep.subr.bf16.mxu0 0
      %5185 = vmatpush1.bf16.msra.mxu0 %v5164
      %5186 = vmatprep.subr.bf16.mxu0 0
      %5187 = vmatpush1.bf16.msra.mxu0 %v5165
      %5188 = vmatprep.subr.bf16.mxu0 0
      %5189 = vmatpush1.bf16.msra.mxu0 %v5166
      %5190 = vmatprep.subr.bf16.mxu0 0
      %5191 = vmatpush1.bf16.msra.mxu0 %v5167
      %5192 = vmatprep.subr.bf16.mxu0 0
      %5193 = vmatpush1.bf16.msra.mxu0 0
      %5194 = vmatprep.subr.bf16.mxu0 0
      %5195 = vmatpush1.bf16.msra.mxu0 0
      %5196 = vmatprep.subr.bf16.mxu0 0
      %5197 = vmatpush1.bf16.msra.mxu0 0
      %5198 = vmatprep.subr.bf16.mxu0 0
      %5199 = vmatpush1.bf16.msra.mxu0 0
      %5200 = vmatprep.subr.bf16.mxu0 0
      %5201 = vmatpush1.bf16.msra.mxu0 0
      %5202 = vmatprep.subr.bf16.mxu0 0
      %5203 = vmatpush1.bf16.msra.mxu0 0
      %5204 = vmatprep.subr.bf16.mxu0 0
      %5205 = vmatpush1.bf16.msra.mxu0 0
      %5206 = vmatprep.subr.bf16.mxu0 0
      %5207 = vmatpush1.bf16.msra.mxu0 0
      %5208 = vmatprep.mubr.bf16.mxu0 0
      %5209 = vmatmul.mubr.bf16.gmra.mrb[0].mxu0 %v3757
      %v5210 = vpop.f32.mrb[0].mxu0
      %v5211 = vadd.f32 0.0, %v5210
      %v5212 = vpop.f32.mrb[0].mxu0
      %v5213 = vpop.f32.mrb[0].mxu0
      %v5214 = vadd.f32 0.0, %v5213
      %v5215 = vpop.f32.mrb[0].mxu0
      %5216 = vmatprep.mubr.bf16.mxu0 0
      %5217 = vmatmul.mubr.bf16.gmra.mrb[0].mxu0 %v3759
      %v5218 = vpop.f32.mrb[0].mxu0
      %v5219 = vadd.f32 0.0, %v5218
      %v5220 = vpop.f32.mrb[0].mxu0
      %v5221 = vpop.f32.mrb[0].mxu0
      %v5222 = vadd.f32 0.0, %v5221
      %v5223 = vpop.f32.mrb[0].mxu0
      %5224 = vmatprep.mubr.bf16.mxu0 0
      %5225 = vmatmul.mubr.bf16.gmra.mrb[0].mxu0 %v3761
      %v5226 = vpop.f32.mrb[0].mxu0
      %v5227 = vadd.f32 0.0, %v5226
      %v5228 = vpop.f32.mrb[0].mxu0
      %v5229 = vpop.f32.mrb[0].mxu0
      %v5230 = vadd.f32 0.0, %v5229
      %v5231 = vpop.f32.mrb[0].mxu0
      %5232 = vmatprep.mubr.bf16.mxu0 0
      %5233 = vmatmul.mubr.bf16.gmra.mrb[0].mxu0 %v3763
      %v5234 = vpop.f32.mrb[0].mxu0
      %v5235 = vadd.f32 0.0, %v5234
      %v5236 = vpop.f32.mrb[0].mxu0
      %v5237 = vpop.f32.mrb[0].mxu0
      %v5238 = vadd.f32 0.0, %v5237
      %v5239 = vpop.f32.mrb[0].mxu0
      %5240 = vmatprep.mubr.bf16.mxu0 0
      %5241 = vmatmul.mubr.bf16.gmra.mrb[0].mxu0 %v3765
      %v5242 = vpop.f32.mrb[0].mxu0
      %v5243 = vadd.f32 0.0, %v5242
      %v5244 = vpop.f32.mrb[0].mxu0
      %v5245 = vpop.f32.mrb[0].mxu0
      %v5246 = vadd.f32 0.0, %v5245
      %v5247 = vpop.f32.mrb[0].mxu0
      %5248 = vmatprep.mubr.bf16.mxu0 0
      %5249 = vmatmul.mubr.bf16.gmra.mrb[0].mxu0 %v3767
      %v5250 = vpop.f32.mrb[0].mxu0
      %v5251 = vadd.f32 0.0, %v5250
      %v5252 = vpop.f32.mrb[0].mxu0
      %v5253 = vpop.f32.mrb[0].mxu0
      %v5254 = vadd.f32 0.0, %v5253
      %v5255 = vpop.f32.mrb[0].mxu0
      %5256 = vmatprep.mubr.bf16.mxu0 0
      %5257 = vmatmul.mubr.bf16.gmra.mrb[0].mxu0 %v3769
      %v5258 = vpop.f32.mrb[0].mxu0
      %v5259 = vadd.f32 0.0, %v5258
      %v5260 = vpop.f32.mrb[0].mxu0
      %v5261 = vpop.f32.mrb[0].mxu0
      %v5262 = vadd.f32 0.0, %v5261
      %v5263 = vpop.f32.mrb[0].mxu0
      %5264 = vmatprep.mubr.bf16.mxu0 0
      %5265 = vmatmul.mubr.bf16.gmra.mrb[0].mxu0 %v3771
      %v5266 = vpop.f32.mrb[0].mxu0
      %v5267 = vadd.f32 0.0, %v5266
      %v5268 = vpop.f32.mrb[0].mxu0
      %v5269 = vpop.f32.mrb[0].mxu0
      %v5270 = vadd.f32 0.0, %v5269
      %v5271 = vpop.f32.mrb[0].mxu0
      %5272 = vmatprep.mubr.bf16.mxu0 0
      %5273 = vmatmul.mubr.bf16.gmra.mrb[0].mxu0 %v3773
      %v5274 = vpop.f32.mrb[0].mxu0
      %v5275 = vadd.f32 0.0, %v5274
      %v5276 = vpop.f32.mrb[0].mxu0
      %v5277 = vpop.f32.mrb[0].mxu0
      %v5278 = vadd.f32 0.0, %v5277
      %v5279 = vpop.f32.mrb[0].mxu0
      %5280 = vmatprep.mubr.bf16.mxu0 0
      %5281 = vmatmul.mubr.bf16.gmra.mrb[0].mxu0 %v3775
      %v5282 = vpop.f32.mrb[0].mxu0
      %v5283 = vadd.f32 0.0, %v5282
      %v5284 = vpop.f32.mrb[0].mxu0
      %v5285 = vpop.f32.mrb[0].mxu0
      %v5286 = vadd.f32 0.0, %v5285
      %v5287 = vpop.f32.mrb[0].mxu0
      %5288 = vmatprep.mubr.bf16.mxu0 0
      %5289 = vmatmul.mubr.bf16.gmra.mrb[0].mxu0 %v3777
      %v5290 = vpop.f32.mrb[0].mxu0
      %v5291 = vadd.f32 0.0, %v5290
      %v5292 = vpop.f32.mrb[0].mxu0
      %v5293 = vpop.f32.mrb[0].mxu0
      %v5294 = vadd.f32 0.0, %v5293
      %v5295 = vpop.f32.mrb[0].mxu0
      %5296 = vmatprep.mubr.bf16.mxu0 0
      %5297 = vmatmul.mubr.bf16.gmra.mrb[0].mxu0 %v3779
      %v5298 = vpop.f32.mrb[0].mxu0
      %v5299 = vadd.f32 0.0, %v5298
      %v5300 = vpop.f32.mrb[0].mxu0
      %v5301 = vpop.f32.mrb[0].mxu0
      %v5302 = vadd.f32 0.0, %v5301
      %v5303 = vpop.f32.mrb[0].mxu0
      %5304 = vmatprep.mubr.bf16.mxu0 0
      %5305 = vmatmul.mubr.bf16.gmra.mrb[0].mxu0 %v3781
      %v5306 = vpop.f32.mrb[0].mxu0
      %v5307 = vadd.f32 0.0, %v5306
      %v5308 = vpop.f32.mrb[0].mxu0
      %v5309 = vpop.f32.mrb[0].mxu0
      %v5310 = vadd.f32 0.0, %v5309
      %v5311 = vpop.f32.mrb[0].mxu0
      %5312 = vmatprep.mubr.bf16.mxu0 0
      %5313 = vmatmul.mubr.bf16.gmra.mrb[0].mxu0 %v3783
      %v5314 = vpop.f32.mrb[0].mxu0
      %v5315 = vadd.f32 0.0, %v5314
      %v5316 = vpop.f32.mrb[0].mxu0
      %v5317 = vpop.f32.mrb[0].mxu0
      %v5318 = vadd.f32 0.0, %v5317
      %v5319 = vpop.f32.mrb[0].mxu0
      %5320 = vmatprep.mubr.bf16.mxu0 0
      %5321 = vmatmul.mubr.bf16.gmra.mrb[0].mxu0 %v3785
      %v5322 = vpop.f32.mrb[0].mxu0
      %v5323 = vadd.f32 0.0, %v5322
      %v5324 = vpop.f32.mrb[0].mxu0
      %v5325 = vpop.f32.mrb[0].mxu0
      %v5326 = vadd.f32 0.0, %v5325
      %v5327 = vpop.f32.mrb[0].mxu0
      %5328 = vmatprep.mubr.bf16.mxu0 0
      %5329 = vmatmul.mubr.bf16.gmra.mrb[0].mxu0 %v3787
      %v5330 = vpop.f32.mrb[0].mxu0
      %v5331 = vadd.f32 0.0, %v5330
      %v5332 = vpop.f32.mrb[0].mxu0
      %v5333 = vpop.f32.mrb[0].mxu0
      %v5334 = vadd.f32 0.0, %v5333
      %v5335 = vpop.f32.mrb[0].mxu0
      %5336 = vmatprep.mubr.bf16.mxu0 0
      %5337 = vmatmul.mubr.bf16.gmra.mrb[0].mxu0 %v3789
      %v5338 = vpop.f32.mrb[0].mxu0
      %v5339 = vadd.f32 0.0, %v5338
      %v5340 = vpop.f32.mrb[0].mxu0
      %v5341 = vpop.f32.mrb[0].mxu0
      %v5342 = vadd.f32 0.0, %v5341
      %v5343 = vpop.f32.mrb[0].mxu0
      %5344 = vmatprep.mubr.bf16.mxu0 0
      %5345 = vmatmul.mubr.bf16.gmra.mrb[0].mxu0 %v3791
      %v5346 = vpop.f32.mrb[0].mxu0
      %v5347 = vadd.f32 0.0, %v5346
      %v5348 = vpop.f32.mrb[0].mxu0
      %v5349 = vpop.f32.mrb[0].mxu0
      %v5350 = vadd.f32 0.0, %v5349
      %v5351 = vpop.f32.mrb[0].mxu0
      %5352 = vmatprep.mubr.bf16.mxu0 0
      %5353 = vmatmul.mubr.bf16.gmra.mrb[0].mxu0 %v3793
      %v5354 = vpop.f32.mrb[0].mxu0
      %v5355 = vadd.f32 0.0, %v5354
      %v5356 = vpop.f32.mrb[0].mxu0
      %v5357 = vpop.f32.mrb[0].mxu0
      %v5358 = vadd.f32 0.0, %v5357
      %v5359 = vpop.f32.mrb[0].mxu0
      %5360 = vmatprep.mubr.bf16.mxu0 0
      %5361 = vmatmul.mubr.bf16.gmra.mrb[0].mxu0 %v3795
      %v5362 = vpop.f32.mrb[0].mxu0
      %v5363 = vadd.f32 0.0, %v5362
      %v5364 = vpop.f32.mrb[0].mxu0
      %v5365 = vpop.f32.mrb[0].mxu0
      %v5366 = vadd.f32 0.0, %v5365
      %v5367 = vpop.f32.mrb[0].mxu0
      %5368 = vmatprep.mubr.bf16.mxu0 0
      %5369 = vmatmul.mubr.bf16.gmra.mrb[0].mxu0 %v3797
      %v5370 = vpop.f32.mrb[0].mxu0
      %v5371 = vadd.f32 0.0, %v5370
      %v5372 = vpop.f32.mrb[0].mxu0
      %v5373 = vpop.f32.mrb[0].mxu0
      %v5374 = vadd.f32 0.0, %v5373
      %v5375 = vpop.f32.mrb[0].mxu0
      %5376 = vmatprep.mubr.bf16.mxu0 0
      %5377 = vmatmul.mubr.bf16.gmra.mrb[0].mxu0 %v3799
      %v5378 = vpop.f32.mrb[0].mxu0
      %v5379 = vadd.f32 0.0, %v5378
      %v5380 = vpop.f32.mrb[0].mxu0
      %v5381 = vpop.f32.mrb[0].mxu0
      %v5382 = vadd.f32 0.0, %v5381
      %v5383 = vpop.f32.mrb[0].mxu0
      %5384 = vmatprep.mubr.bf16.mxu0 0
      %5385 = vmatmul.mubr.bf16.gmra.mrb[0].mxu0 %v3801
      %v5386 = vpop.f32.mrb[0].mxu0
      %v5387 = vadd.f32 0.0, %v5386
      %v5388 = vpop.f32.mrb[0].mxu0
      %v5389 = vpop.f32.mrb[0].mxu0
      %v5390 = vadd.f32 0.0, %v5389
      %v5391 = vpop.f32.mrb[0].mxu0
      %5392 = vmatprep.mubr.bf16.mxu0 0
      %5393 = vmatmul.mubr.bf16.gmra.mrb[0].mxu0 %v3803
      %v5394 = vpop.f32.mrb[0].mxu0
      %v5395 = vadd.f32 0.0, %v5394
      %v5396 = vpop.f32.mrb[0].mxu0
      %v5397 = vpop.f32.mrb[0].mxu0
      %v5398 = vadd.f32 0.0, %v5397
      %v5399 = vpop.f32.mrb[0].mxu0
      %5400 = vmatprep.mubr.bf16.mxu0 0
      %5401 = vmatmul.mubr.bf16.gmra.mrb[0].mxu0 %v3805
      %v5402 = vpop.f32.mrb[0].mxu0
      %v5403 = vadd.f32 0.0, %v5402
      %v5404 = vpop.f32.mrb[0].mxu0
      %v5405 = vpop.f32.mrb[0].mxu0
      %v5406 = vadd.f32 0.0, %v5405
      %v5407 = vpop.f32.mrb[0].mxu0
      %5408 = vmatprep.mubr.bf16.mxu0 0
      %5409 = vmatmul.mubr.bf16.gmra.mrb[0].mxu0 %v3807
      %v5410 = vpop.f32.mrb[0].mxu0
      %v5411 = vadd.f32 0.0, %v5410
      %v5412 = vpop.f32.mrb[0].mxu0
      %v5413 = vpop.f32.mrb[0].mxu0
      %v5414 = vadd.f32 0.0, %v5413
      %v5415 = vpop.f32.mrb[0].mxu0
      %5416 = vmatprep.mubr.bf16.mxu0 0
      %5417 = vmatmul.mubr.bf16.gmra.mrb[0].mxu0 %v3809
      %v5418 = vpop.f32.mrb[0].mxu0
      %v5419 = vadd.f32 0.0, %v5418
      %v5420 = vpop.f32.mrb[0].mxu0
      %v5421 = vpop.f32.mrb[0].mxu0
      %v5422 = vadd.f32 0.0, %v5421
      %v5423 = vpop.f32.mrb[0].mxu0
      %5424 = vmatprep.mubr.bf16.mxu0 0
      %5425 = vmatmul.mubr.bf16.gmra.mrb[0].mxu0 %v3811
      %v5426 = vpop.f32.mrb[0].mxu0
      %v5427 = vadd.f32 0.0, %v5426
      %v5428 = vpop.f32.mrb[0].mxu0
      %v5429 = vpop.f32.mrb[0].mxu0
      %v5430 = vadd.f32 0.0, %v5429
      %v5431 = vpop.f32.mrb[0].mxu0
      %5432 = vmatprep.mubr.bf16.mxu0 0
      %5433 = vmatmul.mubr.bf16.gmra.mrb[0].mxu0 %v3813
      %v5434 = vpop.f32.mrb[0].mxu0
      %v5435 = vadd.f32 0.0, %v5434
      %v5436 = vpop.f32.mrb[0].mxu0
      %v5437 = vpop.f32.mrb[0].mxu0
      %v5438 = vadd.f32 0.0, %v5437
      %v5439 = vpop.f32.mrb[0].mxu0
      %5440 = vmatprep.mubr.bf16.mxu0 0
      %5441 = vmatmul.mubr.bf16.gmra.mrb[0].mxu0 %v3815
      %v5442 = vpop.f32.mrb[0].mxu0
      %v5443 = vadd.f32 0.0, %v5442
      %v5444 = vpop.f32.mrb[0].mxu0
      %v5445 = vpop.f32.mrb[0].mxu0
      %v5446 = vadd.f32 0.0, %v5445
      %v5447 = vpop.f32.mrb[0].mxu0
      %5448 = vmatprep.mubr.bf16.mxu0 0
      %5449 = vmatmul.mubr.bf16.gmra.mrb[0].mxu0 %v5123
      %v5450 = vpop.f32.mrb[0].mxu0
      %v5451 = vadd.f32 0.0, %v5450
      %v5452 = vpop.f32.mrb[0].mxu0
      %v5453 = vpop.f32.mrb[0].mxu0
      %v5454 = vadd.f32 0.0, %v5453
      %v5455 = vpop.f32.mrb[0].mxu0
      %5456 = vmatprep.mubr.bf16.mxu0 0
      %5457 = vmatmul.mubr.bf16.gmra.mrb[0].mxu0 %v5125
      %v5458 = vpop.f32.mrb[0].mxu0
      %v5459 = vadd.f32 0.0, %v5458
      %v5460 = vpop.f32.mrb[0].mxu0
      %v5461 = vpop.f32.mrb[0].mxu0
      %v5462 = vadd.f32 0.0, %v5461
      %v5463 = vpop.f32.mrb[0].mxu0
      %5464 = vdwg.mxu0
      %v5465 = vadd.f32 %v5039, %v5211
      %v5466 = vadd.f32 %v5040, %v5214
      %v5467 = vadd.f32 %v5041, %v5219
      %v5468 = vadd.f32 %v5042, %v5222
      %v5469 = vadd.f32 %v5043, %v5227
      %v5470 = vadd.f32 %v5044, %v5230
      %v5471 = vadd.f32 %v5045, %v5235
      %v5472 = vadd.f32 %v5046, %v5238
      %v5473 = vadd.f32 %v5047, %v5243
      %v5474 = vadd.f32 %v5048, %v5246
      %v5475 = vadd.f32 %v5049, %v5251
      %v5476 = vadd.f32 %v5050, %v5254
      %v5477 = vadd.f32 %v5051, %v5259
      %v5478 = vadd.f32 %v5052, %v5262
      %v5479 = vadd.f32 %v5053, %v5267
      %v5480 = vadd.f32 %v5054, %v5270
      %v5481 = vadd.f32 %v5055, %v5275
      %v5482 = vadd.f32 %v5056, %v5278
      %v5483 = vadd.f32 %v5057, %v5283
      %v5484 = vadd.f32 %v5058, %v5286
      %v5485 = vadd.f32 %v5059, %v5291
      %v5486 = vadd.f32 %v5060, %v5294
      %v5487 = vadd.f32 %v5061, %v5299
      %v5488 = vadd.f32 %v5062, %v5302
      %v5489 = vadd.f32 %v5063, %v5307
      %v5490 = vadd.f32 %v5064, %v5310
      %v5491 = vadd.f32 %v5065, %v5315
      %v5492 = vadd.f32 %v5066, %v5318
      %v5493 = vadd.f32 %v5067, %v5323
      %v5494 = vadd.f32 %v5068, %v5326
      %v5495 = vadd.f32 %v5069, %v5331
      %v5496 = vadd.f32 %v5070, %v5334
      %v5497 = vadd.f32 %v5071, %v5339
      %v5498 = vadd.f32 %v5072, %v5342
      %v5499 = vadd.f32 %v5073, %v5347
      %v5500 = vadd.f32 %v5074, %v5350
      %v5501 = vadd.f32 %v5075, %v5355
      %v5502 = vadd.f32 %v5076, %v5358
      %v5503 = vadd.f32 %v5077, %v5363
      %v5504 = vadd.f32 %v5078, %v5366
      %v5505 = vadd.f32 %v5079, %v5371
      %v5506 = vadd.f32 %v5080, %v5374
      %v5507 = vadd.f32 %v5081, %v5379
      %v5508 = vadd.f32 %v5082, %v5382
      %v5509 = vadd.f32 %v5083, %v5387
      %v5510 = vadd.f32 %v5084, %v5390
      %v5511 = vadd.f32 %v5085, %v5395
      %v5512 = vadd.f32 %v5086, %v5398
      %v5513 = vadd.f32 %v5087, %v5403
      %v5514 = vadd.f32 %v5088, %v5406
      %v5515 = vadd.f32 %v5089, %v5411
      %v5516 = vadd.f32 %v5090, %v5414
      %v5517 = vadd.f32 %v5091, %v5419
      %v5518 = vadd.f32 %v5092, %v5422
      %v5519 = vadd.f32 %v5093, %v5427
      %v5520 = vadd.f32 %v5094, %v5430
      %v5521 = vadd.f32 %v5095, %v5435
      %v5522 = vadd.f32 %v5096, %v5438
      %v5523 = vadd.f32 %v5097, %v5443
      %v5524 = vadd.f32 %v5098, %v5446
      %v5525 = vadd.f32 %v5099, %v5451
      %v5526 = vadd.f32 %v5100, %v5454
      %v5527 = vadd.f32 %v5101, %v5459
      %v5528 = vadd.f32 %v5102, %v5462
      %s5529 = scalar_lea.vmem %s3, 384
      %v5530 = vld [vmem:[%s5529] sm:$0xf]
      %v5531 = vld [vmem:[%s5529 + $0x4] sm:$0xf]
      %v5532 = vld [vmem:[%s5529 + $0x8] sm:$0xf]
      %v5533 = vld [vmem:[%s5529 + $0xc] sm:$0xf]
      %v5534 = vld [vmem:[%s5529 + $0x10] sm:$0xf]
      %v5535 = vld [vmem:[%s5529 + $0x14] sm:$0xf]
      %v5536 = vld [vmem:[%s5529 + $0x18] sm:$0xf]
      %v5537 = vld [vmem:[%s5529 + $0x1c] sm:$0xf]
      %v5538 = vld [vmem:[%s5529 + $0x20] sm:$0xf]
      %v5539 = vld [vmem:[%s5529 + $0x24] sm:$0xf]
      %v5540 = vld [vmem:[%s5529 + $0x28] sm:$0xf]
      %v5541 = vld [vmem:[%s5529 + $0x2c] sm:$0xf]
      %v5542 = vld [vmem:[%s5529 + $0x30] sm:$0xf]
      %v5543 = vld [vmem:[%s5529 + $0x34] sm:$0xf]
      %v5544 = vld [vmem:[%s5529 + $0x38] sm:$0xf]
      %v5545 = vld [vmem:[%s5529 + $0x3c] sm:$0xf]
      %v5562 = vunpack.c.l.b16 %v5530
      %v5563 = vunpack.c.l.b16 %v5531
      %v5564 = vunpack.c.l.b16 %v5532
      %v5565 = vunpack.c.l.b16 %v5533
      %v5566 = vunpack.c.l.b16 %v5534
      %v5567 = vunpack.c.l.b16 %v5535
      %v5568 = vunpack.c.l.b16 %v5536
      %v5569 = vunpack.c.l.b16 %v5537
      %v5570 = vunpack.c.l.b16 %v5538
      %v5571 = vunpack.c.l.b16 %v5539
      %v5572 = vunpack.c.l.b16 %v5540
      %v5573 = vunpack.c.l.b16 %v5541
      %v5574 = vunpack.c.l.b16 %v5542
      %v5575 = vunpack.c.l.b16 %v5543
      %v5576 = vunpack.c.l.b16 %v5544
      %v5577 = vunpack.c.l.b16 %v5545
      %v5578 = vpack.c.b16 %v5563, %v5562
      %v5579 = vpack.c.b16 %v5565, %v5564
      %v5580 = vpack.c.b16 %v5567, %v5566
      %v5581 = vpack.c.b16 %v5569, %v5568
      %v5582 = vpack.c.b16 %v5571, %v5570
      %v5583 = vpack.c.b16 %v5573, %v5572
      %v5584 = vpack.c.b16 %v5575, %v5574
      %v5585 = vpack.c.b16 %v5577, %v5576
      %5594 = vmatprep.subr.bf16.mxu0 0
      %5595 = vmatpush1.bf16.msra.mxu0 %v5578
      %5596 = vmatprep.subr.bf16.mxu0 0
      %5597 = vmatpush1.bf16.msra.mxu0 %v5579
      %5598 = vmatprep.subr.bf16.mxu0 0
      %5599 = vmatpush1.bf16.msra.mxu0 %v5580
      %5600 = vmatprep.subr.bf16.mxu0 0
      %5601 = vmatpush1.bf16.msra.mxu0 %v5581
      %5602 = vmatprep.subr.bf16.mxu0 0
      %5603 = vmatpush1.bf16.msra.mxu0 %v5582
      %5604 = vmatprep.subr.bf16.mxu0 0
      %5605 = vmatpush1.bf16.msra.mxu0 %v5583
      %5606 = vmatprep.subr.bf16.mxu0 0
      %5607 = vmatpush1.bf16.msra.mxu0 %v5584
      %5608 = vmatprep.subr.bf16.mxu0 0
      %5609 = vmatpush1.bf16.msra.mxu0 %v5585
      %5610 = vmatprep.subr.bf16.mxu0 0
      %5611 = vmatpush1.bf16.msra.mxu0 0
      %5612 = vmatprep.subr.bf16.mxu0 0
      %5613 = vmatpush1.bf16.msra.mxu0 0
      %5614 = vmatprep.subr.bf16.mxu0 0
      %5615 = vmatpush1.bf16.msra.mxu0 0
      %5616 = vmatprep.subr.bf16.mxu0 0
      %5617 = vmatpush1.bf16.msra.mxu0 0
      %5618 = vmatprep.subr.bf16.mxu0 0
      %5619 = vmatpush1.bf16.msra.mxu0 0
      %5620 = vmatprep.subr.bf16.mxu0 0
      %5621 = vmatpush1.bf16.msra.mxu0 0
      %5622 = vmatprep.subr.bf16.mxu0 0
      %5623 = vmatpush1.bf16.msra.mxu0 0
      %5624 = vmatprep.subr.bf16.mxu0 0
      %5625 = vmatpush1.bf16.msra.mxu0 0
      %5626 = vmatprep.mubr.bf16.mxu0 0
      %5627 = vmatmul.mubr.bf16.gmra.mrb[0].mxu0 %v2667
      %v5628 = vpop.f32.mrb[0].mxu0
      %v5629 = vadd.f32 0.0, %v5628
      %v5630 = vpop.f32.mrb[0].mxu0
      %v5631 = vpop.f32.mrb[0].mxu0
      %v5632 = vadd.f32 0.0, %v5631
      %v5633 = vpop.f32.mrb[0].mxu0
      %5634 = vmatprep.mubr.bf16.mxu0 0
      %5635 = vmatmul.mubr.bf16.gmra.mrb[0].mxu0 %v2668
      %v5636 = vpop.f32.mrb[0].mxu0
      %v5637 = vadd.f32 0.0, %v5636
      %v5638 = vpop.f32.mrb[0].mxu0
      %v5639 = vpop.f32.mrb[0].mxu0
      %v5640 = vadd.f32 0.0, %v5639
      %v5641 = vpop.f32.mrb[0].mxu0
      %5642 = vmatprep.mubr.bf16.mxu0 0
      %5643 = vmatmul.mubr.bf16.gmra.mrb[0].mxu0 %v2669
      %v5644 = vpop.f32.mrb[0].mxu0
      %v5645 = vadd.f32 0.0, %v5644
      %v5646 = vpop.f32.mrb[0].mxu0
      %v5647 = vpop.f32.mrb[0].mxu0
      %v5648 = vadd.f32 0.0, %v5647
      %v5649 = vpop.f32.mrb[0].mxu0
      %5650 = vmatprep.mubr.bf16.mxu0 0
      %5651 = vmatmul.mubr.bf16.gmra.mrb[0].mxu0 %v2670
      %v5652 = vpop.f32.mrb[0].mxu0
      %v5653 = vadd.f32 0.0, %v5652
      %v5654 = vpop.f32.mrb[0].mxu0
      %v5655 = vpop.f32.mrb[0].mxu0
      %v5656 = vadd.f32 0.0, %v5655
      %v5657 = vpop.f32.mrb[0].mxu0
      %5658 = vmatprep.mubr.bf16.mxu0 0
      %5659 = vmatmul.mubr.bf16.gmra.mrb[0].mxu0 %v2671
      %v5660 = vpop.f32.mrb[0].mxu0
      %v5661 = vadd.f32 0.0, %v5660
      %v5662 = vpop.f32.mrb[0].mxu0
      %v5663 = vpop.f32.mrb[0].mxu0
      %v5664 = vadd.f32 0.0, %v5663
      %v5665 = vpop.f32.mrb[0].mxu0
      %5666 = vmatprep.mubr.bf16.mxu0 0
      %5667 = vmatmul.mubr.bf16.gmra.mrb[0].mxu0 %v2672
      %v5668 = vpop.f32.mrb[0].mxu0
      %v5669 = vadd.f32 0.0, %v5668
      %v5670 = vpop.f32.mrb[0].mxu0
      %v5671 = vpop.f32.mrb[0].mxu0
      %v5672 = vadd.f32 0.0, %v5671
      %v5673 = vpop.f32.mrb[0].mxu0
      %5674 = vmatprep.mubr.bf16.mxu0 0
      %5675 = vmatmul.mubr.bf16.gmra.mrb[0].mxu0 %v2673
      %v5676 = vpop.f32.mrb[0].mxu0
      %v5677 = vadd.f32 0.0, %v5676
      %v5678 = vpop.f32.mrb[0].mxu0
      %v5679 = vpop.f32.mrb[0].mxu0
      %v5680 = vadd.f32 0.0, %v5679
      %v5681 = vpop.f32.mrb[0].mxu0
      %5682 = vmatprep.mubr.bf16.mxu0 0
      %5683 = vmatmul.mubr.bf16.gmra.mrb[0].mxu0 %v2674
      %v5684 = vpop.f32.mrb[0].mxu0
      %v5685 = vadd.f32 0.0, %v5684
      %v5686 = vpop.f32.mrb[0].mxu0
      %v5687 = vpop.f32.mrb[0].mxu0
      %v5688 = vadd.f32 0.0, %v5687
      %v5689 = vpop.f32.mrb[0].mxu0
      %5690 = vmatprep.mubr.bf16.mxu0 0
      %5691 = vmatmul.mubr.bf16.gmra.mrb[0].mxu0 %v2675
      %v5692 = vpop.f32.mrb[0].mxu0
      %v5693 = vadd.f32 0.0, %v5692
      %v5694 = vpop.f32.mrb[0].mxu0
      %v5695 = vpop.f32.mrb[0].mxu0
      %v5696 = vadd.f32 0.0, %v5695
      %v5697 = vpop.f32.mrb[0].mxu0
      %5698 = vmatprep.mubr.bf16.mxu0 0
      %5699 = vmatmul.mubr.bf16.gmra.mrb[0].mxu0 %v2676
      %v5700 = vpop.f32.mrb[0].mxu0
      %v5701 = vadd.f32 0.0, %v5700
      %v5702 = vpop.f32.mrb[0].mxu0
      %v5703 = vpop.f32.mrb[0].mxu0
      %v5704 = vadd.f32 0.0, %v5703
      %v5705 = vpop.f32.mrb[0].mxu0
      %5706 = vmatprep.mubr.bf16.mxu0 0
      %5707 = vmatmul.mubr.bf16.gmra.mrb[0].mxu0 %v2677
      %v5708 = vpop.f32.mrb[0].mxu0
      %v5709 = vadd.f32 0.0, %v5708
      %v5710 = vpop.f32.mrb[0].mxu0
      %v5711 = vpop.f32.mrb[0].mxu0
      %v5712 = vadd.f32 0.0, %v5711
      %v5713 = vpop.f32.mrb[0].mxu0
      %5714 = vmatprep.mubr.bf16.mxu0 0
      %5715 = vmatmul.mubr.bf16.gmra.mrb[0].mxu0 %v2678
      %v5716 = vpop.f32.mrb[0].mxu0
      %v5717 = vadd.f32 0.0, %v5716
      %v5718 = vpop.f32.mrb[0].mxu0
      %v5719 = vpop.f32.mrb[0].mxu0
      %v5720 = vadd.f32 0.0, %v5719
      %v5721 = vpop.f32.mrb[0].mxu0
      %5722 = vmatprep.mubr.bf16.mxu0 0
      %5723 = vmatmul.mubr.bf16.gmra.mrb[0].mxu0 %v2679
      %v5724 = vpop.f32.mrb[0].mxu0
      %v5725 = vadd.f32 0.0, %v5724
      %v5726 = vpop.f32.mrb[0].mxu0
      %v5727 = vpop.f32.mrb[0].mxu0
      %v5728 = vadd.f32 0.0, %v5727
      %v5729 = vpop.f32.mrb[0].mxu0
      %5730 = vmatprep.mubr.bf16.mxu0 0
      %5731 = vmatmul.mubr.bf16.gmra.mrb[0].mxu0 %v2680
      %v5732 = vpop.f32.mrb[0].mxu0
      %v5733 = vadd.f32 0.0, %v5732
      %v5734 = vpop.f32.mrb[0].mxu0
      %v5735 = vpop.f32.mrb[0].mxu0
      %v5736 = vadd.f32 0.0, %v5735
      %v5737 = vpop.f32.mrb[0].mxu0
      %5738 = vmatprep.mubr.bf16.mxu0 0
      %5739 = vmatmul.mubr.bf16.gmra.mrb[0].mxu0 %v2681
      %v5740 = vpop.f32.mrb[0].mxu0
      %v5741 = vadd.f32 0.0, %v5740
      %v5742 = vpop.f32.mrb[0].mxu0
      %v5743 = vpop.f32.mrb[0].mxu0
      %v5744 = vadd.f32 0.0, %v5743
      %v5745 = vpop.f32.mrb[0].mxu0
      %5746 = vmatprep.mubr.bf16.mxu0 0
      %5747 = vmatmul.mubr.bf16.gmra.mrb[0].mxu0 %v2682
      %v5748 = vpop.f32.mrb[0].mxu0
      %v5749 = vadd.f32 0.0, %v5748
      %v5750 = vpop.f32.mrb[0].mxu0
      %v5751 = vpop.f32.mrb[0].mxu0
      %v5752 = vadd.f32 0.0, %v5751
      %v5753 = vpop.f32.mrb[0].mxu0
      %5754 = vmatprep.mubr.bf16.mxu0 0
      %5755 = vmatmul.mubr.bf16.gmra.mrb[0].mxu0 %v2683
      %v5756 = vpop.f32.mrb[0].mxu0
      %v5757 = vadd.f32 0.0, %v5756
      %v5758 = vpop.f32.mrb[0].mxu0
      %v5759 = vpop.f32.mrb[0].mxu0
      %v5760 = vadd.f32 0.0, %v5759
      %v5761 = vpop.f32.mrb[0].mxu0
      %5762 = vmatprep.mubr.bf16.mxu0 0
      %5763 = vmatmul.mubr.bf16.gmra.mrb[0].mxu0 %v2684
      %v5764 = vpop.f32.mrb[0].mxu0
      %v5765 = vadd.f32 0.0, %v5764
      %v5766 = vpop.f32.mrb[0].mxu0
      %v5767 = vpop.f32.mrb[0].mxu0
      %v5768 = vadd.f32 0.0, %v5767
      %v5769 = vpop.f32.mrb[0].mxu0
      %5770 = vmatprep.mubr.bf16.mxu0 0
      %5771 = vmatmul.mubr.bf16.gmra.mrb[0].mxu0 %v2685
      %v5772 = vpop.f32.mrb[0].mxu0
      %v5773 = vadd.f32 0.0, %v5772
      %v5774 = vpop.f32.mrb[0].mxu0
      %v5775 = vpop.f32.mrb[0].mxu0
      %v5776 = vadd.f32 0.0, %v5775
      %v5777 = vpop.f32.mrb[0].mxu0
      %5778 = vmatprep.mubr.bf16.mxu0 0
      %5779 = vmatmul.mubr.bf16.gmra.mrb[0].mxu0 %v2686
      %v5780 = vpop.f32.mrb[0].mxu0
      %v5781 = vadd.f32 0.0, %v5780
      %v5782 = vpop.f32.mrb[0].mxu0
      %v5783 = vpop.f32.mrb[0].mxu0
      %v5784 = vadd.f32 0.0, %v5783
      %v5785 = vpop.f32.mrb[0].mxu0
      %5786 = vmatprep.mubr.bf16.mxu0 0
      %5787 = vmatmul.mubr.bf16.gmra.mrb[0].mxu0 %v2687
      %v5788 = vpop.f32.mrb[0].mxu0
      %v5789 = vadd.f32 0.0, %v5788
      %v5790 = vpop.f32.mrb[0].mxu0
      %v5791 = vpop.f32.mrb[0].mxu0
      %v5792 = vadd.f32 0.0, %v5791
      %v5793 = vpop.f32.mrb[0].mxu0
      %5794 = vmatprep.mubr.bf16.mxu0 0
      %5795 = vmatmul.mubr.bf16.gmra.mrb[0].mxu0 %v2688
      %v5796 = vpop.f32.mrb[0].mxu0
      %v5797 = vadd.f32 0.0, %v5796
      %v5798 = vpop.f32.mrb[0].mxu0
      %v5799 = vpop.f32.mrb[0].mxu0
      %v5800 = vadd.f32 0.0, %v5799
      %v5801 = vpop.f32.mrb[0].mxu0
      %5802 = vmatprep.mubr.bf16.mxu0 0
      %5803 = vmatmul.mubr.bf16.gmra.mrb[0].mxu0 %v2689
      %v5804 = vpop.f32.mrb[0].mxu0
      %v5805 = vadd.f32 0.0, %v5804
      %v5806 = vpop.f32.mrb[0].mxu0
      %v5807 = vpop.f32.mrb[0].mxu0
      %v5808 = vadd.f32 0.0, %v5807
      %v5809 = vpop.f32.mrb[0].mxu0
      %5810 = vmatprep.mubr.bf16.mxu0 0
      %5811 = vmatmul.mubr.bf16.gmra.mrb[0].mxu0 %v2690
      %v5812 = vpop.f32.mrb[0].mxu0
      %v5813 = vadd.f32 0.0, %v5812
      %v5814 = vpop.f32.mrb[0].mxu0
      %v5815 = vpop.f32.mrb[0].mxu0
      %v5816 = vadd.f32 0.0, %v5815
      %v5817 = vpop.f32.mrb[0].mxu0
      %5818 = vmatprep.mubr.bf16.mxu0 0
      %5819 = vmatmul.mubr.bf16.gmra.mrb[0].mxu0 %v2691
      %v5820 = vpop.f32.mrb[0].mxu0
      %v5821 = vadd.f32 0.0, %v5820
      %v5822 = vpop.f32.mrb[0].mxu0
      %v5823 = vpop.f32.mrb[0].mxu0
      %v5824 = vadd.f32 0.0, %v5823
      %v5825 = vpop.f32.mrb[0].mxu0
      %5826 = vmatprep.mubr.bf16.mxu0 0
      %5827 = vmatmul.mubr.bf16.gmra.mrb[0].mxu0 %v2692
      %v5828 = vpop.f32.mrb[0].mxu0
      %v5829 = vadd.f32 0.0, %v5828
      %v5830 = vpop.f32.mrb[0].mxu0
      %v5831 = vpop.f32.mrb[0].mxu0
      %v5832 = vadd.f32 0.0, %v5831
      %v5833 = vpop.f32.mrb[0].mxu0
      %5834 = vmatprep.mubr.bf16.mxu0 0
      %5835 = vmatmul.mubr.bf16.gmra.mrb[0].mxu0 %v2693
      %v5836 = vpop.f32.mrb[0].mxu0
      %v5837 = vadd.f32 0.0, %v5836
      %v5838 = vpop.f32.mrb[0].mxu0
      %v5839 = vpop.f32.mrb[0].mxu0
      %v5840 = vadd.f32 0.0, %v5839
      %v5841 = vpop.f32.mrb[0].mxu0
      %5842 = vmatprep.mubr.bf16.mxu0 0
      %5843 = vmatmul.mubr.bf16.gmra.mrb[0].mxu0 %v2694
      %v5844 = vpop.f32.mrb[0].mxu0
      %v5845 = vadd.f32 0.0, %v5844
      %v5846 = vpop.f32.mrb[0].mxu0
      %v5847 = vpop.f32.mrb[0].mxu0
      %v5848 = vadd.f32 0.0, %v5847
      %v5849 = vpop.f32.mrb[0].mxu0
      %5850 = vmatprep.mubr.bf16.mxu0 0
      %5851 = vmatmul.mubr.bf16.gmra.mrb[0].mxu0 %v2695
      %v5852 = vpop.f32.mrb[0].mxu0
      %v5853 = vadd.f32 0.0, %v5852
      %v5854 = vpop.f32.mrb[0].mxu0
      %v5855 = vpop.f32.mrb[0].mxu0
      %v5856 = vadd.f32 0.0, %v5855
      %v5857 = vpop.f32.mrb[0].mxu0
      %5858 = vmatprep.mubr.bf16.mxu0 0
      %5859 = vmatmul.mubr.bf16.gmra.mrb[0].mxu0 %v2696
      %v5860 = vpop.f32.mrb[0].mxu0
      %v5861 = vadd.f32 0.0, %v5860
      %v5862 = vpop.f32.mrb[0].mxu0
      %v5863 = vpop.f32.mrb[0].mxu0
      %v5864 = vadd.f32 0.0, %v5863
      %v5865 = vpop.f32.mrb[0].mxu0
      %5866 = vmatprep.mubr.bf16.mxu0 0
      %5867 = vmatmul.mubr.bf16.gmra.mrb[0].mxu0 %v2697
      %v5868 = vpop.f32.mrb[0].mxu0
      %v5869 = vadd.f32 0.0, %v5868
      %v5870 = vpop.f32.mrb[0].mxu0
      %v5871 = vpop.f32.mrb[0].mxu0
      %v5872 = vadd.f32 0.0, %v5871
      %v5873 = vpop.f32.mrb[0].mxu0
      %5874 = vmatprep.mubr.bf16.mxu0 0
      %5875 = vmatmul.mubr.bf16.gmra.mrb[0].mxu0 %v2698
      %v5876 = vpop.f32.mrb[0].mxu0
      %v5877 = vadd.f32 0.0, %v5876
      %v5878 = vpop.f32.mrb[0].mxu0
      %v5879 = vpop.f32.mrb[0].mxu0
      %v5880 = vadd.f32 0.0, %v5879
      %v5881 = vpop.f32.mrb[0].mxu0
      %5882 = vdwg.mxu0
      %v5883 = vadd.f32 %v5465, %v5629
      %v5884 = vadd.f32 %v5466, %v5632
      %v5885 = vadd.f32 %v5467, %v5637
      %v5886 = vadd.f32 %v5468, %v5640
      %v5887 = vadd.f32 %v5469, %v5645
      %v5888 = vadd.f32 %v5470, %v5648
      %v5889 = vadd.f32 %v5471, %v5653
      %v5890 = vadd.f32 %v5472, %v5656
      %v5891 = vadd.f32 %v5473, %v5661
      %v5892 = vadd.f32 %v5474, %v5664
      %v5893 = vadd.f32 %v5475, %v5669
      %v5894 = vadd.f32 %v5476, %v5672
      %v5895 = vadd.f32 %v5477, %v5677
      %v5896 = vadd.f32 %v5478, %v5680
      %v5897 = vadd.f32 %v5479, %v5685
      %v5898 = vadd.f32 %v5480, %v5688
      %v5899 = vadd.f32 %v5481, %v5693
      %v5900 = vadd.f32 %v5482, %v5696
      %v5901 = vadd.f32 %v5483, %v5701
      %v5902 = vadd.f32 %v5484, %v5704
      %v5903 = vadd.f32 %v5485, %v5709
      %v5904 = vadd.f32 %v5486, %v5712
      %v5905 = vadd.f32 %v5487, %v5717
      %v5906 = vadd.f32 %v5488, %v5720
      %v5907 = vadd.f32 %v5489, %v5725
      %v5908 = vadd.f32 %v5490, %v5728
      %v5909 = vadd.f32 %v5491, %v5733
      %v5910 = vadd.f32 %v5492, %v5736
      %v5911 = vadd.f32 %v5493, %v5741
      %v5912 = vadd.f32 %v5494, %v5744
      %v5913 = vadd.f32 %v5495, %v5749
      %v5914 = vadd.f32 %v5496, %v5752
      %v5915 = vadd.f32 %v5497, %v5757
      %v5916 = vadd.f32 %v5498, %v5760
      %v5917 = vadd.f32 %v5499, %v5765
      %v5918 = vadd.f32 %v5500, %v5768
      %v5919 = vadd.f32 %v5501, %v5773
      %v5920 = vadd.f32 %v5502, %v5776
      %v5921 = vadd.f32 %v5503, %v5781
      %v5922 = vadd.f32 %v5504, %v5784
      %v5923 = vadd.f32 %v5505, %v5789
      %v5924 = vadd.f32 %v5506, %v5792
      %v5925 = vadd.f32 %v5507, %v5797
      %v5926 = vadd.f32 %v5508, %v5800
      %v5927 = vadd.f32 %v5509, %v5805
      %v5928 = vadd.f32 %v5510, %v5808
      %v5929 = vadd.f32 %v5511, %v5813
      %v5930 = vadd.f32 %v5512, %v5816
      %v5931 = vadd.f32 %v5513, %v5821
      %v5932 = vadd.f32 %v5514, %v5824
      %v5933 = vadd.f32 %v5515, %v5829
      %v5934 = vadd.f32 %v5516, %v5832
      %v5935 = vadd.f32 %v5517, %v5837
      %v5936 = vadd.f32 %v5518, %v5840
      %v5937 = vadd.f32 %v5519, %v5845
      %v5938 = vadd.f32 %v5520, %v5848
      %v5939 = vadd.f32 %v5521, %v5853
      %v5940 = vadd.f32 %v5522, %v5856
      %v5941 = vadd.f32 %v5523, %v5861
      %v5942 = vadd.f32 %v5524, %v5864
      %v5943 = vadd.f32 %v5525, %v5869
      %v5944 = vadd.f32 %v5526, %v5872
      %v5945 = vadd.f32 %v5527, %v5877
      %v5946 = vadd.f32 %v5528, %v5880
      %s5947 = scalar_lea.vmem %s3, 448
      %v5948 = vld [vmem:[%s5947] sm:$0xf]
      %v5949 = vld [vmem:[%s5947 + $0x4] sm:$0xf]
      %v5950 = vld [vmem:[%s5947 + $0x8] sm:$0xf]
      %v5951 = vld [vmem:[%s5947 + $0xc] sm:$0xf]
      %v5952 = vld [vmem:[%s5947 + $0x10] sm:$0xf]
      %v5953 = vld [vmem:[%s5947 + $0x14] sm:$0xf]
      %v5954 = vld [vmem:[%s5947 + $0x18] sm:$0xf]
      %v5955 = vld [vmem:[%s5947 + $0x1c] sm:$0xf]
      %v5956 = vld [vmem:[%s5947 + $0x20] sm:$0xf]
      %v5957 = vld [vmem:[%s5947 + $0x24] sm:$0xf]
      %v5958 = vld [vmem:[%s5947 + $0x28] sm:$0xf]
      %v5959 = vld [vmem:[%s5947 + $0x2c] sm:$0xf]
      %v5960 = vld [vmem:[%s5947 + $0x30] sm:$0xf]
      %v5961 = vld [vmem:[%s5947 + $0x34] sm:$0xf]
      %v5962 = vld [vmem:[%s5947 + $0x38] sm:$0xf]
      %v5963 = vld [vmem:[%s5947 + $0x3c] sm:$0xf]
      %v5964 = vshrl.u32 %v2697, 16
      %v5966 = vor.u32 %v5964, %v4698
      %v5968 = vshll.u32 %v2698, 16
      %v5970 = vrot.slane %v5968, 1
      %v5971 = vsel %vm2733, %v5966, %v5970
      %v5972 = vshrl.u32 %v2698, 16
      %v5974 = vor.u32 %v5972, %v5970
      %v5976 = vshll.u32 %v2699, 16
      %v5978 = vrot.slane %v5976, 1
      %v5979 = vsel %vm2733, %v5974, %v5978
      %v5998 = vunpack.c.l.b16 %v5948
      %v5999 = vunpack.c.l.b16 %v5949
      %v6000 = vunpack.c.l.b16 %v5950
      %v6001 = vunpack.c.l.b16 %v5951
      %v6002 = vunpack.c.l.b16 %v5952
      %v6003 = vunpack.c.l.b16 %v5953
      %v6004 = vunpack.c.l.b16 %v5954
      %v6005 = vunpack.c.l.b16 %v5955
      %v6006 = vunpack.c.l.b16 %v5956
      %v6007 = vunpack.c.l.b16 %v5957
      %v6008 = vunpack.c.l.b16 %v5958
      %v6009 = vunpack.c.l.b16 %v5959
      %v6010 = vunpack.c.l.b16 %v5960
      %v6011 = vunpack.c.l.b16 %v5961
      %v6012 = vunpack.c.l.b16 %v5962
      %v6013 = vunpack.c.l.b16 %v5963
      %v6014 = vpack.c.b16 %v5999, %v5998
      %v6015 = vpack.c.b16 %v6001, %v6000
      %v6016 = vpack.c.b16 %v6003, %v6002
      %v6017 = vpack.c.b16 %v6005, %v6004
      %v6018 = vpack.c.b16 %v6007, %v6006
      %v6019 = vpack.c.b16 %v6009, %v6008
      %v6020 = vpack.c.b16 %v6011, %v6010
      %v6021 = vpack.c.b16 %v6013, %v6012
      %6030 = vmatprep.subr.bf16.mxu0 0
      %6031 = vmatpush1.bf16.msra.mxu0 %v6014
      %6032 = vmatprep.subr.bf16.mxu0 0
      %6033 = vmatpush1.bf16.msra.mxu0 %v6015
      %6034 = vmatprep.subr.bf16.mxu0 0
      %6035 = vmatpush1.bf16.msra.mxu0 %v6016
      %6036 = vmatprep.subr.bf16.mxu0 0
      %6037 = vmatpush1.bf16.msra.mxu0 %v6017
      %6038 = vmatprep.subr.bf16.mxu0 0
      %6039 = vmatpush1.bf16.msra.mxu0 %v6018
      %6040 = vmatprep.subr.bf16.mxu0 0
      %6041 = vmatpush1.bf16.msra.mxu0 %v6019
      %6042 = vmatprep.subr.bf16.mxu0 0
      %6043 = vmatpush1.bf16.msra.mxu0 %v6020
      %6044 = vmatprep.subr.bf16.mxu0 0
      %6045 = vmatpush1.bf16.msra.mxu0 %v6021
      %6046 = vmatprep.subr.bf16.mxu0 0
      %6047 = vmatpush1.bf16.msra.mxu0 0
      %6048 = vmatprep.subr.bf16.mxu0 0
      %6049 = vmatpush1.bf16.msra.mxu0 0
      %6050 = vmatprep.subr.bf16.mxu0 0
      %6051 = vmatpush1.bf16.msra.mxu0 0
      %6052 = vmatprep.subr.bf16.mxu0 0
      %6053 = vmatpush1.bf16.msra.mxu0 0
      %6054 = vmatprep.subr.bf16.mxu0 0
      %6055 = vmatpush1.bf16.msra.mxu0 0
      %6056 = vmatprep.subr.bf16.mxu0 0
      %6057 = vmatpush1.bf16.msra.mxu0 0
      %6058 = vmatprep.subr.bf16.mxu0 0
      %6059 = vmatpush1.bf16.msra.mxu0 0
      %6060 = vmatprep.subr.bf16.mxu0 0
      %6061 = vmatpush1.bf16.msra.mxu0 0
      %6062 = vmatprep.mubr.bf16.mxu0 0
      %6063 = vmatmul.mubr.bf16.gmra.mrb[0].mxu0 %v2777
      %v6064 = vpop.f32.mrb[0].mxu0
      %v6065 = vadd.f32 0.0, %v6064
      %v6066 = vpop.f32.mrb[0].mxu0
      %v6067 = vpop.f32.mrb[0].mxu0
      %v6068 = vadd.f32 0.0, %v6067
      %v6069 = vpop.f32.mrb[0].mxu0
      %6070 = vmatprep.mubr.bf16.mxu0 0
      %6071 = vmatmul.mubr.bf16.gmra.mrb[0].mxu0 %v2785
      %v6072 = vpop.f32.mrb[0].mxu0
      %v6073 = vadd.f32 0.0, %v6072
      %v6074 = vpop.f32.mrb[0].mxu0
      %v6075 = vpop.f32.mrb[0].mxu0
      %v6076 = vadd.f32 0.0, %v6075
      %v6077 = vpop.f32.mrb[0].mxu0
      %6078 = vmatprep.mubr.bf16.mxu0 0
      %6079 = vmatmul.mubr.bf16.gmra.mrb[0].mxu0 %v2793
      %v6080 = vpop.f32.mrb[0].mxu0
      %v6081 = vadd.f32 0.0, %v6080
      %v6082 = vpop.f32.mrb[0].mxu0
      %v6083 = vpop.f32.mrb[0].mxu0
      %v6084 = vadd.f32 0.0, %v6083
      %v6085 = vpop.f32.mrb[0].mxu0
      %6086 = vmatprep.mubr.bf16.mxu0 0
      %6087 = vmatmul.mubr.bf16.gmra.mrb[0].mxu0 %v2801
      %v6088 = vpop.f32.mrb[0].mxu0
      %v6089 = vadd.f32 0.0, %v6088
      %v6090 = vpop.f32.mrb[0].mxu0
      %v6091 = vpop.f32.mrb[0].mxu0
      %v6092 = vadd.f32 0.0, %v6091
      %v6093 = vpop.f32.mrb[0].mxu0
      %6094 = vmatprep.mubr.bf16.mxu0 0
      %6095 = vmatmul.mubr.bf16.gmra.mrb[0].mxu0 %v2809
      %v6096 = vpop.f32.mrb[0].mxu0
      %v6097 = vadd.f32 0.0, %v6096
      %v6098 = vpop.f32.mrb[0].mxu0
      %v6099 = vpop.f32.mrb[0].mxu0
      %v6100 = vadd.f32 0.0, %v6099
      %v6101 = vpop.f32.mrb[0].mxu0
      %6102 = vmatprep.mubr.bf16.mxu0 0
      %6103 = vmatmul.mubr.bf16.gmra.mrb[0].mxu0 %v2817
      %v6104 = vpop.f32.mrb[0].mxu0
      %v6105 = vadd.f32 0.0, %v6104
      %v6106 = vpop.f32.mrb[0].mxu0
      %v6107 = vpop.f32.mrb[0].mxu0
      %v6108 = vadd.f32 0.0, %v6107
      %v6109 = vpop.f32.mrb[0].mxu0
      %6110 = vmatprep.mubr.bf16.mxu0 0
      %6111 = vmatmul.mubr.bf16.gmra.mrb[0].mxu0 %v2825
      %v6112 = vpop.f32.mrb[0].mxu0
      %v6113 = vadd.f32 0.0, %v6112
      %v6114 = vpop.f32.mrb[0].mxu0
      %v6115 = vpop.f32.mrb[0].mxu0
      %v6116 = vadd.f32 0.0, %v6115
      %v6117 = vpop.f32.mrb[0].mxu0
      %6118 = vmatprep.mubr.bf16.mxu0 0
      %6119 = vmatmul.mubr.bf16.gmra.mrb[0].mxu0 %v2833
      %v6120 = vpop.f32.mrb[0].mxu0
      %v6121 = vadd.f32 0.0, %v6120
      %v6122 = vpop.f32.mrb[0].mxu0
      %v6123 = vpop.f32.mrb[0].mxu0
      %v6124 = vadd.f32 0.0, %v6123
      %v6125 = vpop.f32.mrb[0].mxu0
      %6126 = vmatprep.mubr.bf16.mxu0 0
      %6127 = vmatmul.mubr.bf16.gmra.mrb[0].mxu0 %v2841
      %v6128 = vpop.f32.mrb[0].mxu0
      %v6129 = vadd.f32 0.0, %v6128
      %v6130 = vpop.f32.mrb[0].mxu0
      %v6131 = vpop.f32.mrb[0].mxu0
      %v6132 = vadd.f32 0.0, %v6131
      %v6133 = vpop.f32.mrb[0].mxu0
      %6134 = vmatprep.mubr.bf16.mxu0 0
      %6135 = vmatmul.mubr.bf16.gmra.mrb[0].mxu0 %v2849
      %v6136 = vpop.f32.mrb[0].mxu0
      %v6137 = vadd.f32 0.0, %v6136
      %v6138 = vpop.f32.mrb[0].mxu0
      %v6139 = vpop.f32.mrb[0].mxu0
      %v6140 = vadd.f32 0.0, %v6139
      %v6141 = vpop.f32.mrb[0].mxu0
      %6142 = vmatprep.mubr.bf16.mxu0 0
      %6143 = vmatmul.mubr.bf16.gmra.mrb[0].mxu0 %v2857
      %v6144 = vpop.f32.mrb[0].mxu0
      %v6145 = vadd.f32 0.0, %v6144
      %v6146 = vpop.f32.mrb[0].mxu0
      %v6147 = vpop.f32.mrb[0].mxu0
      %v6148 = vadd.f32 0.0, %v6147
      %v6149 = vpop.f32.mrb[0].mxu0
      %6150 = vmatprep.mubr.bf16.mxu0 0
      %6151 = vmatmul.mubr.bf16.gmra.mrb[0].mxu0 %v2865
      %v6152 = vpop.f32.mrb[0].mxu0
      %v6153 = vadd.f32 0.0, %v6152
      %v6154 = vpop.f32.mrb[0].mxu0
      %v6155 = vpop.f32.mrb[0].mxu0
      %v6156 = vadd.f32 0.0, %v6155
      %v6157 = vpop.f32.mrb[0].mxu0
      %6158 = vmatprep.mubr.bf16.mxu0 0
      %6159 = vmatmul.mubr.bf16.gmra.mrb[0].mxu0 %v2873
      %v6160 = vpop.f32.mrb[0].mxu0
      %v6161 = vadd.f32 0.0, %v6160
      %v6162 = vpop.f32.mrb[0].mxu0
      %v6163 = vpop.f32.mrb[0].mxu0
      %v6164 = vadd.f32 0.0, %v6163
      %v6165 = vpop.f32.mrb[0].mxu0
      %6166 = vmatprep.mubr.bf16.mxu0 0
      %6167 = vmatmul.mubr.bf16.gmra.mrb[0].mxu0 %v2881
      %v6168 = vpop.f32.mrb[0].mxu0
      %v6169 = vadd.f32 0.0, %v6168
      %v6170 = vpop.f32.mrb[0].mxu0
      %v6171 = vpop.f32.mrb[0].mxu0
      %v6172 = vadd.f32 0.0, %v6171
      %v6173 = vpop.f32.mrb[0].mxu0
      %6174 = vmatprep.mubr.bf16.mxu0 0
      %6175 = vmatmul.mubr.bf16.gmra.mrb[0].mxu0 %v2889
      %v6176 = vpop.f32.mrb[0].mxu0
      %v6177 = vadd.f32 0.0, %v6176
      %v6178 = vpop.f32.mrb[0].mxu0
      %v6179 = vpop.f32.mrb[0].mxu0
      %v6180 = vadd.f32 0.0, %v6179
      %v6181 = vpop.f32.mrb[0].mxu0
      %6182 = vmatprep.mubr.bf16.mxu0 0
      %6183 = vmatmul.mubr.bf16.gmra.mrb[0].mxu0 %v2897
      %v6184 = vpop.f32.mrb[0].mxu0
      %v6185 = vadd.f32 0.0, %v6184
      %v6186 = vpop.f32.mrb[0].mxu0
      %v6187 = vpop.f32.mrb[0].mxu0
      %v6188 = vadd.f32 0.0, %v6187
      %v6189 = vpop.f32.mrb[0].mxu0
      %6190 = vmatprep.mubr.bf16.mxu0 0
      %6191 = vmatmul.mubr.bf16.gmra.mrb[0].mxu0 %v2905
      %v6192 = vpop.f32.mrb[0].mxu0
      %v6193 = vadd.f32 0.0, %v6192
      %v6194 = vpop.f32.mrb[0].mxu0
      %v6195 = vpop.f32.mrb[0].mxu0
      %v6196 = vadd.f32 0.0, %v6195
      %v6197 = vpop.f32.mrb[0].mxu0
      %6198 = vmatprep.mubr.bf16.mxu0 0
      %6199 = vmatmul.mubr.bf16.gmra.mrb[0].mxu0 %v2913
      %v6200 = vpop.f32.mrb[0].mxu0
      %v6201 = vadd.f32 0.0, %v6200
      %v6202 = vpop.f32.mrb[0].mxu0
      %v6203 = vpop.f32.mrb[0].mxu0
      %v6204 = vadd.f32 0.0, %v6203
      %v6205 = vpop.f32.mrb[0].mxu0
      %6206 = vmatprep.mubr.bf16.mxu0 0
      %6207 = vmatmul.mubr.bf16.gmra.mrb[0].mxu0 %v2921
      %v6208 = vpop.f32.mrb[0].mxu0
      %v6209 = vadd.f32 0.0, %v6208
      %v6210 = vpop.f32.mrb[0].mxu0
      %v6211 = vpop.f32.mrb[0].mxu0
      %v6212 = vadd.f32 0.0, %v6211
      %v6213 = vpop.f32.mrb[0].mxu0
      %6214 = vmatprep.mubr.bf16.mxu0 0
      %6215 = vmatmul.mubr.bf16.gmra.mrb[0].mxu0 %v2929
      %v6216 = vpop.f32.mrb[0].mxu0
      %v6217 = vadd.f32 0.0, %v6216
      %v6218 = vpop.f32.mrb[0].mxu0
      %v6219 = vpop.f32.mrb[0].mxu0
      %v6220 = vadd.f32 0.0, %v6219
      %v6221 = vpop.f32.mrb[0].mxu0
      %6222 = vmatprep.mubr.bf16.mxu0 0
      %6223 = vmatmul.mubr.bf16.gmra.mrb[0].mxu0 %v2937
      %v6224 = vpop.f32.mrb[0].mxu0
      %v6225 = vadd.f32 0.0, %v6224
      %v6226 = vpop.f32.mrb[0].mxu0
      %v6227 = vpop.f32.mrb[0].mxu0
      %v6228 = vadd.f32 0.0, %v6227
      %v6229 = vpop.f32.mrb[0].mxu0
      %6230 = vmatprep.mubr.bf16.mxu0 0
      %6231 = vmatmul.mubr.bf16.gmra.mrb[0].mxu0 %v2945
      %v6232 = vpop.f32.mrb[0].mxu0
      %v6233 = vadd.f32 0.0, %v6232
      %v6234 = vpop.f32.mrb[0].mxu0
      %v6235 = vpop.f32.mrb[0].mxu0
      %v6236 = vadd.f32 0.0, %v6235
      %v6237 = vpop.f32.mrb[0].mxu0
      %6238 = vmatprep.mubr.bf16.mxu0 0
      %6239 = vmatmul.mubr.bf16.gmra.mrb[0].mxu0 %v2953
      %v6240 = vpop.f32.mrb[0].mxu0
      %v6241 = vadd.f32 0.0, %v6240
      %v6242 = vpop.f32.mrb[0].mxu0
      %v6243 = vpop.f32.mrb[0].mxu0
      %v6244 = vadd.f32 0.0, %v6243
      %v6245 = vpop.f32.mrb[0].mxu0
      %6246 = vmatprep.mubr.bf16.mxu0 0
      %6247 = vmatmul.mubr.bf16.gmra.mrb[0].mxu0 %v2961
      %v6248 = vpop.f32.mrb[0].mxu0
      %v6249 = vadd.f32 0.0, %v6248
      %v6250 = vpop.f32.mrb[0].mxu0
      %v6251 = vpop.f32.mrb[0].mxu0
      %v6252 = vadd.f32 0.0, %v6251
      %v6253 = vpop.f32.mrb[0].mxu0
      %6254 = vmatprep.mubr.bf16.mxu0 0
      %6255 = vmatmul.mubr.bf16.gmra.mrb[0].mxu0 %v2969
      %v6256 = vpop.f32.mrb[0].mxu0
      %v6257 = vadd.f32 0.0, %v6256
      %v6258 = vpop.f32.mrb[0].mxu0
      %v6259 = vpop.f32.mrb[0].mxu0
      %v6260 = vadd.f32 0.0, %v6259
      %v6261 = vpop.f32.mrb[0].mxu0
      %6262 = vmatprep.mubr.bf16.mxu0 0
      %6263 = vmatmul.mubr.bf16.gmra.mrb[0].mxu0 %v2977
      %v6264 = vpop.f32.mrb[0].mxu0
      %v6265 = vadd.f32 0.0, %v6264
      %v6266 = vpop.f32.mrb[0].mxu0
      %v6267 = vpop.f32.mrb[0].mxu0
      %v6268 = vadd.f32 0.0, %v6267
      %v6269 = vpop.f32.mrb[0].mxu0
      %6270 = vmatprep.mubr.bf16.mxu0 0
      %6271 = vmatmul.mubr.bf16.gmra.mrb[0].mxu0 %v2985
      %v6272 = vpop.f32.mrb[0].mxu0
      %v6273 = vadd.f32 0.0, %v6272
      %v6274 = vpop.f32.mrb[0].mxu0
      %v6275 = vpop.f32.mrb[0].mxu0
      %v6276 = vadd.f32 0.0, %v6275
      %v6277 = vpop.f32.mrb[0].mxu0
      %6278 = vmatprep.mubr.bf16.mxu0 0
      %6279 = vmatmul.mubr.bf16.gmra.mrb[0].mxu0 %v2993
      %v6280 = vpop.f32.mrb[0].mxu0
      %v6281 = vadd.f32 0.0, %v6280
      %v6282 = vpop.f32.mrb[0].mxu0
      %v6283 = vpop.f32.mrb[0].mxu0
      %v6284 = vadd.f32 0.0, %v6283
      %v6285 = vpop.f32.mrb[0].mxu0
      %6286 = vmatprep.mubr.bf16.mxu0 0
      %6287 = vmatmul.mubr.bf16.gmra.mrb[0].mxu0 %v4691
      %v6288 = vpop.f32.mrb[0].mxu0
      %v6289 = vadd.f32 0.0, %v6288
      %v6290 = vpop.f32.mrb[0].mxu0
      %v6291 = vpop.f32.mrb[0].mxu0
      %v6292 = vadd.f32 0.0, %v6291
      %v6293 = vpop.f32.mrb[0].mxu0
      %6294 = vmatprep.mubr.bf16.mxu0 0
      %6295 = vmatmul.mubr.bf16.gmra.mrb[0].mxu0 %v4699
      %v6296 = vpop.f32.mrb[0].mxu0
      %v6297 = vadd.f32 0.0, %v6296
      %v6298 = vpop.f32.mrb[0].mxu0
      %v6299 = vpop.f32.mrb[0].mxu0
      %v6300 = vadd.f32 0.0, %v6299
      %v6301 = vpop.f32.mrb[0].mxu0
      %6302 = vmatprep.mubr.bf16.mxu0 0
      %6303 = vmatmul.mubr.bf16.gmra.mrb[0].mxu0 %v5971
      %v6304 = vpop.f32.mrb[0].mxu0
      %v6305 = vadd.f32 0.0, %v6304
      %v6306 = vpop.f32.mrb[0].mxu0
      %v6307 = vpop.f32.mrb[0].mxu0
      %v6308 = vadd.f32 0.0, %v6307
      %v6309 = vpop.f32.mrb[0].mxu0
      %6310 = vmatprep.mubr.bf16.mxu0 0
      %6311 = vmatmul.mubr.bf16.gmra.mrb[0].mxu0 %v5979
      %v6312 = vpop.f32.mrb[0].mxu0
      %v6313 = vadd.f32 0.0, %v6312
      %v6314 = vpop.f32.mrb[0].mxu0
      %v6315 = vpop.f32.mrb[0].mxu0
      %v6316 = vadd.f32 0.0, %v6315
      %v6317 = vpop.f32.mrb[0].mxu0
      %6318 = vdwg.mxu0
      %v6319 = vadd.f32 %v5883, %v6065
      %v6320 = vadd.f32 %v5884, %v6068
      %v6321 = vadd.f32 %v5885, %v6073
      %v6322 = vadd.f32 %v5886, %v6076
      %v6323 = vadd.f32 %v5887, %v6081
      %v6324 = vadd.f32 %v5888, %v6084
      %v6325 = vadd.f32 %v5889, %v6089
      %v6326 = vadd.f32 %v5890, %v6092
      %v6327 = vadd.f32 %v5891, %v6097
      %v6328 = vadd.f32 %v5892, %v6100
      %v6329 = vadd.f32 %v5893, %v6105
      %v6330 = vadd.f32 %v5894, %v6108
      %v6331 = vadd.f32 %v5895, %v6113
      %v6332 = vadd.f32 %v5896, %v6116
      %v6333 = vadd.f32 %v5897, %v6121
      %v6334 = vadd.f32 %v5898, %v6124
      %v6335 = vadd.f32 %v5899, %v6129
      %v6336 = vadd.f32 %v5900, %v6132
      %v6337 = vadd.f32 %v5901, %v6137
      %v6338 = vadd.f32 %v5902, %v6140
      %v6339 = vadd.f32 %v5903, %v6145
      %v6340 = vadd.f32 %v5904, %v6148
      %v6341 = vadd.f32 %v5905, %v6153
      %v6342 = vadd.f32 %v5906, %v6156
      %v6343 = vadd.f32 %v5907, %v6161
      %v6344 = vadd.f32 %v5908, %v6164
      %v6345 = vadd.f32 %v5909, %v6169
      %v6346 = vadd.f32 %v5910, %v6172
      %v6347 = vadd.f32 %v5911, %v6177
      %v6348 = vadd.f32 %v5912, %v6180
      %v6349 = vadd.f32 %v5913, %v6185
      %v6350 = vadd.f32 %v5914, %v6188
      %v6351 = vadd.f32 %v5915, %v6193
      %v6352 = vadd.f32 %v5916, %v6196
      %v6353 = vadd.f32 %v5917, %v6201
      %v6354 = vadd.f32 %v5918, %v6204
      %v6355 = vadd.f32 %v5919, %v6209
      %v6356 = vadd.f32 %v5920, %v6212
      %v6357 = vadd.f32 %v5921, %v6217
      %v6358 = vadd.f32 %v5922, %v6220
      %v6359 = vadd.f32 %v5923, %v6225
      %v6360 = vadd.f32 %v5924, %v6228
      %v6361 = vadd.f32 %v5925, %v6233
      %v6362 = vadd.f32 %v5926, %v6236
      %v6363 = vadd.f32 %v5927, %v6241
      %v6364 = vadd.f32 %v5928, %v6244
      %v6365 = vadd.f32 %v5929, %v6249
      %v6366 = vadd.f32 %v5930, %v6252
      %v6367 = vadd.f32 %v5931, %v6257
      %v6368 = vadd.f32 %v5932, %v6260
      %v6369 = vadd.f32 %v5933, %v6265
      %v6370 = vadd.f32 %v5934, %v6268
      %v6371 = vadd.f32 %v5935, %v6273
      %v6372 = vadd.f32 %v5936, %v6276
      %v6373 = vadd.f32 %v5937, %v6281
      %v6374 = vadd.f32 %v5938, %v6284
      %v6375 = vadd.f32 %v5939, %v6289
      %v6376 = vadd.f32 %v5940, %v6292
      %v6377 = vadd.f32 %v5941, %v6297
      %v6378 = vadd.f32 %v5942, %v6300
      %v6379 = vadd.f32 %v5943, %v6305
      %v6380 = vadd.f32 %v5944, %v6308
      %v6381 = vadd.f32 %v5945, %v6313
      %v6382 = vadd.f32 %v5946, %v6316
      %s6383 = scalar_lea.vmem %s3, 512
      %v6384 = vld [vmem:[%s6383] sm:$0xf]
      %v6385 = vld [vmem:[%s6383 + $0x4] sm:$0xf]
      %v6386 = vld [vmem:[%s6383 + $0x8] sm:$0xf]
      %v6387 = vld [vmem:[%s6383 + $0xc] sm:$0xf]
      %v6388 = vld [vmem:[%s6383 + $0x10] sm:$0xf]
      %v6389 = vld [vmem:[%s6383 + $0x14] sm:$0xf]
      %v6390 = vld [vmem:[%s6383 + $0x18] sm:$0xf]
      %v6391 = vld [vmem:[%s6383 + $0x1c] sm:$0xf]
      %v6392 = vld [vmem:[%s6383 + $0x20] sm:$0xf]
      %v6393 = vld [vmem:[%s6383 + $0x24] sm:$0xf]
      %v6394 = vld [vmem:[%s6383 + $0x28] sm:$0xf]
      %v6395 = vld [vmem:[%s6383 + $0x2c] sm:$0xf]
      %v6396 = vld [vmem:[%s6383 + $0x30] sm:$0xf]
      %v6397 = vld [vmem:[%s6383 + $0x34] sm:$0xf]
      %v6398 = vld [vmem:[%s6383 + $0x38] sm:$0xf]
      %v6399 = vld [vmem:[%s6383 + $0x3c] sm:$0xf]
      %v6402 = vrot.slane %v2698, 1
      %v6403 = vsel %vm3750, %v5124, %v6402
      %v6404 = vrot.slane %v2699, 1
      %v6405 = vsel %vm3750, %v6402, %v6404
      %v6424 = vunpack.c.l.b16 %v6384
      %v6425 = vunpack.c.l.b16 %v6385
      %v6426 = vunpack.c.l.b16 %v6386
      %v6427 = vunpack.c.l.b16 %v6387
      %v6428 = vunpack.c.l.b16 %v6388
      %v6429 = vunpack.c.l.b16 %v6389
      %v6430 = vunpack.c.l.b16 %v6390
      %v6431 = vunpack.c.l.b16 %v6391
      %v6432 = vunpack.c.l.b16 %v6392
      %v6433 = vunpack.c.l.b16 %v6393
      %v6434 = vunpack.c.l.b16 %v6394
      %v6435 = vunpack.c.l.b16 %v6395
      %v6436 = vunpack.c.l.b16 %v6396
      %v6437 = vunpack.c.l.b16 %v6397
      %v6438 = vunpack.c.l.b16 %v6398
      %v6439 = vunpack.c.l.b16 %v6399
      %v6440 = vpack.c.b16 %v6425, %v6424
      %v6441 = vpack.c.b16 %v6427, %v6426
      %v6442 = vpack.c.b16 %v6429, %v6428
      %v6443 = vpack.c.b16 %v6431, %v6430
      %v6444 = vpack.c.b16 %v6433, %v6432
      %v6445 = vpack.c.b16 %v6435, %v6434
      %v6446 = vpack.c.b16 %v6437, %v6436
      %v6447 = vpack.c.b16 %v6439, %v6438
      %6456 = vmatprep.subr.bf16.mxu0 0
      %6457 = vmatpush1.bf16.msra.mxu0 %v6440
      %6458 = vmatprep.subr.bf16.mxu0 0
      %6459 = vmatpush1.bf16.msra.mxu0 %v6441
      %6460 = vmatprep.subr.bf16.mxu0 0
      %6461 = vmatpush1.bf16.msra.mxu0 %v6442
      %6462 = vmatprep.subr.bf16.mxu0 0
      %6463 = vmatpush1.bf16.msra.mxu0 %v6443
      %6464 = vmatprep.subr.bf16.mxu0 0
      %6465 = vmatpush1.bf16.msra.mxu0 %v6444
      %6466 = vmatprep.subr.bf16.mxu0 0
      %6467 = vmatpush1.bf16.msra.mxu0 %v6445
      %6468 = vmatprep.subr.bf16.mxu0 0
      %6469 = vmatpush1.bf16.msra.mxu0 %v6446
      %6470 = vmatprep.subr.bf16.mxu0 0
      %6471 = vmatpush1.bf16.msra.mxu0 %v6447
      %6472 = vmatprep.subr.bf16.mxu0 0
      %6473 = vmatpush1.bf16.msra.mxu0 0
      %6474 = vmatprep.subr.bf16.mxu0 0
      %6475 = vmatpush1.bf16.msra.mxu0 0
      %6476 = vmatprep.subr.bf16.mxu0 0
      %6477 = vmatpush1.bf16.msra.mxu0 0
      %6478 = vmatprep.subr.bf16.mxu0 0
      %6479 = vmatpush1.bf16.msra.mxu0 0
      %6480 = vmatprep.subr.bf16.mxu0 0
      %6481 = vmatpush1.bf16.msra.mxu0 0
      %6482 = vmatprep.subr.bf16.mxu0 0
      %6483 = vmatpush1.bf16.msra.mxu0 0
      %6484 = vmatprep.subr.bf16.mxu0 0
      %6485 = vmatpush1.bf16.msra.mxu0 0
      %6486 = vmatprep.subr.bf16.mxu0 0
      %6487 = vmatpush1.bf16.msra.mxu0 0
      %6488 = vmatprep.mubr.bf16.mxu0 0
      %6489 = vmatmul.mubr.bf16.gmra.mrb[0].mxu0 %v3761
      %v6490 = vpop.f32.mrb[0].mxu0
      %v6491 = vadd.f32 0.0, %v6490
      %v6492 = vpop.f32.mrb[0].mxu0
      %v6493 = vpop.f32.mrb[0].mxu0
      %v6494 = vadd.f32 0.0, %v6493
      %v6495 = vpop.f32.mrb[0].mxu0
      %6496 = vmatprep.mubr.bf16.mxu0 0
      %6497 = vmatmul.mubr.bf16.gmra.mrb[0].mxu0 %v3763
      %v6498 = vpop.f32.mrb[0].mxu0
      %v6499 = vadd.f32 0.0, %v6498
      %v6500 = vpop.f32.mrb[0].mxu0
      %v6501 = vpop.f32.mrb[0].mxu0
      %v6502 = vadd.f32 0.0, %v6501
      %v6503 = vpop.f32.mrb[0].mxu0
      %6504 = vmatprep.mubr.bf16.mxu0 0
      %6505 = vmatmul.mubr.bf16.gmra.mrb[0].mxu0 %v3765
      %v6506 = vpop.f32.mrb[0].mxu0
      %v6507 = vadd.f32 0.0, %v6506
      %v6508 = vpop.f32.mrb[0].mxu0
      %v6509 = vpop.f32.mrb[0].mxu0
      %v6510 = vadd.f32 0.0, %v6509
      %v6511 = vpop.f32.mrb[0].mxu0
      %6512 = vmatprep.mubr.bf16.mxu0 0
      %6513 = vmatmul.mubr.bf16.gmra.mrb[0].mxu0 %v3767
      %v6514 = vpop.f32.mrb[0].mxu0
      %v6515 = vadd.f32 0.0, %v6514
      %v6516 = vpop.f32.mrb[0].mxu0
      %v6517 = vpop.f32.mrb[0].mxu0
      %v6518 = vadd.f32 0.0, %v6517
      %v6519 = vpop.f32.mrb[0].mxu0
      %6520 = vmatprep.mubr.bf16.mxu0 0
      %6521 = vmatmul.mubr.bf16.gmra.mrb[0].mxu0 %v3769
      %v6522 = vpop.f32.mrb[0].mxu0
      %v6523 = vadd.f32 0.0, %v6522
      %v6524 = vpop.f32.mrb[0].mxu0
      %v6525 = vpop.f32.mrb[0].mxu0
      %v6526 = vadd.f32 0.0, %v6525
      %v6527 = vpop.f32.mrb[0].mxu0
      %6528 = vmatprep.mubr.bf16.mxu0 0
      %6529 = vmatmul.mubr.bf16.gmra.mrb[0].mxu0 %v3771
      %v6530 = vpop.f32.mrb[0].mxu0
      %v6531 = vadd.f32 0.0, %v6530
      %v6532 = vpop.f32.mrb[0].mxu0
      %v6533 = vpop.f32.mrb[0].mxu0
      %v6534 = vadd.f32 0.0, %v6533
      %v6535 = vpop.f32.mrb[0].mxu0
      %6536 = vmatprep.mubr.bf16.mxu0 0
      %6537 = vmatmul.mubr.bf16.gmra.mrb[0].mxu0 %v3773
      %v6538 = vpop.f32.mrb[0].mxu0
      %v6539 = vadd.f32 0.0, %v6538
      %v6540 = vpop.f32.mrb[0].mxu0
      %v6541 = vpop.f32.mrb[0].mxu0
      %v6542 = vadd.f32 0.0, %v6541
      %v6543 = vpop.f32.mrb[0].mxu0
      %6544 = vmatprep.mubr.bf16.mxu0 0
      %6545 = vmatmul.mubr.bf16.gmra.mrb[0].mxu0 %v3775
      %v6546 = vpop.f32.mrb[0].mxu0
      %v6547 = vadd.f32 0.0, %v6546
      %v6548 = vpop.f32.mrb[0].mxu0
      %v6549 = vpop.f32.mrb[0].mxu0
      %v6550 = vadd.f32 0.0, %v6549
      %v6551 = vpop.f32.mrb[0].mxu0
      %6552 = vmatprep.mubr.bf16.mxu0 0
      %6553 = vmatmul.mubr.bf16.gmra.mrb[0].mxu0 %v3777
      %v6554 = vpop.f32.mrb[0].mxu0
      %v6555 = vadd.f32 0.0, %v6554
      %v6556 = vpop.f32.mrb[0].mxu0
      %v6557 = vpop.f32.mrb[0].mxu0
      %v6558 = vadd.f32 0.0, %v6557
      %v6559 = vpop.f32.mrb[0].mxu0
      %6560 = vmatprep.mubr.bf16.mxu0 0
      %6561 = vmatmul.mubr.bf16.gmra.mrb[0].mxu0 %v3779
      %v6562 = vpop.f32.mrb[0].mxu0
      %v6563 = vadd.f32 0.0, %v6562
      %v6564 = vpop.f32.mrb[0].mxu0
      %v6565 = vpop.f32.mrb[0].mxu0
      %v6566 = vadd.f32 0.0, %v6565
      %v6567 = vpop.f32.mrb[0].mxu0
      %6568 = vmatprep.mubr.bf16.mxu0 0
      %6569 = vmatmul.mubr.bf16.gmra.mrb[0].mxu0 %v3781
      %v6570 = vpop.f32.mrb[0].mxu0
      %v6571 = vadd.f32 0.0, %v6570
      %v6572 = vpop.f32.mrb[0].mxu0
      %v6573 = vpop.f32.mrb[0].mxu0
      %v6574 = vadd.f32 0.0, %v6573
      %v6575 = vpop.f32.mrb[0].mxu0
      %6576 = vmatprep.mubr.bf16.mxu0 0
      %6577 = vmatmul.mubr.bf16.gmra.mrb[0].mxu0 %v3783
      %v6578 = vpop.f32.mrb[0].mxu0
      %v6579 = vadd.f32 0.0, %v6578
      %v6580 = vpop.f32.mrb[0].mxu0
      %v6581 = vpop.f32.mrb[0].mxu0
      %v6582 = vadd.f32 0.0, %v6581
      %v6583 = vpop.f32.mrb[0].mxu0
      %6584 = vmatprep.mubr.bf16.mxu0 0
      %6585 = vmatmul.mubr.bf16.gmra.mrb[0].mxu0 %v3785
      %v6586 = vpop.f32.mrb[0].mxu0
      %v6587 = vadd.f32 0.0, %v6586
      %v6588 = vpop.f32.mrb[0].mxu0
      %v6589 = vpop.f32.mrb[0].mxu0
      %v6590 = vadd.f32 0.0, %v6589
      %v6591 = vpop.f32.mrb[0].mxu0
      %6592 = vmatprep.mubr.bf16.mxu0 0
      %6593 = vmatmul.mubr.bf16.gmra.mrb[0].mxu0 %v3787
      %v6594 = vpop.f32.mrb[0].mxu0
      %v6595 = vadd.f32 0.0, %v6594
      %v6596 = vpop.f32.mrb[0].mxu0
      %v6597 = vpop.f32.mrb[0].mxu0
      %v6598 = vadd.f32 0.0, %v6597
      %v6599 = vpop.f32.mrb[0].mxu0
      %6600 = vmatprep.mubr.bf16.mxu0 0
      %6601 = vmatmul.mubr.bf16.gmra.mrb[0].mxu0 %v3789
      %v6602 = vpop.f32.mrb[0].mxu0
      %v6603 = vadd.f32 0.0, %v6602
      %v6604 = vpop.f32.mrb[0].mxu0
      %v6605 = vpop.f32.mrb[0].mxu0
      %v6606 = vadd.f32 0.0, %v6605
      %v6607 = vpop.f32.mrb[0].mxu0
      %6608 = vmatprep.mubr.bf16.mxu0 0
      %6609 = vmatmul.mubr.bf16.gmra.mrb[0].mxu0 %v3791
      %v6610 = vpop.f32.mrb[0].mxu0
      %v6611 = vadd.f32 0.0, %v6610
      %v6612 = vpop.f32.mrb[0].mxu0
      %v6613 = vpop.f32.mrb[0].mxu0
      %v6614 = vadd.f32 0.0, %v6613
      %v6615 = vpop.f32.mrb[0].mxu0
      %6616 = vmatprep.mubr.bf16.mxu0 0
      %6617 = vmatmul.mubr.bf16.gmra.mrb[0].mxu0 %v3793
      %v6618 = vpop.f32.mrb[0].mxu0
      %v6619 = vadd.f32 0.0, %v6618
      %v6620 = vpop.f32.mrb[0].mxu0
      %v6621 = vpop.f32.mrb[0].mxu0
      %v6622 = vadd.f32 0.0, %v6621
      %v6623 = vpop.f32.mrb[0].mxu0
      %6624 = vmatprep.mubr.bf16.mxu0 0
      %6625 = vmatmul.mubr.bf16.gmra.mrb[0].mxu0 %v3795
      %v6626 = vpop.f32.mrb[0].mxu0
      %v6627 = vadd.f32 0.0, %v6626
      %v6628 = vpop.f32.mrb[0].mxu0
      %v6629 = vpop.f32.mrb[0].mxu0
      %v6630 = vadd.f32 0.0, %v6629
      %v6631 = vpop.f32.mrb[0].mxu0
      %6632 = vmatprep.mubr.bf16.mxu0 0
      %6633 = vmatmul.mubr.bf16.gmra.mrb[0].mxu0 %v3797
      %v6634 = vpop.f32.mrb[0].mxu0
      %v6635 = vadd.f32 0.0, %v6634
      %v6636 = vpop.f32.mrb[0].mxu0
      %v6637 = vpop.f32.mrb[0].mxu0
      %v6638 = vadd.f32 0.0, %v6637
      %v6639 = vpop.f32.mrb[0].mxu0
      %6640 = vmatprep.mubr.bf16.mxu0 0
      %6641 = vmatmul.mubr.bf16.gmra.mrb[0].mxu0 %v3799
      %v6642 = vpop.f32.mrb[0].mxu0
      %v6643 = vadd.f32 0.0, %v6642
      %v6644 = vpop.f32.mrb[0].mxu0
      %v6645 = vpop.f32.mrb[0].mxu0
      %v6646 = vadd.f32 0.0, %v6645
      %v6647 = vpop.f32.mrb[0].mxu0
      %6648 = vmatprep.mubr.bf16.mxu0 0
      %6649 = vmatmul.mubr.bf16.gmra.mrb[0].mxu0 %v3801
      %v6650 = vpop.f32.mrb[0].mxu0
      %v6651 = vadd.f32 0.0, %v6650
      %v6652 = vpop.f32.mrb[0].mxu0
      %v6653 = vpop.f32.mrb[0].mxu0
      %v6654 = vadd.f32 0.0, %v6653
      %v6655 = vpop.f32.mrb[0].mxu0
      %6656 = vmatprep.mubr.bf16.mxu0 0
      %6657 = vmatmul.mubr.bf16.gmra.mrb[0].mxu0 %v3803
      %v6658 = vpop.f32.mrb[0].mxu0
      %v6659 = vadd.f32 0.0, %v6658
      %v6660 = vpop.f32.mrb[0].mxu0
      %v6661 = vpop.f32.mrb[0].mxu0
      %v6662 = vadd.f32 0.0, %v6661
      %v6663 = vpop.f32.mrb[0].mxu0
      %6664 = vmatprep.mubr.bf16.mxu0 0
      %6665 = vmatmul.mubr.bf16.gmra.mrb[0].mxu0 %v3805
      %v6666 = vpop.f32.mrb[0].mxu0
      %v6667 = vadd.f32 0.0, %v6666
      %v6668 = vpop.f32.mrb[0].mxu0
      %v6669 = vpop.f32.mrb[0].mxu0
      %v6670 = vadd.f32 0.0, %v6669
      %v6671 = vpop.f32.mrb[0].mxu0
      %6672 = vmatprep.mubr.bf16.mxu0 0
      %6673 = vmatmul.mubr.bf16.gmra.mrb[0].mxu0 %v3807
      %v6674 = vpop.f32.mrb[0].mxu0
      %v6675 = vadd.f32 0.0, %v6674
      %v6676 = vpop.f32.mrb[0].mxu0
      %v6677 = vpop.f32.mrb[0].mxu0
      %v6678 = vadd.f32 0.0, %v6677
      %v6679 = vpop.f32.mrb[0].mxu0
      %6680 = vmatprep.mubr.bf16.mxu0 0
      %6681 = vmatmul.mubr.bf16.gmra.mrb[0].mxu0 %v3809
      %v6682 = vpop.f32.mrb[0].mxu0
      %v6683 = vadd.f32 0.0, %v6682
      %v6684 = vpop.f32.mrb[0].mxu0
      %v6685 = vpop.f32.mrb[0].mxu0
      %v6686 = vadd.f32 0.0, %v6685
      %v6687 = vpop.f32.mrb[0].mxu0
      %6688 = vmatprep.mubr.bf16.mxu0 0
      %6689 = vmatmul.mubr.bf16.gmra.mrb[0].mxu0 %v3811
      %v6690 = vpop.f32.mrb[0].mxu0
      %v6691 = vadd.f32 0.0, %v6690
      %v6692 = vpop.f32.mrb[0].mxu0
      %v6693 = vpop.f32.mrb[0].mxu0
      %v6694 = vadd.f32 0.0, %v6693
      %v6695 = vpop.f32.mrb[0].mxu0
      %6696 = vmatprep.mubr.bf16.mxu0 0
      %6697 = vmatmul.mubr.bf16.gmra.mrb[0].mxu0 %v3813
      %v6698 = vpop.f32.mrb[0].mxu0
      %v6699 = vadd.f32 0.0, %v6698
      %v6700 = vpop.f32.mrb[0].mxu0
      %v6701 = vpop.f32.mrb[0].mxu0
      %v6702 = vadd.f32 0.0, %v6701
      %v6703 = vpop.f32.mrb[0].mxu0
      %6704 = vmatprep.mubr.bf16.mxu0 0
      %6705 = vmatmul.mubr.bf16.gmra.mrb[0].mxu0 %v3815
      %v6706 = vpop.f32.mrb[0].mxu0
      %v6707 = vadd.f32 0.0, %v6706
      %v6708 = vpop.f32.mrb[0].mxu0
      %v6709 = vpop.f32.mrb[0].mxu0
      %v6710 = vadd.f32 0.0, %v6709
      %v6711 = vpop.f32.mrb[0].mxu0
      %6712 = vmatprep.mubr.bf16.mxu0 0
      %6713 = vmatmul.mubr.bf16.gmra.mrb[0].mxu0 %v5123
      %v6714 = vpop.f32.mrb[0].mxu0
      %v6715 = vadd.f32 0.0, %v6714
      %v6716 = vpop.f32.mrb[0].mxu0
      %v6717 = vpop.f32.mrb[0].mxu0
      %v6718 = vadd.f32 0.0, %v6717
      %v6719 = vpop.f32.mrb[0].mxu0
      %6720 = vmatprep.mubr.bf16.mxu0 0
      %6721 = vmatmul.mubr.bf16.gmra.mrb[0].mxu0 %v5125
      %v6722 = vpop.f32.mrb[0].mxu0
      %v6723 = vadd.f32 0.0, %v6722
      %v6724 = vpop.f32.mrb[0].mxu0
      %v6725 = vpop.f32.mrb[0].mxu0
      %v6726 = vadd.f32 0.0, %v6725
      %v6727 = vpop.f32.mrb[0].mxu0
      %6728 = vmatprep.mubr.bf16.mxu0 0
      %6729 = vmatmul.mubr.bf16.gmra.mrb[0].mxu0 %v6403
      %v6730 = vpop.f32.mrb[0].mxu0
      %v6731 = vadd.f32 0.0, %v6730
      %v6732 = vpop.f32.mrb[0].mxu0
      %v6733 = vpop.f32.mrb[0].mxu0
      %v6734 = vadd.f32 0.0, %v6733
      %v6735 = vpop.f32.mrb[0].mxu0
      %6736 = vmatprep.mubr.bf16.mxu0 0
      %6737 = vmatmul.mubr.bf16.gmra.mrb[0].mxu0 %v6405
      %v6738 = vpop.f32.mrb[0].mxu0
      %v6739 = vadd.f32 0.0, %v6738
      %v6740 = vpop.f32.mrb[0].mxu0
      %v6741 = vpop.f32.mrb[0].mxu0
      %v6742 = vadd.f32 0.0, %v6741
      %v6743 = vpop.f32.mrb[0].mxu0
      %6744 = vdwg.mxu0
      %v6745 = vadd.f32 %v6319, %v6491
      %v6746 = vadd.f32 %v6320, %v6494
      %v6747 = vadd.f32 %v6321, %v6499
      %v6748 = vadd.f32 %v6322, %v6502
      %v6749 = vadd.f32 %v6323, %v6507
      %v6750 = vadd.f32 %v6324, %v6510
      %v6751 = vadd.f32 %v6325, %v6515
      %v6752 = vadd.f32 %v6326, %v6518
      %v6753 = vadd.f32 %v6327, %v6523
      %v6754 = vadd.f32 %v6328, %v6526
      %v6755 = vadd.f32 %v6329, %v6531
      %v6756 = vadd.f32 %v6330, %v6534
      %v6757 = vadd.f32 %v6331, %v6539
      %v6758 = vadd.f32 %v6332, %v6542
      %v6759 = vadd.f32 %v6333, %v6547
      %v6760 = vadd.f32 %v6334, %v6550
      %v6761 = vadd.f32 %v6335, %v6555
      %v6762 = vadd.f32 %v6336, %v6558
      %v6763 = vadd.f32 %v6337, %v6563
      %v6764 = vadd.f32 %v6338, %v6566
      %v6765 = vadd.f32 %v6339, %v6571
      %v6766 = vadd.f32 %v6340, %v6574
      %v6767 = vadd.f32 %v6341, %v6579
      %v6768 = vadd.f32 %v6342, %v6582
      %v6769 = vadd.f32 %v6343, %v6587
      %v6770 = vadd.f32 %v6344, %v6590
      %v6771 = vadd.f32 %v6345, %v6595
      %v6772 = vadd.f32 %v6346, %v6598
      %v6773 = vadd.f32 %v6347, %v6603
      %v6774 = vadd.f32 %v6348, %v6606
      %v6775 = vadd.f32 %v6349, %v6611
      %v6776 = vadd.f32 %v6350, %v6614
      %v6777 = vadd.f32 %v6351, %v6619
      %v6778 = vadd.f32 %v6352, %v6622
      %v6779 = vadd.f32 %v6353, %v6627
      %v6780 = vadd.f32 %v6354, %v6630
      %v6781 = vadd.f32 %v6355, %v6635
      %v6782 = vadd.f32 %v6356, %v6638
      %v6783 = vadd.f32 %v6357, %v6643
      %v6784 = vadd.f32 %v6358, %v6646
      %v6785 = vadd.f32 %v6359, %v6651
      %v6786 = vadd.f32 %v6360, %v6654
      %v6787 = vadd.f32 %v6361, %v6659
      %v6788 = vadd.f32 %v6362, %v6662
      %v6789 = vadd.f32 %v6363, %v6667
      %v6790 = vadd.f32 %v6364, %v6670
      %v6791 = vadd.f32 %v6365, %v6675
      %v6792 = vadd.f32 %v6366, %v6678
      %v6793 = vadd.f32 %v6367, %v6683
      %v6794 = vadd.f32 %v6368, %v6686
      %v6795 = vadd.f32 %v6369, %v6691
      %v6796 = vadd.f32 %v6370, %v6694
      %v6797 = vadd.f32 %v6371, %v6699
      %v6798 = vadd.f32 %v6372, %v6702
      %v6799 = vadd.f32 %v6373, %v6707
      %v6800 = vadd.f32 %v6374, %v6710
      %v6801 = vadd.f32 %v6375, %v6715
      %v6802 = vadd.f32 %v6376, %v6718
      %v6803 = vadd.f32 %v6377, %v6723
      %v6804 = vadd.f32 %v6378, %v6726
      %v6805 = vadd.f32 %v6379, %v6731
      %v6806 = vadd.f32 %v6380, %v6734
      %v6807 = vadd.f32 %v6381, %v6739
      %v6808 = vadd.f32 %v6382, %v6742
      %6809 = vst [vmem:[%s177] sm:$0xff] %v6745
      %6810 = vst [vmem:[%s177 + $0x8] sm:$0xff] %v6746
      %6811 = vst [vmem:[%s177 + $0x10] sm:$0xff] %v6747
      %6812 = vst [vmem:[%s177 + $0x18] sm:$0xff] %v6748
      %6813 = vst [vmem:[%s177 + $0x20] sm:$0xff] %v6749
      %6814 = vst [vmem:[%s177 + $0x28] sm:$0xff] %v6750
      %6815 = vst [vmem:[%s177 + $0x30] sm:$0xff] %v6751
      %6816 = vst [vmem:[%s177 + $0x38] sm:$0xff] %v6752
      %6817 = vst [vmem:[%s177 + $0x40] sm:$0xff] %v6753
      %6818 = vst [vmem:[%s177 + $0x48] sm:$0xff] %v6754
      %6819 = vst [vmem:[%s177 + $0x50] sm:$0xff] %v6755
      %6820 = vst [vmem:[%s177 + $0x58] sm:$0xff] %v6756
      %6821 = vst [vmem:[%s177 + $0x60] sm:$0xff] %v6757
      %6822 = vst [vmem:[%s177 + $0x68] sm:$0xff] %v6758
      %6823 = vst [vmem:[%s177 + $0x70] sm:$0xff] %v6759
      %6824 = vst [vmem:[%s177 + $0x78] sm:$0xff] %v6760
      %6825 = vst [vmem:[%s177 + $0x80] sm:$0xff] %v6761
      %6826 = vst [vmem:[%s177 + $0x88] sm:$0xff] %v6762
      %6827 = vst [vmem:[%s177 + $0x90] sm:$0xff] %v6763
      %6828 = vst [vmem:[%s177 + $0x98] sm:$0xff] %v6764
      %6829 = vst [vmem:[%s177 + $0xa0] sm:$0xff] %v6765
      %6830 = vst [vmem:[%s177 + $0xa8] sm:$0xff] %v6766
      %6831 = vst [vmem:[%s177 + $0xb0] sm:$0xff] %v6767
      %6832 = vst [vmem:[%s177 + $0xb8] sm:$0xff] %v6768
      %6833 = vst [vmem:[%s177 + $0xc0] sm:$0xff] %v6769
      %6834 = vst [vmem:[%s177 + $0xc8] sm:$0xff] %v6770
      %6835 = vst [vmem:[%s177 + $0xd0] sm:$0xff] %v6771
      %6836 = vst [vmem:[%s177 + $0xd8] sm:$0xff] %v6772
      %6837 = vst [vmem:[%s177 + $0xe0] sm:$0xff] %v6773
      %6838 = vst [vmem:[%s177 + $0xe8] sm:$0xff] %v6774
      %6839 = vst [vmem:[%s177 + $0xf0] sm:$0xff] %v6775
      %6840 = vst [vmem:[%s177 + $0xf8] sm:$0xff] %v6776
      %6841 = vst [vmem:[%s177 + $0x100] sm:$0xff] %v6777
      %6842 = vst [vmem:[%s177 + $0x108] sm:$0xff] %v6778
      %6843 = vst [vmem:[%s177 + $0x110] sm:$0xff] %v6779
      %6844 = vst [vmem:[%s177 + $0x118] sm:$0xff] %v6780
      %6845 = vst [vmem:[%s177 + $0x120] sm:$0xff] %v6781
      %6846 = vst [vmem:[%s177 + $0x128] sm:$0xff] %v6782
      %6847 = vst [vmem:[%s177 + $0x130] sm:$0xff] %v6783
      %6848 = vst [vmem:[%s177 + $0x138] sm:$0xff] %v6784
      %6849 = vst [vmem:[%s177 + $0x140] sm:$0xff] %v6785
      %6850 = vst [vmem:[%s177 + $0x148] sm:$0xff] %v6786
      %6851 = vst [vmem:[%s177 + $0x150] sm:$0xff] %v6787
      %6852 = vst [vmem:[%s177 + $0x158] sm:$0xff] %v6788
      %6853 = vst [vmem:[%s177 + $0x160] sm:$0xff] %v6789
      %6854 = vst [vmem:[%s177 + $0x168] sm:$0xff] %v6790
      %6855 = vst [vmem:[%s177 + $0x170] sm:$0xff] %v6791
      %6856 = vst [vmem:[%s177 + $0x178] sm:$0xff] %v6792
      %6857 = vst [vmem:[%s177 + $0x180] sm:$0xff] %v6793
      %6858 = vst [vmem:[%s177 + $0x188] sm:$0xff] %v6794
      %6859 = vst [vmem:[%s177 + $0x190] sm:$0xff] %v6795
      %6860 = vst [vmem:[%s177 + $0x198] sm:$0xff] %v6796
      %6861 = vst [vmem:[%s177 + $0x1a0] sm:$0xff] %v6797
      %6862 = vst [vmem:[%s177 + $0x1a8] sm:$0xff] %v6798
      %6863 = vst [vmem:[%s177 + $0x1b0] sm:$0xff] %v6799
      %6864 = vst [vmem:[%s177 + $0x1b8] sm:$0xff] %v6800
      %6865 = vst [vmem:[%s177 + $0x1c0] sm:$0xff] %v6801
      %6866 = vst [vmem:[%s177 + $0x1c8] sm:$0xff] %v6802
      %6867 = vst [vmem:[%s177 + $0x1d0] sm:$0xff] %v6803
      %6868 = vst [vmem:[%s177 + $0x1d8] sm:$0xff] %v6804
      %6869 = vst [vmem:[%s177 + $0x1e0] sm:$0xff] %v6805
      %6870 = vst [vmem:[%s177 + $0x1e8] sm:$0xff] %v6806
      %6871 = vst [vmem:[%s177 + $0x1f0] sm:$0xff] %v6807
      %6872 = vst [vmem:[%s177 + $0x1f8] sm:$0xff] %v6808
      %s6873 = smul.u32 64, %s15
      %p6874 = scmp.lt.s32.totalorder %s6873, 127
      %s6875 = scalar_select %p6874, %s6873, 127
      %s6876 = smul.addr %s6875, 8
      %s6877 = scalar_lea.vmem %s4, %s6876
      // Predicated region
      $region37: #{fused_bn_relu_gconv.1} parent=35 // pred_check
        %p6878 = pneg %p117
      $region38: #{fused_bn_relu_gconv.1} parent=35 // pred_check_branch
        %6880 = sbr.rel (%p6878) target = $region40
      $region39: #{fused_bn_relu_gconv.1} parent=35 // pred_region
        %s6881 = smul.u32 64, %s15
      $region40: #{fused_bn_relu_gconv.1} parent=35 // pred_fallthru
        _
    $region36: #{fused_bn_relu_gconv.1} parent=5 // pred_fallthru
      _
    %p6882 = scmp.le.s32.totalorder 2, %s10
    // Predicated region
    $region41: #{fused_bn_relu_gconv.1} parent=5 // pred_check
      %p6883 = pneg %p6882
    $region42: #{fused_bn_relu_gconv.1} parent=5 // pred_check_branch
      %6885 = sbr.rel (%p6883) target = $region44
    $region43: #{fused_bn_relu_gconv.1} parent=5 // pred_region
      %s6886 = ssub.s32 %s10, 2
      // Predicated region
      $region45: #{fused_bn_relu_gconv.1} parent=43 // pred_check
        %p6887 = pneg %p123
      $region46: #{fused_bn_relu_gconv.1} parent=43 // pred_check_branch
        %6889 = sbr.rel (%p6887) target = $region48
      $region47: #{fused_bn_relu_gconv.1} parent=43 // pred_region
        %s6890 = smul.u32 64, %s16
        %p6891 = scmp.lt.s32.totalorder %s6890, 127
        %s6892 = scalar_select %p6891, %s6890, 127
        %s6893 = smul.addr %s6892, 8
        %s6894 = scalar_lea.vmem %s4, %s6893
      $region48: #{fused_bn_relu_gconv.1} parent=43 // pred_fallthru
        _
    $region44: #{fused_bn_relu_gconv.1} parent=5 // pred_fallthru
      _
  $region6: #{fused_bn_relu_gconv.1} parent=0 // loop_footer
    %s14 = sadd.s32 1, %s10
  $region7: #{fused_bn_relu_gconv.1} parent=0 // loop_footer_branch
    %9 = sbr.rel target = $region3
  $region8: #{fused_bn_relu_gconv.1} parent=0 // loop_exit
    _

</llo_original>
